<compile_context>
chip_gen: v5e
topology: v5e:2x2
jax: 0.10.0
libtpu: 0.0.40
codegen_flags: <defaults>
</compile_context>

<pallas_src>
import functools

import jax
import jax.numpy as jnp
from jax.experimental import pallas as pl
from jax.experimental.pallas import tpu as pltpu


# ----------------------------------------------------------------------------
# Fused Mixed_5b kernel: one image per grid step, everything in VMEM.
# ----------------------------------------------------------------------------
def _mixed5b_kernel(x_ref,
                    w1x1_ref, s1x1_ref, c1x1_ref,
                    w1b_ref, s1b_ref, c1b_ref,
                    w2b_ref, s2b_ref, c2b_ref,
                    w2c_ref, s2c_ref, c2c_ref,
                    w3_ref, s3_ref, c3_ref,
                    o_ref, *, H, W):
    HW = H * W
    bf16 = jnp.bfloat16

    def pad_h(x3d, p):
        """Zero-pad the leading (major) spatial axis — cheap, no lane shuffle."""
        _, Wc, C = x3d.shape
        z = jnp.zeros((p, Wc, C), x3d.dtype)
        return jnp.concatenate([z, x3d, z], axis=0)

    def pad_w(x3d, p):
        """Zero-pad the sublane spatial axis."""
        Hc, _, C = x3d.shape
        z = jnp.zeros((Hc, p, C), x3d.dtype)
        return jnp.concatenate([z, x3d, z], axis=1)

    def conv_bn_relu(x3d, w_ref, s_ref, c_ref, K):
        """KxK stride-1 'same' conv + folded BN + ReLU on an (H, W, Cin) bf16 value.

        Weights are pre-reshaped to (K, K*Cin, Cout).  The kx im2col
        lane-concat is built ONCE (hoisted out of the ky loop); each ky tap is
        then a cheap major-axis slice + one wide-contraction MXU matmul
        accumulated in f32."""
        p = (K - 1) // 2
        Cin = x3d.shape[-1]
        xpad = pad_h(pad_w(x3d, p), p)                          # (H+2p, W+2p, Cin)
        xcat = jnp.concatenate(
            [xpad[:, kx:kx + W, :] for kx in range(K)], axis=-1)  # (H+2p, W, K*Cin)
        acc = None
        for ky in range(K):
            slab = xcat[ky:ky + H].reshape(HW, K * Cin)
            part = jnp.dot(slab, w_ref[ky], preferred_element_type=jnp.float32)
            acc = part if acc is None else acc + part
        return jnp.maximum(acc * s_ref[...] + c_ref[...], 0.0)

    x2d = x_ref[0]                                              # (HW, 192) bf16
    x3d = x2d.reshape(H, W, 192)

    # Branches 0 / 1a / 2a: three shared-input 1x1 ConvNormActs fused into one
    # (HW,192) x (192,208) matmul.  Column order b2a(64)|b1a(48)|b0(96) keeps
    # the two conv-feeding slices at lane offsets 0 and 64.
    y = jnp.dot(x2d, w1x1_ref[...], preferred_element_type=jnp.float32)
    y = jnp.maximum(y * s1x1_ref[...] + c1x1_ref[...], 0.0)    # (HW, 208) f32
    x2a = y[:, 0:64].astype(bf16).reshape(H, W, 64)
    x1a = y[:, 64:112].astype(bf16).reshape(H, W, 48)
    x0 = y[:, 112:208]                                         # branch0 output

    # Branch 1: 1x1(->48) [above] -> 5x5(->64), pad 2.
    x1 = conv_bn_relu(x1a, w1b_ref, s1b_ref, c1b_ref, 5)

    # Branch 2: 1x1(->64) [above] -> 3x3(->96) -> 3x3(->96), pad 1 each.
    y2b = conv_bn_relu(x2a, w2b_ref, s2b_ref, c2b_ref, 3)
    x2 = conv_bn_relu(y2b.astype(bf16).reshape(H, W, 96),
                      w2c_ref, s2c_ref, c2c_ref, 3)

    # Branch 3: separable 3x3 avg-pool (count_include_pad=False) -> 1x1(->64).
    xf = x3d.astype(jnp.float32)
    xw = pad_w(xf, 1)                                          # (H, W+2, 192)
    hsum = xw[:, 0:W, :] + xw[:, 1:W + 1, :] + xw[:, 2:W + 2, :]
    hh = pad_h(hsum, 1)                                        # (H+2, W, 192)
    vsum = hh[0:H] + hh[1:H + 1] + hh[2:H + 2]                 # (H, W, 192)
    # Per-pixel window counts from the same separable sum on a 1-lane ones map
    # (replaces the previously DMA'd (HW,1) inv_counts input).
    ones = jnp.ones((H, W, 1), jnp.float32)
    ow = pad_w(ones, 1)
    hcnt = ow[:, 0:W, :] + ow[:, 1:W + 1, :] + ow[:, 2:W + 2, :]
    oc = pad_h(hcnt, 1)
    cnt = oc[0:H] + oc[1:H + 1] + oc[2:H + 2]                  # (H, W, 1)
    pooled = (vsum / cnt).reshape(HW, 192).astype(bf16)
    x3 = jnp.dot(pooled, w3_ref[...], preferred_element_type=jnp.float32)
    x3 = jnp.maximum(x3 * s3_ref[...] + c3_ref[...], 0.0)

    # Single lane-dense store of the concatenated (HW, 320) result.
    o_ref[0] = jnp.concatenate([x0, x1, x2, x3], axis=1).astype(o_ref.dtype)


# ----------------------------------------------------------------------------
# Wrapper: weight packing + pallas_call (one launch for the whole block).
# ----------------------------------------------------------------------------
@jax.jit
def mixed_5b_forward(x_nchw, params):
    N, Cin, H, W = x_nchw.shape
    HW = H * W
    bf16 = jnp.bfloat16

    # NCHW f32 -> (N, H*W, C) bf16 (transpose/reshape/cast fuse in XLA).
    x = jnp.transpose(x_nchw, (0, 2, 3, 1)).reshape(N, HW, Cin).astype(bf16)

    # Fuse the three shared-input 1x1 convs along Cout: b2a(64)|b1a(48)|b0(96).
    b0, b1a, b2a = params["b0"], params["b1a"], params["b2a"]
    w1x1 = jnp.concatenate(
        [b2a["w"][0, 0], b1a["w"][0, 0], b0["w"][0, 0]], axis=-1).astype(bf16)
    s1x1 = jnp.concatenate(
        [b2a["scale"], b1a["scale"], b0["scale"]]).reshape(1, -1)
    c1x1 = jnp.concatenate(
        [b2a["bias"], b1a["bias"], b0["bias"]]).reshape(1, -1)

    def fold(p):  # (K,K,Cin,Cout) -> (K, K*Cin, Cout) bf16 + (1,Cout) scale/bias
        k, cin, cout = p["w"].shape[0], p["w"].shape[2], p["w"].shape[3]
        return (p["w"].reshape(k, k * cin, cout).astype(bf16),
                p["scale"].reshape(1, cout), p["bias"].reshape(1, cout))

    w1b, s1b, c1b = fold(params["b1b"])                    # (5, 240, 64)
    w2b, s2b, c2b = fold(params["b2b"])                    # (3, 192, 96)
    w2c, s2c, c2c = fold(params["b2c"])                    # (3, 288, 96)
    w3 = params["b3"]["w"][0, 0].astype(bf16)              # (192, 64)
    s3 = params["b3"]["scale"].reshape(1, -1)
    c3 = params["b3"]["bias"].reshape(1, -1)

    c2d = lambda n: (0, 0)
    c3d = lambda n: (0, 0, 0)
    out = pl.pallas_call(
        functools.partial(_mixed5b_kernel, H=H, W=W),
        out_shape=jax.ShapeDtypeStruct((N, HW, 320), jnp.float32),
        grid=(N,),
        in_specs=[
            pl.BlockSpec((1, HW, Cin), lambda n: (n, 0, 0)),  # image
            pl.BlockSpec((Cin, 208), c2d),                    # fused 1x1 W
            pl.BlockSpec((1, 208), c2d), pl.BlockSpec((1, 208), c2d),
            pl.BlockSpec(w1b.shape, c3d),                     # 5x5 W (folded)
            pl.BlockSpec((1, 64), c2d), pl.BlockSpec((1, 64), c2d),
            pl.BlockSpec(w2b.shape, c3d),                     # 3x3 W (folded)
            pl.BlockSpec((1, 96), c2d), pl.BlockSpec((1, 96), c2d),
            pl.BlockSpec(w2c.shape, c3d),                     # 3x3 W (folded)
            pl.BlockSpec((1, 96), c2d), pl.BlockSpec((1, 96), c2d),
            pl.BlockSpec((Cin, 64), c2d),                     # pool-branch 1x1
            pl.BlockSpec((1, 64), c2d), pl.BlockSpec((1, 64), c2d),
        ],
        out_specs=pl.BlockSpec((1, HW, 320), lambda n: (n, 0, 0)),
        compiler_params=pltpu.CompilerParams(
            dimension_semantics=("parallel",),
            vmem_limit_bytes=48 * 1024 * 1024),
    )(x, w1x1, s1x1, c1x1,
      w1b, s1b, c1b, w2b, s2b, c2b, w2c, s2c, c2c, w3, s3, c3)

    out = out.reshape(N, H, W, 320)
    return jnp.transpose(out, (0, 3, 1, 2))                 # -> NCHW (PyTorch)


# ----------------------------------------------------------------------------
# Parameter construction (deterministic, synthetic) — ConvNormAct folded BN.
# ----------------------------------------------------------------------------
def make_convnormact_params(key, cin, cout, k, eps=1e-3):
    kw, kg, kb, km, kv = jax.random.split(key, 5)
    w = jax.random.normal(kw, (k, k, cin, cout), jnp.float32)
    w = w * (1.0 / jnp.sqrt(float(k * k * cin)))             # HWIO
    gamma = jax.random.uniform(kg, (cout,), jnp.float32, 0.5, 1.5)
    beta = 0.1 * jax.random.normal(kb, (cout,), jnp.float32)
    mean = 0.1 * jax.random.normal(km, (cout,), jnp.float32)
    var = jax.random.uniform(kv, (cout,), jnp.float32, 0.5, 1.5)
    scale = gamma / jnp.sqrt(var + eps)
    bias = beta - mean * scale
    return {"w": w, "scale": scale, "bias": bias}


def make_mixed5b_params(key):
    keys = jax.random.split(key, 7)
    return {
        "b0": make_convnormact_params(keys[0], 192, 96, 1),
        "b1a": make_convnormact_params(keys[1], 192, 48, 1),
        "b1b": make_convnormact_params(keys[2], 48, 64, 5),
        "b2a": make_convnormact_params(keys[3], 192, 64, 1),
        "b2b": make_convnormact_params(keys[4], 64, 96, 3),
        "b2c": make_convnormact_params(keys[5], 96, 96, 3),
        "b3": make_convnormact_params(keys[6], 192, 64, 1),
    }


# ----------------------------------------------------------------------------
# Pure-JAX references (f32 and bf16-operand variants) for correctness checks.
# ----------------------------------------------------------------------------
def _ref_cba(x, p, pad, bf16_ops):
    w = p["w"]
    if bf16_ops:
        x = x.astype(jnp.bfloat16)
        w = w.astype(jnp.bfloat16)
        prec = jax.lax.Precision.DEFAULT
    else:
        prec = jax.lax.Precision.HIGHEST
    y = jax.lax.conv_general_dilated(
        x, w, (1, 1), ((pad, pad), (pad, pad)),
        dimension_numbers=("NHWC", "HWIO", "NHWC"),
        preferred_element_type=jnp.float32, precision=prec)
    return jnp.maximum(y * p["scale"] + p["bias"], 0.0)


def _ref_avgpool(x):
    s = jax.lax.reduce_window(x, 0.0, jax.lax.add, (1, 3, 3, 1), (1, 1, 1, 1),
                              [(0, 0), (1, 1), (1, 1), (0, 0)])
    c = jax.lax.reduce_window(jnp.ones_like(x[..., :1]), 0.0, jax.lax.add,
                              (1, 3, 3, 1), (1, 1, 1, 1),
                              [(0, 0), (1, 1), (1, 1), (0, 0)])
    return s / c


def mixed_5b_reference(x_nchw, params, bf16_ops):
    x = jnp.transpose(x_nchw, (0, 2, 3, 1))
    if bf16_ops:
        x = x.astype(jnp.bfloat16).astype(jnp.float32)
    cba = lambda xin, p, pad: _ref_cba(xin, p, pad, bf16_ops)
    x0 = cba(x, params["b0"], 0)
    x1 = cba(cba(x, params["b1a"], 0), params["b1b"], 2)
    x2 = cba(cba(cba(x, params["b2a"], 0), params["b2b"], 1),
             params["b2c"], 1)
    x3 = cba(_ref_avgpool(x), params["b3"], 0)
    out = jnp.concatenate([x0, x1, x2, x3], axis=-1)
    return jnp.transpose(out, (0, 3, 1, 2))


# ----------------------------------------------------------------------------
if __name__ == "__main__":
    key = jax.random.PRNGKey(0)
    kx, kp = jax.random.split(key)

    # Mixed_5b requires 192 input channels; keep batch/spatial small.
    N, C, H, W = 2, 192, 16, 16
    x = jax.random.normal(kx, (N, C, H, W), jnp.float32)
    params = make_mixed5b_params(kp)

    out = jax.block_until_ready(mixed_5b_forward(x, params))
    assert out.shape == (N, 96 + 64 + 96 + 64, H, W), out.shape

    # Check against a reference using the SAME numerics as the kernel
    # (bf16 matmul operands, f32 accumulation / pooling / BN / ReLU).
    ref_b = jax.block_until_ready(mixed_5b_reference(x, params, bf16_ops=True))
    err_b = float(jnp.max(jnp.abs(out - ref_b)))
    assert err_b < 1e-2, err_b

    # Loose sanity bound against the full-f32 reference; the only difference
    # is bf16 operand quantization inside the matmuls.
    ref_f = jax.block_until_ready(mixed_5b_reference(x, params, bf16_ops=False))
    err_f = float(jnp.max(jnp.abs(out - ref_f)))
    assert err_f < 0.25, err_f

    print("KERNEL_OK")
</pallas_src>

<mosaic_0001>
module attributes {stable_mosaic.version = 11 : i64} {
  func.func @_mixed5b_kernel(%arg0: i32, %arg1: memref<1x256x192xbf16, #tpu.memory_space<vmem>>, %arg2: memref<192x208xbf16, #tpu.memory_space<vmem>>, %arg3: memref<1x208xf32, #tpu.memory_space<vmem>>, %arg4: memref<1x208xf32, #tpu.memory_space<vmem>>, %arg5: memref<5x240x64xbf16, #tpu.memory_space<vmem>>, %arg6: memref<1x64xf32, #tpu.memory_space<vmem>>, %arg7: memref<1x64xf32, #tpu.memory_space<vmem>>, %arg8: memref<3x192x96xbf16, #tpu.memory_space<vmem>>, %arg9: memref<1x96xf32, #tpu.memory_space<vmem>>, %arg10: memref<1x96xf32, #tpu.memory_space<vmem>>, %arg11: memref<3x288x96xbf16, #tpu.memory_space<vmem>>, %arg12: memref<1x96xf32, #tpu.memory_space<vmem>>, %arg13: memref<1x96xf32, #tpu.memory_space<vmem>>, %arg14: memref<192x64xbf16, #tpu.memory_space<vmem>>, %arg15: memref<1x64xf32, #tpu.memory_space<vmem>>, %arg16: memref<1x64xf32, #tpu.memory_space<vmem>>, %arg17: memref<1x256x320xf32, #tpu.memory_space<vmem>>) attributes {dimension_semantics = [#tpu.dimension_semantics<parallel>], iteration_bounds = array<i64: 2>, scalar_prefetch = 0 : i64, scratch_operands = 0 : i64, tpu.core_type = #tpu.core_type<tc>, window_params = [{transform_indices = @transform_0, window_bounds = array<i64: 1, 256, 192>}, {pipeline_mode = #tpu.pipeline_mode<synchronous>, transform_indices = @transform_1, window_bounds = array<i64: 192, 208>}, {pipeline_mode = #tpu.pipeline_mode<synchronous>, transform_indices = @transform_2, window_bounds = array<i64: 1, 208>}, {pipeline_mode = #tpu.pipeline_mode<synchronous>, transform_indices = @transform_3, window_bounds = array<i64: 1, 208>}, {pipeline_mode = #tpu.pipeline_mode<synchronous>, transform_indices = @transform_4, window_bounds = array<i64: 5, 240, 64>}, {pipeline_mode = #tpu.pipeline_mode<synchronous>, transform_indices = @transform_5, window_bounds = array<i64: 1, 64>}, {pipeline_mode = #tpu.pipeline_mode<synchronous>, transform_indices = @transform_6, window_bounds = array<i64: 1, 64>}, {pipeline_mode = #tpu.pipeline_mode<synchronous>, transform_indices = @transform_7, window_bounds = array<i64: 3, 192, 96>}, {pipeline_mode = #tpu.pipeline_mode<synchronous>, transform_indices = @transform_8, window_bounds = array<i64: 1, 96>}, {pipeline_mode = #tpu.pipeline_mode<synchronous>, transform_indices = @transform_9, window_bounds = array<i64: 1, 96>}, {pipeline_mode = #tpu.pipeline_mode<synchronous>, transform_indices = @transform_10, window_bounds = array<i64: 3, 288, 96>}, {pipeline_mode = #tpu.pipeline_mode<synchronous>, transform_indices = @transform_11, window_bounds = array<i64: 1, 96>}, {pipeline_mode = #tpu.pipeline_mode<synchronous>, transform_indices = @transform_12, window_bounds = array<i64: 1, 96>}, {pipeline_mode = #tpu.pipeline_mode<synchronous>, transform_indices = @transform_13, window_bounds = array<i64: 192, 64>}, {pipeline_mode = #tpu.pipeline_mode<synchronous>, transform_indices = @transform_14, window_bounds = array<i64: 1, 64>}, {pipeline_mode = #tpu.pipeline_mode<synchronous>, transform_indices = @transform_15, window_bounds = array<i64: 1, 64>}, {transform_indices = @transform_16, window_bounds = array<i64: 1, 256, 320>}]} {
    %c0 = arith.constant 0 : index
    %c0_0 = arith.constant 0 : index
    %c0_1 = arith.constant 0 : index
    %0 = vector.load %arg1[%c0, %c0_0, %c0_1] : memref<1x256x192xbf16, #tpu.memory_space<vmem>>, vector<1x256x192xbf16>
    %1 = vector.shape_cast %0 : vector<1x256x192xbf16> to vector<256x192xbf16>
    %2 = vector.shape_cast %1 : vector<256x192xbf16> to vector<16x16x192xbf16>
    %c0_2 = arith.constant 0 : index
    %c0_3 = arith.constant 0 : index
    %3 = vector.load %arg2[%c0_2, %c0_3] : memref<192x208xbf16, #tpu.memory_space<vmem>>, vector<192x208xbf16>
    %cst = arith.constant dense<0.000000e+00> : vector<256x208xf32>
    %4 = tpu.matmul %1, %3, %cst {dimension_numbers = #tpu.dot_dimension_numbers<[1], [0], [0], [1], [0, 0, 1, 1], [], []>} : vector<256x192xbf16>, vector<192x208xbf16>, vector<256x208xf32> -> vector<256x208xf32>
    %c0_4 = arith.constant 0 : index
    %c0_5 = arith.constant 0 : index
    %5 = vector.load %arg3[%c0_4, %c0_5] : memref<1x208xf32, #tpu.memory_space<vmem>>, vector<1x208xf32>
    %6 = vector.broadcast %5 : vector<1x208xf32> to vector<256x208xf32>
    %7 = arith.mulf %4, %6 : vector<256x208xf32>
    %c0_6 = arith.constant 0 : index
    %c0_7 = arith.constant 0 : index
    %8 = vector.load %arg4[%c0_6, %c0_7] : memref<1x208xf32, #tpu.memory_space<vmem>>, vector<1x208xf32>
    %9 = vector.broadcast %8 : vector<1x208xf32> to vector<256x208xf32>
    %10 = arith.addf %7, %9 : vector<256x208xf32>
    %cst_8 = arith.constant 0.000000e+00 : f32
    %11 = vector.broadcast %cst_8 : f32 to vector<256x208xf32>
    %12 = arith.maximumf %10, %11 : vector<256x208xf32>
    %13 = vector.extract_strided_slice %12 {offsets = [0, 0], sizes = [256, 64], strides = [1, 1]} : vector<256x208xf32> to vector<256x64xf32>
    %14 = arith.truncf %13 : vector<256x64xf32> to vector<256x64xbf16>
    %15 = vector.shape_cast %14 : vector<256x64xbf16> to vector<16x16x64xbf16>
    %16 = vector.extract_strided_slice %12 {offsets = [0, 64], sizes = [256, 48], strides = [1, 1]} : vector<256x208xf32> to vector<256x48xf32>
    %17 = arith.truncf %16 : vector<256x48xf32> to vector<256x48xbf16>
    %18 = vector.shape_cast %17 : vector<256x48xbf16> to vector<16x16x48xbf16>
    %19 = vector.extract_strided_slice %12 {offsets = [0, 112], sizes = [256, 96], strides = [1, 1]} : vector<256x208xf32> to vector<256x96xf32>
    %cst_9 = arith.constant 0.000000e+00 : bf16
    %20 = vector.broadcast %cst_9 : bf16 to vector<16x2x48xbf16>
    %21 = tpu.concatenate %20, %18, %20 in 1 : vector<16x2x48xbf16>, vector<16x16x48xbf16>, vector<16x2x48xbf16> -> vector<16x20x48xbf16>
    %cst_10 = arith.constant 0.000000e+00 : bf16
    %22 = vector.broadcast %cst_10 : bf16 to vector<2x20x48xbf16>
    %23 = tpu.concatenate %22, %21, %22 in 0 : vector<2x20x48xbf16>, vector<16x20x48xbf16>, vector<2x20x48xbf16> -> vector<20x20x48xbf16>
    %24 = vector.extract_strided_slice %23 {offsets = [0, 0, 0], sizes = [20, 16, 48], strides = [1, 1, 1]} : vector<20x20x48xbf16> to vector<20x16x48xbf16>
    %25 = vector.extract_strided_slice %23 {offsets = [0, 1, 0], sizes = [20, 16, 48], strides = [1, 1, 1]} : vector<20x20x48xbf16> to vector<20x16x48xbf16>
    %26 = vector.extract_strided_slice %23 {offsets = [0, 2, 0], sizes = [20, 16, 48], strides = [1, 1, 1]} : vector<20x20x48xbf16> to vector<20x16x48xbf16>
    %27 = vector.extract_strided_slice %23 {offsets = [0, 3, 0], sizes = [20, 16, 48], strides = [1, 1, 1]} : vector<20x20x48xbf16> to vector<20x16x48xbf16>
    %28 = vector.extract_strided_slice %23 {offsets = [0, 4, 0], sizes = [20, 16, 48], strides = [1, 1, 1]} : vector<20x20x48xbf16> to vector<20x16x48xbf16>
    %29 = tpu.concatenate %24, %25, %26, %27, %28 in 2 : vector<20x16x48xbf16>, vector<20x16x48xbf16>, vector<20x16x48xbf16>, vector<20x16x48xbf16>, vector<20x16x48xbf16> -> vector<20x16x240xbf16>
    %30 = vector.extract_strided_slice %29 {offsets = [0, 0, 0], sizes = [16, 16, 240], strides = [1, 1, 1]} : vector<20x16x240xbf16> to vector<16x16x240xbf16>
    %31 = vector.shape_cast %30 : vector<16x16x240xbf16> to vector<256x240xbf16>
    %c0_11 = arith.constant 0 : index
    %c0_12 = arith.constant 0 : index
    %c0_13 = arith.constant 0 : index
    %32 = vector.load %arg5[%c0_11, %c0_12, %c0_13] : memref<5x240x64xbf16, #tpu.memory_space<vmem>>, vector<1x240x64xbf16>
    %33 = vector.shape_cast %32 : vector<1x240x64xbf16> to vector<240x64xbf16>
    %cst_14 = arith.constant dense<0.000000e+00> : vector<256x64xf32>
    %34 = tpu.matmul %31, %33, %cst_14 {dimension_numbers = #tpu.dot_dimension_numbers<[1], [0], [0], [1], [0, 0, 1, 1], [], []>} : vector<256x240xbf16>, vector<240x64xbf16>, vector<256x64xf32> -> vector<256x64xf32>
    %35 = vector.extract_strided_slice %29 {offsets = [1, 0, 0], sizes = [16, 16, 240], strides = [1, 1, 1]} : vector<20x16x240xbf16> to vector<16x16x240xbf16>
    %36 = vector.shape_cast %35 : vector<16x16x240xbf16> to vector<256x240xbf16>
    %c1 = arith.constant 1 : index
    %c0_15 = arith.constant 0 : index
    %c0_16 = arith.constant 0 : index
    %37 = vector.load %arg5[%c1, %c0_15, %c0_16] : memref<5x240x64xbf16, #tpu.memory_space<vmem>>, vector<1x240x64xbf16>
    %38 = vector.shape_cast %37 : vector<1x240x64xbf16> to vector<240x64xbf16>
    %cst_17 = arith.constant dense<0.000000e+00> : vector<256x64xf32>
    %39 = tpu.matmul %36, %38, %cst_17 {dimension_numbers = #tpu.dot_dimension_numbers<[1], [0], [0], [1], [0, 0, 1, 1], [], []>} : vector<256x240xbf16>, vector<240x64xbf16>, vector<256x64xf32> -> vector<256x64xf32>
    %40 = arith.addf %34, %39 : vector<256x64xf32>
    %41 = vector.extract_strided_slice %29 {offsets = [2, 0, 0], sizes = [16, 16, 240], strides = [1, 1, 1]} : vector<20x16x240xbf16> to vector<16x16x240xbf16>
    %42 = vector.shape_cast %41 : vector<16x16x240xbf16> to vector<256x240xbf16>
    %c2 = arith.constant 2 : index
    %c0_18 = arith.constant 0 : index
    %c0_19 = arith.constant 0 : index
    %43 = vector.load %arg5[%c2, %c0_18, %c0_19] : memref<5x240x64xbf16, #tpu.memory_space<vmem>>, vector<1x240x64xbf16>
    %44 = vector.shape_cast %43 : vector<1x240x64xbf16> to vector<240x64xbf16>
    %cst_20 = arith.constant dense<0.000000e+00> : vector<256x64xf32>
    %45 = tpu.matmul %42, %44, %cst_20 {dimension_numbers = #tpu.dot_dimension_numbers<[1], [0], [0], [1], [0, 0, 1, 1], [], []>} : vector<256x240xbf16>, vector<240x64xbf16>, vector<256x64xf32> -> vector<256x64xf32>
    %46 = arith.addf %40, %45 : vector<256x64xf32>
    %47 = vector.extract_strided_slice %29 {offsets = [3, 0, 0], sizes = [16, 16, 240], strides = [1, 1, 1]} : vector<20x16x240xbf16> to vector<16x16x240xbf16>
    %48 = vector.shape_cast %47 : vector<16x16x240xbf16> to vector<256x240xbf16>
    %c3 = arith.constant 3 : index
    %c0_21 = arith.constant 0 : index
    %c0_22 = arith.constant 0 : index
    %49 = vector.load %arg5[%c3, %c0_21, %c0_22] : memref<5x240x64xbf16, #tpu.memory_space<vmem>>, vector<1x240x64xbf16>
    %50 = vector.shape_cast %49 : vector<1x240x64xbf16> to vector<240x64xbf16>
    %cst_23 = arith.constant dense<0.000000e+00> : vector<256x64xf32>
    %51 = tpu.matmul %48, %50, %cst_23 {dimension_numbers = #tpu.dot_dimension_numbers<[1], [0], [0], [1], [0, 0, 1, 1], [], []>} : vector<256x240xbf16>, vector<240x64xbf16>, vector<256x64xf32> -> vector<256x64xf32>
    %52 = arith.addf %46, %51 : vector<256x64xf32>
    %53 = vector.extract_strided_slice %29 {offsets = [4, 0, 0], sizes = [16, 16, 240], strides = [1, 1, 1]} : vector<20x16x240xbf16> to vector<16x16x240xbf16>
    %54 = vector.shape_cast %53 : vector<16x16x240xbf16> to vector<256x240xbf16>
    %c4 = arith.constant 4 : index
    %c0_24 = arith.constant 0 : index
    %c0_25 = arith.constant 0 : index
    %55 = vector.load %arg5[%c4, %c0_24, %c0_25] : memref<5x240x64xbf16, #tpu.memory_space<vmem>>, vector<1x240x64xbf16>
    %56 = vector.shape_cast %55 : vector<1x240x64xbf16> to vector<240x64xbf16>
    %cst_26 = arith.constant dense<0.000000e+00> : vector<256x64xf32>
    %57 = tpu.matmul %54, %56, %cst_26 {dimension_numbers = #tpu.dot_dimension_numbers<[1], [0], [0], [1], [0, 0, 1, 1], [], []>} : vector<256x240xbf16>, vector<240x64xbf16>, vector<256x64xf32> -> vector<256x64xf32>
    %58 = arith.addf %52, %57 : vector<256x64xf32>
    %c0_27 = arith.constant 0 : index
    %c0_28 = arith.constant 0 : index
    %59 = vector.load %arg6[%c0_27, %c0_28] : memref<1x64xf32, #tpu.memory_space<vmem>>, vector<1x64xf32>
    %60 = vector.broadcast %59 : vector<1x64xf32> to vector<256x64xf32>
    %61 = arith.mulf %58, %60 : vector<256x64xf32>
    %c0_29 = arith.constant 0 : index
    %c0_30 = arith.constant 0 : index
    %62 = vector.load %arg7[%c0_29, %c0_30] : memref<1x64xf32, #tpu.memory_space<vmem>>, vector<1x64xf32>
    %63 = vector.broadcast %62 : vector<1x64xf32> to vector<256x64xf32>
    %64 = arith.addf %61, %63 : vector<256x64xf32>
    %cst_31 = arith.constant 0.000000e+00 : f32
    %65 = vector.broadcast %cst_31 : f32 to vector<256x64xf32>
    %66 = arith.maximumf %64, %65 : vector<256x64xf32>
    %cst_32 = arith.constant 0.000000e+00 : bf16
    %67 = vector.broadcast %cst_32 : bf16 to vector<16x1x64xbf16>
    %68 = tpu.concatenate %67, %15, %67 in 1 : vector<16x1x64xbf16>, vector<16x16x64xbf16>, vector<16x1x64xbf16> -> vector<16x18x64xbf16>
    %cst_33 = arith.constant 0.000000e+00 : bf16
    %69 = vector.broadcast %cst_33 : bf16 to vector<1x18x64xbf16>
    %70 = tpu.concatenate %69, %68, %69 in 0 : vector<1x18x64xbf16>, vector<16x18x64xbf16>, vector<1x18x64xbf16> -> vector<18x18x64xbf16>
    %71 = vector.extract_strided_slice %70 {offsets = [0, 0, 0], sizes = [18, 16, 64], strides = [1, 1, 1]} : vector<18x18x64xbf16> to vector<18x16x64xbf16>
    %72 = vector.extract_strided_slice %70 {offsets = [0, 1, 0], sizes = [18, 16, 64], strides = [1, 1, 1]} : vector<18x18x64xbf16> to vector<18x16x64xbf16>
    %73 = vector.extract_strided_slice %70 {offsets = [0, 2, 0], sizes = [18, 16, 64], strides = [1, 1, 1]} : vector<18x18x64xbf16> to vector<18x16x64xbf16>
    %74 = tpu.concatenate %71, %72, %73 in 2 : vector<18x16x64xbf16>, vector<18x16x64xbf16>, vector<18x16x64xbf16> -> vector<18x16x192xbf16>
    %75 = vector.extract_strided_slice %74 {offsets = [0, 0, 0], sizes = [16, 16, 192], strides = [1, 1, 1]} : vector<18x16x192xbf16> to vector<16x16x192xbf16>
    %76 = vector.shape_cast %75 : vector<16x16x192xbf16> to vector<256x192xbf16>
    %c0_34 = arith.constant 0 : index
    %c0_35 = arith.constant 0 : index
    %c0_36 = arith.constant 0 : index
    %77 = vector.load %arg8[%c0_34, %c0_35, %c0_36] : memref<3x192x96xbf16, #tpu.memory_space<vmem>>, vector<1x192x96xbf16>
    %78 = vector.shape_cast %77 : vector<1x192x96xbf16> to vector<192x96xbf16>
    %cst_37 = arith.constant dense<0.000000e+00> : vector<256x96xf32>
    %79 = tpu.matmul %76, %78, %cst_37 {dimension_numbers = #tpu.dot_dimension_numbers<[1], [0], [0], [1], [0, 0, 1, 1], [], []>} : vector<256x192xbf16>, vector<192x96xbf16>, vector<256x96xf32> -> vector<256x96xf32>
    %80 = vector.extract_strided_slice %74 {offsets = [1, 0, 0], sizes = [16, 16, 192], strides = [1, 1, 1]} : vector<18x16x192xbf16> to vector<16x16x192xbf16>
    %81 = vector.shape_cast %80 : vector<16x16x192xbf16> to vector<256x192xbf16>
    %c1_38 = arith.constant 1 : index
    %c0_39 = arith.constant 0 : index
    %c0_40 = arith.constant 0 : index
    %82 = vector.load %arg8[%c1_38, %c0_39, %c0_40] : memref<3x192x96xbf16, #tpu.memory_space<vmem>>, vector<1x192x96xbf16>
    %83 = vector.shape_cast %82 : vector<1x192x96xbf16> to vector<192x96xbf16>
    %cst_41 = arith.constant dense<0.000000e+00> : vector<256x96xf32>
    %84 = tpu.matmul %81, %83, %cst_41 {dimension_numbers = #tpu.dot_dimension_numbers<[1], [0], [0], [1], [0, 0, 1, 1], [], []>} : vector<256x192xbf16>, vector<192x96xbf16>, vector<256x96xf32> -> vector<256x96xf32>
    %85 = arith.addf %79, %84 : vector<256x96xf32>
    %86 = vector.extract_strided_slice %74 {offsets = [2, 0, 0], sizes = [16, 16, 192], strides = [1, 1, 1]} : vector<18x16x192xbf16> to vector<16x16x192xbf16>
    %87 = vector.shape_cast %86 : vector<16x16x192xbf16> to vector<256x192xbf16>
    %c2_42 = arith.constant 2 : index
    %c0_43 = arith.constant 0 : index
    %c0_44 = arith.constant 0 : index
    %88 = vector.load %arg8[%c2_42, %c0_43, %c0_44] : memref<3x192x96xbf16, #tpu.memory_space<vmem>>, vector<1x192x96xbf16>
    %89 = vector.shape_cast %88 : vector<1x192x96xbf16> to vector<192x96xbf16>
    %cst_45 = arith.constant dense<0.000000e+00> : vector<256x96xf32>
    %90 = tpu.matmul %87, %89, %cst_45 {dimension_numbers = #tpu.dot_dimension_numbers<[1], [0], [0], [1], [0, 0, 1, 1], [], []>} : vector<256x192xbf16>, vector<192x96xbf16>, vector<256x96xf32> -> vector<256x96xf32>
    %91 = arith.addf %85, %90 : vector<256x96xf32>
    %c0_46 = arith.constant 0 : index
    %c0_47 = arith.constant 0 : index
    %92 = vector.load %arg9[%c0_46, %c0_47] : memref<1x96xf32, #tpu.memory_space<vmem>>, vector<1x96xf32>
    %93 = vector.broadcast %92 : vector<1x96xf32> to vector<256x96xf32>
    %94 = arith.mulf %91, %93 : vector<256x96xf32>
    %c0_48 = arith.constant 0 : index
    %c0_49 = arith.constant 0 : index
    %95 = vector.load %arg10[%c0_48, %c0_49] : memref<1x96xf32, #tpu.memory_space<vmem>>, vector<1x96xf32>
    %96 = vector.broadcast %95 : vector<1x96xf32> to vector<256x96xf32>
    %97 = arith.addf %94, %96 : vector<256x96xf32>
    %cst_50 = arith.constant 0.000000e+00 : f32
    %98 = vector.broadcast %cst_50 : f32 to vector<256x96xf32>
    %99 = arith.maximumf %97, %98 : vector<256x96xf32>
    %100 = arith.truncf %99 : vector<256x96xf32> to vector<256x96xbf16>
    %101 = vector.shape_cast %100 : vector<256x96xbf16> to vector<16x16x96xbf16>
    %cst_51 = arith.constant 0.000000e+00 : bf16
    %102 = vector.broadcast %cst_51 : bf16 to vector<16x1x96xbf16>
    %103 = tpu.concatenate %102, %101, %102 in 1 : vector<16x1x96xbf16>, vector<16x16x96xbf16>, vector<16x1x96xbf16> -> vector<16x18x96xbf16>
    %cst_52 = arith.constant 0.000000e+00 : bf16
    %104 = vector.broadcast %cst_52 : bf16 to vector<1x18x96xbf16>
    %105 = tpu.concatenate %104, %103, %104 in 0 : vector<1x18x96xbf16>, vector<16x18x96xbf16>, vector<1x18x96xbf16> -> vector<18x18x96xbf16>
    %106 = vector.extract_strided_slice %105 {offsets = [0, 0, 0], sizes = [18, 16, 96], strides = [1, 1, 1]} : vector<18x18x96xbf16> to vector<18x16x96xbf16>
    %107 = vector.extract_strided_slice %105 {offsets = [0, 1, 0], sizes = [18, 16, 96], strides = [1, 1, 1]} : vector<18x18x96xbf16> to vector<18x16x96xbf16>
    %108 = vector.extract_strided_slice %105 {offsets = [0, 2, 0], sizes = [18, 16, 96], strides = [1, 1, 1]} : vector<18x18x96xbf16> to vector<18x16x96xbf16>
    %109 = tpu.concatenate %106, %107, %108 in 2 : vector<18x16x96xbf16>, vector<18x16x96xbf16>, vector<18x16x96xbf16> -> vector<18x16x288xbf16>
    %110 = vector.extract_strided_slice %109 {offsets = [0, 0, 0], sizes = [16, 16, 288], strides = [1, 1, 1]} : vector<18x16x288xbf16> to vector<16x16x288xbf16>
    %111 = vector.shape_cast %110 : vector<16x16x288xbf16> to vector<256x288xbf16>
    %c0_53 = arith.constant 0 : index
    %c0_54 = arith.constant 0 : index
    %c0_55 = arith.constant 0 : index
    %112 = vector.load %arg11[%c0_53, %c0_54, %c0_55] : memref<3x288x96xbf16, #tpu.memory_space<vmem>>, vector<1x288x96xbf16>
    %113 = vector.shape_cast %112 : vector<1x288x96xbf16> to vector<288x96xbf16>
    %cst_56 = arith.constant dense<0.000000e+00> : vector<256x96xf32>
    %114 = tpu.matmul %111, %113, %cst_56 {dimension_numbers = #tpu.dot_dimension_numbers<[1], [0], [0], [1], [0, 0, 1, 1], [], []>} : vector<256x288xbf16>, vector<288x96xbf16>, vector<256x96xf32> -> vector<256x96xf32>
    %115 = vector.extract_strided_slice %109 {offsets = [1, 0, 0], sizes = [16, 16, 288], strides = [1, 1, 1]} : vector<18x16x288xbf16> to vector<16x16x288xbf16>
    %116 = vector.shape_cast %115 : vector<16x16x288xbf16> to vector<256x288xbf16>
    %c1_57 = arith.constant 1 : index
    %c0_58 = arith.constant 0 : index
    %c0_59 = arith.constant 0 : index
    %117 = vector.load %arg11[%c1_57, %c0_58, %c0_59] : memref<3x288x96xbf16, #tpu.memory_space<vmem>>, vector<1x288x96xbf16>
    %118 = vector.shape_cast %117 : vector<1x288x96xbf16> to vector<288x96xbf16>
    %cst_60 = arith.constant dense<0.000000e+00> : vector<256x96xf32>
    %119 = tpu.matmul %116, %118, %cst_60 {dimension_numbers = #tpu.dot_dimension_numbers<[1], [0], [0], [1], [0, 0, 1, 1], [], []>} : vector<256x288xbf16>, vector<288x96xbf16>, vector<256x96xf32> -> vector<256x96xf32>
    %120 = arith.addf %114, %119 : vector<256x96xf32>
    %121 = vector.extract_strided_slice %109 {offsets = [2, 0, 0], sizes = [16, 16, 288], strides = [1, 1, 1]} : vector<18x16x288xbf16> to vector<16x16x288xbf16>
    %122 = vector.shape_cast %121 : vector<16x16x288xbf16> to vector<256x288xbf16>
    %c2_61 = arith.constant 2 : index
    %c0_62 = arith.constant 0 : index
    %c0_63 = arith.constant 0 : index
    %123 = vector.load %arg11[%c2_61, %c0_62, %c0_63] : memref<3x288x96xbf16, #tpu.memory_space<vmem>>, vector<1x288x96xbf16>
    %124 = vector.shape_cast %123 : vector<1x288x96xbf16> to vector<288x96xbf16>
    %cst_64 = arith.constant dense<0.000000e+00> : vector<256x96xf32>
    %125 = tpu.matmul %122, %124, %cst_64 {dimension_numbers = #tpu.dot_dimension_numbers<[1], [0], [0], [1], [0, 0, 1, 1], [], []>} : vector<256x288xbf16>, vector<288x96xbf16>, vector<256x96xf32> -> vector<256x96xf32>
    %126 = arith.addf %120, %125 : vector<256x96xf32>
    %c0_65 = arith.constant 0 : index
    %c0_66 = arith.constant 0 : index
    %127 = vector.load %arg12[%c0_65, %c0_66] : memref<1x96xf32, #tpu.memory_space<vmem>>, vector<1x96xf32>
    %128 = vector.broadcast %127 : vector<1x96xf32> to vector<256x96xf32>
    %129 = arith.mulf %126, %128 : vector<256x96xf32>
    %c0_67 = arith.constant 0 : index
    %c0_68 = arith.constant 0 : index
    %130 = vector.load %arg13[%c0_67, %c0_68] : memref<1x96xf32, #tpu.memory_space<vmem>>, vector<1x96xf32>
    %131 = vector.broadcast %130 : vector<1x96xf32> to vector<256x96xf32>
    %132 = arith.addf %129, %131 : vector<256x96xf32>
    %cst_69 = arith.constant 0.000000e+00 : f32
    %133 = vector.broadcast %cst_69 : f32 to vector<256x96xf32>
    %134 = arith.maximumf %132, %133 : vector<256x96xf32>
    %135 = arith.extf %2 : vector<16x16x192xbf16> to vector<16x16x192xf32>
    %cst_70 = arith.constant 0.000000e+00 : f32
    %136 = vector.broadcast %cst_70 : f32 to vector<16x1x192xf32>
    %137 = tpu.concatenate %136, %135, %136 in 1 : vector<16x1x192xf32>, vector<16x16x192xf32>, vector<16x1x192xf32> -> vector<16x18x192xf32>
    %138 = vector.extract_strided_slice %137 {offsets = [0, 0, 0], sizes = [16, 16, 192], strides = [1, 1, 1]} : vector<16x18x192xf32> to vector<16x16x192xf32>
    %139 = vector.extract_strided_slice %137 {offsets = [0, 1, 0], sizes = [16, 16, 192], strides = [1, 1, 1]} : vector<16x18x192xf32> to vector<16x16x192xf32>
    %140 = arith.addf %138, %139 : vector<16x16x192xf32>
    %141 = vector.extract_strided_slice %137 {offsets = [0, 2, 0], sizes = [16, 16, 192], strides = [1, 1, 1]} : vector<16x18x192xf32> to vector<16x16x192xf32>
    %142 = arith.addf %140, %141 : vector<16x16x192xf32>
    %cst_71 = arith.constant 0.000000e+00 : f32
    %143 = vector.broadcast %cst_71 : f32 to vector<1x16x192xf32>
    %144 = tpu.concatenate %143, %142, %143 in 0 : vector<1x16x192xf32>, vector<16x16x192xf32>, vector<1x16x192xf32> -> vector<18x16x192xf32>
    %145 = vector.extract_strided_slice %144 {offsets = [0, 0, 0], sizes = [16, 16, 192], strides = [1, 1, 1]} : vector<18x16x192xf32> to vector<16x16x192xf32>
    %146 = vector.extract_strided_slice %144 {offsets = [1, 0, 0], sizes = [16, 16, 192], strides = [1, 1, 1]} : vector<18x16x192xf32> to vector<16x16x192xf32>
    %147 = arith.addf %145, %146 : vector<16x16x192xf32>
    %148 = vector.extract_strided_slice %144 {offsets = [2, 0, 0], sizes = [16, 16, 192], strides = [1, 1, 1]} : vector<18x16x192xf32> to vector<16x16x192xf32>
    %149 = arith.addf %147, %148 : vector<16x16x192xf32>
    %cst_72 = arith.constant 1.000000e+00 : f32
    %150 = vector.broadcast %cst_72 : f32 to vector<16x16x1xf32>
    %cst_73 = arith.constant 0.000000e+00 : f32
    %151 = vector.broadcast %cst_73 : f32 to vector<16x1x1xf32>
    %152 = tpu.concatenate %151, %150, %151 in 1 : vector<16x1x1xf32>, vector<16x16x1xf32>, vector<16x1x1xf32> -> vector<16x18x1xf32>
    %153 = vector.extract_strided_slice %152 {offsets = [0, 0, 0], sizes = [16, 16, 1], strides = [1, 1, 1]} : vector<16x18x1xf32> to vector<16x16x1xf32>
    %154 = vector.extract_strided_slice %152 {offsets = [0, 1, 0], sizes = [16, 16, 1], strides = [1, 1, 1]} : vector<16x18x1xf32> to vector<16x16x1xf32>
    %155 = arith.addf %153, %154 : vector<16x16x1xf32>
    %156 = vector.extract_strided_slice %152 {offsets = [0, 2, 0], sizes = [16, 16, 1], strides = [1, 1, 1]} : vector<16x18x1xf32> to vector<16x16x1xf32>
    %157 = arith.addf %155, %156 : vector<16x16x1xf32>
    %cst_74 = arith.constant 0.000000e+00 : f32
    %158 = vector.broadcast %cst_74 : f32 to vector<1x16x1xf32>
    %159 = tpu.concatenate %158, %157, %158 in 0 : vector<1x16x1xf32>, vector<16x16x1xf32>, vector<1x16x1xf32> -> vector<18x16x1xf32>
    %160 = vector.extract_strided_slice %159 {offsets = [0, 0, 0], sizes = [16, 16, 1], strides = [1, 1, 1]} : vector<18x16x1xf32> to vector<16x16x1xf32>
    %161 = vector.extract_strided_slice %159 {offsets = [1, 0, 0], sizes = [16, 16, 1], strides = [1, 1, 1]} : vector<18x16x1xf32> to vector<16x16x1xf32>
    %162 = arith.addf %160, %161 : vector<16x16x1xf32>
    %163 = vector.extract_strided_slice %159 {offsets = [2, 0, 0], sizes = [16, 16, 1], strides = [1, 1, 1]} : vector<18x16x1xf32> to vector<16x16x1xf32>
    %164 = arith.addf %162, %163 : vector<16x16x1xf32>
    %165 = vector.broadcast %164 : vector<16x16x1xf32> to vector<16x16x192xf32>
    %166 = arith.divf %149, %165 : vector<16x16x192xf32>
    %167 = vector.shape_cast %166 : vector<16x16x192xf32> to vector<256x192xf32>
    %168 = arith.truncf %167 : vector<256x192xf32> to vector<256x192xbf16>
    %c0_75 = arith.constant 0 : index
    %c0_76 = arith.constant 0 : index
    %169 = vector.load %arg14[%c0_75, %c0_76] : memref<192x64xbf16, #tpu.memory_space<vmem>>, vector<192x64xbf16>
    %cst_77 = arith.constant dense<0.000000e+00> : vector<256x64xf32>
    %170 = tpu.matmul %168, %169, %cst_77 {dimension_numbers = #tpu.dot_dimension_numbers<[1], [0], [0], [1], [0, 0, 1, 1], [], []>} : vector<256x192xbf16>, vector<192x64xbf16>, vector<256x64xf32> -> vector<256x64xf32>
    %c0_78 = arith.constant 0 : index
    %c0_79 = arith.constant 0 : index
    %171 = vector.load %arg15[%c0_78, %c0_79] : memref<1x64xf32, #tpu.memory_space<vmem>>, vector<1x64xf32>
    %172 = vector.broadcast %171 : vector<1x64xf32> to vector<256x64xf32>
    %173 = arith.mulf %170, %172 : vector<256x64xf32>
    %c0_80 = arith.constant 0 : index
    %c0_81 = arith.constant 0 : index
    %174 = vector.load %arg16[%c0_80, %c0_81] : memref<1x64xf32, #tpu.memory_space<vmem>>, vector<1x64xf32>
    %175 = vector.broadcast %174 : vector<1x64xf32> to vector<256x64xf32>
    %176 = arith.addf %173, %175 : vector<256x64xf32>
    %cst_82 = arith.constant 0.000000e+00 : f32
    %177 = vector.broadcast %cst_82 : f32 to vector<256x64xf32>
    %178 = arith.maximumf %176, %177 : vector<256x64xf32>
    %179 = tpu.concatenate %19, %66, %134, %178 in 1 : vector<256x96xf32>, vector<256x64xf32>, vector<256x96xf32>, vector<256x64xf32> -> vector<256x320xf32>
    %c0_83 = arith.constant 0 : index
    %c0_84 = arith.constant 0 : index
    %c0_85 = arith.constant 0 : index
    %180 = vector.load %arg17[%c0_83, %c0_84, %c0_85] : memref<1x256x320xf32, #tpu.memory_space<vmem>>, vector<1x256x320xf32>
    %181 = vector.shape_cast %180 : vector<1x256x320xf32> to vector<256x320xf32>
    %182 = vector.shape_cast %179 : vector<256x320xf32> to vector<1x256x320xf32>
    tpu.vector_store %arg17[%c0_83, %c0_84, %c0_85], %182 {strides = array<i32>} : memref<1x256x320xf32, #tpu.memory_space<vmem>>, vector<1x256x320xf32>,
    return
  }
  func.func @transform_0(%arg0: i32) -> (i32, i32, i32) {
    %c0_i32 = arith.constant 0 : i32
    %c0_i32_0 = arith.constant 0 : i32
    %c0_i32_1 = arith.constant 0 : i32
    return %arg0, %c0_i32, %c0_i32_0 : i32, i32, i32
  }
  func.func @transform_1(%arg0: i32) -> (i32, i32) {
    %c0_i32 = arith.constant 0 : i32
    %c0_i32_0 = arith.constant 0 : i32
    %c0_i32_1 = arith.constant 0 : i32
    return %c0_i32, %c0_i32_0 : i32, i32
  }
  func.func @transform_2(%arg0: i32) -> (i32, i32) {
    %c0_i32 = arith.constant 0 : i32
    %c0_i32_0 = arith.constant 0 : i32
    %c0_i32_1 = arith.constant 0 : i32
    return %c0_i32, %c0_i32_0 : i32, i32
  }
  func.func @transform_3(%arg0: i32) -> (i32, i32) {
    %c0_i32 = arith.constant 0 : i32
    %c0_i32_0 = arith.constant 0 : i32
    %c0_i32_1 = arith.constant 0 : i32
    return %c0_i32, %c0_i32_0 : i32, i32
  }
  func.func @transform_4(%arg0: i32) -> (i32, i32, i32) {
    %c0_i32 = arith.constant 0 : i32
    %c0_i32_0 = arith.constant 0 : i32
    %c0_i32_1 = arith.constant 0 : i32
    %c0_i32_2 = arith.constant 0 : i32
    return %c0_i32, %c0_i32_0, %c0_i32_1 : i32, i32, i32
  }
  func.func @transform_5(%arg0: i32) -> (i32, i32) {
    %c0_i32 = arith.constant 0 : i32
    %c0_i32_0 = arith.constant 0 : i32
    %c0_i32_1 = arith.constant 0 : i32
    return %c0_i32, %c0_i32_0 : i32, i32
  }
  func.func @transform_6(%arg0: i32) -> (i32, i32) {
    %c0_i32 = arith.constant 0 : i32
    %c0_i32_0 = arith.constant 0 : i32
    %c0_i32_1 = arith.constant 0 : i32
    return %c0_i32, %c0_i32_0 : i32, i32
  }
  func.func @transform_7(%arg0: i32) -> (i32, i32, i32) {
    %c0_i32 = arith.constant 0 : i32
    %c0_i32_0 = arith.constant 0 : i32
    %c0_i32_1 = arith.constant 0 : i32
    %c0_i32_2 = arith.constant 0 : i32
    return %c0_i32, %c0_i32_0, %c0_i32_1 : i32, i32, i32
  }
  func.func @transform_8(%arg0: i32) -> (i32, i32) {
    %c0_i32 = arith.constant 0 : i32
    %c0_i32_0 = arith.constant 0 : i32
    %c0_i32_1 = arith.constant 0 : i32
    return %c0_i32, %c0_i32_0 : i32, i32
  }
  func.func @transform_9(%arg0: i32) -> (i32, i32) {
    %c0_i32 = arith.constant 0 : i32
    %c0_i32_0 = arith.constant 0 : i32
    %c0_i32_1 = arith.constant 0 : i32
    return %c0_i32, %c0_i32_0 : i32, i32
  }
  func.func @transform_10(%arg0: i32) -> (i32, i32, i32) {
    %c0_i32 = arith.constant 0 : i32
    %c0_i32_0 = arith.constant 0 : i32
    %c0_i32_1 = arith.constant 0 : i32
    %c0_i32_2 = arith.constant 0 : i32
    return %c0_i32, %c0_i32_0, %c0_i32_1 : i32, i32, i32
  }
  func.func @transform_11(%arg0: i32) -> (i32, i32) {
    %c0_i32 = arith.constant 0 : i32
    %c0_i32_0 = arith.constant 0 : i32
    %c0_i32_1 = arith.constant 0 : i32
    return %c0_i32, %c0_i32_0 : i32, i32
  }
  func.func @transform_12(%arg0: i32) -> (i32, i32) {
    %c0_i32 = arith.constant 0 : i32
    %c0_i32_0 = arith.constant 0 : i32
    %c0_i32_1 = arith.constant 0 : i32
    return %c0_i32, %c0_i32_0 : i32, i32
  }
  func.func @transform_13(%arg0: i32) -> (i32, i32) {
    %c0_i32 = arith.constant 0 : i32
    %c0_i32_0 = arith.constant 0 : i32
    %c0_i32_1 = arith.constant 0 : i32
    return %c0_i32, %c0_i32_0 : i32, i32
  }
  func.func @transform_14(%arg0: i32) -> (i32, i32) {
    %c0_i32 = arith.constant 0 : i32
    %c0_i32_0 = arith.constant 0 : i32
    %c0_i32_1 = arith.constant 0 : i32
    return %c0_i32, %c0_i32_0 : i32, i32
  }
  func.func @transform_15(%arg0: i32) -> (i32, i32) {
    %c0_i32 = arith.constant 0 : i32
    %c0_i32_0 = arith.constant 0 : i32
    %c0_i32_1 = arith.constant 0 : i32
    return %c0_i32, %c0_i32_0 : i32, i32
  }
  func.func @transform_16(%arg0: i32) -> (i32, i32, i32) {
    %c0_i32 = arith.constant 0 : i32
    %c0_i32_0 = arith.constant 0 : i32
    %c0_i32_1 = arith.constant 0 : i32
    return %arg0, %c0_i32, %c0_i32_0 : i32, i32, i32
  }
}

</mosaic_0001>

<llo_original>
// kernel: mixed_5b_forward.1
$region0: #{mixed_5b_forward.1}
  #allocation0 [shape = 'u32[]', space=smem, size = 0x4, offset = 0x4, fixed_abs, tag = 'smem constant byte address 0x4 - core index']
  #allocation1 [shape = 'u32[72,128]{1,0:T(1,128)}', space=vmem, size = 0x9000, scoped, tag = 'internal scratch']
  %s0 = inlined_call_operand.vmem [shape: bf16[2,256,192], index: 0, kind: input, shape index: {}]
  %s1 = inlined_call_operand.vmem [shape: bf16[192,208], index: 1, kind: input, shape index: {}]
  %s2 = inlined_call_operand.vmem [shape: f32[1,208], index: 2, kind: input, shape index: {}]
  %s3 = inlined_call_operand.vmem [shape: f32[1,208], index: 3, kind: input, shape index: {}]
  %s4 = inlined_call_operand.vmem [shape: bf16[5,240,64], index: 4, kind: input, shape index: {}]
  %s5 = inlined_call_operand.vmem [shape: f32[1,64], index: 5, kind: input, shape index: {}]
  %s6 = inlined_call_operand.vmem [shape: f32[1,64], index: 6, kind: input, shape index: {}]
  %s7 = inlined_call_operand.vmem [shape: bf16[3,192,96], index: 7, kind: input, shape index: {}]
  %s8 = inlined_call_operand.vmem [shape: f32[1,96], index: 8, kind: input, shape index: {}]
  %s9 = inlined_call_operand.vmem [shape: f32[1,96], index: 9, kind: input, shape index: {}]
  %s10 = inlined_call_operand.vmem [shape: bf16[3,288,96], index: 10, kind: input, shape index: {}]
  %s11 = inlined_call_operand.vmem [shape: f32[1,96], index: 11, kind: input, shape index: {}]
  %s12 = inlined_call_operand.vmem [shape: f32[1,96], index: 12, kind: input, shape index: {}]
  %s13 = inlined_call_operand.vmem [shape: bf16[192,64], index: 13, kind: input, shape index: {}]
  %s14 = inlined_call_operand.vmem [shape: f32[1,64], index: 14, kind: input, shape index: {}]
  %s15 = inlined_call_operand.vmem [shape: f32[1,64], index: 15, kind: input, shape index: {}]
  %s16 = inlined_call_operand.hbm [shape: f32[2,256,320], index: 16, kind: output, shape index: {}]
  %s17 = sld [smem:[#allocation0]]
  $region97: #{mixed_5b_forward.1} parent=0
    _
  %s19 = ssub.s32 1, %s17
  %s20 = scalar_select 0, %s19, %s17
  $region1: #{mixed_5b_forward.1} parent=0
    #allocation2 [shape = 'u8[786432]{0}', space=vmem, size = 0xc0000, scoped, tag = 'output window, operand 0']
    #allocation3 [shape = 's32[2]{0}', space=sflag, size = 0x8, scoped, tag = 'scoped memory for mixed_5b_forward.1']
    %21 = vsyncpa [#allocation3], 0
    %s22 = scalar_lea.sflag [#allocation3], 1
    %23 = vsyncpa %s22, 0
    loop: start=0, step=1, limit=4
    $region2: #{mixed_5b_forward.1} parent=1 // loop_pre_header
      _
    $region3: #{mixed_5b_forward.1} parent=1 // loop_header
      %s25 = sphi 0, %s29
      %p26 = scmp.ge.s32.totalorder %s25, 4
      %s35 = sphi 0, %s37
      %s38 = sphi 0, %s35
      %s39 = sphi 0, %s38
      %s55 = sphi 0, %s39
      %s59 = sphi 0, %s59
      %s61 = sphi 0, %s59
      %s62 = sphi 0, %s61
      %s76 = sphi 0, %s62
      %s80 = sphi 0, %s80
      %s82 = sphi 0, %s80
      %s83 = sphi 0, %s82
      %s97 = sphi 0, %s83
      %s101 = sphi 0, %s101
      %s103 = sphi 0, %s101
      %s104 = sphi 0, %s103
      %s118 = sphi 0, %s104
      %s122 = sphi 0, %s122
      %s124 = sphi 0, %s122
      %s125 = sphi 0, %s124
      %s139 = sphi 0, %s125
      %s143 = sphi 0, %s143
      %s145 = sphi 0, %s143
      %s146 = sphi 0, %s145
      %s160 = sphi 0, %s146
      %s164 = sphi 0, %s164
      %s166 = sphi 0, %s164
      %s167 = sphi 0, %s166
      %s181 = sphi 0, %s167
      %s185 = sphi 0, %s185
      %s187 = sphi 0, %s185
      %s188 = sphi 0, %s187
      %s202 = sphi 0, %s188
      %s206 = sphi 0, %s206
      %s208 = sphi 0, %s206
      %s209 = sphi 0, %s208
      %s223 = sphi 0, %s209
      %s227 = sphi 0, %s227
      %s229 = sphi 0, %s227
      %s230 = sphi 0, %s229
      %s244 = sphi 0, %s230
      %s248 = sphi 0, %s248
      %s250 = sphi 0, %s248
      %s251 = sphi 0, %s250
      %s265 = sphi 0, %s251
      %s269 = sphi 0, %s269
      %s271 = sphi 0, %s269
      %s272 = sphi 0, %s271
      %s286 = sphi 0, %s272
      %s290 = sphi 0, %s290
      %s292 = sphi 0, %s290
      %s293 = sphi 0, %s292
      %s307 = sphi 0, %s293
      %s311 = sphi 0, %s311
      %s313 = sphi 0, %s311
      %s314 = sphi 0, %s313
      %s328 = sphi 0, %s314
      %s332 = sphi 0, %s332
      %s334 = sphi 0, %s332
      %s335 = sphi 0, %s334
      %s349 = sphi 0, %s335
      %s353 = sphi 0, %s353
      %s355 = sphi 0, %s353
      %s356 = sphi 0, %s355
      %s370 = sphi 0, %s356
      %s376 = sphi 0, %s378
      %s379 = sphi 0, %s376
      %s380 = sphi 0, %s379
      %s396 = sphi 0, %s380
    $region4: #{mixed_5b_forward.1} parent=1 // loop_header_branch
      %28 = sbr.rel (%p26) target = $region8
    $region5: #{mixed_5b_forward.1} parent=1 // loop_body
      %s30 = ssub.s32 %s25, 1
      %s31 = ssub.s32 %s25, 2
      %s32 = sadd.s32 %s25, 1
      %s33 = ssub.s32 %s25, %s32
      %p34 = scmp.eq.s32.totalorder %s33, 0
      %s36 = sadd.s32 %s35, 1
      %s37 = scalar_select %p34, %s35, %s36
      %p40 = pneg %p34
      %p41 = scmp.eq.s32.totalorder %s25, 1
      %p42 = por %p40, %p41
      %p43 = scmp.ne.s32.totalorder %s35, %s38
      %p44 = scmp.eq.s32.totalorder %s25, 0
      %p45 = por %p43, %p44
      %p46 = scmp.ne.s32.totalorder %s35, %s38
      %p47 = scmp.eq.s32.totalorder %s30, 1
      %p48 = por %p46, %p47
      %p49 = scmp.ne.s32.totalorder %s38, %s39
      %p50 = scmp.eq.s32.totalorder %s30, 0
      %p51 = por %p49, %p50
      %p52 = scmp.ne.s32.totalorder %s38, %s39
      %p53 = scmp.eq.s32.totalorder %s31, 1
      %p54 = por %p52, %p53
      %p56 = scmp.ne.s32.totalorder %s39, %s55
      %p57 = scmp.eq.s32.totalorder %s31, 0
      %p58 = por %p56, %p57
      %s60 = sadd.s32 %s59, 1
      %p63 = scmp.eq.s32.totalorder %s25, 1
      %p64 = scmp.ne.s32.totalorder %s59, %s61
      %p65 = scmp.eq.s32.totalorder %s25, 0
      %p66 = por %p64, %p65
      %p67 = scmp.ne.s32.totalorder %s59, %s61
      %p68 = scmp.eq.s32.totalorder %s30, 1
      %p69 = por %p67, %p68
      %p70 = scmp.ne.s32.totalorder %s61, %s62
      %p71 = scmp.eq.s32.totalorder %s30, 0
      %p72 = por %p70, %p71
      %p73 = scmp.ne.s32.totalorder %s61, %s62
      %p74 = scmp.eq.s32.totalorder %s31, 1
      %p75 = por %p73, %p74
      %p77 = scmp.ne.s32.totalorder %s62, %s76
      %p78 = scmp.eq.s32.totalorder %s31, 0
      %p79 = por %p77, %p78
      %s81 = sadd.s32 %s80, 1
      %p84 = scmp.eq.s32.totalorder %s25, 1
      %p85 = scmp.ne.s32.totalorder %s80, %s82
      %p86 = scmp.eq.s32.totalorder %s25, 0
      %p87 = por %p85, %p86
      %p88 = scmp.ne.s32.totalorder %s80, %s82
      %p89 = scmp.eq.s32.totalorder %s30, 1
      %p90 = por %p88, %p89
      %p91 = scmp.ne.s32.totalorder %s82, %s83
      %p92 = scmp.eq.s32.totalorder %s30, 0
      %p93 = por %p91, %p92
      %p94 = scmp.ne.s32.totalorder %s82, %s83
      %p95 = scmp.eq.s32.totalorder %s31, 1
      %p96 = por %p94, %p95
      %p98 = scmp.ne.s32.totalorder %s83, %s97
      %p99 = scmp.eq.s32.totalorder %s31, 0
      %p100 = por %p98, %p99
      %s102 = sadd.s32 %s101, 1
      %p105 = scmp.eq.s32.totalorder %s25, 1
      %p106 = scmp.ne.s32.totalorder %s101, %s103
      %p107 = scmp.eq.s32.totalorder %s25, 0
      %p108 = por %p106, %p107
      %p109 = scmp.ne.s32.totalorder %s101, %s103
      %p110 = scmp.eq.s32.totalorder %s30, 1
      %p111 = por %p109, %p110
      %p112 = scmp.ne.s32.totalorder %s103, %s104
      %p113 = scmp.eq.s32.totalorder %s30, 0
      %p114 = por %p112, %p113
      %p115 = scmp.ne.s32.totalorder %s103, %s104
      %p116 = scmp.eq.s32.totalorder %s31, 1
      %p117 = por %p115, %p116
      %p119 = scmp.ne.s32.totalorder %s104, %s118
      %p120 = scmp.eq.s32.totalorder %s31, 0
      %p121 = por %p119, %p120
      %s123 = sadd.s32 %s122, 1
      %p126 = scmp.eq.s32.totalorder %s25, 1
      %p127 = scmp.ne.s32.totalorder %s122, %s124
      %p128 = scmp.eq.s32.totalorder %s25, 0
      %p129 = por %p127, %p128
      %p130 = scmp.ne.s32.totalorder %s122, %s124
      %p131 = scmp.eq.s32.totalorder %s30, 1
      %p132 = por %p130, %p131
      %p133 = scmp.ne.s32.totalorder %s124, %s125
      %p134 = scmp.eq.s32.totalorder %s30, 0
      %p135 = por %p133, %p134
      %p136 = scmp.ne.s32.totalorder %s124, %s125
      %p137 = scmp.eq.s32.totalorder %s31, 1
      %p138 = por %p136, %p137
      %p140 = scmp.ne.s32.totalorder %s125, %s139
      %p141 = scmp.eq.s32.totalorder %s31, 0
      %p142 = por %p140, %p141
      %s144 = sadd.s32 %s143, 1
      %p147 = scmp.eq.s32.totalorder %s25, 1
      %p148 = scmp.ne.s32.totalorder %s143, %s145
      %p149 = scmp.eq.s32.totalorder %s25, 0
      %p150 = por %p148, %p149
      %p151 = scmp.ne.s32.totalorder %s143, %s145
      %p152 = scmp.eq.s32.totalorder %s30, 1
      %p153 = por %p151, %p152
      %p154 = scmp.ne.s32.totalorder %s145, %s146
      %p155 = scmp.eq.s32.totalorder %s30, 0
      %p156 = por %p154, %p155
      %p157 = scmp.ne.s32.totalorder %s145, %s146
      %p158 = scmp.eq.s32.totalorder %s31, 1
      %p159 = por %p157, %p158
      %p161 = scmp.ne.s32.totalorder %s146, %s160
      %p162 = scmp.eq.s32.totalorder %s31, 0
      %p163 = por %p161, %p162
      %s165 = sadd.s32 %s164, 1
      %p168 = scmp.eq.s32.totalorder %s25, 1
      %p169 = scmp.ne.s32.totalorder %s164, %s166
      %p170 = scmp.eq.s32.totalorder %s25, 0
      %p171 = por %p169, %p170
      %p172 = scmp.ne.s32.totalorder %s164, %s166
      %p173 = scmp.eq.s32.totalorder %s30, 1
      %p174 = por %p172, %p173
      %p175 = scmp.ne.s32.totalorder %s166, %s167
      %p176 = scmp.eq.s32.totalorder %s30, 0
      %p177 = por %p175, %p176
      %p178 = scmp.ne.s32.totalorder %s166, %s167
      %p179 = scmp.eq.s32.totalorder %s31, 1
      %p180 = por %p178, %p179
      %p182 = scmp.ne.s32.totalorder %s167, %s181
      %p183 = scmp.eq.s32.totalorder %s31, 0
      %p184 = por %p182, %p183
      %s186 = sadd.s32 %s185, 1
      %p189 = scmp.eq.s32.totalorder %s25, 1
      %p190 = scmp.ne.s32.totalorder %s185, %s187
      %p191 = scmp.eq.s32.totalorder %s25, 0
      %p192 = por %p190, %p191
      %p193 = scmp.ne.s32.totalorder %s185, %s187
      %p194 = scmp.eq.s32.totalorder %s30, 1
      %p195 = por %p193, %p194
      %p196 = scmp.ne.s32.totalorder %s187, %s188
      %p197 = scmp.eq.s32.totalorder %s30, 0
      %p198 = por %p196, %p197
      %p199 = scmp.ne.s32.totalorder %s187, %s188
      %p200 = scmp.eq.s32.totalorder %s31, 1
      %p201 = por %p199, %p200
      %p203 = scmp.ne.s32.totalorder %s188, %s202
      %p204 = scmp.eq.s32.totalorder %s31, 0
      %p205 = por %p203, %p204
      %s207 = sadd.s32 %s206, 1
      %p210 = scmp.eq.s32.totalorder %s25, 1
      %p211 = scmp.ne.s32.totalorder %s206, %s208
      %p212 = scmp.eq.s32.totalorder %s25, 0
      %p213 = por %p211, %p212
      %p214 = scmp.ne.s32.totalorder %s206, %s208
      %p215 = scmp.eq.s32.totalorder %s30, 1
      %p216 = por %p214, %p215
      %p217 = scmp.ne.s32.totalorder %s208, %s209
      %p218 = scmp.eq.s32.totalorder %s30, 0
      %p219 = por %p217, %p218
      %p220 = scmp.ne.s32.totalorder %s208, %s209
      %p221 = scmp.eq.s32.totalorder %s31, 1
      %p222 = por %p220, %p221
      %p224 = scmp.ne.s32.totalorder %s209, %s223
      %p225 = scmp.eq.s32.totalorder %s31, 0
      %p226 = por %p224, %p225
      %s228 = sadd.s32 %s227, 1
      %p231 = scmp.eq.s32.totalorder %s25, 1
      %p232 = scmp.ne.s32.totalorder %s227, %s229
      %p233 = scmp.eq.s32.totalorder %s25, 0
      %p234 = por %p232, %p233
      %p235 = scmp.ne.s32.totalorder %s227, %s229
      %p236 = scmp.eq.s32.totalorder %s30, 1
      %p237 = por %p235, %p236
      %p238 = scmp.ne.s32.totalorder %s229, %s230
      %p239 = scmp.eq.s32.totalorder %s30, 0
      %p240 = por %p238, %p239
      %p241 = scmp.ne.s32.totalorder %s229, %s230
      %p242 = scmp.eq.s32.totalorder %s31, 1
      %p243 = por %p241, %p242
      %p245 = scmp.ne.s32.totalorder %s230, %s244
      %p246 = scmp.eq.s32.totalorder %s31, 0
      %p247 = por %p245, %p246
      %s249 = sadd.s32 %s248, 1
      %p252 = scmp.eq.s32.totalorder %s25, 1
      %p253 = scmp.ne.s32.totalorder %s248, %s250
      %p254 = scmp.eq.s32.totalorder %s25, 0
      %p255 = por %p253, %p254
      %p256 = scmp.ne.s32.totalorder %s248, %s250
      %p257 = scmp.eq.s32.totalorder %s30, 1
      %p258 = por %p256, %p257
      %p259 = scmp.ne.s32.totalorder %s250, %s251
      %p260 = scmp.eq.s32.totalorder %s30, 0
      %p261 = por %p259, %p260
      %p262 = scmp.ne.s32.totalorder %s250, %s251
      %p263 = scmp.eq.s32.totalorder %s31, 1
      %p264 = por %p262, %p263
      %p266 = scmp.ne.s32.totalorder %s251, %s265
      %p267 = scmp.eq.s32.totalorder %s31, 0
      %p268 = por %p266, %p267
      %s270 = sadd.s32 %s269, 1
      %p273 = scmp.eq.s32.totalorder %s25, 1
      %p274 = scmp.ne.s32.totalorder %s269, %s271
      %p275 = scmp.eq.s32.totalorder %s25, 0
      %p276 = por %p274, %p275
      %p277 = scmp.ne.s32.totalorder %s269, %s271
      %p278 = scmp.eq.s32.totalorder %s30, 1
      %p279 = por %p277, %p278
      %p280 = scmp.ne.s32.totalorder %s271, %s272
      %p281 = scmp.eq.s32.totalorder %s30, 0
      %p282 = por %p280, %p281
      %p283 = scmp.ne.s32.totalorder %s271, %s272
      %p284 = scmp.eq.s32.totalorder %s31, 1
      %p285 = por %p283, %p284
      %p287 = scmp.ne.s32.totalorder %s272, %s286
      %p288 = scmp.eq.s32.totalorder %s31, 0
      %p289 = por %p287, %p288
      %s291 = sadd.s32 %s290, 1
      %p294 = scmp.eq.s32.totalorder %s25, 1
      %p295 = scmp.ne.s32.totalorder %s290, %s292
      %p296 = scmp.eq.s32.totalorder %s25, 0
      %p297 = por %p295, %p296
      %p298 = scmp.ne.s32.totalorder %s290, %s292
      %p299 = scmp.eq.s32.totalorder %s30, 1
      %p300 = por %p298, %p299
      %p301 = scmp.ne.s32.totalorder %s292, %s293
      %p302 = scmp.eq.s32.totalorder %s30, 0
      %p303 = por %p301, %p302
      %p304 = scmp.ne.s32.totalorder %s292, %s293
      %p305 = scmp.eq.s32.totalorder %s31, 1
      %p306 = por %p304, %p305
      %p308 = scmp.ne.s32.totalorder %s293, %s307
      %p309 = scmp.eq.s32.totalorder %s31, 0
      %p310 = por %p308, %p309
      %s312 = sadd.s32 %s311, 1
      %p315 = scmp.eq.s32.totalorder %s25, 1
      %p316 = scmp.ne.s32.totalorder %s311, %s313
      %p317 = scmp.eq.s32.totalorder %s25, 0
      %p318 = por %p316, %p317
      %p319 = scmp.ne.s32.totalorder %s311, %s313
      %p320 = scmp.eq.s32.totalorder %s30, 1
      %p321 = por %p319, %p320
      %p322 = scmp.ne.s32.totalorder %s313, %s314
      %p323 = scmp.eq.s32.totalorder %s30, 0
      %p324 = por %p322, %p323
      %p325 = scmp.ne.s32.totalorder %s313, %s314
      %p326 = scmp.eq.s32.totalorder %s31, 1
      %p327 = por %p325, %p326
      %p329 = scmp.ne.s32.totalorder %s314, %s328
      %p330 = scmp.eq.s32.totalorder %s31, 0
      %p331 = por %p329, %p330
      %s333 = sadd.s32 %s332, 1
      %p336 = scmp.eq.s32.totalorder %s25, 1
      %p337 = scmp.ne.s32.totalorder %s332, %s334
      %p338 = scmp.eq.s32.totalorder %s25, 0
      %p339 = por %p337, %p338
      %p340 = scmp.ne.s32.totalorder %s332, %s334
      %p341 = scmp.eq.s32.totalorder %s30, 1
      %p342 = por %p340, %p341
      %p343 = scmp.ne.s32.totalorder %s334, %s335
      %p344 = scmp.eq.s32.totalorder %s30, 0
      %p345 = por %p343, %p344
      %p346 = scmp.ne.s32.totalorder %s334, %s335
      %p347 = scmp.eq.s32.totalorder %s31, 1
      %p348 = por %p346, %p347
      %p350 = scmp.ne.s32.totalorder %s335, %s349
      %p351 = scmp.eq.s32.totalorder %s31, 0
      %p352 = por %p350, %p351
      %s354 = sadd.s32 %s353, 1
      %p357 = scmp.eq.s32.totalorder %s25, 1
      %p358 = scmp.ne.s32.totalorder %s353, %s355
      %p359 = scmp.eq.s32.totalorder %s25, 0
      %p360 = por %p358, %p359
      %p361 = scmp.ne.s32.totalorder %s353, %s355
      %p362 = scmp.eq.s32.totalorder %s30, 1
      %p363 = por %p361, %p362
      %p364 = scmp.ne.s32.totalorder %s355, %s356
      %p365 = scmp.eq.s32.totalorder %s30, 0
      %p366 = por %p364, %p365
      %p367 = scmp.ne.s32.totalorder %s355, %s356
      %p368 = scmp.eq.s32.totalorder %s31, 1
      %p369 = por %p367, %p368
      %p371 = scmp.ne.s32.totalorder %s356, %s370
      %p372 = scmp.eq.s32.totalorder %s31, 0
      %p373 = por %p371, %p372
      %s374 = ssub.s32 %s25, %s32
      %p375 = scmp.eq.s32.totalorder %s374, 0
      %s377 = sadd.s32 %s376, 1
      %s378 = scalar_select %p375, %s376, %s377
      %p381 = pneg %p375
      %p382 = scmp.eq.s32.totalorder %s25, 1
      %p383 = por %p381, %p382
      %p384 = scmp.ne.s32.totalorder %s376, %s379
      %p385 = scmp.eq.s32.totalorder %s25, 0
      %p386 = por %p384, %p385
      %p387 = scmp.ne.s32.totalorder %s376, %s379
      %p388 = scmp.eq.s32.totalorder %s30, 1
      %p389 = por %p387, %p388
      %p390 = scmp.ne.s32.totalorder %s379, %s380
      %p391 = scmp.eq.s32.totalorder %s30, 0
      %p392 = por %p390, %p391
      %p393 = scmp.ne.s32.totalorder %s379, %s380
      %p394 = scmp.eq.s32.totalorder %s31, 1
      %p395 = por %p393, %p394
      %p397 = scmp.ne.s32.totalorder %s380, %s396
      %p398 = scmp.eq.s32.totalorder %s31, 0
      %p399 = por %p397, %p398
      %p400 = scmp.le.s32.totalorder 1, %s25
      %p401 = scmp.lt.s32.totalorder %s25, 3
      %p402 = pnand %p400, %p401
      %p403 = pneg %p402
      // Predicated region
      $region9: #{mixed_5b_forward.1} parent=5 // pred_check
        _
      $region10: #{mixed_5b_forward.1} parent=5 // pred_check_branch
        %405 = sbr.rel (%p402) target = $region12
      $region11: #{mixed_5b_forward.1} parent=5 // pred_region
        %s406 = ssub.s32 %s25, 1
        // Predicated region
        $region13: #{mixed_5b_forward.1} parent=11 // pred_check
          %p407 = pneg %p72
        $region14: #{mixed_5b_forward.1} parent=11 // pred_check_branch
          %409 = sbr.rel (%p407) target = $region16
        $region15: #{mixed_5b_forward.1} parent=11 // pred_region
          _
        $region16: #{mixed_5b_forward.1} parent=11 // pred_fallthru
          _
        // Predicated region
        $region17: #{mixed_5b_forward.1} parent=11 // pred_check
          %p410 = pneg %p93
        $region18: #{mixed_5b_forward.1} parent=11 // pred_check_branch
          %412 = sbr.rel (%p410) target = $region20
        $region19: #{mixed_5b_forward.1} parent=11 // pred_region
          _
        $region20: #{mixed_5b_forward.1} parent=11 // pred_fallthru
          _
        // Predicated region
        $region21: #{mixed_5b_forward.1} parent=11 // pred_check
          %p413 = pneg %p114
        $region22: #{mixed_5b_forward.1} parent=11 // pred_check_branch
          %415 = sbr.rel (%p413) target = $region24
        $region23: #{mixed_5b_forward.1} parent=11 // pred_region
          _
        $region24: #{mixed_5b_forward.1} parent=11 // pred_fallthru
          _
        // Predicated region
        $region25: #{mixed_5b_forward.1} parent=11 // pred_check
          %p416 = pneg %p135
        $region26: #{mixed_5b_forward.1} parent=11 // pred_check_branch
          %418 = sbr.rel (%p416) target = $region28
        $region27: #{mixed_5b_forward.1} parent=11 // pred_region
          _
        $region28: #{mixed_5b_forward.1} parent=11 // pred_fallthru
          _
        // Predicated region
        $region29: #{mixed_5b_forward.1} parent=11 // pred_check
          %p419 = pneg %p156
        $region30: #{mixed_5b_forward.1} parent=11 // pred_check_branch
          %421 = sbr.rel (%p419) target = $region32
        $region31: #{mixed_5b_forward.1} parent=11 // pred_region
          _
        $region32: #{mixed_5b_forward.1} parent=11 // pred_fallthru
          _
        // Predicated region
        $region33: #{mixed_5b_forward.1} parent=11 // pred_check
          %p422 = pneg %p177
        $region34: #{mixed_5b_forward.1} parent=11 // pred_check_branch
          %424 = sbr.rel (%p422) target = $region36
        $region35: #{mixed_5b_forward.1} parent=11 // pred_region
          _
        $region36: #{mixed_5b_forward.1} parent=11 // pred_fallthru
          _
        // Predicated region
        $region37: #{mixed_5b_forward.1} parent=11 // pred_check
          %p425 = pneg %p198
        $region38: #{mixed_5b_forward.1} parent=11 // pred_check_branch
          %427 = sbr.rel (%p425) target = $region40
        $region39: #{mixed_5b_forward.1} parent=11 // pred_region
          _
        $region40: #{mixed_5b_forward.1} parent=11 // pred_fallthru
          _
        // Predicated region
        $region41: #{mixed_5b_forward.1} parent=11 // pred_check
          %p428 = pneg %p219
        $region42: #{mixed_5b_forward.1} parent=11 // pred_check_branch
          %430 = sbr.rel (%p428) target = $region44
        $region43: #{mixed_5b_forward.1} parent=11 // pred_region
          _
        $region44: #{mixed_5b_forward.1} parent=11 // pred_fallthru
          _
        // Predicated region
        $region45: #{mixed_5b_forward.1} parent=11 // pred_check
          %p431 = pneg %p240
        $region46: #{mixed_5b_forward.1} parent=11 // pred_check_branch
          %433 = sbr.rel (%p431) target = $region48
        $region47: #{mixed_5b_forward.1} parent=11 // pred_region
          _
        $region48: #{mixed_5b_forward.1} parent=11 // pred_fallthru
          _
        // Predicated region
        $region49: #{mixed_5b_forward.1} parent=11 // pred_check
          %p434 = pneg %p261
        $region50: #{mixed_5b_forward.1} parent=11 // pred_check_branch
          %436 = sbr.rel (%p434) target = $region52
        $region51: #{mixed_5b_forward.1} parent=11 // pred_region
          _
        $region52: #{mixed_5b_forward.1} parent=11 // pred_fallthru
          _
        // Predicated region
        $region53: #{mixed_5b_forward.1} parent=11 // pred_check
          %p437 = pneg %p282
        $region54: #{mixed_5b_forward.1} parent=11 // pred_check_branch
          %439 = sbr.rel (%p437) target = $region56
        $region55: #{mixed_5b_forward.1} parent=11 // pred_region
          _
        $region56: #{mixed_5b_forward.1} parent=11 // pred_fallthru
          _
        // Predicated region
        $region57: #{mixed_5b_forward.1} parent=11 // pred_check
          %p440 = pneg %p303
        $region58: #{mixed_5b_forward.1} parent=11 // pred_check_branch
          %442 = sbr.rel (%p440) target = $region60
        $region59: #{mixed_5b_forward.1} parent=11 // pred_region
          _
        $region60: #{mixed_5b_forward.1} parent=11 // pred_fallthru
          _
        // Predicated region
        $region61: #{mixed_5b_forward.1} parent=11 // pred_check
          %p443 = pneg %p324
        $region62: #{mixed_5b_forward.1} parent=11 // pred_check_branch
          %445 = sbr.rel (%p443) target = $region64
        $region63: #{mixed_5b_forward.1} parent=11 // pred_region
          _
        $region64: #{mixed_5b_forward.1} parent=11 // pred_fallthru
          _
        // Predicated region
        $region65: #{mixed_5b_forward.1} parent=11 // pred_check
          %p446 = pneg %p345
        $region66: #{mixed_5b_forward.1} parent=11 // pred_check_branch
          %448 = sbr.rel (%p446) target = $region68
        $region67: #{mixed_5b_forward.1} parent=11 // pred_region
          _
        $region68: #{mixed_5b_forward.1} parent=11 // pred_fallthru
          _
        // Predicated region
        $region69: #{mixed_5b_forward.1} parent=11 // pred_check
          %p449 = pneg %p366
        $region70: #{mixed_5b_forward.1} parent=11 // pred_check_branch
          %451 = sbr.rel (%p449) target = $region72
        $region71: #{mixed_5b_forward.1} parent=11 // pred_region
          _
        $region72: #{mixed_5b_forward.1} parent=11 // pred_fallthru
          _
      $region12: #{mixed_5b_forward.1} parent=5 // pred_fallthru
        _
      %p452 = scmp.lt.s32.totalorder %s25, 2
      // Predicated region
      $region73: #{mixed_5b_forward.1} parent=5 // pred_check
        %p453 = pneg %p452
      $region74: #{mixed_5b_forward.1} parent=5 // pred_check_branch
        %455 = sbr.rel (%p453) target = $region76
      $region75: #{mixed_5b_forward.1} parent=5 // pred_region
        // Predicated region
        $region77: #{mixed_5b_forward.1} parent=75 // pred_check
          %p456 = pneg %p45
        $region78: #{mixed_5b_forward.1} parent=75 // pred_check_branch
          %458 = sbr.rel (%p456) target = $region80
        $region79: #{mixed_5b_forward.1} parent=75 // pred_region
          %p459 = scmp.lt.s32.totalorder %s25, 1
          %s460 = scalar_select %p459, %s25, 1
          %s461 = smul.addr %s460, 64
          %s462 = smul.addr %s461, 4
          %s463 = scalar_lea.vmem %s0, %s462
        $region80: #{mixed_5b_forward.1} parent=75 // pred_fallthru
          _
      $region76: #{mixed_5b_forward.1} parent=5 // pred_fallthru
        _
      %p464 = scmp.le.s32.totalorder 1, %s25
      %p465 = scmp.lt.s32.totalorder %s25, 3
      %p466 = pnand %p464, %p465
      %p467 = pneg %p466
      // Predicated region
      $region81: #{mixed_5b_forward.1} parent=5 // pred_check
        _
      $region82: #{mixed_5b_forward.1} parent=5 // pred_check_branch
        %469 = sbr.rel (%p466) target = $region84
      $region83: #{mixed_5b_forward.1} parent=5 // pred_region
        %s470 = ssub.s32 %s25, 1
        %p471 = scmp.lt.s32.totalorder %s30, 1
        %s472 = scalar_select %p471, %s30, 1
        %s473 = smul.addr %s472, 64
        %s474 = smul.addr %s473, 4
        %s475 = scalar_lea.vmem %s0, %s474
        %p476 = pneg %p51
        %p477 = pneg %p48
        %p478 = pneg %p72
        %p479 = pneg %p69
        %p480 = pneg %p93
        %p481 = pneg %p90
        %p482 = pneg %p114
        %p483 = pneg %p111
        %p484 = pneg %p135
        %p485 = pneg %p132
        %p486 = pneg %p156
        %p487 = pneg %p153
        %p488 = pneg %p177
        %p489 = pneg %p174
        %p490 = pneg %p198
        %p491 = pneg %p195
        %p492 = pneg %p219
        %p493 = pneg %p216
        %p494 = pneg %p240
        %p495 = pneg %p237
        %p496 = pneg %p261
        %p497 = pneg %p258
        %p498 = pneg %p282
        %p499 = pneg %p279
        %p500 = pneg %p303
        %p501 = pneg %p300
        %p502 = pneg %p324
        %p503 = pneg %p321
        %p504 = pneg %p345
        %p505 = pneg %p342
        %p506 = pneg %p366
        %p507 = pneg %p363
        %p508 = pneg %p392
        %p509 = pneg %p389
        %s510 = sand.u32 %s379, 1
        %s511 = scalar_lea.sflag [#allocation3], %s510
        %s512 = sand.u32 %s379, 1
        %s513 = smul.addr %s512, 768
        %s514 = scalar_lea.vmem [#allocation2], %s513
        %p515 = scmp.lt.s32.totalorder %s30, 1
        %s516 = scalar_select %p515, %s30, 1
        %s517 = smul.addr %s516, 64
        %s518 = smul.addr %s517, 4
        %s519 = scalar_lea.vmem %s0, %s518
        %v521 = vld [vmem:[%s519] sm:$0xff]
        %v522 = vld [vmem:[%s519 + $0x8] sm:$0xff]
        %v523 = vld [vmem:[%s519 + $0x10] sm:$0xff]
        %v524 = vld [vmem:[%s519 + $0x18] sm:$0xff]
        %v525 = vld [vmem:[%s519 + $0x20] sm:$0xff]
        %v526 = vld [vmem:[%s519 + $0x28] sm:$0xff]
        %v527 = vld [vmem:[%s519 + $0x30] sm:$0xff]
        %v528 = vld [vmem:[%s519 + $0x38] sm:$0xff]
        %v529 = vld [vmem:[%s519 + $0x40] sm:$0xff]
        %v530 = vld [vmem:[%s519 + $0x48] sm:$0xff]
        %v531 = vld [vmem:[%s519 + $0x50] sm:$0xff]
        %v532 = vld [vmem:[%s519 + $0x58] sm:$0xff]
        %v533 = vld [vmem:[%s519 + $0x60] sm:$0xff]
        %v534 = vld [vmem:[%s519 + $0x68] sm:$0xff]
        %v535 = vld [vmem:[%s519 + $0x70] sm:$0xff]
        %v536 = vld [vmem:[%s519 + $0x78] sm:$0xff]
        %v537 = vld [vmem:[%s519 + $0x80] sm:$0xff]
        %v538 = vld [vmem:[%s519 + $0x88] sm:$0xff]
        %v539 = vld [vmem:[%s519 + $0x90] sm:$0xff]
        %v540 = vld [vmem:[%s519 + $0x98] sm:$0xff]
        %v541 = vld [vmem:[%s519 + $0xa0] sm:$0xff]
        %v542 = vld [vmem:[%s519 + $0xa8] sm:$0xff]
        %v543 = vld [vmem:[%s519 + $0xb0] sm:$0xff]
        %v544 = vld [vmem:[%s519 + $0xb8] sm:$0xff]
        %v545 = vld [vmem:[%s519 + $0xc0] sm:$0xff]
        %v546 = vld [vmem:[%s519 + $0xc8] sm:$0xff]
        %v547 = vld [vmem:[%s519 + $0xd0] sm:$0xff]
        %v548 = vld [vmem:[%s519 + $0xd8] sm:$0xff]
        %v549 = vld [vmem:[%s519 + $0xe0] sm:$0xff]
        %v550 = vld [vmem:[%s519 + $0xe8] sm:$0xff]
        %v551 = vld [vmem:[%s519 + $0xf0] sm:$0xff]
        %v552 = vld [vmem:[%s519 + $0xf8] sm:$0xff]
        %v553 = vld [vmem:[%s1] sm:$0xff]
        %v554 = vld [vmem:[%s1 + $0x8] sm:$0xff]
        %v555 = vld [vmem:[%s1 + $0x10] sm:$0xff]
        %v556 = vld [vmem:[%s1 + $0x18] sm:$0xff]
        %v557 = vld [vmem:[%s1 + $0x20] sm:$0xff]
        %v558 = vld [vmem:[%s1 + $0x28] sm:$0xff]
        %v559 = vld [vmem:[%s1 + $0x30] sm:$0xff]
        %v560 = vld [vmem:[%s1 + $0x38] sm:$0xff]
        %v561 = vld [vmem:[%s1 + $0x40] sm:$0xff]
        %v562 = vld [vmem:[%s1 + $0x48] sm:$0xff]
        %v563 = vld [vmem:[%s1 + $0x50] sm:$0xff]
        %v564 = vld [vmem:[%s1 + $0x58] sm:$0xff]
        %v565 = vld [vmem:[%s1 + $0x60] sm:$0xff]
        %v566 = vld [vmem:[%s1 + $0x68] sm:$0xff]
        %v567 = vld [vmem:[%s1 + $0x70] sm:$0xff]
        %v568 = vld [vmem:[%s1 + $0x78] sm:$0xff]
        %v569 = vld [vmem:[%s1 + $0x80] sm:$0xff]
        %v570 = vld [vmem:[%s1 + $0x88] sm:$0xff]
        %v571 = vld [vmem:[%s1 + $0x90] sm:$0xff]
        %v572 = vld [vmem:[%s1 + $0x98] sm:$0xff]
        %v573 = vld [vmem:[%s1 + $0xa0] sm:$0xff]
        %v574 = vld [vmem:[%s1 + $0xa8] sm:$0xff]
        %v575 = vld [vmem:[%s1 + $0xb0] sm:$0xff]
        %v576 = vld [vmem:[%s1 + $0xb8] sm:$0xff]
        %v609 = vunpack.c.l.b16 %v521
        %v610 = vunpack.c.h.b16 %v521
        %v611 = vunpack.c.l.b16 %v522
        %v612 = vunpack.c.h.b16 %v522
        %v613 = vunpack.c.l.b16 %v523
        %v614 = vunpack.c.h.b16 %v523
        %v615 = vunpack.c.l.b16 %v524
        %v616 = vunpack.c.h.b16 %v524
        %v617 = vunpack.c.l.b16 %v525
        %v618 = vunpack.c.h.b16 %v525
        %v619 = vunpack.c.l.b16 %v526
        %v620 = vunpack.c.h.b16 %v526
        %v621 = vunpack.c.l.b16 %v527
        %v622 = vunpack.c.h.b16 %v527
        %v623 = vunpack.c.l.b16 %v528
        %v624 = vunpack.c.h.b16 %v528
        %v625 = vunpack.c.l.b16 %v529
        %v626 = vunpack.c.h.b16 %v529
        %v627 = vunpack.c.l.b16 %v530
        %v628 = vunpack.c.h.b16 %v530
        %v629 = vunpack.c.l.b16 %v531
        %v630 = vunpack.c.h.b16 %v531
        %v631 = vunpack.c.l.b16 %v532
        %v632 = vunpack.c.h.b16 %v532
        %v633 = vunpack.c.l.b16 %v533
        %v634 = vunpack.c.h.b16 %v533
        %v635 = vunpack.c.l.b16 %v534
        %v636 = vunpack.c.h.b16 %v534
        %v637 = vunpack.c.l.b16 %v535
        %v638 = vunpack.c.h.b16 %v535
        %v639 = vunpack.c.l.b16 %v536
        %v640 = vunpack.c.h.b16 %v536
        %v641 = vunpack.c.l.b16 %v537
        %v642 = vunpack.c.h.b16 %v537
        %v643 = vunpack.c.l.b16 %v538
        %v644 = vunpack.c.h.b16 %v538
        %v645 = vunpack.c.l.b16 %v539
        %v646 = vunpack.c.h.b16 %v539
        %v647 = vunpack.c.l.b16 %v540
        %v648 = vunpack.c.h.b16 %v540
        %v649 = vunpack.c.l.b16 %v541
        %v650 = vunpack.c.h.b16 %v541
        %v651 = vunpack.c.l.b16 %v542
        %v652 = vunpack.c.h.b16 %v542
        %v653 = vunpack.c.l.b16 %v543
        %v654 = vunpack.c.h.b16 %v543
        %v655 = vunpack.c.l.b16 %v544
        %v656 = vunpack.c.h.b16 %v544
        %v657 = vunpack.c.l.b16 %v545
        %v658 = vunpack.c.h.b16 %v545
        %v659 = vunpack.c.l.b16 %v546
        %v660 = vunpack.c.h.b16 %v546
        %v661 = vunpack.c.l.b16 %v547
        %v662 = vunpack.c.h.b16 %v547
        %v663 = vunpack.c.l.b16 %v548
        %v664 = vunpack.c.h.b16 %v548
        %v665 = vunpack.c.l.b16 %v549
        %v666 = vunpack.c.h.b16 %v549
        %v667 = vunpack.c.l.b16 %v550
        %v668 = vunpack.c.h.b16 %v550
        %v669 = vunpack.c.l.b16 %v551
        %v670 = vunpack.c.h.b16 %v551
        %v671 = vunpack.c.l.b16 %v552
        %v672 = vunpack.c.h.b16 %v552
        %v673 = vpack.c.b16 %v611, %v609
        %v674 = vpack.c.b16 %v612, %v610
        %v675 = vpack.c.b16 %v615, %v613
        %v676 = vpack.c.b16 %v616, %v614
        %v677 = vpack.c.b16 %v619, %v617
        %v678 = vpack.c.b16 %v620, %v618
        %v679 = vpack.c.b16 %v623, %v621
        %v680 = vpack.c.b16 %v624, %v622
        %v681 = vpack.c.b16 %v627, %v625
        %v682 = vpack.c.b16 %v628, %v626
        %v683 = vpack.c.b16 %v631, %v629
        %v684 = vpack.c.b16 %v632, %v630
        %v685 = vpack.c.b16 %v635, %v633
        %v686 = vpack.c.b16 %v636, %v634
        %v687 = vpack.c.b16 %v639, %v637
        %v688 = vpack.c.b16 %v640, %v638
        %v689 = vpack.c.b16 %v643, %v641
        %v690 = vpack.c.b16 %v644, %v642
        %v691 = vpack.c.b16 %v647, %v645
        %v692 = vpack.c.b16 %v648, %v646
        %v693 = vpack.c.b16 %v651, %v649
        %v694 = vpack.c.b16 %v652, %v650
        %v695 = vpack.c.b16 %v655, %v653
        %v696 = vpack.c.b16 %v656, %v654
        %v697 = vpack.c.b16 %v659, %v657
        %v698 = vpack.c.b16 %v660, %v658
        %v699 = vpack.c.b16 %v663, %v661
        %v700 = vpack.c.b16 %v664, %v662
        %v701 = vpack.c.b16 %v667, %v665
        %v702 = vpack.c.b16 %v668, %v666
        %v703 = vpack.c.b16 %v671, %v669
        %v704 = vpack.c.b16 %v672, %v670
        %v745 = vunpack.c.l.b16 %v553
        %v746 = vunpack.c.h.b16 %v553
        %v747 = vunpack.c.l.b16 %v554
        %v748 = vunpack.c.h.b16 %v554
        %v749 = vunpack.c.l.b16 %v555
        %v750 = vunpack.c.h.b16 %v555
        %v751 = vunpack.c.l.b16 %v556
        %v752 = vunpack.c.h.b16 %v556
        %v753 = vunpack.c.l.b16 %v557
        %v754 = vunpack.c.h.b16 %v557
        %v755 = vunpack.c.l.b16 %v558
        %v756 = vunpack.c.h.b16 %v558
        %v757 = vunpack.c.l.b16 %v559
        %v758 = vunpack.c.h.b16 %v559
        %v759 = vunpack.c.l.b16 %v560
        %v760 = vunpack.c.h.b16 %v560
        %v761 = vunpack.c.l.b16 %v561
        %v762 = vunpack.c.h.b16 %v561
        %v763 = vunpack.c.l.b16 %v562
        %v764 = vunpack.c.h.b16 %v562
        %v765 = vunpack.c.l.b16 %v563
        %v766 = vunpack.c.h.b16 %v563
        %v767 = vunpack.c.l.b16 %v564
        %v768 = vunpack.c.h.b16 %v564
        %v769 = vunpack.c.l.b16 %v565
        %v770 = vunpack.c.h.b16 %v565
        %v771 = vunpack.c.l.b16 %v566
        %v772 = vunpack.c.h.b16 %v566
        %v773 = vunpack.c.l.b16 %v567
        %v774 = vunpack.c.h.b16 %v567
        %v775 = vunpack.c.l.b16 %v568
        %v776 = vunpack.c.h.b16 %v568
        %v777 = vunpack.c.l.b16 %v569
        %v778 = vunpack.c.h.b16 %v569
        %v779 = vunpack.c.l.b16 %v570
        %v780 = vunpack.c.h.b16 %v570
        %v781 = vunpack.c.l.b16 %v571
        %v782 = vunpack.c.h.b16 %v571
        %v783 = vunpack.c.l.b16 %v572
        %v784 = vunpack.c.h.b16 %v572
        %v785 = vunpack.c.l.b16 %v573
        %v786 = vunpack.c.h.b16 %v573
        %v787 = vunpack.c.l.b16 %v574
        %v788 = vunpack.c.h.b16 %v574
        %v789 = vunpack.c.l.b16 %v575
        %v790 = vunpack.c.h.b16 %v575
        %v791 = vunpack.c.l.b16 %v576
        %v792 = vunpack.c.h.b16 %v576
        %v793 = vpack.c.b16 %v747, %v745
        %v794 = vpack.c.b16 %v748, %v746
        %v795 = vpack.c.b16 %v751, %v749
        %v796 = vpack.c.b16 %v752, %v750
        %v797 = vpack.c.b16 %v755, %v753
        %v798 = vpack.c.b16 %v756, %v754
        %v799 = vpack.c.b16 %v759, %v757
        %v800 = vpack.c.b16 %v760, %v758
        %v801 = vpack.c.b16 %v763, %v761
        %v802 = vpack.c.b16 %v764, %v762
        %v803 = vpack.c.b16 %v767, %v765
        %v804 = vpack.c.b16 %v768, %v766
        %v805 = vpack.c.b16 %v771, %v769
        %v806 = vpack.c.b16 %v772, %v770
        %v807 = vpack.c.b16 %v775, %v773
        %v808 = vpack.c.b16 %v776, %v774
        %v809 = vpack.c.b16 %v779, %v777
        %v810 = vpack.c.b16 %v780, %v778
        %v811 = vpack.c.b16 %v783, %v781
        %v812 = vpack.c.b16 %v784, %v782
        %v813 = vpack.c.b16 %v787, %v785
        %v814 = vpack.c.b16 %v788, %v786
        %v815 = vpack.c.b16 %v791, %v789
        %v816 = vpack.c.b16 %v792, %v790
        %vm841 = vcmask 523264
        %v843 = vsel %vm841, %v674, 0
        %v846 = vsel %vm841, %v676, 0
        %v849 = vsel %vm841, %v678, 0
        %v852 = vsel %vm841, %v680, 0
        %v855 = vsel %vm841, %v682, 0
        %v858 = vsel %vm841, %v684, 0
        %v861 = vsel %vm841, %v686, 0
        %v864 = vsel %vm841, %v688, 0
        %v867 = vsel %vm841, %v690, 0
        %v870 = vsel %vm841, %v692, 0
        %v873 = vsel %vm841, %v694, 0
        %v876 = vsel %vm841, %v696, 0
        %v879 = vsel %vm841, %v698, 0
        %v882 = vsel %vm841, %v700, 0
        %v885 = vsel %vm841, %v702, 0
        %v888 = vsel %vm841, %v704, 0
        %890 = vmatpush.bf16.msra.mxu0 %v807
        %891 = vmatpush.bf16.msra.mxu0 %v805
        %892 = vmatpush.bf16.msra.mxu0 %v803
        %893 = vmatpush.bf16.msra.mxu0 %v801
        %894 = vmatpush.bf16.msra.mxu0 %v799
        %895 = vmatpush.bf16.msra.mxu0 %v797
        %896 = vmatpush.bf16.msra.mxu0 %v795
        %897 = vmatpush.bf16.msra.mxu0 %v793
        %898 = vmatmul.bf16.gmra.mxu0 %v673
        %v899 = vpop.f32.mrf.mxu0
        %v900 = vadd.f32 0.0, %v899
        %v901 = vpop.f32.mrf.mxu0
        %v902 = vadd.f32 0.0, %v901
        %903 = vmatmul.bf16.gmra.mxu0 %v675
        %v904 = vpop.f32.mrf.mxu0
        %v905 = vadd.f32 0.0, %v904
        %v906 = vpop.f32.mrf.mxu0
        %v907 = vadd.f32 0.0, %v906
        %908 = vmatmul.bf16.gmra.mxu0 %v677
        %v909 = vpop.f32.mrf.mxu0
        %v910 = vadd.f32 0.0, %v909
        %v911 = vpop.f32.mrf.mxu0
        %v912 = vadd.f32 0.0, %v911
        %913 = vmatmul.bf16.gmra.mxu0 %v679
        %v914 = vpop.f32.mrf.mxu0
        %v915 = vadd.f32 0.0, %v914
        %v916 = vpop.f32.mrf.mxu0
        %v917 = vadd.f32 0.0, %v916
        %918 = vmatmul.bf16.gmra.mxu0 %v681
        %v919 = vpop.f32.mrf.mxu0
        %v920 = vadd.f32 0.0, %v919
        %v921 = vpop.f32.mrf.mxu0
        %v922 = vadd.f32 0.0, %v921
        %923 = vmatmul.bf16.gmra.mxu0 %v683
        %v924 = vpop.f32.mrf.mxu0
        %v925 = vadd.f32 0.0, %v924
        %v926 = vpop.f32.mrf.mxu0
        %v927 = vadd.f32 0.0, %v926
        %928 = vmatmul.bf16.gmra.mxu0 %v685
        %v929 = vpop.f32.mrf.mxu0
        %v930 = vadd.f32 0.0, %v929
        %v931 = vpop.f32.mrf.mxu0
        %v932 = vadd.f32 0.0, %v931
        %933 = vmatmul.bf16.gmra.mxu0 %v687
        %v934 = vpop.f32.mrf.mxu0
        %v935 = vadd.f32 0.0, %v934
        %v936 = vpop.f32.mrf.mxu0
        %v937 = vadd.f32 0.0, %v936
        %938 = vmatmul.bf16.gmra.mxu0 %v689
        %v939 = vpop.f32.mrf.mxu0
        %v940 = vadd.f32 0.0, %v939
        %v941 = vpop.f32.mrf.mxu0
        %v942 = vadd.f32 0.0, %v941
        %943 = vmatmul.bf16.gmra.mxu0 %v691
        %v944 = vpop.f32.mrf.mxu0
        %v945 = vadd.f32 0.0, %v944
        %v946 = vpop.f32.mrf.mxu0
        %v947 = vadd.f32 0.0, %v946
        %948 = vmatmul.bf16.gmra.mxu0 %v693
        %v949 = vpop.f32.mrf.mxu0
        %v950 = vadd.f32 0.0, %v949
        %v951 = vpop.f32.mrf.mxu0
        %v952 = vadd.f32 0.0, %v951
        %953 = vmatmul.bf16.gmra.mxu0 %v695
        %v954 = vpop.f32.mrf.mxu0
        %v955 = vadd.f32 0.0, %v954
        %v956 = vpop.f32.mrf.mxu0
        %v957 = vadd.f32 0.0, %v956
        %958 = vmatmul.bf16.gmra.mxu0 %v697
        %v959 = vpop.f32.mrf.mxu0
        %v960 = vadd.f32 0.0, %v959
        %v961 = vpop.f32.mrf.mxu0
        %v962 = vadd.f32 0.0, %v961
        %963 = vmatmul.bf16.gmra.mxu0 %v699
        %v964 = vpop.f32.mrf.mxu0
        %v965 = vadd.f32 0.0, %v964
        %v966 = vpop.f32.mrf.mxu0
        %v967 = vadd.f32 0.0, %v966
        %968 = vmatmul.bf16.gmra.mxu0 %v701
        %v969 = vpop.f32.mrf.mxu0
        %v970 = vadd.f32 0.0, %v969
        %v971 = vpop.f32.mrf.mxu0
        %v972 = vadd.f32 0.0, %v971
        %973 = vmatmul.bf16.gmra.mxu0 %v703
        %v974 = vpop.f32.mrf.mxu0
        %v975 = vadd.f32 0.0, %v974
        %v976 = vpop.f32.mrf.mxu0
        %v977 = vadd.f32 0.0, %v976
        %978 = vdwg.mxu0
        %979 = vmatpush.bf16.msra.mxu0 0
        %980 = vmatpush.bf16.msra.mxu0 0
        %981 = vmatpush.bf16.msra.mxu0 0
        %982 = vmatpush.bf16.msra.mxu0 0
        %983 = vmatpush.bf16.msra.mxu0 %v815
        %984 = vmatpush.bf16.msra.mxu0 %v813
        %985 = vmatpush.bf16.msra.mxu0 %v811
        %986 = vmatpush.bf16.msra.mxu0 %v809
        %987 = vmatmul.bf16.gmra.mxu0 %v843
        %v988 = vpop.f32.mrf.mxu0
        %v989 = vadd.f32 %v900, %v988
        %v990 = vpop.f32.mrf.mxu0
        %v991 = vadd.f32 %v902, %v990
        %992 = vmatmul.bf16.gmra.mxu0 %v846
        %v993 = vpop.f32.mrf.mxu0
        %v994 = vadd.f32 %v905, %v993
        %v995 = vpop.f32.mrf.mxu0
        %v996 = vadd.f32 %v907, %v995
        %997 = vmatmul.bf16.gmra.mxu0 %v849
        %v998 = vpop.f32.mrf.mxu0
        %v999 = vadd.f32 %v910, %v998
        %v1000 = vpop.f32.mrf.mxu0
        %v1001 = vadd.f32 %v912, %v1000
        %1002 = vmatmul.bf16.gmra.mxu0 %v852
        %v1003 = vpop.f32.mrf.mxu0
        %v1004 = vadd.f32 %v915, %v1003
        %v1005 = vpop.f32.mrf.mxu0
        %v1006 = vadd.f32 %v917, %v1005
        %1007 = vmatmul.bf16.gmra.mxu0 %v855
        %v1008 = vpop.f32.mrf.mxu0
        %v1009 = vadd.f32 %v920, %v1008
        %v1010 = vpop.f32.mrf.mxu0
        %v1011 = vadd.f32 %v922, %v1010
        %1012 = vmatmul.bf16.gmra.mxu0 %v858
        %v1013 = vpop.f32.mrf.mxu0
        %v1014 = vadd.f32 %v925, %v1013
        %v1015 = vpop.f32.mrf.mxu0
        %v1016 = vadd.f32 %v927, %v1015
        %1017 = vmatmul.bf16.gmra.mxu0 %v861
        %v1018 = vpop.f32.mrf.mxu0
        %v1019 = vadd.f32 %v930, %v1018
        %v1020 = vpop.f32.mrf.mxu0
        %v1021 = vadd.f32 %v932, %v1020
        %1022 = vmatmul.bf16.gmra.mxu0 %v864
        %v1023 = vpop.f32.mrf.mxu0
        %v1024 = vadd.f32 %v935, %v1023
        %v1025 = vpop.f32.mrf.mxu0
        %v1026 = vadd.f32 %v937, %v1025
        %1027 = vmatmul.bf16.gmra.mxu0 %v867
        %v1028 = vpop.f32.mrf.mxu0
        %v1029 = vadd.f32 %v940, %v1028
        %v1030 = vpop.f32.mrf.mxu0
        %v1031 = vadd.f32 %v942, %v1030
        %1032 = vmatmul.bf16.gmra.mxu0 %v870
        %v1033 = vpop.f32.mrf.mxu0
        %v1034 = vadd.f32 %v945, %v1033
        %v1035 = vpop.f32.mrf.mxu0
        %v1036 = vadd.f32 %v947, %v1035
        %1037 = vmatmul.bf16.gmra.mxu0 %v873
        %v1038 = vpop.f32.mrf.mxu0
        %v1039 = vadd.f32 %v950, %v1038
        %v1040 = vpop.f32.mrf.mxu0
        %v1041 = vadd.f32 %v952, %v1040
        %1042 = vmatmul.bf16.gmra.mxu0 %v876
        %v1043 = vpop.f32.mrf.mxu0
        %v1044 = vadd.f32 %v955, %v1043
        %v1045 = vpop.f32.mrf.mxu0
        %v1046 = vadd.f32 %v957, %v1045
        %1047 = vmatmul.bf16.gmra.mxu0 %v879
        %v1048 = vpop.f32.mrf.mxu0
        %v1049 = vadd.f32 %v960, %v1048
        %v1050 = vpop.f32.mrf.mxu0
        %v1051 = vadd.f32 %v962, %v1050
        %1052 = vmatmul.bf16.gmra.mxu0 %v882
        %v1053 = vpop.f32.mrf.mxu0
        %v1054 = vadd.f32 %v965, %v1053
        %v1055 = vpop.f32.mrf.mxu0
        %v1056 = vadd.f32 %v967, %v1055
        %1057 = vmatmul.bf16.gmra.mxu0 %v885
        %v1058 = vpop.f32.mrf.mxu0
        %v1059 = vadd.f32 %v970, %v1058
        %v1060 = vpop.f32.mrf.mxu0
        %v1061 = vadd.f32 %v972, %v1060
        %1062 = vmatmul.bf16.gmra.mxu0 %v888
        %v1063 = vpop.f32.mrf.mxu0
        %v1064 = vadd.f32 %v975, %v1063
        %v1065 = vpop.f32.mrf.mxu0
        %v1066 = vadd.f32 %v977, %v1065
        %1067 = vdwg.mxu0
        %1068 = vmatpush.bf16.msra.mxu0 %v808
        %1069 = vmatpush.bf16.msra.mxu0 %v806
        %1070 = vmatpush.bf16.msra.mxu0 %v804
        %1071 = vmatpush.bf16.msra.mxu0 %v802
        %1072 = vmatpush.bf16.msra.mxu0 %v800
        %1073 = vmatpush.bf16.msra.mxu0 %v798
        %1074 = vmatpush.bf16.msra.mxu0 %v796
        %1075 = vmatpush.bf16.msra.mxu0 %v794
        %1076 = vmatmul.bf16.gmra.mxu0 %v673
        %v1077 = vpop.f32.mrf.mxu0
        %v1078 = vadd.f32 0.0, %v1077
        %v1079 = vpop.f32.mrf.mxu0
        %v1080 = vadd.f32 0.0, %v1079
        %1081 = vmatmul.bf16.gmra.mxu0 %v675
        %v1082 = vpop.f32.mrf.mxu0
        %v1083 = vadd.f32 0.0, %v1082
        %v1084 = vpop.f32.mrf.mxu0
        %v1085 = vadd.f32 0.0, %v1084
        %1086 = vmatmul.bf16.gmra.mxu0 %v677
        %v1087 = vpop.f32.mrf.mxu0
        %v1088 = vadd.f32 0.0, %v1087
        %v1089 = vpop.f32.mrf.mxu0
        %v1090 = vadd.f32 0.0, %v1089
        %1091 = vmatmul.bf16.gmra.mxu0 %v679
        %v1092 = vpop.f32.mrf.mxu0
        %v1093 = vadd.f32 0.0, %v1092
        %v1094 = vpop.f32.mrf.mxu0
        %v1095 = vadd.f32 0.0, %v1094
        %1096 = vmatmul.bf16.gmra.mxu0 %v681
        %v1097 = vpop.f32.mrf.mxu0
        %v1098 = vadd.f32 0.0, %v1097
        %v1099 = vpop.f32.mrf.mxu0
        %v1100 = vadd.f32 0.0, %v1099
        %1101 = vmatmul.bf16.gmra.mxu0 %v683
        %v1102 = vpop.f32.mrf.mxu0
        %v1103 = vadd.f32 0.0, %v1102
        %v1104 = vpop.f32.mrf.mxu0
        %v1105 = vadd.f32 0.0, %v1104
        %1106 = vmatmul.bf16.gmra.mxu0 %v685
        %v1107 = vpop.f32.mrf.mxu0
        %v1108 = vadd.f32 0.0, %v1107
        %v1109 = vpop.f32.mrf.mxu0
        %v1110 = vadd.f32 0.0, %v1109
        %1111 = vmatmul.bf16.gmra.mxu0 %v687
        %v1112 = vpop.f32.mrf.mxu0
        %v1113 = vadd.f32 0.0, %v1112
        %v1114 = vpop.f32.mrf.mxu0
        %v1115 = vadd.f32 0.0, %v1114
        %1116 = vmatmul.bf16.gmra.mxu0 %v689
        %v1117 = vpop.f32.mrf.mxu0
        %v1118 = vadd.f32 0.0, %v1117
        %v1119 = vpop.f32.mrf.mxu0
        %v1120 = vadd.f32 0.0, %v1119
        %1121 = vmatmul.bf16.gmra.mxu0 %v691
        %v1122 = vpop.f32.mrf.mxu0
        %v1123 = vadd.f32 0.0, %v1122
        %v1124 = vpop.f32.mrf.mxu0
        %v1125 = vadd.f32 0.0, %v1124
        %1126 = vmatmul.bf16.gmra.mxu0 %v693
        %v1127 = vpop.f32.mrf.mxu0
        %v1128 = vadd.f32 0.0, %v1127
        %v1129 = vpop.f32.mrf.mxu0
        %v1130 = vadd.f32 0.0, %v1129
        %1131 = vmatmul.bf16.gmra.mxu0 %v695
        %v1132 = vpop.f32.mrf.mxu0
        %v1133 = vadd.f32 0.0, %v1132
        %v1134 = vpop.f32.mrf.mxu0
        %v1135 = vadd.f32 0.0, %v1134
        %1136 = vmatmul.bf16.gmra.mxu0 %v697
        %v1137 = vpop.f32.mrf.mxu0
        %v1138 = vadd.f32 0.0, %v1137
        %v1139 = vpop.f32.mrf.mxu0
        %v1140 = vadd.f32 0.0, %v1139
        %1141 = vmatmul.bf16.gmra.mxu0 %v699
        %v1142 = vpop.f32.mrf.mxu0
        %v1143 = vadd.f32 0.0, %v1142
        %v1144 = vpop.f32.mrf.mxu0
        %v1145 = vadd.f32 0.0, %v1144
        %1146 = vmatmul.bf16.gmra.mxu0 %v701
        %v1147 = vpop.f32.mrf.mxu0
        %v1148 = vadd.f32 0.0, %v1147
        %v1149 = vpop.f32.mrf.mxu0
        %v1150 = vadd.f32 0.0, %v1149
        %1151 = vmatmul.bf16.gmra.mxu0 %v703
        %v1152 = vpop.f32.mrf.mxu0
        %v1153 = vadd.f32 0.0, %v1152
        %v1154 = vpop.f32.mrf.mxu0
        %v1155 = vadd.f32 0.0, %v1154
        %1156 = vdwg.mxu0
        %1157 = vmatpush.bf16.msra.mxu0 0
        %1158 = vmatpush.bf16.msra.mxu0 0
        %1159 = vmatpush.bf16.msra.mxu0 0
        %1160 = vmatpush.bf16.msra.mxu0 0
        %1161 = vmatpush.bf16.msra.mxu0 %v816
        %1162 = vmatpush.bf16.msra.mxu0 %v814
        %1163 = vmatpush.bf16.msra.mxu0 %v812
        %1164 = vmatpush.bf16.msra.mxu0 %v810
        %1165 = vmatmul.bf16.gmra.mxu0 %v843
        %v1166 = vpop.f32.mrf.mxu0
        %v1167 = vadd.f32 %v1078, %v1166
        %v1168 = vpop.f32.mrf.mxu0
        %v1169 = vadd.f32 %v1080, %v1168
        %1170 = vmatmul.bf16.gmra.mxu0 %v846
        %v1171 = vpop.f32.mrf.mxu0
        %v1172 = vadd.f32 %v1083, %v1171
        %v1173 = vpop.f32.mrf.mxu0
        %v1174 = vadd.f32 %v1085, %v1173
        %1175 = vmatmul.bf16.gmra.mxu0 %v849
        %v1176 = vpop.f32.mrf.mxu0
        %v1177 = vadd.f32 %v1088, %v1176
        %v1178 = vpop.f32.mrf.mxu0
        %v1179 = vadd.f32 %v1090, %v1178
        %1180 = vmatmul.bf16.gmra.mxu0 %v852
        %v1181 = vpop.f32.mrf.mxu0
        %v1182 = vadd.f32 %v1093, %v1181
        %v1183 = vpop.f32.mrf.mxu0
        %v1184 = vadd.f32 %v1095, %v1183
        %1185 = vmatmul.bf16.gmra.mxu0 %v855
        %v1186 = vpop.f32.mrf.mxu0
        %v1187 = vadd.f32 %v1098, %v1186
        %v1188 = vpop.f32.mrf.mxu0
        %v1189 = vadd.f32 %v1100, %v1188
        %1190 = vmatmul.bf16.gmra.mxu0 %v858
        %v1191 = vpop.f32.mrf.mxu0
        %v1192 = vadd.f32 %v1103, %v1191
        %v1193 = vpop.f32.mrf.mxu0
        %v1194 = vadd.f32 %v1105, %v1193
        %1195 = vmatmul.bf16.gmra.mxu0 %v861
        %v1196 = vpop.f32.mrf.mxu0
        %v1197 = vadd.f32 %v1108, %v1196
        %v1198 = vpop.f32.mrf.mxu0
        %v1199 = vadd.f32 %v1110, %v1198
        %1200 = vmatmul.bf16.gmra.mxu0 %v864
        %v1201 = vpop.f32.mrf.mxu0
        %v1202 = vadd.f32 %v1113, %v1201
        %v1203 = vpop.f32.mrf.mxu0
        %v1204 = vadd.f32 %v1115, %v1203
        %1205 = vmatmul.bf16.gmra.mxu0 %v867
        %v1206 = vpop.f32.mrf.mxu0
        %v1207 = vadd.f32 %v1118, %v1206
        %v1208 = vpop.f32.mrf.mxu0
        %v1209 = vadd.f32 %v1120, %v1208
        %1210 = vmatmul.bf16.gmra.mxu0 %v870
        %v1211 = vpop.f32.mrf.mxu0
        %v1212 = vadd.f32 %v1123, %v1211
        %v1213 = vpop.f32.mrf.mxu0
        %v1214 = vadd.f32 %v1125, %v1213
        %1215 = vmatmul.bf16.gmra.mxu0 %v873
        %v1216 = vpop.f32.mrf.mxu0
        %v1217 = vadd.f32 %v1128, %v1216
        %v1218 = vpop.f32.mrf.mxu0
        %v1219 = vadd.f32 %v1130, %v1218
        %1220 = vmatmul.bf16.gmra.mxu0 %v876
        %v1221 = vpop.f32.mrf.mxu0
        %v1222 = vadd.f32 %v1133, %v1221
        %v1223 = vpop.f32.mrf.mxu0
        %v1224 = vadd.f32 %v1135, %v1223
        %1225 = vmatmul.bf16.gmra.mxu0 %v879
        %v1226 = vpop.f32.mrf.mxu0
        %v1227 = vadd.f32 %v1138, %v1226
        %v1228 = vpop.f32.mrf.mxu0
        %v1229 = vadd.f32 %v1140, %v1228
        %1230 = vmatmul.bf16.gmra.mxu0 %v882
        %v1231 = vpop.f32.mrf.mxu0
        %v1232 = vadd.f32 %v1143, %v1231
        %v1233 = vpop.f32.mrf.mxu0
        %v1234 = vadd.f32 %v1145, %v1233
        %1235 = vmatmul.bf16.gmra.mxu0 %v885
        %v1236 = vpop.f32.mrf.mxu0
        %v1237 = vadd.f32 %v1148, %v1236
        %v1238 = vpop.f32.mrf.mxu0
        %v1239 = vadd.f32 %v1150, %v1238
        %1240 = vmatmul.bf16.gmra.mxu0 %v888
        %v1241 = vpop.f32.mrf.mxu0
        %v1242 = vadd.f32 %v1153, %v1241
        %v1243 = vpop.f32.mrf.mxu0
        %v1244 = vadd.f32 %v1155, %v1243
        %1245 = vdwg.mxu0
        %v1246 = vld [vmem:[%s2] sm:$0x3]
        %v1248 = vperm.slane %v1246, 0
        %v1249 = vperm.slane %v1246, 1
        %v1252 = vmul.f32 %v989, %v1248
        %v1253 = vmul.f32 %v1167, %v1249
        %v1254 = vmul.f32 %v991, %v1248
        %v1255 = vmul.f32 %v1169, %v1249
        %v1256 = vmul.f32 %v994, %v1248
        %v1257 = vmul.f32 %v1172, %v1249
        %v1258 = vmul.f32 %v996, %v1248
        %v1259 = vmul.f32 %v1174, %v1249
        %v1260 = vmul.f32 %v999, %v1248
        %v1261 = vmul.f32 %v1177, %v1249
        %v1262 = vmul.f32 %v1001, %v1248
        %v1263 = vmul.f32 %v1179, %v1249
        %v1264 = vmul.f32 %v1004, %v1248
        %v1265 = vmul.f32 %v1182, %v1249
        %v1266 = vmul.f32 %v1006, %v1248
        %v1267 = vmul.f32 %v1184, %v1249
        %v1268 = vmul.f32 %v1009, %v1248
        %v1269 = vmul.f32 %v1187, %v1249
        %v1270 = vmul.f32 %v1011, %v1248
        %v1271 = vmul.f32 %v1189, %v1249
        %v1272 = vmul.f32 %v1014, %v1248
        %v1273 = vmul.f32 %v1192, %v1249
        %v1274 = vmul.f32 %v1016, %v1248
        %v1275 = vmul.f32 %v1194, %v1249
        %v1276 = vmul.f32 %v1019, %v1248
        %v1277 = vmul.f32 %v1197, %v1249
        %v1278 = vmul.f32 %v1021, %v1248
        %v1279 = vmul.f32 %v1199, %v1249
        %v1280 = vmul.f32 %v1024, %v1248
        %v1281 = vmul.f32 %v1202, %v1249
        %v1282 = vmul.f32 %v1026, %v1248
        %v1283 = vmul.f32 %v1204, %v1249
        %v1284 = vmul.f32 %v1029, %v1248
        %v1285 = vmul.f32 %v1207, %v1249
        %v1286 = vmul.f32 %v1031, %v1248
        %v1287 = vmul.f32 %v1209, %v1249
        %v1288 = vmul.f32 %v1034, %v1248
        %v1289 = vmul.f32 %v1212, %v1249
        %v1290 = vmul.f32 %v1036, %v1248
        %v1291 = vmul.f32 %v1214, %v1249
        %v1292 = vmul.f32 %v1039, %v1248
        %v1293 = vmul.f32 %v1217, %v1249
        %v1294 = vmul.f32 %v1041, %v1248
        %v1295 = vmul.f32 %v1219, %v1249
        %v1296 = vmul.f32 %v1044, %v1248
        %v1297 = vmul.f32 %v1222, %v1249
        %v1298 = vmul.f32 %v1046, %v1248
        %v1299 = vmul.f32 %v1224, %v1249
        %v1300 = vmul.f32 %v1049, %v1248
        %v1301 = vmul.f32 %v1227, %v1249
        %v1302 = vmul.f32 %v1051, %v1248
        %v1303 = vmul.f32 %v1229, %v1249
        %v1304 = vmul.f32 %v1054, %v1248
        %v1305 = vmul.f32 %v1232, %v1249
        %v1306 = vmul.f32 %v1056, %v1248
        %v1307 = vmul.f32 %v1234, %v1249
        %v1308 = vmul.f32 %v1059, %v1248
        %v1309 = vmul.f32 %v1237, %v1249
        %v1310 = vmul.f32 %v1061, %v1248
        %v1311 = vmul.f32 %v1239, %v1249
        %v1312 = vmul.f32 %v1064, %v1248
        %v1313 = vmul.f32 %v1242, %v1249
        %v1314 = vmul.f32 %v1066, %v1248
        %v1315 = vmul.f32 %v1244, %v1249
        %v1316 = vld [vmem:[%s3] sm:$0x3]
        %v1318 = vperm.slane %v1316, 0
        %v1319 = vperm.slane %v1316, 1
        %v1322 = vadd.f32 %v1252, %v1318
        %v1323 = vadd.f32 %v1253, %v1319
        %v1324 = vadd.f32 %v1254, %v1318
        %v1325 = vadd.f32 %v1255, %v1319
        %v1326 = vadd.f32 %v1256, %v1318
        %v1327 = vadd.f32 %v1257, %v1319
        %v1328 = vadd.f32 %v1258, %v1318
        %v1329 = vadd.f32 %v1259, %v1319
        %v1330 = vadd.f32 %v1260, %v1318
        %v1331 = vadd.f32 %v1261, %v1319
        %v1332 = vadd.f32 %v1262, %v1318
        %v1333 = vadd.f32 %v1263, %v1319
        %v1334 = vadd.f32 %v1264, %v1318
        %v1335 = vadd.f32 %v1265, %v1319
        %v1336 = vadd.f32 %v1266, %v1318
        %v1337 = vadd.f32 %v1267, %v1319
        %v1338 = vadd.f32 %v1268, %v1318
        %v1339 = vadd.f32 %v1269, %v1319
        %v1340 = vadd.f32 %v1270, %v1318
        %v1341 = vadd.f32 %v1271, %v1319
        %v1342 = vadd.f32 %v1272, %v1318
        %v1343 = vadd.f32 %v1273, %v1319
        %v1344 = vadd.f32 %v1274, %v1318
        %v1345 = vadd.f32 %v1275, %v1319
        %v1346 = vadd.f32 %v1276, %v1318
        %v1347 = vadd.f32 %v1277, %v1319
        %v1348 = vadd.f32 %v1278, %v1318
        %v1349 = vadd.f32 %v1279, %v1319
        %v1350 = vadd.f32 %v1280, %v1318
        %v1351 = vadd.f32 %v1281, %v1319
        %v1352 = vadd.f32 %v1282, %v1318
        %v1353 = vadd.f32 %v1283, %v1319
        %v1354 = vadd.f32 %v1284, %v1318
        %v1355 = vadd.f32 %v1285, %v1319
        %v1356 = vadd.f32 %v1286, %v1318
        %v1357 = vadd.f32 %v1287, %v1319
        %v1358 = vadd.f32 %v1288, %v1318
        %v1359 = vadd.f32 %v1289, %v1319
        %v1360 = vadd.f32 %v1290, %v1318
        %v1361 = vadd.f32 %v1291, %v1319
        %v1362 = vadd.f32 %v1292, %v1318
        %v1363 = vadd.f32 %v1293, %v1319
        %v1364 = vadd.f32 %v1294, %v1318
        %v1365 = vadd.f32 %v1295, %v1319
        %v1366 = vadd.f32 %v1296, %v1318
        %v1367 = vadd.f32 %v1297, %v1319
        %v1368 = vadd.f32 %v1298, %v1318
        %v1369 = vadd.f32 %v1299, %v1319
        %v1370 = vadd.f32 %v1300, %v1318
        %v1371 = vadd.f32 %v1301, %v1319
        %v1372 = vadd.f32 %v1302, %v1318
        %v1373 = vadd.f32 %v1303, %v1319
        %v1374 = vadd.f32 %v1304, %v1318
        %v1375 = vadd.f32 %v1305, %v1319
        %v1376 = vadd.f32 %v1306, %v1318
        %v1377 = vadd.f32 %v1307, %v1319
        %v1378 = vadd.f32 %v1308, %v1318
        %v1379 = vadd.f32 %v1309, %v1319
        %v1380 = vadd.f32 %v1310, %v1318
        %v1381 = vadd.f32 %v1311, %v1319
        %v1382 = vadd.f32 %v1312, %v1318
        %v1383 = vadd.f32 %v1313, %v1319
        %v1384 = vadd.f32 %v1314, %v1318
        %v1385 = vadd.f32 %v1315, %v1319
        %v1386 = vmax.f32 %v1322, 0.0
        %v1387 = vmax.f32 %v1323, 0.0
        %v1388 = vmax.f32 %v1324, 0.0
        %v1389 = vmax.f32 %v1325, 0.0
        %v1390 = vmax.f32 %v1326, 0.0
        %v1391 = vmax.f32 %v1327, 0.0
        %v1392 = vmax.f32 %v1328, 0.0
        %v1393 = vmax.f32 %v1329, 0.0
        %v1394 = vmax.f32 %v1330, 0.0
        %v1395 = vmax.f32 %v1331, 0.0
        %v1396 = vmax.f32 %v1332, 0.0
        %v1397 = vmax.f32 %v1333, 0.0
        %v1398 = vmax.f32 %v1334, 0.0
        %v1399 = vmax.f32 %v1335, 0.0
        %v1400 = vmax.f32 %v1336, 0.0
        %v1401 = vmax.f32 %v1337, 0.0
        %v1402 = vmax.f32 %v1338, 0.0
        %v1403 = vmax.f32 %v1339, 0.0
        %v1404 = vmax.f32 %v1340, 0.0
        %v1405 = vmax.f32 %v1341, 0.0
        %v1406 = vmax.f32 %v1342, 0.0
        %v1407 = vmax.f32 %v1343, 0.0
        %v1408 = vmax.f32 %v1344, 0.0
        %v1409 = vmax.f32 %v1345, 0.0
        %v1410 = vmax.f32 %v1346, 0.0
        %v1411 = vmax.f32 %v1347, 0.0
        %v1412 = vmax.f32 %v1348, 0.0
        %v1413 = vmax.f32 %v1349, 0.0
        %v1414 = vmax.f32 %v1350, 0.0
        %v1415 = vmax.f32 %v1351, 0.0
        %v1416 = vmax.f32 %v1352, 0.0
        %v1417 = vmax.f32 %v1353, 0.0
        %v1418 = vmax.f32 %v1354, 0.0
        %v1419 = vmax.f32 %v1355, 0.0
        %v1420 = vmax.f32 %v1356, 0.0
        %v1421 = vmax.f32 %v1357, 0.0
        %v1422 = vmax.f32 %v1358, 0.0
        %v1423 = vmax.f32 %v1359, 0.0
        %v1424 = vmax.f32 %v1360, 0.0
        %v1425 = vmax.f32 %v1361, 0.0
        %v1426 = vmax.f32 %v1362, 0.0
        %v1427 = vmax.f32 %v1363, 0.0
        %v1428 = vmax.f32 %v1364, 0.0
        %v1429 = vmax.f32 %v1365, 0.0
        %v1430 = vmax.f32 %v1366, 0.0
        %v1431 = vmax.f32 %v1367, 0.0
        %v1432 = vmax.f32 %v1368, 0.0
        %v1433 = vmax.f32 %v1369, 0.0
        %v1434 = vmax.f32 %v1370, 0.0
        %v1435 = vmax.f32 %v1371, 0.0
        %v1436 = vmax.f32 %v1372, 0.0
        %v1437 = vmax.f32 %v1373, 0.0
        %v1438 = vmax.f32 %v1374, 0.0
        %v1439 = vmax.f32 %v1375, 0.0
        %v1440 = vmax.f32 %v1376, 0.0
        %v1441 = vmax.f32 %v1377, 0.0
        %v1442 = vmax.f32 %v1378, 0.0
        %v1443 = vmax.f32 %v1379, 0.0
        %v1444 = vmax.f32 %v1380, 0.0
        %v1445 = vmax.f32 %v1381, 0.0
        %v1446 = vmax.f32 %v1382, 0.0
        %v1447 = vmax.f32 %v1383, 0.0
        %v1448 = vmax.f32 %v1384, 0.0
        %v1449 = vmax.f32 %v1385, 0.0
        %v1450 = vpack.c.bf16 %v1386, %v1386
        %v1451 = vpack.c.bf16 %v1388, %v1388
        %v1452 = vpack.c.bf16 %v1390, %v1390
        %v1453 = vpack.c.bf16 %v1392, %v1392
        %v1454 = vpack.c.bf16 %v1394, %v1394
        %v1455 = vpack.c.bf16 %v1396, %v1396
        %v1456 = vpack.c.bf16 %v1398, %v1398
        %v1457 = vpack.c.bf16 %v1400, %v1400
        %v1458 = vpack.c.bf16 %v1402, %v1402
        %v1459 = vpack.c.bf16 %v1404, %v1404
        %v1460 = vpack.c.bf16 %v1406, %v1406
        %v1461 = vpack.c.bf16 %v1408, %v1408
        %v1462 = vpack.c.bf16 %v1410, %v1410
        %v1463 = vpack.c.bf16 %v1412, %v1412
        %v1464 = vpack.c.bf16 %v1414, %v1414
        %v1465 = vpack.c.bf16 %v1416, %v1416
        %v1466 = vpack.c.bf16 %v1418, %v1418
        %v1467 = vpack.c.bf16 %v1420, %v1420
        %v1468 = vpack.c.bf16 %v1422, %v1422
        %v1469 = vpack.c.bf16 %v1424, %v1424
        %v1470 = vpack.c.bf16 %v1426, %v1426
        %v1471 = vpack.c.bf16 %v1428, %v1428
        %v1472 = vpack.c.bf16 %v1430, %v1430
        %v1473 = vpack.c.bf16 %v1432, %v1432
        %v1474 = vpack.c.bf16 %v1434, %v1434
        %v1475 = vpack.c.bf16 %v1436, %v1436
        %v1476 = vpack.c.bf16 %v1438, %v1438
        %v1477 = vpack.c.bf16 %v1440, %v1440
        %v1478 = vpack.c.bf16 %v1442, %v1442
        %v1479 = vpack.c.bf16 %v1444, %v1444
        %v1480 = vpack.c.bf16 %v1446, %v1446
        %v1481 = vpack.c.bf16 %v1448, %v1448
        %v1514 = vunpack.c.l.b16 %v1450
        %v1515 = vunpack.c.l.b16 %v1451
        %v1516 = vunpack.c.l.b16 %v1452
        %v1517 = vunpack.c.l.b16 %v1453
        %v1518 = vunpack.c.l.b16 %v1454
        %v1519 = vunpack.c.l.b16 %v1455
        %v1520 = vunpack.c.l.b16 %v1456
        %v1521 = vunpack.c.l.b16 %v1457
        %v1522 = vunpack.c.l.b16 %v1458
        %v1523 = vunpack.c.l.b16 %v1459
        %v1524 = vunpack.c.l.b16 %v1460
        %v1525 = vunpack.c.l.b16 %v1461
        %v1526 = vunpack.c.l.b16 %v1462
        %v1527 = vunpack.c.l.b16 %v1463
        %v1528 = vunpack.c.l.b16 %v1464
        %v1529 = vunpack.c.l.b16 %v1465
        %v1530 = vunpack.c.l.b16 %v1466
        %v1531 = vunpack.c.l.b16 %v1467
        %v1532 = vunpack.c.l.b16 %v1468
        %v1533 = vunpack.c.l.b16 %v1469
        %v1534 = vunpack.c.l.b16 %v1470
        %v1535 = vunpack.c.l.b16 %v1471
        %v1536 = vunpack.c.l.b16 %v1472
        %v1537 = vunpack.c.l.b16 %v1473
        %v1538 = vunpack.c.l.b16 %v1474
        %v1539 = vunpack.c.l.b16 %v1475
        %v1540 = vunpack.c.l.b16 %v1476
        %v1541 = vunpack.c.l.b16 %v1477
        %v1542 = vunpack.c.l.b16 %v1478
        %v1543 = vunpack.c.l.b16 %v1479
        %v1544 = vunpack.c.l.b16 %v1480
        %v1545 = vunpack.c.l.b16 %v1481
        %v1546 = vpack.c.b16 %v1515, %v1514
        %v1547 = vpack.c.b16 %v1517, %v1516
        %v1548 = vpack.c.b16 %v1519, %v1518
        %v1549 = vpack.c.b16 %v1521, %v1520
        %v1550 = vpack.c.b16 %v1523, %v1522
        %v1551 = vpack.c.b16 %v1525, %v1524
        %v1552 = vpack.c.b16 %v1527, %v1526
        %v1553 = vpack.c.b16 %v1529, %v1528
        %v1554 = vpack.c.b16 %v1531, %v1530
        %v1555 = vpack.c.b16 %v1533, %v1532
        %v1556 = vpack.c.b16 %v1535, %v1534
        %v1557 = vpack.c.b16 %v1537, %v1536
        %v1558 = vpack.c.b16 %v1539, %v1538
        %v1559 = vpack.c.b16 %v1541, %v1540
        %v1560 = vpack.c.b16 %v1543, %v1542
        %v1561 = vpack.c.b16 %v1545, %v1544
        %v1562 = vrot.slane %v1546, 7
        %v1563 = vrot.slane %v1547, 7
        %v1564 = vrot.slane %v1548, 7
        %v1565 = vrot.slane %v1549, 7
        %v1566 = vrot.slane %v1550, 7
        %v1567 = vrot.slane %v1551, 7
        %v1568 = vrot.slane %v1552, 7
        %v1569 = vrot.slane %v1553, 7
        %v1570 = vrot.slane %v1554, 7
        %v1571 = vrot.slane %v1555, 7
        %v1572 = vrot.slane %v1556, 7
        %v1573 = vrot.slane %v1557, 7
        %v1574 = vrot.slane %v1558, 7
        %v1575 = vrot.slane %v1559, 7
        %v1576 = vrot.slane %v1560, 7
        %v1577 = vrot.slane %v1561, 7
        %1578 = vrot.lane.b32.xlu0 %v1562, 64
        %v1579 = vpop.permute.xlu0 %1578
        %1580 = vrot.lane.b32.xlu0 %v1563, 64
        %v1581 = vpop.permute.xlu0 %1580
        %1582 = vrot.lane.b32.xlu0 %v1564, 64
        %v1583 = vpop.permute.xlu0 %1582
        %1584 = vrot.lane.b32.xlu0 %v1565, 64
        %v1585 = vpop.permute.xlu0 %1584
        %1586 = vrot.lane.b32.xlu0 %v1566, 64
        %v1587 = vpop.permute.xlu0 %1586
        %1588 = vrot.lane.b32.xlu0 %v1567, 64
        %v1589 = vpop.permute.xlu0 %1588
        %1590 = vrot.lane.b32.xlu0 %v1568, 64
        %v1591 = vpop.permute.xlu0 %1590
        %1592 = vrot.lane.b32.xlu0 %v1569, 64
        %v1593 = vpop.permute.xlu0 %1592
        %1594 = vrot.lane.b32.xlu0 %v1570, 64
        %v1595 = vpop.permute.xlu0 %1594
        %1596 = vrot.lane.b32.xlu0 %v1571, 64
        %v1597 = vpop.permute.xlu0 %1596
        %1598 = vrot.lane.b32.xlu0 %v1572, 64
        %v1599 = vpop.permute.xlu0 %1598
        %1600 = vrot.lane.b32.xlu0 %v1573, 64
        %v1601 = vpop.permute.xlu0 %1600
        %1602 = vrot.lane.b32.xlu0 %v1574, 64
        %v1603 = vpop.permute.xlu0 %1602
        %1604 = vrot.lane.b32.xlu0 %v1575, 64
        %v1605 = vpop.permute.xlu0 %1604
        %1606 = vrot.lane.b32.xlu0 %v1576, 64
        %v1607 = vpop.permute.xlu0 %1606
        %1608 = vrot.lane.b32.xlu0 %v1577, 64
        %v1609 = vpop.permute.xlu0 %1608
        %vm1610 = vcmask 1040384
        %v1613 = vsel %vm1610, 0, %v1579
        %v1615 = vsel %vm1610, 0, %v1581
        %v1617 = vsel %vm1610, 0, %v1583
        %v1619 = vsel %vm1610, 0, %v1585
        %v1621 = vsel %vm1610, 0, %v1587
        %v1623 = vsel %vm1610, 0, %v1589
        %v1625 = vsel %vm1610, 0, %v1591
        %v1627 = vsel %vm1610, 0, %v1593
        %v1629 = vsel %vm1610, 0, %v1595
        %v1631 = vsel %vm1610, 0, %v1597
        %v1633 = vsel %vm1610, 0, %v1599
        %v1635 = vsel %vm1610, 0, %v1601
        %v1637 = vsel %vm1610, 0, %v1603
        %v1639 = vsel %vm1610, 0, %v1605
        %v1641 = vsel %vm1610, 0, %v1607
        %v1643 = vsel %vm1610, 0, %v1609
        %v1644 = vsel %vm1610, %v1579, 0
        %v1645 = vsel %vm1610, %v1581, 0
        %v1646 = vsel %vm1610, %v1583, 0
        %v1647 = vsel %vm1610, %v1585, 0
        %v1648 = vsel %vm1610, %v1587, 0
        %v1649 = vsel %vm1610, %v1589, 0
        %v1650 = vsel %vm1610, %v1591, 0
        %v1651 = vsel %vm1610, %v1593, 0
        %v1652 = vsel %vm1610, %v1595, 0
        %v1653 = vsel %vm1610, %v1597, 0
        %v1654 = vsel %vm1610, %v1599, 0
        %v1655 = vsel %vm1610, %v1601, 0
        %v1656 = vsel %vm1610, %v1603, 0
        %v1657 = vsel %vm1610, %v1605, 0
        %v1658 = vsel %vm1610, %v1607, 0
        %v1659 = vsel %vm1610, %v1609, 0
        %vm1660 = vsmask.f32 7424
        %v1661 = vshrl.u32 0, 16
        %v1663 = vshll.u32 0, 16
        %v1665 = vrot.slane %v1663, 1
        %v1666 = vor.u32 %v1661, %v1665
        %v1667 = vsel %vm1660, %v1666, %v1665
        %v1668 = vshrl.u32 %v1613, 16
        %v1670 = vshll.u32 %v1613, 16
        %v1672 = vrot.slane %v1670, 1
        %v1673 = vor.u32 %v1668, %v1672
        %v1674 = vshll.u32 %v1644, 16
        %v1676 = vrot.slane %v1674, 1
        %v1677 = vsel %vm1660, %v1673, %v1676
        %v1678 = vshrl.u32 %v1615, 16
        %v1680 = vshll.u32 %v1615, 16
        %v1682 = vrot.slane %v1680, 1
        %v1683 = vor.u32 %v1678, %v1682
        %v1684 = vshll.u32 %v1645, 16
        %v1686 = vrot.slane %v1684, 1
        %v1687 = vsel %vm1660, %v1683, %v1686
        %v1688 = vshrl.u32 %v1617, 16
        %v1690 = vshll.u32 %v1617, 16
        %v1692 = vrot.slane %v1690, 1
        %v1693 = vor.u32 %v1688, %v1692
        %v1694 = vshll.u32 %v1646, 16
        %v1696 = vrot.slane %v1694, 1
        %v1697 = vsel %vm1660, %v1693, %v1696
        %v1698 = vshrl.u32 %v1619, 16
        %v1700 = vshll.u32 %v1619, 16
        %v1702 = vrot.slane %v1700, 1
        %v1703 = vor.u32 %v1698, %v1702
        %v1704 = vshll.u32 %v1647, 16
        %v1706 = vrot.slane %v1704, 1
        %v1707 = vsel %vm1660, %v1703, %v1706
        %v1708 = vshrl.u32 %v1621, 16
        %v1710 = vshll.u32 %v1621, 16
        %v1712 = vrot.slane %v1710, 1
        %v1713 = vor.u32 %v1708, %v1712
        %v1714 = vshll.u32 %v1648, 16
        %v1716 = vrot.slane %v1714, 1
        %v1717 = vsel %vm1660, %v1713, %v1716
        %v1718 = vshrl.u32 %v1623, 16
        %v1720 = vshll.u32 %v1623, 16
        %v1722 = vrot.slane %v1720, 1
        %v1723 = vor.u32 %v1718, %v1722
        %v1724 = vshll.u32 %v1649, 16
        %v1726 = vrot.slane %v1724, 1
        %v1727 = vsel %vm1660, %v1723, %v1726
        %v1728 = vshrl.u32 %v1625, 16
        %v1730 = vshll.u32 %v1625, 16
        %v1732 = vrot.slane %v1730, 1
        %v1733 = vor.u32 %v1728, %v1732
        %v1734 = vshll.u32 %v1650, 16
        %v1736 = vrot.slane %v1734, 1
        %v1737 = vsel %vm1660, %v1733, %v1736
        %v1738 = vshrl.u32 %v1627, 16
        %v1740 = vshll.u32 %v1627, 16
        %v1742 = vrot.slane %v1740, 1
        %v1743 = vor.u32 %v1738, %v1742
        %v1744 = vshll.u32 %v1651, 16
        %v1746 = vrot.slane %v1744, 1
        %v1747 = vsel %vm1660, %v1743, %v1746
        %v1748 = vshrl.u32 %v1629, 16
        %v1750 = vshll.u32 %v1629, 16
        %v1752 = vrot.slane %v1750, 1
        %v1753 = vor.u32 %v1748, %v1752
        %v1754 = vshll.u32 %v1652, 16
        %v1756 = vrot.slane %v1754, 1
        %v1757 = vsel %vm1660, %v1753, %v1756
        %v1758 = vshrl.u32 %v1631, 16
        %v1760 = vshll.u32 %v1631, 16
        %v1762 = vrot.slane %v1760, 1
        %v1763 = vor.u32 %v1758, %v1762
        %v1764 = vshll.u32 %v1653, 16
        %v1766 = vrot.slane %v1764, 1
        %v1767 = vsel %vm1660, %v1763, %v1766
        %v1768 = vshrl.u32 %v1633, 16
        %v1770 = vshll.u32 %v1633, 16
        %v1772 = vrot.slane %v1770, 1
        %v1773 = vor.u32 %v1768, %v1772
        %v1774 = vshll.u32 %v1654, 16
        %v1776 = vrot.slane %v1774, 1
        %v1777 = vsel %vm1660, %v1773, %v1776
        %v1778 = vshrl.u32 %v1635, 16
        %v1780 = vshll.u32 %v1635, 16
        %v1782 = vrot.slane %v1780, 1
        %v1783 = vor.u32 %v1778, %v1782
        %v1784 = vshll.u32 %v1655, 16
        %v1786 = vrot.slane %v1784, 1
        %v1787 = vsel %vm1660, %v1783, %v1786
        %v1788 = vshrl.u32 %v1637, 16
        %v1790 = vshll.u32 %v1637, 16
        %v1792 = vrot.slane %v1790, 1
        %v1793 = vor.u32 %v1788, %v1792
        %v1794 = vshll.u32 %v1656, 16
        %v1796 = vrot.slane %v1794, 1
        %v1797 = vsel %vm1660, %v1793, %v1796
        %v1798 = vshrl.u32 %v1639, 16
        %v1800 = vshll.u32 %v1639, 16
        %v1802 = vrot.slane %v1800, 1
        %v1803 = vor.u32 %v1798, %v1802
        %v1804 = vshll.u32 %v1657, 16
        %v1806 = vrot.slane %v1804, 1
        %v1807 = vsel %vm1660, %v1803, %v1806
        %v1808 = vshrl.u32 %v1641, 16
        %v1810 = vshll.u32 %v1641, 16
        %v1812 = vrot.slane %v1810, 1
        %v1813 = vor.u32 %v1808, %v1812
        %v1814 = vshll.u32 %v1658, 16
        %v1816 = vrot.slane %v1814, 1
        %v1817 = vsel %vm1660, %v1813, %v1816
        %v1818 = vshrl.u32 %v1643, 16
        %v1820 = vshll.u32 %v1643, 16
        %v1822 = vrot.slane %v1820, 1
        %v1823 = vor.u32 %v1818, %v1822
        %v1824 = vshll.u32 %v1659, 16
        %v1826 = vrot.slane %v1824, 1
        %v1827 = vsel %vm1660, %v1823, %v1826
        %1828 = vrot.lane.b32.xlu0 %v1667, 48
        %v1829 = vpop.permute.xlu0 %1828
        %1830 = vrot.lane.b32.xlu0 %v1677, 48
        %v1831 = vpop.permute.xlu0 %1830
        %1832 = vrot.lane.b32.xlu0 %v1687, 48
        %v1833 = vpop.permute.xlu0 %1832
        %1834 = vrot.lane.b32.xlu0 %v1697, 48
        %v1835 = vpop.permute.xlu0 %1834
        %1836 = vrot.lane.b32.xlu0 %v1707, 48
        %v1837 = vpop.permute.xlu0 %1836
        %1838 = vrot.lane.b32.xlu0 %v1717, 48
        %v1839 = vpop.permute.xlu0 %1838
        %1840 = vrot.lane.b32.xlu0 %v1727, 48
        %v1841 = vpop.permute.xlu0 %1840
        %1842 = vrot.lane.b32.xlu0 %v1737, 48
        %v1843 = vpop.permute.xlu0 %1842
        %1844 = vrot.lane.b32.xlu0 %v1747, 48
        %v1845 = vpop.permute.xlu0 %1844
        %1846 = vrot.lane.b32.xlu0 %v1757, 48
        %v1847 = vpop.permute.xlu0 %1846
        %1848 = vrot.lane.b32.xlu0 %v1767, 48
        %v1849 = vpop.permute.xlu0 %1848
        %1850 = vrot.lane.b32.xlu0 %v1777, 48
        %v1851 = vpop.permute.xlu0 %1850
        %1852 = vrot.lane.b32.xlu0 %v1787, 48
        %v1853 = vpop.permute.xlu0 %1852
        %1854 = vrot.lane.b32.xlu0 %v1797, 48
        %v1855 = vpop.permute.xlu0 %1854
        %1856 = vrot.lane.b32.xlu0 %v1807, 48
        %v1857 = vpop.permute.xlu0 %1856
        %1858 = vrot.lane.b32.xlu0 %v1817, 48
        %v1859 = vpop.permute.xlu0 %1858
        %1860 = vrot.lane.b32.xlu0 %v1827, 48
        %v1861 = vpop.permute.xlu0 %1860
        %vm1895 = vcmask 1046528
        %v1896 = vrot.slane 0, 1
        %v1897 = vsel %vm1895, %v1896, %v1896
        %v1898 = vrot.slane %v1613, 1
        %v1899 = vrot.slane %v1644, 1
        %v1900 = vsel %vm1895, %v1898, %v1899
        %v1901 = vrot.slane %v1615, 1
        %v1902 = vrot.slane %v1645, 1
        %v1903 = vsel %vm1895, %v1901, %v1902
        %v1904 = vrot.slane %v1617, 1
        %v1905 = vrot.slane %v1646, 1
        %v1906 = vsel %vm1895, %v1904, %v1905
        %v1907 = vrot.slane %v1619, 1
        %v1908 = vrot.slane %v1647, 1
        %v1909 = vsel %vm1895, %v1907, %v1908
        %v1910 = vrot.slane %v1621, 1
        %v1911 = vrot.slane %v1648, 1
        %v1912 = vsel %vm1895, %v1910, %v1911
        %v1913 = vrot.slane %v1623, 1
        %v1914 = vrot.slane %v1649, 1
        %v1915 = vsel %vm1895, %v1913, %v1914
        %v1916 = vrot.slane %v1625, 1
        %v1917 = vrot.slane %v1650, 1
        %v1918 = vsel %vm1895, %v1916, %v1917
        %v1919 = vrot.slane %v1627, 1
        %v1920 = vrot.slane %v1651, 1
        %v1921 = vsel %vm1895, %v1919, %v1920
        %v1922 = vrot.slane %v1629, 1
        %v1923 = vrot.slane %v1652, 1
        %v1924 = vsel %vm1895, %v1922, %v1923
        %v1925 = vrot.slane %v1631, 1
        %v1926 = vrot.slane %v1653, 1
        %v1927 = vsel %vm1895, %v1925, %v1926
        %v1928 = vrot.slane %v1633, 1
        %v1929 = vrot.slane %v1654, 1
        %v1930 = vsel %vm1895, %v1928, %v1929
        %v1931 = vrot.slane %v1635, 1
        %v1932 = vrot.slane %v1655, 1
        %v1933 = vsel %vm1895, %v1931, %v1932
        %v1934 = vrot.slane %v1637, 1
        %v1935 = vrot.slane %v1656, 1
        %v1936 = vsel %vm1895, %v1934, %v1935
        %v1937 = vrot.slane %v1639, 1
        %v1938 = vrot.slane %v1657, 1
        %v1939 = vsel %vm1895, %v1937, %v1938
        %v1940 = vrot.slane %v1641, 1
        %v1941 = vrot.slane %v1658, 1
        %v1942 = vsel %vm1895, %v1940, %v1941
        %v1943 = vrot.slane %v1643, 1
        %v1944 = vrot.slane %v1659, 1
        %v1945 = vsel %vm1895, %v1943, %v1944
        %1946 = vrot.lane.b32.xlu0 %v1897, 96
        %v1947 = vpop.permute.xlu0 %1946
        %1948 = vrot.lane.b32.xlu0 %v1900, 96
        %v1949 = vpop.permute.xlu0 %1948
        %1950 = vrot.lane.b32.xlu0 %v1903, 96
        %v1951 = vpop.permute.xlu0 %1950
        %1952 = vrot.lane.b32.xlu0 %v1906, 96
        %v1953 = vpop.permute.xlu0 %1952
        %1954 = vrot.lane.b32.xlu0 %v1909, 96
        %v1955 = vpop.permute.xlu0 %1954
        %1956 = vrot.lane.b32.xlu0 %v1912, 96
        %v1957 = vpop.permute.xlu0 %1956
        %1958 = vrot.lane.b32.xlu0 %v1915, 96
        %v1959 = vpop.permute.xlu0 %1958
        %1960 = vrot.lane.b32.xlu0 %v1918, 96
        %v1961 = vpop.permute.xlu0 %1960
        %1962 = vrot.lane.b32.xlu0 %v1921, 96
        %v1963 = vpop.permute.xlu0 %1962
        %1964 = vrot.lane.b32.xlu0 %v1924, 96
        %v1965 = vpop.permute.xlu0 %1964
        %1966 = vrot.lane.b32.xlu0 %v1927, 96
        %v1967 = vpop.permute.xlu0 %1966
        %1968 = vrot.lane.b32.xlu0 %v1930, 96
        %v1969 = vpop.permute.xlu0 %1968
        %1970 = vrot.lane.b32.xlu0 %v1933, 96
        %v1971 = vpop.permute.xlu0 %1970
        %1972 = vrot.lane.b32.xlu0 %v1936, 96
        %v1973 = vpop.permute.xlu0 %1972
        %1974 = vrot.lane.b32.xlu0 %v1939, 96
        %v1975 = vpop.permute.xlu0 %1974
        %1976 = vrot.lane.b32.xlu0 %v1942, 96
        %v1977 = vpop.permute.xlu0 %1976
        %1978 = vrot.lane.b32.xlu0 %v1945, 96
        %v1979 = vpop.permute.xlu0 %1978
        %vm1980 = vsmask.f32 6400
        %v1981 = vrot.slane %v1661, 1
        %v1982 = vrot.slane %v1663, 2
        %v1983 = vor.u32 %v1981, %v1982
        %v1984 = vsel %vm1980, %v1983, %v1983
        %v1985 = vrot.slane %v1668, 1
        %v1986 = vrot.slane %v1670, 2
        %v1987 = vor.u32 %v1985, %v1986
        %v1988 = vshrl.u32 %v1644, 16
        %v1990 = vrot.slane %v1988, 1
        %v1991 = vrot.slane %v1674, 2
        %v1992 = vor.u32 %v1990, %v1991
        %v1993 = vsel %vm1980, %v1987, %v1992
        %v1994 = vrot.slane %v1678, 1
        %v1995 = vrot.slane %v1680, 2
        %v1996 = vor.u32 %v1994, %v1995
        %v1997 = vshrl.u32 %v1645, 16
        %v1999 = vrot.slane %v1997, 1
        %v2000 = vrot.slane %v1684, 2
        %v2001 = vor.u32 %v1999, %v2000
        %v2002 = vsel %vm1980, %v1996, %v2001
        %v2003 = vrot.slane %v1688, 1
        %v2004 = vrot.slane %v1690, 2
        %v2005 = vor.u32 %v2003, %v2004
        %v2006 = vshrl.u32 %v1646, 16
        %v2008 = vrot.slane %v2006, 1
        %v2009 = vrot.slane %v1694, 2
        %v2010 = vor.u32 %v2008, %v2009
        %v2011 = vsel %vm1980, %v2005, %v2010
        %v2012 = vrot.slane %v1698, 1
        %v2013 = vrot.slane %v1700, 2
        %v2014 = vor.u32 %v2012, %v2013
        %v2015 = vshrl.u32 %v1647, 16
        %v2017 = vrot.slane %v2015, 1
        %v2018 = vrot.slane %v1704, 2
        %v2019 = vor.u32 %v2017, %v2018
        %v2020 = vsel %vm1980, %v2014, %v2019
        %v2021 = vrot.slane %v1708, 1
        %v2022 = vrot.slane %v1710, 2
        %v2023 = vor.u32 %v2021, %v2022
        %v2024 = vshrl.u32 %v1648, 16
        %v2026 = vrot.slane %v2024, 1
        %v2027 = vrot.slane %v1714, 2
        %v2028 = vor.u32 %v2026, %v2027
        %v2029 = vsel %vm1980, %v2023, %v2028
        %v2030 = vrot.slane %v1718, 1
        %v2031 = vrot.slane %v1720, 2
        %v2032 = vor.u32 %v2030, %v2031
        %v2033 = vshrl.u32 %v1649, 16
        %v2035 = vrot.slane %v2033, 1
        %v2036 = vrot.slane %v1724, 2
        %v2037 = vor.u32 %v2035, %v2036
        %v2038 = vsel %vm1980, %v2032, %v2037
        %v2039 = vrot.slane %v1728, 1
        %v2040 = vrot.slane %v1730, 2
        %v2041 = vor.u32 %v2039, %v2040
        %v2042 = vshrl.u32 %v1650, 16
        %v2044 = vrot.slane %v2042, 1
        %v2045 = vrot.slane %v1734, 2
        %v2046 = vor.u32 %v2044, %v2045
        %v2047 = vsel %vm1980, %v2041, %v2046
        %v2048 = vrot.slane %v1738, 1
        %v2049 = vrot.slane %v1740, 2
        %v2050 = vor.u32 %v2048, %v2049
        %v2051 = vshrl.u32 %v1651, 16
        %v2053 = vrot.slane %v2051, 1
        %v2054 = vrot.slane %v1744, 2
        %v2055 = vor.u32 %v2053, %v2054
        %v2056 = vsel %vm1980, %v2050, %v2055
        %v2057 = vrot.slane %v1748, 1
        %v2058 = vrot.slane %v1750, 2
        %v2059 = vor.u32 %v2057, %v2058
        %v2060 = vshrl.u32 %v1652, 16
        %v2062 = vrot.slane %v2060, 1
        %v2063 = vrot.slane %v1754, 2
        %v2064 = vor.u32 %v2062, %v2063
        %v2065 = vsel %vm1980, %v2059, %v2064
        %v2066 = vrot.slane %v1758, 1
        %v2067 = vrot.slane %v1760, 2
        %v2068 = vor.u32 %v2066, %v2067
        %v2069 = vshrl.u32 %v1653, 16
        %v2071 = vrot.slane %v2069, 1
        %v2072 = vrot.slane %v1764, 2
        %v2073 = vor.u32 %v2071, %v2072
        %v2074 = vsel %vm1980, %v2068, %v2073
        %v2075 = vrot.slane %v1768, 1
        %v2076 = vrot.slane %v1770, 2
        %v2077 = vor.u32 %v2075, %v2076
        %v2078 = vshrl.u32 %v1654, 16
        %v2080 = vrot.slane %v2078, 1
        %v2081 = vrot.slane %v1774, 2
        %v2082 = vor.u32 %v2080, %v2081
        %v2083 = vsel %vm1980, %v2077, %v2082
        %v2084 = vrot.slane %v1778, 1
        %v2085 = vrot.slane %v1780, 2
        %v2086 = vor.u32 %v2084, %v2085
        %v2087 = vshrl.u32 %v1655, 16
        %v2089 = vrot.slane %v2087, 1
        %v2090 = vrot.slane %v1784, 2
        %v2091 = vor.u32 %v2089, %v2090
        %v2092 = vsel %vm1980, %v2086, %v2091
        %v2093 = vrot.slane %v1788, 1
        %v2094 = vrot.slane %v1790, 2
        %v2095 = vor.u32 %v2093, %v2094
        %v2096 = vshrl.u32 %v1656, 16
        %v2098 = vrot.slane %v2096, 1
        %v2099 = vrot.slane %v1794, 2
        %v2100 = vor.u32 %v2098, %v2099
        %v2101 = vsel %vm1980, %v2095, %v2100
        %v2102 = vrot.slane %v1798, 1
        %v2103 = vrot.slane %v1800, 2
        %v2104 = vor.u32 %v2102, %v2103
        %v2105 = vshrl.u32 %v1657, 16
        %v2107 = vrot.slane %v2105, 1
        %v2108 = vrot.slane %v1804, 2
        %v2109 = vor.u32 %v2107, %v2108
        %v2110 = vsel %vm1980, %v2104, %v2109
        %v2111 = vrot.slane %v1808, 1
        %v2112 = vrot.slane %v1810, 2
        %v2113 = vor.u32 %v2111, %v2112
        %v2114 = vshrl.u32 %v1658, 16
        %v2116 = vrot.slane %v2114, 1
        %v2117 = vrot.slane %v1814, 2
        %v2118 = vor.u32 %v2116, %v2117
        %v2119 = vsel %vm1980, %v2113, %v2118
        %v2120 = vrot.slane %v1818, 1
        %v2121 = vrot.slane %v1820, 2
        %v2122 = vor.u32 %v2120, %v2121
        %v2123 = vshrl.u32 %v1659, 16
        %v2125 = vrot.slane %v2123, 1
        %v2126 = vrot.slane %v1824, 2
        %v2127 = vor.u32 %v2125, %v2126
        %v2128 = vsel %vm1980, %v2122, %v2127
        %2129 = vrot.lane.b32.xlu0 %v1984, 16
        %v2130 = vpop.permute.xlu0 %2129
        %2131 = vrot.lane.b32.xlu0 %v1993, 16
        %v2132 = vpop.permute.xlu0 %2131
        %2133 = vrot.lane.b32.xlu0 %v2002, 16
        %v2134 = vpop.permute.xlu0 %2133
        %2135 = vrot.lane.b32.xlu0 %v2011, 16
        %v2136 = vpop.permute.xlu0 %2135
        %2137 = vrot.lane.b32.xlu0 %v2020, 16
        %v2138 = vpop.permute.xlu0 %2137
        %2139 = vrot.lane.b32.xlu0 %v2029, 16
        %v2140 = vpop.permute.xlu0 %2139
        %2141 = vrot.lane.b32.xlu0 %v2038, 16
        %v2142 = vpop.permute.xlu0 %2141
        %2143 = vrot.lane.b32.xlu0 %v2047, 16
        %v2144 = vpop.permute.xlu0 %2143
        %2145 = vrot.lane.b32.xlu0 %v2056, 16
        %v2146 = vpop.permute.xlu0 %2145
        %2147 = vrot.lane.b32.xlu0 %v2065, 16
        %v2148 = vpop.permute.xlu0 %2147
        %2149 = vrot.lane.b32.xlu0 %v2074, 16
        %v2150 = vpop.permute.xlu0 %2149
        %2151 = vrot.lane.b32.xlu0 %v2083, 16
        %v2152 = vpop.permute.xlu0 %2151
        %2153 = vrot.lane.b32.xlu0 %v2092, 16
        %v2154 = vpop.permute.xlu0 %2153
        %2155 = vrot.lane.b32.xlu0 %v2101, 16
        %v2156 = vpop.permute.xlu0 %2155
        %2157 = vrot.lane.b32.xlu0 %v2110, 16
        %v2158 = vpop.permute.xlu0 %2157
        %2159 = vrot.lane.b32.xlu0 %v2119, 16
        %v2160 = vpop.permute.xlu0 %2159
        %2161 = vrot.lane.b32.xlu0 %v2128, 16
        %v2162 = vpop.permute.xlu0 %2161
        %vm2163 = vcmask 1045504
        %v2164 = vrot.slane 0, 2
        %v2165 = vsel %vm2163, %v2164, %v2164
        %v2166 = vrot.slane %v1613, 2
        %v2167 = vrot.slane %v1644, 2
        %v2168 = vsel %vm2163, %v2166, %v2167
        %v2169 = vrot.slane %v1615, 2
        %v2170 = vrot.slane %v1645, 2
        %v2171 = vsel %vm2163, %v2169, %v2170
        %v2172 = vrot.slane %v1617, 2
        %v2173 = vrot.slane %v1646, 2
        %v2174 = vsel %vm2163, %v2172, %v2173
        %v2175 = vrot.slane %v1619, 2
        %v2176 = vrot.slane %v1647, 2
        %v2177 = vsel %vm2163, %v2175, %v2176
        %v2178 = vrot.slane %v1621, 2
        %v2179 = vrot.slane %v1648, 2
        %v2180 = vsel %vm2163, %v2178, %v2179
        %v2181 = vrot.slane %v1623, 2
        %v2182 = vrot.slane %v1649, 2
        %v2183 = vsel %vm2163, %v2181, %v2182
        %v2184 = vrot.slane %v1625, 2
        %v2185 = vrot.slane %v1650, 2
        %v2186 = vsel %vm2163, %v2184, %v2185
        %v2187 = vrot.slane %v1627, 2
        %v2188 = vrot.slane %v1651, 2
        %v2189 = vsel %vm2163, %v2187, %v2188
        %v2190 = vrot.slane %v1629, 2
        %v2191 = vrot.slane %v1652, 2
        %v2192 = vsel %vm2163, %v2190, %v2191
        %v2193 = vrot.slane %v1631, 2
        %v2194 = vrot.slane %v1653, 2
        %v2195 = vsel %vm2163, %v2193, %v2194
        %v2196 = vrot.slane %v1633, 2
        %v2197 = vrot.slane %v1654, 2
        %v2198 = vsel %vm2163, %v2196, %v2197
        %v2199 = vrot.slane %v1635, 2
        %v2200 = vrot.slane %v1655, 2
        %v2201 = vsel %vm2163, %v2199, %v2200
        %v2202 = vrot.slane %v1637, 2
        %v2203 = vrot.slane %v1656, 2
        %v2204 = vsel %vm2163, %v2202, %v2203
        %v2205 = vrot.slane %v1639, 2
        %v2206 = vrot.slane %v1657, 2
        %v2207 = vsel %vm2163, %v2205, %v2206
        %v2208 = vrot.slane %v1641, 2
        %v2209 = vrot.slane %v1658, 2
        %v2210 = vsel %vm2163, %v2208, %v2209
        %v2211 = vrot.slane %v1643, 2
        %v2212 = vrot.slane %v1659, 2
        %v2213 = vsel %vm2163, %v2211, %v2212
        %2214 = vrot.lane.b32.xlu0 %v2165, 64
        %v2215 = vpop.permute.xlu0 %2214
        %2216 = vrot.lane.b32.xlu0 %v2168, 64
        %v2217 = vpop.permute.xlu0 %2216
        %2218 = vrot.lane.b32.xlu0 %v2171, 64
        %v2219 = vpop.permute.xlu0 %2218
        %2220 = vrot.lane.b32.xlu0 %v2174, 64
        %v2221 = vpop.permute.xlu0 %2220
        %2222 = vrot.lane.b32.xlu0 %v2177, 64
        %v2223 = vpop.permute.xlu0 %2222
        %2224 = vrot.lane.b32.xlu0 %v2180, 64
        %v2225 = vpop.permute.xlu0 %2224
        %2226 = vrot.lane.b32.xlu0 %v2183, 64
        %v2227 = vpop.permute.xlu0 %2226
        %2228 = vrot.lane.b32.xlu0 %v2186, 64
        %v2229 = vpop.permute.xlu0 %2228
        %2230 = vrot.lane.b32.xlu0 %v2189, 64
        %v2231 = vpop.permute.xlu0 %2230
        %2232 = vrot.lane.b32.xlu0 %v2192, 64
        %v2233 = vpop.permute.xlu0 %2232
        %2234 = vrot.lane.b32.xlu0 %v2195, 64
        %v2235 = vpop.permute.xlu0 %2234
        %2236 = vrot.lane.b32.xlu0 %v2198, 64
        %v2237 = vpop.permute.xlu0 %2236
        %2238 = vrot.lane.b32.xlu0 %v2201, 64
        %v2239 = vpop.permute.xlu0 %2238
        %2240 = vrot.lane.b32.xlu0 %v2204, 64
        %v2241 = vpop.permute.xlu0 %2240
        %2242 = vrot.lane.b32.xlu0 %v2207, 64
        %v2243 = vpop.permute.xlu0 %2242
        %2244 = vrot.lane.b32.xlu0 %v2210, 64
        %v2245 = vpop.permute.xlu0 %2244
        %2246 = vrot.lane.b32.xlu0 %v2213, 64
        %v2247 = vpop.permute.xlu0 %2246
        %vm2248 = vcmask 392192
        %v2250 = vsel %vm2248, 0, %v1829
        %v2252 = vsel %vm2248, %v1613, %v1831
        %v2254 = vsel %vm2248, %v1615, %v1833
        %v2256 = vsel %vm2248, %v1617, %v1835
        %v2258 = vsel %vm2248, %v1619, %v1837
        %v2260 = vsel %vm2248, %v1621, %v1839
        %v2262 = vsel %vm2248, %v1623, %v1841
        %v2264 = vsel %vm2248, %v1625, %v1843
        %v2266 = vsel %vm2248, %v1627, %v1845
        %v2268 = vsel %vm2248, %v1629, %v1847
        %v2270 = vsel %vm2248, %v1631, %v1849
        %v2272 = vsel %vm2248, %v1633, %v1851
        %v2274 = vsel %vm2248, %v1635, %v1853
        %v2276 = vsel %vm2248, %v1637, %v1855
        %v2278 = vsel %vm2248, %v1639, %v1857
        %v2280 = vsel %vm2248, %v1641, %v1859
        %v2282 = vsel %vm2248, %v1643, %v1861
        %vm2283 = vcmask 785408
        %v2285 = vsel %vm2283, %v2250, %v1947
        %v2288 = vsel %vm2283, %v2252, %v1949
        %v2291 = vsel %vm2283, %v2254, %v1951
        %v2294 = vsel %vm2283, %v2256, %v1953
        %v2297 = vsel %vm2283, %v2258, %v1955
        %v2300 = vsel %vm2283, %v2260, %v1957
        %v2303 = vsel %vm2283, %v2262, %v1959
        %v2306 = vsel %vm2283, %v2264, %v1961
        %v2309 = vsel %vm2283, %v2266, %v1963
        %v2312 = vsel %vm2283, %v2268, %v1965
        %v2315 = vsel %vm2283, %v2270, %v1967
        %v2318 = vsel %vm2283, %v2272, %v1969
        %v2321 = vsel %vm2283, %v2274, %v1971
        %v2324 = vsel %vm2283, %v2276, %v1973
        %v2327 = vsel %vm2283, %v2278, %v1975
        %v2330 = vsel %vm2283, %v2280, %v1977
        %v2333 = vsel %vm2283, %v2282, %v1979
        %vm2335 = vcmask 130048
        %v2337 = vsel %vm2335, %v1947, %v2130
        %v2339 = vsel %vm2335, %v1949, %v2132
        %v2341 = vsel %vm2335, %v1951, %v2134
        %v2343 = vsel %vm2335, %v1953, %v2136
        %v2345 = vsel %vm2335, %v1955, %v2138
        %v2347 = vsel %vm2335, %v1957, %v2140
        %v2349 = vsel %vm2335, %v1959, %v2142
        %v2351 = vsel %vm2335, %v1961, %v2144
        %v2353 = vsel %vm2335, %v1963, %v2146
        %v2355 = vsel %vm2335, %v1965, %v2148
        %v2357 = vsel %vm2335, %v1967, %v2150
        %v2359 = vsel %vm2335, %v1969, %v2152
        %v2361 = vsel %vm2335, %v1971, %v2154
        %v2363 = vsel %vm2335, %v1973, %v2156
        %v2365 = vsel %vm2335, %v1975, %v2158
        %v2367 = vsel %vm2335, %v1977, %v2160
        %v2369 = vsel %vm2335, %v1979, %v2162
        %v2371 = vsel %vm841, %v2337, %v2215
        %v2373 = vsel %vm841, %v2339, %v2217
        %v2375 = vsel %vm841, %v2341, %v2219
        %v2377 = vsel %vm841, %v2343, %v2221
        %v2379 = vsel %vm841, %v2345, %v2223
        %v2381 = vsel %vm841, %v2347, %v2225
        %v2383 = vsel %vm841, %v2349, %v2227
        %v2385 = vsel %vm841, %v2351, %v2229
        %v2387 = vsel %vm841, %v2353, %v2231
        %v2389 = vsel %vm841, %v2355, %v2233
        %v2391 = vsel %vm841, %v2357, %v2235
        %v2393 = vsel %vm841, %v2359, %v2237
        %v2395 = vsel %vm841, %v2361, %v2239
        %v2397 = vsel %vm841, %v2363, %v2241
        %v2399 = vsel %vm841, %v2365, %v2243
        %v2401 = vsel %vm841, %v2367, %v2245
        %v2403 = vsel %vm841, %v2369, %v2247
        %v2404 = vld [vmem:[%s4] sm:$0xf]
        %v2405 = vld [vmem:[%s4 + $0x4] sm:$0xf]
        %v2406 = vld [vmem:[%s4 + $0x8] sm:$0xf]
        %v2407 = vld [vmem:[%s4 + $0xc] sm:$0xf]
        %v2408 = vld [vmem:[%s4 + $0x10] sm:$0xf]
        %v2409 = vld [vmem:[%s4 + $0x14] sm:$0xf]
        %v2410 = vld [vmem:[%s4 + $0x18] sm:$0xf]
        %v2411 = vld [vmem:[%s4 + $0x1c] sm:$0xf]
        %v2412 = vld [vmem:[%s4 + $0x20] sm:$0xf]
        %v2413 = vld [vmem:[%s4 + $0x24] sm:$0xf]
        %v2414 = vld [vmem:[%s4 + $0x28] sm:$0xf]
        %v2415 = vld [vmem:[%s4 + $0x2c] sm:$0xf]
        %v2416 = vld [vmem:[%s4 + $0x30] sm:$0xf]
        %v2417 = vld [vmem:[%s4 + $0x34] sm:$0xf]
        %v2418 = vld [vmem:[%s4 + $0x38] sm:$0xf]
        %v2419 = vld [vmem:[%s4 + $0x3c] sm:$0xf]
        %v2420 = vld [vmem:[%s4 + $0x40] sm:$0xf]
        %v2421 = vld [vmem:[%s4 + $0x44] sm:$0xf]
        %v2422 = vld [vmem:[%s4 + $0x48] sm:$0xf]
        %v2423 = vld [vmem:[%s4 + $0x4c] sm:$0xf]
        %v2424 = vld [vmem:[%s4 + $0x50] sm:$0xf]
        %v2425 = vld [vmem:[%s4 + $0x54] sm:$0xf]
        %v2426 = vld [vmem:[%s4 + $0x58] sm:$0xf]
        %v2427 = vld [vmem:[%s4 + $0x5c] sm:$0xf]
        %v2428 = vld [vmem:[%s4 + $0x60] sm:$0xf]
        %v2429 = vld [vmem:[%s4 + $0x64] sm:$0xf]
        %v2430 = vld [vmem:[%s4 + $0x68] sm:$0xf]
        %v2431 = vld [vmem:[%s4 + $0x6c] sm:$0xf]
        %v2432 = vld [vmem:[%s4 + $0x70] sm:$0xf]
        %v2433 = vld [vmem:[%s4 + $0x74] sm:$0xf]
        %s2434 = scalar_lea.vmem %s4, 120
        %v2435 = vld [vmem:[%s2434] sm:$0xf]
        %v2436 = vld [vmem:[%s2434 + $0x4] sm:$0xf]
        %v2437 = vld [vmem:[%s2434 + $0x8] sm:$0xf]
        %v2438 = vld [vmem:[%s2434 + $0xc] sm:$0xf]
        %v2439 = vld [vmem:[%s2434 + $0x10] sm:$0xf]
        %v2440 = vld [vmem:[%s2434 + $0x14] sm:$0xf]
        %v2441 = vld [vmem:[%s2434 + $0x18] sm:$0xf]
        %v2442 = vld [vmem:[%s2434 + $0x1c] sm:$0xf]
        %v2443 = vld [vmem:[%s2434 + $0x20] sm:$0xf]
        %v2444 = vld [vmem:[%s2434 + $0x24] sm:$0xf]
        %v2445 = vld [vmem:[%s2434 + $0x28] sm:$0xf]
        %v2446 = vld [vmem:[%s2434 + $0x2c] sm:$0xf]
        %v2447 = vld [vmem:[%s2434 + $0x30] sm:$0xf]
        %v2448 = vld [vmem:[%s2434 + $0x34] sm:$0xf]
        %v2449 = vld [vmem:[%s2434 + $0x38] sm:$0xf]
        %v2450 = vld [vmem:[%s2434 + $0x3c] sm:$0xf]
        %v2451 = vld [vmem:[%s2434 + $0x40] sm:$0xf]
        %v2452 = vld [vmem:[%s2434 + $0x44] sm:$0xf]
        %v2453 = vld [vmem:[%s2434 + $0x48] sm:$0xf]
        %v2454 = vld [vmem:[%s2434 + $0x4c] sm:$0xf]
        %v2455 = vld [vmem:[%s2434 + $0x50] sm:$0xf]
        %v2456 = vld [vmem:[%s2434 + $0x54] sm:$0xf]
        %v2457 = vld [vmem:[%s2434 + $0x58] sm:$0xf]
        %v2458 = vld [vmem:[%s2434 + $0x5c] sm:$0xf]
        %v2459 = vld [vmem:[%s2434 + $0x60] sm:$0xf]
        %v2460 = vld [vmem:[%s2434 + $0x64] sm:$0xf]
        %v2461 = vld [vmem:[%s2434 + $0x68] sm:$0xf]
        %v2462 = vld [vmem:[%s2434 + $0x6c] sm:$0xf]
        %v2463 = vld [vmem:[%s2434 + $0x70] sm:$0xf]
        %v2464 = vld [vmem:[%s2434 + $0x74] sm:$0xf]
        %v2495 = vunpack.c.l.b16 %v2435
        %v2496 = vunpack.c.l.b16 %v2436
        %v2497 = vunpack.c.l.b16 %v2437
        %v2498 = vunpack.c.l.b16 %v2438
        %v2499 = vunpack.c.l.b16 %v2439
        %v2500 = vunpack.c.l.b16 %v2440
        %v2501 = vunpack.c.l.b16 %v2441
        %v2502 = vunpack.c.l.b16 %v2442
        %v2503 = vunpack.c.l.b16 %v2443
        %v2504 = vunpack.c.l.b16 %v2444
        %v2505 = vunpack.c.l.b16 %v2445
        %v2506 = vunpack.c.l.b16 %v2446
        %v2507 = vunpack.c.l.b16 %v2447
        %v2508 = vunpack.c.l.b16 %v2448
        %v2509 = vunpack.c.l.b16 %v2449
        %v2510 = vunpack.c.l.b16 %v2450
        %v2511 = vunpack.c.l.b16 %v2451
        %v2512 = vunpack.c.l.b16 %v2452
        %v2513 = vunpack.c.l.b16 %v2453
        %v2514 = vunpack.c.l.b16 %v2454
        %v2515 = vunpack.c.l.b16 %v2455
        %v2516 = vunpack.c.l.b16 %v2456
        %v2517 = vunpack.c.l.b16 %v2457
        %v2518 = vunpack.c.l.b16 %v2458
        %v2519 = vunpack.c.l.b16 %v2459
        %v2520 = vunpack.c.l.b16 %v2460
        %v2521 = vunpack.c.l.b16 %v2461
        %v2522 = vunpack.c.l.b16 %v2462
        %v2523 = vunpack.c.l.b16 %v2463
        %v2524 = vunpack.c.l.b16 %v2464
        %v2525 = vpack.c.b16 %v2496, %v2495
        %v2526 = vpack.c.b16 %v2498, %v2497
        %v2527 = vpack.c.b16 %v2500, %v2499
        %v2528 = vpack.c.b16 %v2502, %v2501
        %v2529 = vpack.c.b16 %v2504, %v2503
        %v2530 = vpack.c.b16 %v2506, %v2505
        %v2531 = vpack.c.b16 %v2508, %v2507
        %v2532 = vpack.c.b16 %v2510, %v2509
        %v2533 = vpack.c.b16 %v2512, %v2511
        %v2534 = vpack.c.b16 %v2514, %v2513
        %v2535 = vpack.c.b16 %v2516, %v2515
        %v2536 = vpack.c.b16 %v2518, %v2517
        %v2537 = vpack.c.b16 %v2520, %v2519
        %v2538 = vpack.c.b16 %v2522, %v2521
        %v2539 = vpack.c.b16 %v2524, %v2523
        %vm2555 = vcmask 916480
        %v2556 = vsel %vm2555, %v2371, 0
        %v2558 = vsel %vm2555, %v2373, 0
        %v2560 = vsel %vm2555, %v2375, 0
        %v2562 = vsel %vm2555, %v2377, 0
        %v2564 = vsel %vm2555, %v2379, 0
        %v2566 = vsel %vm2555, %v2381, 0
        %v2568 = vsel %vm2555, %v2383, 0
        %v2570 = vsel %vm2555, %v2385, 0
        %v2572 = vsel %vm2555, %v2387, 0
        %v2574 = vsel %vm2555, %v2389, 0
        %v2576 = vsel %vm2555, %v2391, 0
        %v2578 = vsel %vm2555, %v2393, 0
        %v2580 = vsel %vm2555, %v2395, 0
        %v2582 = vsel %vm2555, %v2397, 0
        %v2584 = vsel %vm2555, %v2399, 0
        %v2586 = vsel %vm2555, %v2401, 0
        %2588 = vmatpush.bf16.msra.mxu0 %v2532
        %2589 = vmatpush.bf16.msra.mxu0 %v2531
        %2590 = vmatpush.bf16.msra.mxu0 %v2530
        %2591 = vmatpush.bf16.msra.mxu0 %v2529
        %2592 = vmatpush.bf16.msra.mxu0 %v2528
        %2593 = vmatpush.bf16.msra.mxu0 %v2527
        %2594 = vmatpush.bf16.msra.mxu0 %v2526
        %2595 = vmatpush.bf16.msra.mxu0 %v2525
        %2596 = vmatmul.bf16.gmra.mxu0 %v2285
        %v2597 = vpop.f32.mrf.mxu0
        %v2598 = vadd.f32 0.0, %v2597
        %v2599 = vpop.f32.mrf.mxu0
        %v2600 = vadd.f32 0.0, %v2599
        %2601 = vmatmul.bf16.gmra.mxu0 %v2288
        %v2602 = vpop.f32.mrf.mxu0
        %v2603 = vadd.f32 0.0, %v2602
        %v2604 = vpop.f32.mrf.mxu0
        %v2605 = vadd.f32 0.0, %v2604
        %2606 = vmatmul.bf16.gmra.mxu0 %v2291
        %v2607 = vpop.f32.mrf.mxu0
        %v2608 = vadd.f32 0.0, %v2607
        %v2609 = vpop.f32.mrf.mxu0
        %v2610 = vadd.f32 0.0, %v2609
        %2611 = vmatmul.bf16.gmra.mxu0 %v2294
        %v2612 = vpop.f32.mrf.mxu0
        %v2613 = vadd.f32 0.0, %v2612
        %v2614 = vpop.f32.mrf.mxu0
        %v2615 = vadd.f32 0.0, %v2614
        %2616 = vmatmul.bf16.gmra.mxu0 %v2297
        %v2617 = vpop.f32.mrf.mxu0
        %v2618 = vadd.f32 0.0, %v2617
        %v2619 = vpop.f32.mrf.mxu0
        %v2620 = vadd.f32 0.0, %v2619
        %2621 = vmatmul.bf16.gmra.mxu0 %v2300
        %v2622 = vpop.f32.mrf.mxu0
        %v2623 = vadd.f32 0.0, %v2622
        %v2624 = vpop.f32.mrf.mxu0
        %v2625 = vadd.f32 0.0, %v2624
        %2626 = vmatmul.bf16.gmra.mxu0 %v2303
        %v2627 = vpop.f32.mrf.mxu0
        %v2628 = vadd.f32 0.0, %v2627
        %v2629 = vpop.f32.mrf.mxu0
        %v2630 = vadd.f32 0.0, %v2629
        %2631 = vmatmul.bf16.gmra.mxu0 %v2306
        %v2632 = vpop.f32.mrf.mxu0
        %v2633 = vadd.f32 0.0, %v2632
        %v2634 = vpop.f32.mrf.mxu0
        %v2635 = vadd.f32 0.0, %v2634
        %2636 = vmatmul.bf16.gmra.mxu0 %v2309
        %v2637 = vpop.f32.mrf.mxu0
        %v2638 = vadd.f32 0.0, %v2637
        %v2639 = vpop.f32.mrf.mxu0
        %v2640 = vadd.f32 0.0, %v2639
        %2641 = vmatmul.bf16.gmra.mxu0 %v2312
        %v2642 = vpop.f32.mrf.mxu0
        %v2643 = vadd.f32 0.0, %v2642
        %v2644 = vpop.f32.mrf.mxu0
        %v2645 = vadd.f32 0.0, %v2644
        %2646 = vmatmul.bf16.gmra.mxu0 %v2315
        %v2647 = vpop.f32.mrf.mxu0
        %v2648 = vadd.f32 0.0, %v2647
        %v2649 = vpop.f32.mrf.mxu0
        %v2650 = vadd.f32 0.0, %v2649
        %2651 = vmatmul.bf16.gmra.mxu0 %v2318
        %v2652 = vpop.f32.mrf.mxu0
        %v2653 = vadd.f32 0.0, %v2652
        %v2654 = vpop.f32.mrf.mxu0
        %v2655 = vadd.f32 0.0, %v2654
        %2656 = vmatmul.bf16.gmra.mxu0 %v2321
        %v2657 = vpop.f32.mrf.mxu0
        %v2658 = vadd.f32 0.0, %v2657
        %v2659 = vpop.f32.mrf.mxu0
        %v2660 = vadd.f32 0.0, %v2659
        %2661 = vmatmul.bf16.gmra.mxu0 %v2324
        %v2662 = vpop.f32.mrf.mxu0
        %v2663 = vadd.f32 0.0, %v2662
        %v2664 = vpop.f32.mrf.mxu0
        %v2665 = vadd.f32 0.0, %v2664
        %2666 = vmatmul.bf16.gmra.mxu0 %v2327
        %v2667 = vpop.f32.mrf.mxu0
        %v2668 = vadd.f32 0.0, %v2667
        %v2669 = vpop.f32.mrf.mxu0
        %v2670 = vadd.f32 0.0, %v2669
        %2671 = vmatmul.bf16.gmra.mxu0 %v2330
        %v2672 = vpop.f32.mrf.mxu0
        %v2673 = vadd.f32 0.0, %v2672
        %v2674 = vpop.f32.mrf.mxu0
        %v2675 = vadd.f32 0.0, %v2674
        %2676 = vdwg.mxu0
        %2677 = vmatpush.bf16.msra.mxu0 0
        %2678 = vmatpush.bf16.msra.mxu0 %v2539
        %2679 = vmatpush.bf16.msra.mxu0 %v2538
        %2680 = vmatpush.bf16.msra.mxu0 %v2537
        %2681 = vmatpush.bf16.msra.mxu0 %v2536
        %2682 = vmatpush.bf16.msra.mxu0 %v2535
        %2683 = vmatpush.bf16.msra.mxu0 %v2534
        %2684 = vmatpush.bf16.msra.mxu0 %v2533
        %2685 = vmatmul.bf16.gmra.mxu0 %v2556
        %v2686 = vpop.f32.mrf.mxu0
        %v2687 = vadd.f32 %v2598, %v2686
        %v2688 = vpop.f32.mrf.mxu0
        %v2689 = vadd.f32 %v2600, %v2688
        %2690 = vmatmul.bf16.gmra.mxu0 %v2558
        %v2691 = vpop.f32.mrf.mxu0
        %v2692 = vadd.f32 %v2603, %v2691
        %v2693 = vpop.f32.mrf.mxu0
        %v2694 = vadd.f32 %v2605, %v2693
        %2695 = vmatmul.bf16.gmra.mxu0 %v2560
        %v2696 = vpop.f32.mrf.mxu0
        %v2697 = vadd.f32 %v2608, %v2696
        %v2698 = vpop.f32.mrf.mxu0
        %v2699 = vadd.f32 %v2610, %v2698
        %2700 = vmatmul.bf16.gmra.mxu0 %v2562
        %v2701 = vpop.f32.mrf.mxu0
        %v2702 = vadd.f32 %v2613, %v2701
        %v2703 = vpop.f32.mrf.mxu0
        %v2704 = vadd.f32 %v2615, %v2703
        %2705 = vmatmul.bf16.gmra.mxu0 %v2564
        %v2706 = vpop.f32.mrf.mxu0
        %v2707 = vadd.f32 %v2618, %v2706
        %v2708 = vpop.f32.mrf.mxu0
        %v2709 = vadd.f32 %v2620, %v2708
        %2710 = vmatmul.bf16.gmra.mxu0 %v2566
        %v2711 = vpop.f32.mrf.mxu0
        %v2712 = vadd.f32 %v2623, %v2711
        %v2713 = vpop.f32.mrf.mxu0
        %v2714 = vadd.f32 %v2625, %v2713
        %2715 = vmatmul.bf16.gmra.mxu0 %v2568
        %v2716 = vpop.f32.mrf.mxu0
        %v2717 = vadd.f32 %v2628, %v2716
        %v2718 = vpop.f32.mrf.mxu0
        %v2719 = vadd.f32 %v2630, %v2718
        %2720 = vmatmul.bf16.gmra.mxu0 %v2570
        %v2721 = vpop.f32.mrf.mxu0
        %v2722 = vadd.f32 %v2633, %v2721
        %v2723 = vpop.f32.mrf.mxu0
        %v2724 = vadd.f32 %v2635, %v2723
        %2725 = vmatmul.bf16.gmra.mxu0 %v2572
        %v2726 = vpop.f32.mrf.mxu0
        %v2727 = vadd.f32 %v2638, %v2726
        %v2728 = vpop.f32.mrf.mxu0
        %v2729 = vadd.f32 %v2640, %v2728
        %2730 = vmatmul.bf16.gmra.mxu0 %v2574
        %v2731 = vpop.f32.mrf.mxu0
        %v2732 = vadd.f32 %v2643, %v2731
        %v2733 = vpop.f32.mrf.mxu0
        %v2734 = vadd.f32 %v2645, %v2733
        %2735 = vmatmul.bf16.gmra.mxu0 %v2576
        %v2736 = vpop.f32.mrf.mxu0
        %v2737 = vadd.f32 %v2648, %v2736
        %v2738 = vpop.f32.mrf.mxu0
        %v2739 = vadd.f32 %v2650, %v2738
        %2740 = vmatmul.bf16.gmra.mxu0 %v2578
        %v2741 = vpop.f32.mrf.mxu0
        %v2742 = vadd.f32 %v2653, %v2741
        %v2743 = vpop.f32.mrf.mxu0
        %v2744 = vadd.f32 %v2655, %v2743
        %2745 = vmatmul.bf16.gmra.mxu0 %v2580
        %v2746 = vpop.f32.mrf.mxu0
        %v2747 = vadd.f32 %v2658, %v2746
        %v2748 = vpop.f32.mrf.mxu0
        %v2749 = vadd.f32 %v2660, %v2748
        %2750 = vmatmul.bf16.gmra.mxu0 %v2582
        %v2751 = vpop.f32.mrf.mxu0
        %v2752 = vadd.f32 %v2663, %v2751
        %v2753 = vpop.f32.mrf.mxu0
        %v2754 = vadd.f32 %v2665, %v2753
        %2755 = vmatmul.bf16.gmra.mxu0 %v2584
        %v2756 = vpop.f32.mrf.mxu0
        %v2757 = vadd.f32 %v2668, %v2756
        %v2758 = vpop.f32.mrf.mxu0
        %v2759 = vadd.f32 %v2670, %v2758
        %2760 = vmatmul.bf16.gmra.mxu0 %v2586
        %v2761 = vpop.f32.mrf.mxu0
        %v2762 = vadd.f32 %v2673, %v2761
        %v2763 = vpop.f32.mrf.mxu0
        %v2764 = vadd.f32 %v2675, %v2763
        %2765 = vdwg.mxu0
        %v2796 = vunpack.c.l.b16 %v2404
        %v2797 = vunpack.c.l.b16 %v2405
        %v2798 = vunpack.c.l.b16 %v2406
        %v2799 = vunpack.c.l.b16 %v2407
        %v2800 = vunpack.c.l.b16 %v2408
        %v2801 = vunpack.c.l.b16 %v2409
        %v2802 = vunpack.c.l.b16 %v2410
        %v2803 = vunpack.c.l.b16 %v2411
        %v2804 = vunpack.c.l.b16 %v2412
        %v2805 = vunpack.c.l.b16 %v2413
        %v2806 = vunpack.c.l.b16 %v2414
        %v2807 = vunpack.c.l.b16 %v2415
        %v2808 = vunpack.c.l.b16 %v2416
        %v2809 = vunpack.c.l.b16 %v2417
        %v2810 = vunpack.c.l.b16 %v2418
        %v2811 = vunpack.c.l.b16 %v2419
        %v2812 = vunpack.c.l.b16 %v2420
        %v2813 = vunpack.c.l.b16 %v2421
        %v2814 = vunpack.c.l.b16 %v2422
        %v2815 = vunpack.c.l.b16 %v2423
        %v2816 = vunpack.c.l.b16 %v2424
        %v2817 = vunpack.c.l.b16 %v2425
        %v2818 = vunpack.c.l.b16 %v2426
        %v2819 = vunpack.c.l.b16 %v2427
        %v2820 = vunpack.c.l.b16 %v2428
        %v2821 = vunpack.c.l.b16 %v2429
        %v2822 = vunpack.c.l.b16 %v2430
        %v2823 = vunpack.c.l.b16 %v2431
        %v2824 = vunpack.c.l.b16 %v2432
        %v2825 = vunpack.c.l.b16 %v2433
        %v2826 = vpack.c.b16 %v2797, %v2796
        %v2827 = vpack.c.b16 %v2799, %v2798
        %v2828 = vpack.c.b16 %v2801, %v2800
        %v2829 = vpack.c.b16 %v2803, %v2802
        %v2830 = vpack.c.b16 %v2805, %v2804
        %v2831 = vpack.c.b16 %v2807, %v2806
        %v2832 = vpack.c.b16 %v2809, %v2808
        %v2833 = vpack.c.b16 %v2811, %v2810
        %v2834 = vpack.c.b16 %v2813, %v2812
        %v2835 = vpack.c.b16 %v2815, %v2814
        %v2836 = vpack.c.b16 %v2817, %v2816
        %v2837 = vpack.c.b16 %v2819, %v2818
        %v2838 = vpack.c.b16 %v2821, %v2820
        %v2839 = vpack.c.b16 %v2823, %v2822
        %v2840 = vpack.c.b16 %v2825, %v2824
        %2856 = vmatpush.bf16.msra.mxu0 %v2833
        %2857 = vmatpush.bf16.msra.mxu0 %v2832
        %2858 = vmatpush.bf16.msra.mxu0 %v2831
        %2859 = vmatpush.bf16.msra.mxu0 %v2830
        %2860 = vmatpush.bf16.msra.mxu0 %v2829
        %2861 = vmatpush.bf16.msra.mxu0 %v2828
        %2862 = vmatpush.bf16.msra.mxu0 %v2827
        %2863 = vmatpush.bf16.msra.mxu0 %v2826
        %2864 = vmatmul.bf16.gmra.mxu0 %v2285
        %v2865 = vpop.f32.mrf.mxu0
        %v2866 = vadd.f32 %v2687, %v2865
        %v2867 = vpop.f32.mrf.mxu0
        %v2868 = vadd.f32 %v2689, %v2867
        %2869 = vmatmul.bf16.gmra.mxu0 %v2285
        %v2870 = vpop.f32.mrf.mxu0
        %v2871 = vadd.f32 %v2692, %v2870
        %v2872 = vpop.f32.mrf.mxu0
        %v2873 = vadd.f32 %v2694, %v2872
        %2874 = vmatmul.bf16.gmra.mxu0 %v2288
        %v2875 = vpop.f32.mrf.mxu0
        %v2876 = vadd.f32 %v2697, %v2875
        %v2877 = vpop.f32.mrf.mxu0
        %v2878 = vadd.f32 %v2699, %v2877
        %2879 = vmatmul.bf16.gmra.mxu0 %v2291
        %v2880 = vpop.f32.mrf.mxu0
        %v2881 = vadd.f32 %v2702, %v2880
        %v2882 = vpop.f32.mrf.mxu0
        %v2883 = vadd.f32 %v2704, %v2882
        %2884 = vmatmul.bf16.gmra.mxu0 %v2294
        %v2885 = vpop.f32.mrf.mxu0
        %v2886 = vadd.f32 %v2707, %v2885
        %v2887 = vpop.f32.mrf.mxu0
        %v2888 = vadd.f32 %v2709, %v2887
        %2889 = vmatmul.bf16.gmra.mxu0 %v2297
        %v2890 = vpop.f32.mrf.mxu0
        %v2891 = vadd.f32 %v2712, %v2890
        %v2892 = vpop.f32.mrf.mxu0
        %v2893 = vadd.f32 %v2714, %v2892
        %2894 = vmatmul.bf16.gmra.mxu0 %v2300
        %v2895 = vpop.f32.mrf.mxu0
        %v2896 = vadd.f32 %v2717, %v2895
        %v2897 = vpop.f32.mrf.mxu0
        %v2898 = vadd.f32 %v2719, %v2897
        %2899 = vmatmul.bf16.gmra.mxu0 %v2303
        %v2900 = vpop.f32.mrf.mxu0
        %v2901 = vadd.f32 %v2722, %v2900
        %v2902 = vpop.f32.mrf.mxu0
        %v2903 = vadd.f32 %v2724, %v2902
        %2904 = vmatmul.bf16.gmra.mxu0 %v2306
        %v2905 = vpop.f32.mrf.mxu0
        %v2906 = vadd.f32 %v2727, %v2905
        %v2907 = vpop.f32.mrf.mxu0
        %v2908 = vadd.f32 %v2729, %v2907
        %2909 = vmatmul.bf16.gmra.mxu0 %v2309
        %v2910 = vpop.f32.mrf.mxu0
        %v2911 = vadd.f32 %v2732, %v2910
        %v2912 = vpop.f32.mrf.mxu0
        %v2913 = vadd.f32 %v2734, %v2912
        %2914 = vmatmul.bf16.gmra.mxu0 %v2312
        %v2915 = vpop.f32.mrf.mxu0
        %v2916 = vadd.f32 %v2737, %v2915
        %v2917 = vpop.f32.mrf.mxu0
        %v2918 = vadd.f32 %v2739, %v2917
        %2919 = vmatmul.bf16.gmra.mxu0 %v2315
        %v2920 = vpop.f32.mrf.mxu0
        %v2921 = vadd.f32 %v2742, %v2920
        %v2922 = vpop.f32.mrf.mxu0
        %v2923 = vadd.f32 %v2744, %v2922
        %2924 = vmatmul.bf16.gmra.mxu0 %v2318
        %v2925 = vpop.f32.mrf.mxu0
        %v2926 = vadd.f32 %v2747, %v2925
        %v2927 = vpop.f32.mrf.mxu0
        %v2928 = vadd.f32 %v2749, %v2927
        %2929 = vmatmul.bf16.gmra.mxu0 %v2321
        %v2930 = vpop.f32.mrf.mxu0
        %v2931 = vadd.f32 %v2752, %v2930
        %v2932 = vpop.f32.mrf.mxu0
        %v2933 = vadd.f32 %v2754, %v2932
        %2934 = vmatmul.bf16.gmra.mxu0 %v2324
        %v2935 = vpop.f32.mrf.mxu0
        %v2936 = vadd.f32 %v2757, %v2935
        %v2937 = vpop.f32.mrf.mxu0
        %v2938 = vadd.f32 %v2759, %v2937
        %2939 = vmatmul.bf16.gmra.mxu0 %v2327
        %v2940 = vpop.f32.mrf.mxu0
        %v2941 = vadd.f32 %v2762, %v2940
        %v2942 = vpop.f32.mrf.mxu0
        %v2943 = vadd.f32 %v2764, %v2942
        %2944 = vdwg.mxu0
        %2945 = vmatpush.bf16.msra.mxu0 0
        %2946 = vmatpush.bf16.msra.mxu0 %v2840
        %2947 = vmatpush.bf16.msra.mxu0 %v2839
        %2948 = vmatpush.bf16.msra.mxu0 %v2838
        %2949 = vmatpush.bf16.msra.mxu0 %v2837
        %2950 = vmatpush.bf16.msra.mxu0 %v2836
        %2951 = vmatpush.bf16.msra.mxu0 %v2835
        %2952 = vmatpush.bf16.msra.mxu0 %v2834
        %2953 = vmatmul.bf16.gmra.mxu0 %v2556
        %v2954 = vpop.f32.mrf.mxu0
        %v2955 = vadd.f32 %v2866, %v2954
        %v2956 = vpop.f32.mrf.mxu0
        %v2957 = vadd.f32 %v2868, %v2956
        %2958 = vmatmul.bf16.gmra.mxu0 %v2556
        %v2959 = vpop.f32.mrf.mxu0
        %v2960 = vadd.f32 %v2871, %v2959
        %v2961 = vpop.f32.mrf.mxu0
        %v2962 = vadd.f32 %v2873, %v2961
        %2963 = vmatmul.bf16.gmra.mxu0 %v2558
        %v2964 = vpop.f32.mrf.mxu0
        %v2965 = vadd.f32 %v2876, %v2964
        %v2966 = vpop.f32.mrf.mxu0
        %v2967 = vadd.f32 %v2878, %v2966
        %2968 = vmatmul.bf16.gmra.mxu0 %v2560
        %v2969 = vpop.f32.mrf.mxu0
        %v2970 = vadd.f32 %v2881, %v2969
        %v2971 = vpop.f32.mrf.mxu0
        %v2972 = vadd.f32 %v2883, %v2971
        %2973 = vmatmul.bf16.gmra.mxu0 %v2562
        %v2974 = vpop.f32.mrf.mxu0
        %v2975 = vadd.f32 %v2886, %v2974
        %v2976 = vpop.f32.mrf.mxu0
        %v2977 = vadd.f32 %v2888, %v2976
        %2978 = vmatmul.bf16.gmra.mxu0 %v2564
        %v2979 = vpop.f32.mrf.mxu0
        %v2980 = vadd.f32 %v2891, %v2979
        %v2981 = vpop.f32.mrf.mxu0
        %v2982 = vadd.f32 %v2893, %v2981
        %2983 = vmatmul.bf16.gmra.mxu0 %v2566
        %v2984 = vpop.f32.mrf.mxu0
        %v2985 = vadd.f32 %v2896, %v2984
        %v2986 = vpop.f32.mrf.mxu0
        %v2987 = vadd.f32 %v2898, %v2986
        %2988 = vmatmul.bf16.gmra.mxu0 %v2568
        %v2989 = vpop.f32.mrf.mxu0
        %v2990 = vadd.f32 %v2901, %v2989
        %v2991 = vpop.f32.mrf.mxu0
        %v2992 = vadd.f32 %v2903, %v2991
        %2993 = vmatmul.bf16.gmra.mxu0 %v2570
        %v2994 = vpop.f32.mrf.mxu0
        %v2995 = vadd.f32 %v2906, %v2994
        %v2996 = vpop.f32.mrf.mxu0
        %v2997 = vadd.f32 %v2908, %v2996
        %2998 = vmatmul.bf16.gmra.mxu0 %v2572
        %v2999 = vpop.f32.mrf.mxu0
        %v3000 = vadd.f32 %v2911, %v2999
        %v3001 = vpop.f32.mrf.mxu0
        %v3002 = vadd.f32 %v2913, %v3001
        %3003 = vmatmul.bf16.gmra.mxu0 %v2574
        %v3004 = vpop.f32.mrf.mxu0
        %v3005 = vadd.f32 %v2916, %v3004
        %v3006 = vpop.f32.mrf.mxu0
        %v3007 = vadd.f32 %v2918, %v3006
        %3008 = vmatmul.bf16.gmra.mxu0 %v2576
        %v3009 = vpop.f32.mrf.mxu0
        %v3010 = vadd.f32 %v2921, %v3009
        %v3011 = vpop.f32.mrf.mxu0
        %v3012 = vadd.f32 %v2923, %v3011
        %3013 = vmatmul.bf16.gmra.mxu0 %v2578
        %v3014 = vpop.f32.mrf.mxu0
        %v3015 = vadd.f32 %v2926, %v3014
        %v3016 = vpop.f32.mrf.mxu0
        %v3017 = vadd.f32 %v2928, %v3016
        %3018 = vmatmul.bf16.gmra.mxu0 %v2580
        %v3019 = vpop.f32.mrf.mxu0
        %v3020 = vadd.f32 %v2931, %v3019
        %v3021 = vpop.f32.mrf.mxu0
        %v3022 = vadd.f32 %v2933, %v3021
        %3023 = vmatmul.bf16.gmra.mxu0 %v2582
        %v3024 = vpop.f32.mrf.mxu0
        %v3025 = vadd.f32 %v2936, %v3024
        %v3026 = vpop.f32.mrf.mxu0
        %v3027 = vadd.f32 %v2938, %v3026
        %3028 = vmatmul.bf16.gmra.mxu0 %v2584
        %v3029 = vpop.f32.mrf.mxu0
        %v3030 = vadd.f32 %v2941, %v3029
        %v3031 = vpop.f32.mrf.mxu0
        %v3032 = vadd.f32 %v2943, %v3031
        %3033 = vdwg.mxu0
        %s3034 = scalar_lea.vmem %s4, 240
        %v3035 = vld [vmem:[%s3034] sm:$0xf]
        %v3036 = vld [vmem:[%s3034 + $0x4] sm:$0xf]
        %v3037 = vld [vmem:[%s3034 + $0x8] sm:$0xf]
        %v3038 = vld [vmem:[%s3034 + $0xc] sm:$0xf]
        %v3039 = vld [vmem:[%s3034 + $0x10] sm:$0xf]
        %v3040 = vld [vmem:[%s3034 + $0x14] sm:$0xf]
        %v3041 = vld [vmem:[%s3034 + $0x18] sm:$0xf]
        %v3042 = vld [vmem:[%s3034 + $0x1c] sm:$0xf]
        %v3043 = vld [vmem:[%s3034 + $0x20] sm:$0xf]
        %v3044 = vld [vmem:[%s3034 + $0x24] sm:$0xf]
        %v3045 = vld [vmem:[%s3034 + $0x28] sm:$0xf]
        %v3046 = vld [vmem:[%s3034 + $0x2c] sm:$0xf]
        %v3047 = vld [vmem:[%s3034 + $0x30] sm:$0xf]
        %v3048 = vld [vmem:[%s3034 + $0x34] sm:$0xf]
        %v3049 = vld [vmem:[%s3034 + $0x38] sm:$0xf]
        %v3050 = vld [vmem:[%s3034 + $0x3c] sm:$0xf]
        %v3051 = vld [vmem:[%s3034 + $0x40] sm:$0xf]
        %v3052 = vld [vmem:[%s3034 + $0x44] sm:$0xf]
        %v3053 = vld [vmem:[%s3034 + $0x48] sm:$0xf]
        %v3054 = vld [vmem:[%s3034 + $0x4c] sm:$0xf]
        %v3055 = vld [vmem:[%s3034 + $0x50] sm:$0xf]
        %v3056 = vld [vmem:[%s3034 + $0x54] sm:$0xf]
        %v3057 = vld [vmem:[%s3034 + $0x58] sm:$0xf]
        %v3058 = vld [vmem:[%s3034 + $0x5c] sm:$0xf]
        %v3059 = vld [vmem:[%s3034 + $0x60] sm:$0xf]
        %v3060 = vld [vmem:[%s3034 + $0x64] sm:$0xf]
        %v3061 = vld [vmem:[%s3034 + $0x68] sm:$0xf]
        %v3062 = vld [vmem:[%s3034 + $0x6c] sm:$0xf]
        %v3063 = vld [vmem:[%s3034 + $0x70] sm:$0xf]
        %v3064 = vld [vmem:[%s3034 + $0x74] sm:$0xf]
        %v3095 = vunpack.c.l.b16 %v3035
        %v3096 = vunpack.c.l.b16 %v3036
        %v3097 = vunpack.c.l.b16 %v3037
        %v3098 = vunpack.c.l.b16 %v3038
        %v3099 = vunpack.c.l.b16 %v3039
        %v3100 = vunpack.c.l.b16 %v3040
        %v3101 = vunpack.c.l.b16 %v3041
        %v3102 = vunpack.c.l.b16 %v3042
        %v3103 = vunpack.c.l.b16 %v3043
        %v3104 = vunpack.c.l.b16 %v3044
        %v3105 = vunpack.c.l.b16 %v3045
        %v3106 = vunpack.c.l.b16 %v3046
        %v3107 = vunpack.c.l.b16 %v3047
        %v3108 = vunpack.c.l.b16 %v3048
        %v3109 = vunpack.c.l.b16 %v3049
        %v3110 = vunpack.c.l.b16 %v3050
        %v3111 = vunpack.c.l.b16 %v3051
        %v3112 = vunpack.c.l.b16 %v3052
        %v3113 = vunpack.c.l.b16 %v3053
        %v3114 = vunpack.c.l.b16 %v3054
        %v3115 = vunpack.c.l.b16 %v3055
        %v3116 = vunpack.c.l.b16 %v3056
        %v3117 = vunpack.c.l.b16 %v3057
        %v3118 = vunpack.c.l.b16 %v3058
        %v3119 = vunpack.c.l.b16 %v3059
        %v3120 = vunpack.c.l.b16 %v3060
        %v3121 = vunpack.c.l.b16 %v3061
        %v3122 = vunpack.c.l.b16 %v3062
        %v3123 = vunpack.c.l.b16 %v3063
        %v3124 = vunpack.c.l.b16 %v3064
        %v3125 = vpack.c.b16 %v3096, %v3095
        %v3126 = vpack.c.b16 %v3098, %v3097
        %v3127 = vpack.c.b16 %v3100, %v3099
        %v3128 = vpack.c.b16 %v3102, %v3101
        %v3129 = vpack.c.b16 %v3104, %v3103
        %v3130 = vpack.c.b16 %v3106, %v3105
        %v3131 = vpack.c.b16 %v3108, %v3107
        %v3132 = vpack.c.b16 %v3110, %v3109
        %v3133 = vpack.c.b16 %v3112, %v3111
        %v3134 = vpack.c.b16 %v3114, %v3113
        %v3135 = vpack.c.b16 %v3116, %v3115
        %v3136 = vpack.c.b16 %v3118, %v3117
        %v3137 = vpack.c.b16 %v3120, %v3119
        %v3138 = vpack.c.b16 %v3122, %v3121
        %v3139 = vpack.c.b16 %v3124, %v3123
        %v3155 = vsel %vm2555, %v2403, 0
        %3157 = vmatpush.bf16.msra.mxu0 %v3132
        %3158 = vmatpush.bf16.msra.mxu0 %v3131
        %3159 = vmatpush.bf16.msra.mxu0 %v3130
        %3160 = vmatpush.bf16.msra.mxu0 %v3129
        %3161 = vmatpush.bf16.msra.mxu0 %v3128
        %3162 = vmatpush.bf16.msra.mxu0 %v3127
        %3163 = vmatpush.bf16.msra.mxu0 %v3126
        %3164 = vmatpush.bf16.msra.mxu0 %v3125
        %3165 = vmatmul.bf16.gmra.mxu0 %v2288
        %v3166 = vpop.f32.mrf.mxu0
        %v3167 = vadd.f32 0.0, %v3166
        %v3168 = vpop.f32.mrf.mxu0
        %v3169 = vadd.f32 0.0, %v3168
        %3170 = vmatmul.bf16.gmra.mxu0 %v2291
        %v3171 = vpop.f32.mrf.mxu0
        %v3172 = vadd.f32 0.0, %v3171
        %v3173 = vpop.f32.mrf.mxu0
        %v3174 = vadd.f32 0.0, %v3173
        %3175 = vmatmul.bf16.gmra.mxu0 %v2294
        %v3176 = vpop.f32.mrf.mxu0
        %v3177 = vadd.f32 0.0, %v3176
        %v3178 = vpop.f32.mrf.mxu0
        %v3179 = vadd.f32 0.0, %v3178
        %3180 = vmatmul.bf16.gmra.mxu0 %v2297
        %v3181 = vpop.f32.mrf.mxu0
        %v3182 = vadd.f32 0.0, %v3181
        %v3183 = vpop.f32.mrf.mxu0
        %v3184 = vadd.f32 0.0, %v3183
        %3185 = vmatmul.bf16.gmra.mxu0 %v2300
        %v3186 = vpop.f32.mrf.mxu0
        %v3187 = vadd.f32 0.0, %v3186
        %v3188 = vpop.f32.mrf.mxu0
        %v3189 = vadd.f32 0.0, %v3188
        %3190 = vmatmul.bf16.gmra.mxu0 %v2303
        %v3191 = vpop.f32.mrf.mxu0
        %v3192 = vadd.f32 0.0, %v3191
        %v3193 = vpop.f32.mrf.mxu0
        %v3194 = vadd.f32 0.0, %v3193
        %3195 = vmatmul.bf16.gmra.mxu0 %v2306
        %v3196 = vpop.f32.mrf.mxu0
        %v3197 = vadd.f32 0.0, %v3196
        %v3198 = vpop.f32.mrf.mxu0
        %v3199 = vadd.f32 0.0, %v3198
        %3200 = vmatmul.bf16.gmra.mxu0 %v2309
        %v3201 = vpop.f32.mrf.mxu0
        %v3202 = vadd.f32 0.0, %v3201
        %v3203 = vpop.f32.mrf.mxu0
        %v3204 = vadd.f32 0.0, %v3203
        %3205 = vmatmul.bf16.gmra.mxu0 %v2312
        %v3206 = vpop.f32.mrf.mxu0
        %v3207 = vadd.f32 0.0, %v3206
        %v3208 = vpop.f32.mrf.mxu0
        %v3209 = vadd.f32 0.0, %v3208
        %3210 = vmatmul.bf16.gmra.mxu0 %v2315
        %v3211 = vpop.f32.mrf.mxu0
        %v3212 = vadd.f32 0.0, %v3211
        %v3213 = vpop.f32.mrf.mxu0
        %v3214 = vadd.f32 0.0, %v3213
        %3215 = vmatmul.bf16.gmra.mxu0 %v2318
        %v3216 = vpop.f32.mrf.mxu0
        %v3217 = vadd.f32 0.0, %v3216
        %v3218 = vpop.f32.mrf.mxu0
        %v3219 = vadd.f32 0.0, %v3218
        %3220 = vmatmul.bf16.gmra.mxu0 %v2321
        %v3221 = vpop.f32.mrf.mxu0
        %v3222 = vadd.f32 0.0, %v3221
        %v3223 = vpop.f32.mrf.mxu0
        %v3224 = vadd.f32 0.0, %v3223
        %3225 = vmatmul.bf16.gmra.mxu0 %v2324
        %v3226 = vpop.f32.mrf.mxu0
        %v3227 = vadd.f32 0.0, %v3226
        %v3228 = vpop.f32.mrf.mxu0
        %v3229 = vadd.f32 0.0, %v3228
        %3230 = vmatmul.bf16.gmra.mxu0 %v2327
        %v3231 = vpop.f32.mrf.mxu0
        %v3232 = vadd.f32 0.0, %v3231
        %v3233 = vpop.f32.mrf.mxu0
        %v3234 = vadd.f32 0.0, %v3233
        %3235 = vmatmul.bf16.gmra.mxu0 %v2330
        %v3236 = vpop.f32.mrf.mxu0
        %v3237 = vadd.f32 0.0, %v3236
        %v3238 = vpop.f32.mrf.mxu0
        %v3239 = vadd.f32 0.0, %v3238
        %3240 = vmatmul.bf16.gmra.mxu0 %v2333
        %v3241 = vpop.f32.mrf.mxu0
        %v3242 = vadd.f32 0.0, %v3241
        %v3243 = vpop.f32.mrf.mxu0
        %v3244 = vadd.f32 0.0, %v3243
        %3245 = vdwg.mxu0
        %3246 = vmatpush.bf16.msra.mxu0 0
        %3247 = vmatpush.bf16.msra.mxu0 %v3139
        %3248 = vmatpush.bf16.msra.mxu0 %v3138
        %3249 = vmatpush.bf16.msra.mxu0 %v3137
        %3250 = vmatpush.bf16.msra.mxu0 %v3136
        %3251 = vmatpush.bf16.msra.mxu0 %v3135
        %3252 = vmatpush.bf16.msra.mxu0 %v3134
        %3253 = vmatpush.bf16.msra.mxu0 %v3133
        %3254 = vmatmul.bf16.gmra.mxu0 %v2558
        %v3255 = vpop.f32.mrf.mxu0
        %v3256 = vadd.f32 %v3167, %v3255
        %v3257 = vpop.f32.mrf.mxu0
        %v3258 = vadd.f32 %v3169, %v3257
        %3259 = vmatmul.bf16.gmra.mxu0 %v2560
        %v3260 = vpop.f32.mrf.mxu0
        %v3261 = vadd.f32 %v3172, %v3260
        %v3262 = vpop.f32.mrf.mxu0
        %v3263 = vadd.f32 %v3174, %v3262
        %3264 = vmatmul.bf16.gmra.mxu0 %v2562
        %v3265 = vpop.f32.mrf.mxu0
        %v3266 = vadd.f32 %v3177, %v3265
        %v3267 = vpop.f32.mrf.mxu0
        %v3268 = vadd.f32 %v3179, %v3267
        %3269 = vmatmul.bf16.gmra.mxu0 %v2564
        %v3270 = vpop.f32.mrf.mxu0
        %v3271 = vadd.f32 %v3182, %v3270
        %v3272 = vpop.f32.mrf.mxu0
        %v3273 = vadd.f32 %v3184, %v3272
        %3274 = vmatmul.bf16.gmra.mxu0 %v2566
        %v3275 = vpop.f32.mrf.mxu0
        %v3276 = vadd.f32 %v3187, %v3275
        %v3277 = vpop.f32.mrf.mxu0
        %v3278 = vadd.f32 %v3189, %v3277
        %3279 = vmatmul.bf16.gmra.mxu0 %v2568
        %v3280 = vpop.f32.mrf.mxu0
        %v3281 = vadd.f32 %v3192, %v3280
        %v3282 = vpop.f32.mrf.mxu0
        %v3283 = vadd.f32 %v3194, %v3282
        %3284 = vmatmul.bf16.gmra.mxu0 %v2570
        %v3285 = vpop.f32.mrf.mxu0
        %v3286 = vadd.f32 %v3197, %v3285
        %v3287 = vpop.f32.mrf.mxu0
        %v3288 = vadd.f32 %v3199, %v3287
        %3289 = vmatmul.bf16.gmra.mxu0 %v2572
        %v3290 = vpop.f32.mrf.mxu0
        %v3291 = vadd.f32 %v3202, %v3290
        %v3292 = vpop.f32.mrf.mxu0
        %v3293 = vadd.f32 %v3204, %v3292
        %3294 = vmatmul.bf16.gmra.mxu0 %v2574
        %v3295 = vpop.f32.mrf.mxu0
        %v3296 = vadd.f32 %v3207, %v3295
        %v3297 = vpop.f32.mrf.mxu0
        %v3298 = vadd.f32 %v3209, %v3297
        %3299 = vmatmul.bf16.gmra.mxu0 %v2576
        %v3300 = vpop.f32.mrf.mxu0
        %v3301 = vadd.f32 %v3212, %v3300
        %v3302 = vpop.f32.mrf.mxu0
        %v3303 = vadd.f32 %v3214, %v3302
        %3304 = vmatmul.bf16.gmra.mxu0 %v2578
        %v3305 = vpop.f32.mrf.mxu0
        %v3306 = vadd.f32 %v3217, %v3305
        %v3307 = vpop.f32.mrf.mxu0
        %v3308 = vadd.f32 %v3219, %v3307
        %3309 = vmatmul.bf16.gmra.mxu0 %v2580
        %v3310 = vpop.f32.mrf.mxu0
        %v3311 = vadd.f32 %v3222, %v3310
        %v3312 = vpop.f32.mrf.mxu0
        %v3313 = vadd.f32 %v3224, %v3312
        %3314 = vmatmul.bf16.gmra.mxu0 %v2582
        %v3315 = vpop.f32.mrf.mxu0
        %v3316 = vadd.f32 %v3227, %v3315
        %v3317 = vpop.f32.mrf.mxu0
        %v3318 = vadd.f32 %v3229, %v3317
        %3319 = vmatmul.bf16.gmra.mxu0 %v2584
        %v3320 = vpop.f32.mrf.mxu0
        %v3321 = vadd.f32 %v3232, %v3320
        %v3322 = vpop.f32.mrf.mxu0
        %v3323 = vadd.f32 %v3234, %v3322
        %3324 = vmatmul.bf16.gmra.mxu0 %v2586
        %v3325 = vpop.f32.mrf.mxu0
        %v3326 = vadd.f32 %v3237, %v3325
        %v3327 = vpop.f32.mrf.mxu0
        %v3328 = vadd.f32 %v3239, %v3327
        %3329 = vmatmul.bf16.gmra.mxu0 %v3155
        %v3330 = vpop.f32.mrf.mxu0
        %v3331 = vadd.f32 %v3242, %v3330
        %v3332 = vpop.f32.mrf.mxu0
        %v3333 = vadd.f32 %v3244, %v3332
        %3334 = vdwg.mxu0
        %v3335 = vadd.f32 %v2955, %v3256
        %v3336 = vadd.f32 %v2957, %v3258
        %v3337 = vadd.f32 %v2960, %v3261
        %v3338 = vadd.f32 %v2962, %v3263
        %v3339 = vadd.f32 %v2965, %v3266
        %v3340 = vadd.f32 %v2967, %v3268
        %v3341 = vadd.f32 %v2970, %v3271
        %v3342 = vadd.f32 %v2972, %v3273
        %v3343 = vadd.f32 %v2975, %v3276
        %v3344 = vadd.f32 %v2977, %v3278
        %v3345 = vadd.f32 %v2980, %v3281
        %v3346 = vadd.f32 %v2982, %v3283
        %v3347 = vadd.f32 %v2985, %v3286
        %v3348 = vadd.f32 %v2987, %v3288
        %v3349 = vadd.f32 %v2990, %v3291
        %v3350 = vadd.f32 %v2992, %v3293
        %v3351 = vadd.f32 %v2995, %v3296
        %v3352 = vadd.f32 %v2997, %v3298
        %v3353 = vadd.f32 %v3000, %v3301
        %v3354 = vadd.f32 %v3002, %v3303
        %v3355 = vadd.f32 %v3005, %v3306
        %v3356 = vadd.f32 %v3007, %v3308
        %v3357 = vadd.f32 %v3010, %v3311
        %v3358 = vadd.f32 %v3012, %v3313
        %v3359 = vadd.f32 %v3015, %v3316
        %v3360 = vadd.f32 %v3017, %v3318
        %v3361 = vadd.f32 %v3020, %v3321
        %v3362 = vadd.f32 %v3022, %v3323
        %v3363 = vadd.f32 %v3025, %v3326
        %v3364 = vadd.f32 %v3027, %v3328
        %v3365 = vadd.f32 %v3030, %v3331
        %v3366 = vadd.f32 %v3032, %v3333
        %s3367 = scalar_lea.vmem %s4, 360
        %v3368 = vld [vmem:[%s3367] sm:$0xf]
        %v3369 = vld [vmem:[%s3367 + $0x4] sm:$0xf]
        %v3370 = vld [vmem:[%s3367 + $0x8] sm:$0xf]
        %v3371 = vld [vmem:[%s3367 + $0xc] sm:$0xf]
        %v3372 = vld [vmem:[%s3367 + $0x10] sm:$0xf]
        %v3373 = vld [vmem:[%s3367 + $0x14] sm:$0xf]
        %v3374 = vld [vmem:[%s3367 + $0x18] sm:$0xf]
        %v3375 = vld [vmem:[%s3367 + $0x1c] sm:$0xf]
        %v3376 = vld [vmem:[%s3367 + $0x20] sm:$0xf]
        %v3377 = vld [vmem:[%s3367 + $0x24] sm:$0xf]
        %v3378 = vld [vmem:[%s3367 + $0x28] sm:$0xf]
        %v3379 = vld [vmem:[%s3367 + $0x2c] sm:$0xf]
        %v3380 = vld [vmem:[%s3367 + $0x30] sm:$0xf]
        %v3381 = vld [vmem:[%s3367 + $0x34] sm:$0xf]
        %v3382 = vld [vmem:[%s3367 + $0x38] sm:$0xf]
        %v3383 = vld [vmem:[%s3367 + $0x3c] sm:$0xf]
        %v3384 = vld [vmem:[%s3367 + $0x40] sm:$0xf]
        %v3385 = vld [vmem:[%s3367 + $0x44] sm:$0xf]
        %v3386 = vld [vmem:[%s3367 + $0x48] sm:$0xf]
        %v3387 = vld [vmem:[%s3367 + $0x4c] sm:$0xf]
        %v3388 = vld [vmem:[%s3367 + $0x50] sm:$0xf]
        %v3389 = vld [vmem:[%s3367 + $0x54] sm:$0xf]
        %v3390 = vld [vmem:[%s3367 + $0x58] sm:$0xf]
        %v3391 = vld [vmem:[%s3367 + $0x5c] sm:$0xf]
        %v3392 = vld [vmem:[%s3367 + $0x60] sm:$0xf]
        %v3393 = vld [vmem:[%s3367 + $0x64] sm:$0xf]
        %v3394 = vld [vmem:[%s3367 + $0x68] sm:$0xf]
        %v3395 = vld [vmem:[%s3367 + $0x6c] sm:$0xf]
        %v3396 = vld [vmem:[%s3367 + $0x70] sm:$0xf]
        %v3397 = vld [vmem:[%s3367 + $0x74] sm:$0xf]
        %v3428 = vunpack.c.l.b16 %v3368
        %v3429 = vunpack.c.l.b16 %v3369
        %v3430 = vunpack.c.l.b16 %v3370
        %v3431 = vunpack.c.l.b16 %v3371
        %v3432 = vunpack.c.l.b16 %v3372
        %v3433 = vunpack.c.l.b16 %v3373
        %v3434 = vunpack.c.l.b16 %v3374
        %v3435 = vunpack.c.l.b16 %v3375
        %v3436 = vunpack.c.l.b16 %v3376
        %v3437 = vunpack.c.l.b16 %v3377
        %v3438 = vunpack.c.l.b16 %v3378
        %v3439 = vunpack.c.l.b16 %v3379
        %v3440 = vunpack.c.l.b16 %v3380
        %v3441 = vunpack.c.l.b16 %v3381
        %v3442 = vunpack.c.l.b16 %v3382
        %v3443 = vunpack.c.l.b16 %v3383
        %v3444 = vunpack.c.l.b16 %v3384
        %v3445 = vunpack.c.l.b16 %v3385
        %v3446 = vunpack.c.l.b16 %v3386
        %v3447 = vunpack.c.l.b16 %v3387
        %v3448 = vunpack.c.l.b16 %v3388
        %v3449 = vunpack.c.l.b16 %v3389
        %v3450 = vunpack.c.l.b16 %v3390
        %v3451 = vunpack.c.l.b16 %v3391
        %v3452 = vunpack.c.l.b16 %v3392
        %v3453 = vunpack.c.l.b16 %v3393
        %v3454 = vunpack.c.l.b16 %v3394
        %v3455 = vunpack.c.l.b16 %v3395
        %v3456 = vunpack.c.l.b16 %v3396
        %v3457 = vunpack.c.l.b16 %v3397
        %v3458 = vpack.c.b16 %v3429, %v3428
        %v3459 = vpack.c.b16 %v3431, %v3430
        %v3460 = vpack.c.b16 %v3433, %v3432
        %v3461 = vpack.c.b16 %v3435, %v3434
        %v3462 = vpack.c.b16 %v3437, %v3436
        %v3463 = vpack.c.b16 %v3439, %v3438
        %v3464 = vpack.c.b16 %v3441, %v3440
        %v3465 = vpack.c.b16 %v3443, %v3442
        %v3466 = vpack.c.b16 %v3445, %v3444
        %v3467 = vpack.c.b16 %v3447, %v3446
        %v3468 = vpack.c.b16 %v3449, %v3448
        %v3469 = vpack.c.b16 %v3451, %v3450
        %v3470 = vpack.c.b16 %v3453, %v3452
        %v3471 = vpack.c.b16 %v3455, %v3454
        %v3472 = vpack.c.b16 %v3457, %v3456
        %3488 = vmatpush.bf16.msra.mxu0 %v3465
        %3489 = vmatpush.bf16.msra.mxu0 %v3464
        %3490 = vmatpush.bf16.msra.mxu0 %v3463
        %3491 = vmatpush.bf16.msra.mxu0 %v3462
        %3492 = vmatpush.bf16.msra.mxu0 %v3461
        %3493 = vmatpush.bf16.msra.mxu0 %v3460
        %3494 = vmatpush.bf16.msra.mxu0 %v3459
        %3495 = vmatpush.bf16.msra.mxu0 %v3458
        %3496 = vmatmul.bf16.gmra.mxu0 %v2291
        %v3497 = vpop.f32.mrf.mxu0
        %v3498 = vadd.f32 0.0, %v3497
        %v3499 = vpop.f32.mrf.mxu0
        %v3500 = vadd.f32 0.0, %v3499
        %3501 = vmatmul.bf16.gmra.mxu0 %v2294
        %v3502 = vpop.f32.mrf.mxu0
        %v3503 = vadd.f32 0.0, %v3502
        %v3504 = vpop.f32.mrf.mxu0
        %v3505 = vadd.f32 0.0, %v3504
        %3506 = vmatmul.bf16.gmra.mxu0 %v2297
        %v3507 = vpop.f32.mrf.mxu0
        %v3508 = vadd.f32 0.0, %v3507
        %v3509 = vpop.f32.mrf.mxu0
        %v3510 = vadd.f32 0.0, %v3509
        %3511 = vmatmul.bf16.gmra.mxu0 %v2300
        %v3512 = vpop.f32.mrf.mxu0
        %v3513 = vadd.f32 0.0, %v3512
        %v3514 = vpop.f32.mrf.mxu0
        %v3515 = vadd.f32 0.0, %v3514
        %3516 = vmatmul.bf16.gmra.mxu0 %v2303
        %v3517 = vpop.f32.mrf.mxu0
        %v3518 = vadd.f32 0.0, %v3517
        %v3519 = vpop.f32.mrf.mxu0
        %v3520 = vadd.f32 0.0, %v3519
        %3521 = vmatmul.bf16.gmra.mxu0 %v2306
        %v3522 = vpop.f32.mrf.mxu0
        %v3523 = vadd.f32 0.0, %v3522
        %v3524 = vpop.f32.mrf.mxu0
        %v3525 = vadd.f32 0.0, %v3524
        %3526 = vmatmul.bf16.gmra.mxu0 %v2309
        %v3527 = vpop.f32.mrf.mxu0
        %v3528 = vadd.f32 0.0, %v3527
        %v3529 = vpop.f32.mrf.mxu0
        %v3530 = vadd.f32 0.0, %v3529
        %3531 = vmatmul.bf16.gmra.mxu0 %v2312
        %v3532 = vpop.f32.mrf.mxu0
        %v3533 = vadd.f32 0.0, %v3532
        %v3534 = vpop.f32.mrf.mxu0
        %v3535 = vadd.f32 0.0, %v3534
        %3536 = vmatmul.bf16.gmra.mxu0 %v2315
        %v3537 = vpop.f32.mrf.mxu0
        %v3538 = vadd.f32 0.0, %v3537
        %v3539 = vpop.f32.mrf.mxu0
        %v3540 = vadd.f32 0.0, %v3539
        %3541 = vmatmul.bf16.gmra.mxu0 %v2318
        %v3542 = vpop.f32.mrf.mxu0
        %v3543 = vadd.f32 0.0, %v3542
        %v3544 = vpop.f32.mrf.mxu0
        %v3545 = vadd.f32 0.0, %v3544
        %3546 = vmatmul.bf16.gmra.mxu0 %v2321
        %v3547 = vpop.f32.mrf.mxu0
        %v3548 = vadd.f32 0.0, %v3547
        %v3549 = vpop.f32.mrf.mxu0
        %v3550 = vadd.f32 0.0, %v3549
        %3551 = vmatmul.bf16.gmra.mxu0 %v2324
        %v3552 = vpop.f32.mrf.mxu0
        %v3553 = vadd.f32 0.0, %v3552
        %v3554 = vpop.f32.mrf.mxu0
        %v3555 = vadd.f32 0.0, %v3554
        %3556 = vmatmul.bf16.gmra.mxu0 %v2327
        %v3557 = vpop.f32.mrf.mxu0
        %v3558 = vadd.f32 0.0, %v3557
        %v3559 = vpop.f32.mrf.mxu0
        %v3560 = vadd.f32 0.0, %v3559
        %3561 = vmatmul.bf16.gmra.mxu0 %v2330
        %v3562 = vpop.f32.mrf.mxu0
        %v3563 = vadd.f32 0.0, %v3562
        %v3564 = vpop.f32.mrf.mxu0
        %v3565 = vadd.f32 0.0, %v3564
        %3566 = vmatmul.bf16.gmra.mxu0 %v2333
        %v3567 = vpop.f32.mrf.mxu0
        %v3568 = vadd.f32 0.0, %v3567
        %v3569 = vpop.f32.mrf.mxu0
        %v3570 = vadd.f32 0.0, %v3569
        %3571 = vmatmul.bf16.gmra.mxu0 %v2285
        %v3572 = vpop.f32.mrf.mxu0
        %v3573 = vadd.f32 0.0, %v3572
        %v3574 = vpop.f32.mrf.mxu0
        %v3575 = vadd.f32 0.0, %v3574
        %3576 = vdwg.mxu0
        %3577 = vmatpush.bf16.msra.mxu0 0
        %3578 = vmatpush.bf16.msra.mxu0 %v3472
        %3579 = vmatpush.bf16.msra.mxu0 %v3471
        %3580 = vmatpush.bf16.msra.mxu0 %v3470
        %3581 = vmatpush.bf16.msra.mxu0 %v3469
        %3582 = vmatpush.bf16.msra.mxu0 %v3468
        %3583 = vmatpush.bf16.msra.mxu0 %v3467
        %3584 = vmatpush.bf16.msra.mxu0 %v3466
        %3585 = vmatmul.bf16.gmra.mxu0 %v2560
        %v3586 = vpop.f32.mrf.mxu0
        %v3587 = vadd.f32 %v3498, %v3586
        %v3588 = vpop.f32.mrf.mxu0
        %v3589 = vadd.f32 %v3500, %v3588
        %3590 = vmatmul.bf16.gmra.mxu0 %v2562
        %v3591 = vpop.f32.mrf.mxu0
        %v3592 = vadd.f32 %v3503, %v3591
        %v3593 = vpop.f32.mrf.mxu0
        %v3594 = vadd.f32 %v3505, %v3593
        %3595 = vmatmul.bf16.gmra.mxu0 %v2564
        %v3596 = vpop.f32.mrf.mxu0
        %v3597 = vadd.f32 %v3508, %v3596
        %v3598 = vpop.f32.mrf.mxu0
        %v3599 = vadd.f32 %v3510, %v3598
        %3600 = vmatmul.bf16.gmra.mxu0 %v2566
        %v3601 = vpop.f32.mrf.mxu0
        %v3602 = vadd.f32 %v3513, %v3601
        %v3603 = vpop.f32.mrf.mxu0
        %v3604 = vadd.f32 %v3515, %v3603
        %3605 = vmatmul.bf16.gmra.mxu0 %v2568
        %v3606 = vpop.f32.mrf.mxu0
        %v3607 = vadd.f32 %v3518, %v3606
        %v3608 = vpop.f32.mrf.mxu0
        %v3609 = vadd.f32 %v3520, %v3608
        %3610 = vmatmul.bf16.gmra.mxu0 %v2570
        %v3611 = vpop.f32.mrf.mxu0
        %v3612 = vadd.f32 %v3523, %v3611
        %v3613 = vpop.f32.mrf.mxu0
        %v3614 = vadd.f32 %v3525, %v3613
        %3615 = vmatmul.bf16.gmra.mxu0 %v2572
        %v3616 = vpop.f32.mrf.mxu0
        %v3617 = vadd.f32 %v3528, %v3616
        %v3618 = vpop.f32.mrf.mxu0
        %v3619 = vadd.f32 %v3530, %v3618
        %3620 = vmatmul.bf16.gmra.mxu0 %v2574
        %v3621 = vpop.f32.mrf.mxu0
        %v3622 = vadd.f32 %v3533, %v3621
        %v3623 = vpop.f32.mrf.mxu0
        %v3624 = vadd.f32 %v3535, %v3623
        %3625 = vmatmul.bf16.gmra.mxu0 %v2576
        %v3626 = vpop.f32.mrf.mxu0
        %v3627 = vadd.f32 %v3538, %v3626
        %v3628 = vpop.f32.mrf.mxu0
        %v3629 = vadd.f32 %v3540, %v3628
        %3630 = vmatmul.bf16.gmra.mxu0 %v2578
        %v3631 = vpop.f32.mrf.mxu0
        %v3632 = vadd.f32 %v3543, %v3631
        %v3633 = vpop.f32.mrf.mxu0
        %v3634 = vadd.f32 %v3545, %v3633
        %3635 = vmatmul.bf16.gmra.mxu0 %v2580
        %v3636 = vpop.f32.mrf.mxu0
        %v3637 = vadd.f32 %v3548, %v3636
        %v3638 = vpop.f32.mrf.mxu0
        %v3639 = vadd.f32 %v3550, %v3638
        %3640 = vmatmul.bf16.gmra.mxu0 %v2582
        %v3641 = vpop.f32.mrf.mxu0
        %v3642 = vadd.f32 %v3553, %v3641
        %v3643 = vpop.f32.mrf.mxu0
        %v3644 = vadd.f32 %v3555, %v3643
        %3645 = vmatmul.bf16.gmra.mxu0 %v2584
        %v3646 = vpop.f32.mrf.mxu0
        %v3647 = vadd.f32 %v3558, %v3646
        %v3648 = vpop.f32.mrf.mxu0
        %v3649 = vadd.f32 %v3560, %v3648
        %3650 = vmatmul.bf16.gmra.mxu0 %v2586
        %v3651 = vpop.f32.mrf.mxu0
        %v3652 = vadd.f32 %v3563, %v3651
        %v3653 = vpop.f32.mrf.mxu0
        %v3654 = vadd.f32 %v3565, %v3653
        %3655 = vmatmul.bf16.gmra.mxu0 %v3155
        %v3656 = vpop.f32.mrf.mxu0
        %v3657 = vadd.f32 %v3568, %v3656
        %v3658 = vpop.f32.mrf.mxu0
        %v3659 = vadd.f32 %v3570, %v3658
        %3660 = vmatmul.bf16.gmra.mxu0 %v2556
        %v3661 = vpop.f32.mrf.mxu0
        %v3662 = vadd.f32 %v3573, %v3661
        %v3663 = vpop.f32.mrf.mxu0
        %v3664 = vadd.f32 %v3575, %v3663
        %3665 = vdwg.mxu0
        %v3666 = vadd.f32 %v3335, %v3587
        %v3667 = vadd.f32 %v3336, %v3589
        %v3668 = vadd.f32 %v3337, %v3592
        %v3669 = vadd.f32 %v3338, %v3594
        %v3670 = vadd.f32 %v3339, %v3597
        %v3671 = vadd.f32 %v3340, %v3599
        %v3672 = vadd.f32 %v3341, %v3602
        %v3673 = vadd.f32 %v3342, %v3604
        %v3674 = vadd.f32 %v3343, %v3607
        %v3675 = vadd.f32 %v3344, %v3609
        %v3676 = vadd.f32 %v3345, %v3612
        %v3677 = vadd.f32 %v3346, %v3614
        %v3678 = vadd.f32 %v3347, %v3617
        %v3679 = vadd.f32 %v3348, %v3619
        %v3680 = vadd.f32 %v3349, %v3622
        %v3681 = vadd.f32 %v3350, %v3624
        %v3682 = vadd.f32 %v3351, %v3627
        %v3683 = vadd.f32 %v3352, %v3629
        %v3684 = vadd.f32 %v3353, %v3632
        %v3685 = vadd.f32 %v3354, %v3634
        %v3686 = vadd.f32 %v3355, %v3637
        %v3687 = vadd.f32 %v3356, %v3639
        %v3688 = vadd.f32 %v3357, %v3642
        %v3689 = vadd.f32 %v3358, %v3644
        %v3690 = vadd.f32 %v3359, %v3647
        %v3691 = vadd.f32 %v3360, %v3649
        %v3692 = vadd.f32 %v3361, %v3652
        %v3693 = vadd.f32 %v3362, %v3654
        %v3694 = vadd.f32 %v3363, %v3657
        %v3695 = vadd.f32 %v3364, %v3659
        %v3696 = vadd.f32 %v3365, %v3662
        %v3697 = vadd.f32 %v3366, %v3664
        %s3698 = scalar_lea.vmem %s4, 480
        %v3699 = vld [vmem:[%s3698] sm:$0xf]
        %v3700 = vld [vmem:[%s3698 + $0x4] sm:$0xf]
        %v3701 = vld [vmem:[%s3698 + $0x8] sm:$0xf]
        %v3702 = vld [vmem:[%s3698 + $0xc] sm:$0xf]
        %v3703 = vld [vmem:[%s3698 + $0x10] sm:$0xf]
        %v3704 = vld [vmem:[%s3698 + $0x14] sm:$0xf]
        %v3705 = vld [vmem:[%s3698 + $0x18] sm:$0xf]
        %v3706 = vld [vmem:[%s3698 + $0x1c] sm:$0xf]
        %v3707 = vld [vmem:[%s3698 + $0x20] sm:$0xf]
        %v3708 = vld [vmem:[%s3698 + $0x24] sm:$0xf]
        %v3709 = vld [vmem:[%s3698 + $0x28] sm:$0xf]
        %v3710 = vld [vmem:[%s3698 + $0x2c] sm:$0xf]
        %v3711 = vld [vmem:[%s3698 + $0x30] sm:$0xf]
        %v3712 = vld [vmem:[%s3698 + $0x34] sm:$0xf]
        %v3713 = vld [vmem:[%s3698 + $0x38] sm:$0xf]
        %v3714 = vld [vmem:[%s3698 + $0x3c] sm:$0xf]
        %v3715 = vld [vmem:[%s3698 + $0x40] sm:$0xf]
        %v3716 = vld [vmem:[%s3698 + $0x44] sm:$0xf]
        %v3717 = vld [vmem:[%s3698 + $0x48] sm:$0xf]
        %v3718 = vld [vmem:[%s3698 + $0x4c] sm:$0xf]
        %v3719 = vld [vmem:[%s3698 + $0x50] sm:$0xf]
        %v3720 = vld [vmem:[%s3698 + $0x54] sm:$0xf]
        %v3721 = vld [vmem:[%s3698 + $0x58] sm:$0xf]
        %v3722 = vld [vmem:[%s3698 + $0x5c] sm:$0xf]
        %v3723 = vld [vmem:[%s3698 + $0x60] sm:$0xf]
        %v3724 = vld [vmem:[%s3698 + $0x64] sm:$0xf]
        %v3725 = vld [vmem:[%s3698 + $0x68] sm:$0xf]
        %v3726 = vld [vmem:[%s3698 + $0x6c] sm:$0xf]
        %v3727 = vld [vmem:[%s3698 + $0x70] sm:$0xf]
        %v3728 = vld [vmem:[%s3698 + $0x74] sm:$0xf]
        %v3759 = vunpack.c.l.b16 %v3699
        %v3760 = vunpack.c.l.b16 %v3700
        %v3761 = vunpack.c.l.b16 %v3701
        %v3762 = vunpack.c.l.b16 %v3702
        %v3763 = vunpack.c.l.b16 %v3703
        %v3764 = vunpack.c.l.b16 %v3704
        %v3765 = vunpack.c.l.b16 %v3705
        %v3766 = vunpack.c.l.b16 %v3706
        %v3767 = vunpack.c.l.b16 %v3707
        %v3768 = vunpack.c.l.b16 %v3708
        %v3769 = vunpack.c.l.b16 %v3709
        %v3770 = vunpack.c.l.b16 %v3710
        %v3771 = vunpack.c.l.b16 %v3711
        %v3772 = vunpack.c.l.b16 %v3712
        %v3773 = vunpack.c.l.b16 %v3713
        %v3774 = vunpack.c.l.b16 %v3714
        %v3775 = vunpack.c.l.b16 %v3715
        %v3776 = vunpack.c.l.b16 %v3716
        %v3777 = vunpack.c.l.b16 %v3717
        %v3778 = vunpack.c.l.b16 %v3718
        %v3779 = vunpack.c.l.b16 %v3719
        %v3780 = vunpack.c.l.b16 %v3720
        %v3781 = vunpack.c.l.b16 %v3721
        %v3782 = vunpack.c.l.b16 %v3722
        %v3783 = vunpack.c.l.b16 %v3723
        %v3784 = vunpack.c.l.b16 %v3724
        %v3785 = vunpack.c.l.b16 %v3725
        %v3786 = vunpack.c.l.b16 %v3726
        %v3787 = vunpack.c.l.b16 %v3727
        %v3788 = vunpack.c.l.b16 %v3728
        %v3789 = vpack.c.b16 %v3760, %v3759
        %v3790 = vpack.c.b16 %v3762, %v3761
        %v3791 = vpack.c.b16 %v3764, %v3763
        %v3792 = vpack.c.b16 %v3766, %v3765
        %v3793 = vpack.c.b16 %v3768, %v3767
        %v3794 = vpack.c.b16 %v3770, %v3769
        %v3795 = vpack.c.b16 %v3772, %v3771
        %v3796 = vpack.c.b16 %v3774, %v3773
        %v3797 = vpack.c.b16 %v3776, %v3775
        %v3798 = vpack.c.b16 %v3778, %v3777
        %v3799 = vpack.c.b16 %v3780, %v3779
        %v3800 = vpack.c.b16 %v3782, %v3781
        %v3801 = vpack.c.b16 %v3784, %v3783
        %v3802 = vpack.c.b16 %v3786, %v3785
        %v3803 = vpack.c.b16 %v3788, %v3787
        %3819 = vmatpush.bf16.msra.mxu0 %v3796
        %3820 = vmatpush.bf16.msra.mxu0 %v3795
        %3821 = vmatpush.bf16.msra.mxu0 %v3794
        %3822 = vmatpush.bf16.msra.mxu0 %v3793
        %3823 = vmatpush.bf16.msra.mxu0 %v3792
        %3824 = vmatpush.bf16.msra.mxu0 %v3791
        %3825 = vmatpush.bf16.msra.mxu0 %v3790
        %3826 = vmatpush.bf16.msra.mxu0 %v3789
        %3827 = vmatmul.bf16.gmra.mxu0 %v2294
        %v3828 = vpop.f32.mrf.mxu0
        %v3829 = vadd.f32 0.0, %v3828
        %v3830 = vpop.f32.mrf.mxu0
        %v3831 = vadd.f32 0.0, %v3830
        %3832 = vmatmul.bf16.gmra.mxu0 %v2297
        %v3833 = vpop.f32.mrf.mxu0
        %v3834 = vadd.f32 0.0, %v3833
        %v3835 = vpop.f32.mrf.mxu0
        %v3836 = vadd.f32 0.0, %v3835
        %3837 = vmatmul.bf16.gmra.mxu0 %v2300
        %v3838 = vpop.f32.mrf.mxu0
        %v3839 = vadd.f32 0.0, %v3838
        %v3840 = vpop.f32.mrf.mxu0
        %v3841 = vadd.f32 0.0, %v3840
        %3842 = vmatmul.bf16.gmra.mxu0 %v2303
        %v3843 = vpop.f32.mrf.mxu0
        %v3844 = vadd.f32 0.0, %v3843
        %v3845 = vpop.f32.mrf.mxu0
        %v3846 = vadd.f32 0.0, %v3845
        %3847 = vmatmul.bf16.gmra.mxu0 %v2306
        %v3848 = vpop.f32.mrf.mxu0
        %v3849 = vadd.f32 0.0, %v3848
        %v3850 = vpop.f32.mrf.mxu0
        %v3851 = vadd.f32 0.0, %v3850
        %3852 = vmatmul.bf16.gmra.mxu0 %v2309
        %v3853 = vpop.f32.mrf.mxu0
        %v3854 = vadd.f32 0.0, %v3853
        %v3855 = vpop.f32.mrf.mxu0
        %v3856 = vadd.f32 0.0, %v3855
        %3857 = vmatmul.bf16.gmra.mxu0 %v2312
        %v3858 = vpop.f32.mrf.mxu0
        %v3859 = vadd.f32 0.0, %v3858
        %v3860 = vpop.f32.mrf.mxu0
        %v3861 = vadd.f32 0.0, %v3860
        %3862 = vmatmul.bf16.gmra.mxu0 %v2315
        %v3863 = vpop.f32.mrf.mxu0
        %v3864 = vadd.f32 0.0, %v3863
        %v3865 = vpop.f32.mrf.mxu0
        %v3866 = vadd.f32 0.0, %v3865
        %3867 = vmatmul.bf16.gmra.mxu0 %v2318
        %v3868 = vpop.f32.mrf.mxu0
        %v3869 = vadd.f32 0.0, %v3868
        %v3870 = vpop.f32.mrf.mxu0
        %v3871 = vadd.f32 0.0, %v3870
        %3872 = vmatmul.bf16.gmra.mxu0 %v2321
        %v3873 = vpop.f32.mrf.mxu0
        %v3874 = vadd.f32 0.0, %v3873
        %v3875 = vpop.f32.mrf.mxu0
        %v3876 = vadd.f32 0.0, %v3875
        %3877 = vmatmul.bf16.gmra.mxu0 %v2324
        %v3878 = vpop.f32.mrf.mxu0
        %v3879 = vadd.f32 0.0, %v3878
        %v3880 = vpop.f32.mrf.mxu0
        %v3881 = vadd.f32 0.0, %v3880
        %3882 = vmatmul.bf16.gmra.mxu0 %v2327
        %v3883 = vpop.f32.mrf.mxu0
        %v3884 = vadd.f32 0.0, %v3883
        %v3885 = vpop.f32.mrf.mxu0
        %v3886 = vadd.f32 0.0, %v3885
        %3887 = vmatmul.bf16.gmra.mxu0 %v2330
        %v3888 = vpop.f32.mrf.mxu0
        %v3889 = vadd.f32 0.0, %v3888
        %v3890 = vpop.f32.mrf.mxu0
        %v3891 = vadd.f32 0.0, %v3890
        %3892 = vmatmul.bf16.gmra.mxu0 %v2333
        %v3893 = vpop.f32.mrf.mxu0
        %v3894 = vadd.f32 0.0, %v3893
        %v3895 = vpop.f32.mrf.mxu0
        %v3896 = vadd.f32 0.0, %v3895
        %3897 = vmatmul.bf16.gmra.mxu0 %v2285
        %v3898 = vpop.f32.mrf.mxu0
        %v3899 = vadd.f32 0.0, %v3898
        %v3900 = vpop.f32.mrf.mxu0
        %v3901 = vadd.f32 0.0, %v3900
        %3902 = vmatmul.bf16.gmra.mxu0 %v2285
        %v3903 = vpop.f32.mrf.mxu0
        %v3904 = vadd.f32 0.0, %v3903
        %v3905 = vpop.f32.mrf.mxu0
        %v3906 = vadd.f32 0.0, %v3905
        %3907 = vdwg.mxu0
        %3908 = vmatpush.bf16.msra.mxu0 0
        %3909 = vmatpush.bf16.msra.mxu0 %v3803
        %3910 = vmatpush.bf16.msra.mxu0 %v3802
        %3911 = vmatpush.bf16.msra.mxu0 %v3801
        %3912 = vmatpush.bf16.msra.mxu0 %v3800
        %3913 = vmatpush.bf16.msra.mxu0 %v3799
        %3914 = vmatpush.bf16.msra.mxu0 %v3798
        %3915 = vmatpush.bf16.msra.mxu0 %v3797
        %3916 = vmatmul.bf16.gmra.mxu0 %v2562
        %v3917 = vpop.f32.mrf.mxu0
        %v3918 = vadd.f32 %v3829, %v3917
        %v3919 = vpop.f32.mrf.mxu0
        %v3920 = vadd.f32 %v3831, %v3919
        %3921 = vmatmul.bf16.gmra.mxu0 %v2564
        %v3922 = vpop.f32.mrf.mxu0
        %v3923 = vadd.f32 %v3834, %v3922
        %v3924 = vpop.f32.mrf.mxu0
        %v3925 = vadd.f32 %v3836, %v3924
        %3926 = vmatmul.bf16.gmra.mxu0 %v2566
        %v3927 = vpop.f32.mrf.mxu0
        %v3928 = vadd.f32 %v3839, %v3927
        %v3929 = vpop.f32.mrf.mxu0
        %v3930 = vadd.f32 %v3841, %v3929
        %3931 = vmatmul.bf16.gmra.mxu0 %v2568
        %v3932 = vpop.f32.mrf.mxu0
        %v3933 = vadd.f32 %v3844, %v3932
        %v3934 = vpop.f32.mrf.mxu0
        %v3935 = vadd.f32 %v3846, %v3934
        %3936 = vmatmul.bf16.gmra.mxu0 %v2570
        %v3937 = vpop.f32.mrf.mxu0
        %v3938 = vadd.f32 %v3849, %v3937
        %v3939 = vpop.f32.mrf.mxu0
        %v3940 = vadd.f32 %v3851, %v3939
        %3941 = vmatmul.bf16.gmra.mxu0 %v2572
        %v3942 = vpop.f32.mrf.mxu0
        %v3943 = vadd.f32 %v3854, %v3942
        %v3944 = vpop.f32.mrf.mxu0
        %v3945 = vadd.f32 %v3856, %v3944
        %3946 = vmatmul.bf16.gmra.mxu0 %v2574
        %v3947 = vpop.f32.mrf.mxu0
        %v3948 = vadd.f32 %v3859, %v3947
        %v3949 = vpop.f32.mrf.mxu0
        %v3950 = vadd.f32 %v3861, %v3949
        %3951 = vmatmul.bf16.gmra.mxu0 %v2576
        %v3952 = vpop.f32.mrf.mxu0
        %v3953 = vadd.f32 %v3864, %v3952
        %v3954 = vpop.f32.mrf.mxu0
        %v3955 = vadd.f32 %v3866, %v3954
        %3956 = vmatmul.bf16.gmra.mxu0 %v2578
        %v3957 = vpop.f32.mrf.mxu0
        %v3958 = vadd.f32 %v3869, %v3957
        %v3959 = vpop.f32.mrf.mxu0
        %v3960 = vadd.f32 %v3871, %v3959
        %3961 = vmatmul.bf16.gmra.mxu0 %v2580
        %v3962 = vpop.f32.mrf.mxu0
        %v3963 = vadd.f32 %v3874, %v3962
        %v3964 = vpop.f32.mrf.mxu0
        %v3965 = vadd.f32 %v3876, %v3964
        %3966 = vmatmul.bf16.gmra.mxu0 %v2582
        %v3967 = vpop.f32.mrf.mxu0
        %v3968 = vadd.f32 %v3879, %v3967
        %v3969 = vpop.f32.mrf.mxu0
        %v3970 = vadd.f32 %v3881, %v3969
        %3971 = vmatmul.bf16.gmra.mxu0 %v2584
        %v3972 = vpop.f32.mrf.mxu0
        %v3973 = vadd.f32 %v3884, %v3972
        %v3974 = vpop.f32.mrf.mxu0
        %v3975 = vadd.f32 %v3886, %v3974
        %3976 = vmatmul.bf16.gmra.mxu0 %v2586
        %v3977 = vpop.f32.mrf.mxu0
        %v3978 = vadd.f32 %v3889, %v3977
        %v3979 = vpop.f32.mrf.mxu0
        %v3980 = vadd.f32 %v3891, %v3979
        %3981 = vmatmul.bf16.gmra.mxu0 %v3155
        %v3982 = vpop.f32.mrf.mxu0
        %v3983 = vadd.f32 %v3894, %v3982
        %v3984 = vpop.f32.mrf.mxu0
        %v3985 = vadd.f32 %v3896, %v3984
        %3986 = vmatmul.bf16.gmra.mxu0 %v2556
        %v3987 = vpop.f32.mrf.mxu0
        %v3988 = vadd.f32 %v3899, %v3987
        %v3989 = vpop.f32.mrf.mxu0
        %v3990 = vadd.f32 %v3901, %v3989
        %3991 = vmatmul.bf16.gmra.mxu0 %v2556
        %v3992 = vpop.f32.mrf.mxu0
        %v3993 = vadd.f32 %v3904, %v3992
        %v3994 = vpop.f32.mrf.mxu0
        %v3995 = vadd.f32 %v3906, %v3994
        %3996 = vdwg.mxu0
        %v3997 = vadd.f32 %v3666, %v3918
        %v3998 = vadd.f32 %v3667, %v3920
        %v3999 = vadd.f32 %v3668, %v3923
        %v4000 = vadd.f32 %v3669, %v3925
        %v4001 = vadd.f32 %v3670, %v3928
        %v4002 = vadd.f32 %v3671, %v3930
        %v4003 = vadd.f32 %v3672, %v3933
        %v4004 = vadd.f32 %v3673, %v3935
        %v4005 = vadd.f32 %v3674, %v3938
        %v4006 = vadd.f32 %v3675, %v3940
        %v4007 = vadd.f32 %v3676, %v3943
        %v4008 = vadd.f32 %v3677, %v3945
        %v4009 = vadd.f32 %v3678, %v3948
        %v4010 = vadd.f32 %v3679, %v3950
        %v4011 = vadd.f32 %v3680, %v3953
        %v4012 = vadd.f32 %v3681, %v3955
        %v4013 = vadd.f32 %v3682, %v3958
        %v4014 = vadd.f32 %v3683, %v3960
        %v4015 = vadd.f32 %v3684, %v3963
        %v4016 = vadd.f32 %v3685, %v3965
        %v4017 = vadd.f32 %v3686, %v3968
        %v4018 = vadd.f32 %v3687, %v3970
        %v4019 = vadd.f32 %v3688, %v3973
        %v4020 = vadd.f32 %v3689, %v3975
        %v4021 = vadd.f32 %v3690, %v3978
        %v4022 = vadd.f32 %v3691, %v3980
        %v4023 = vadd.f32 %v3692, %v3983
        %v4024 = vadd.f32 %v3693, %v3985
        %v4025 = vadd.f32 %v3694, %v3988
        %v4026 = vadd.f32 %v3695, %v3990
        %v4027 = vadd.f32 %v3696, %v3993
        %v4028 = vadd.f32 %v3697, %v3995
        %v4029 = vld [vmem:[%s5] sm:$0x1]
        %v4031 = vperm.slane %v4029, 0
        %v4033 = vmul.f32 %v3997, %v4031
        %v4034 = vmul.f32 %v3998, %v4031
        %v4035 = vmul.f32 %v3999, %v4031
        %v4036 = vmul.f32 %v4000, %v4031
        %v4037 = vmul.f32 %v4001, %v4031
        %v4038 = vmul.f32 %v4002, %v4031
        %v4039 = vmul.f32 %v4003, %v4031
        %v4040 = vmul.f32 %v4004, %v4031
        %v4041 = vmul.f32 %v4005, %v4031
        %v4042 = vmul.f32 %v4006, %v4031
        %v4043 = vmul.f32 %v4007, %v4031
        %v4044 = vmul.f32 %v4008, %v4031
        %v4045 = vmul.f32 %v4009, %v4031
        %v4046 = vmul.f32 %v4010, %v4031
        %v4047 = vmul.f32 %v4011, %v4031
        %v4048 = vmul.f32 %v4012, %v4031
        %v4049 = vmul.f32 %v4013, %v4031
        %v4050 = vmul.f32 %v4014, %v4031
        %v4051 = vmul.f32 %v4015, %v4031
        %v4052 = vmul.f32 %v4016, %v4031
        %v4053 = vmul.f32 %v4017, %v4031
        %v4054 = vmul.f32 %v4018, %v4031
        %v4055 = vmul.f32 %v4019, %v4031
        %v4056 = vmul.f32 %v4020, %v4031
        %v4057 = vmul.f32 %v4021, %v4031
        %v4058 = vmul.f32 %v4022, %v4031
        %v4059 = vmul.f32 %v4023, %v4031
        %v4060 = vmul.f32 %v4024, %v4031
        %v4061 = vmul.f32 %v4025, %v4031
        %v4062 = vmul.f32 %v4026, %v4031
        %v4063 = vmul.f32 %v4027, %v4031
        %v4064 = vmul.f32 %v4028, %v4031
        %v4065 = vld [vmem:[%s6] sm:$0x1]
        %v4067 = vperm.slane %v4065, 0
        %v4069 = vadd.f32 %v4033, %v4067
        %v4070 = vadd.f32 %v4034, %v4067
        %v4071 = vadd.f32 %v4035, %v4067
        %v4072 = vadd.f32 %v4036, %v4067
        %v4073 = vadd.f32 %v4037, %v4067
        %v4074 = vadd.f32 %v4038, %v4067
        %v4075 = vadd.f32 %v4039, %v4067
        %v4076 = vadd.f32 %v4040, %v4067
        %v4077 = vadd.f32 %v4041, %v4067
        %v4078 = vadd.f32 %v4042, %v4067
        %v4079 = vadd.f32 %v4043, %v4067
        %v4080 = vadd.f32 %v4044, %v4067
        %v4081 = vadd.f32 %v4045, %v4067
        %v4082 = vadd.f32 %v4046, %v4067
        %v4083 = vadd.f32 %v4047, %v4067
        %v4084 = vadd.f32 %v4048, %v4067
        %v4085 = vadd.f32 %v4049, %v4067
        %v4086 = vadd.f32 %v4050, %v4067
        %v4087 = vadd.f32 %v4051, %v4067
        %v4088 = vadd.f32 %v4052, %v4067
        %v4089 = vadd.f32 %v4053, %v4067
        %v4090 = vadd.f32 %v4054, %v4067
        %v4091 = vadd.f32 %v4055, %v4067
        %v4092 = vadd.f32 %v4056, %v4067
        %v4093 = vadd.f32 %v4057, %v4067
        %v4094 = vadd.f32 %v4058, %v4067
        %v4095 = vadd.f32 %v4059, %v4067
        %v4096 = vadd.f32 %v4060, %v4067
        %v4097 = vadd.f32 %v4061, %v4067
        %v4098 = vadd.f32 %v4062, %v4067
        %v4099 = vadd.f32 %v4063, %v4067
        %v4100 = vadd.f32 %v4064, %v4067
        %v4101 = vmax.f32 %v4069, 0.0
        %v4102 = vmax.f32 %v4070, 0.0
        %v4103 = vmax.f32 %v4071, 0.0
        %v4104 = vmax.f32 %v4072, 0.0
        %v4105 = vmax.f32 %v4073, 0.0
        %v4106 = vmax.f32 %v4074, 0.0
        %v4107 = vmax.f32 %v4075, 0.0
        %v4108 = vmax.f32 %v4076, 0.0
        %v4109 = vmax.f32 %v4077, 0.0
        %v4110 = vmax.f32 %v4078, 0.0
        %v4111 = vmax.f32 %v4079, 0.0
        %v4112 = vmax.f32 %v4080, 0.0
        %v4113 = vmax.f32 %v4081, 0.0
        %v4114 = vmax.f32 %v4082, 0.0
        %v4115 = vmax.f32 %v4083, 0.0
        %v4116 = vmax.f32 %v4084, 0.0
        %v4117 = vmax.f32 %v4085, 0.0
        %v4118 = vmax.f32 %v4086, 0.0
        %v4119 = vmax.f32 %v4087, 0.0
        %v4120 = vmax.f32 %v4088, 0.0
        %v4121 = vmax.f32 %v4089, 0.0
        %v4122 = vmax.f32 %v4090, 0.0
        %v4123 = vmax.f32 %v4091, 0.0
        %v4124 = vmax.f32 %v4092, 0.0
        %v4125 = vmax.f32 %v4093, 0.0
        %v4126 = vmax.f32 %v4094, 0.0
        %v4127 = vmax.f32 %v4095, 0.0
        %v4128 = vmax.f32 %v4096, 0.0
        %v4129 = vmax.f32 %v4097, 0.0
        %v4130 = vmax.f32 %v4098, 0.0
        %v4131 = vmax.f32 %v4099, 0.0
        %v4132 = vmax.f32 %v4100, 0.0
        %v4134 = vshrl.u32 %v1546, 16
        %v4136 = vrot.slane %v4134, 7
        %v4137 = vshll.u32 %v1546, 16
        %v4139 = vor.u32 %v4136, %v4137
        %v4141 = vshrl.u32 %v1547, 16
        %v4143 = vrot.slane %v4141, 7
        %v4144 = vshll.u32 %v1547, 16
        %v4146 = vor.u32 %v4143, %v4144
        %v4148 = vshrl.u32 %v1548, 16
        %v4150 = vrot.slane %v4148, 7
        %v4151 = vshll.u32 %v1548, 16
        %v4153 = vor.u32 %v4150, %v4151
        %v4155 = vshrl.u32 %v1549, 16
        %v4157 = vrot.slane %v4155, 7
        %v4158 = vshll.u32 %v1549, 16
        %v4160 = vor.u32 %v4157, %v4158
        %v4162 = vshrl.u32 %v1550, 16
        %v4164 = vrot.slane %v4162, 7
        %v4165 = vshll.u32 %v1550, 16
        %v4167 = vor.u32 %v4164, %v4165
        %v4169 = vshrl.u32 %v1551, 16
        %v4171 = vrot.slane %v4169, 7
        %v4172 = vshll.u32 %v1551, 16
        %v4174 = vor.u32 %v4171, %v4172
        %v4176 = vshrl.u32 %v1552, 16
        %v4178 = vrot.slane %v4176, 7
        %v4179 = vshll.u32 %v1552, 16
        %v4181 = vor.u32 %v4178, %v4179
        %v4183 = vshrl.u32 %v1553, 16
        %v4185 = vrot.slane %v4183, 7
        %v4186 = vshll.u32 %v1553, 16
        %v4188 = vor.u32 %v4185, %v4186
        %v4190 = vshrl.u32 %v1554, 16
        %v4192 = vrot.slane %v4190, 7
        %v4193 = vshll.u32 %v1554, 16
        %v4195 = vor.u32 %v4192, %v4193
        %v4197 = vshrl.u32 %v1555, 16
        %v4199 = vrot.slane %v4197, 7
        %v4200 = vshll.u32 %v1555, 16
        %v4202 = vor.u32 %v4199, %v4200
        %v4204 = vshrl.u32 %v1556, 16
        %v4206 = vrot.slane %v4204, 7
        %v4207 = vshll.u32 %v1556, 16
        %v4209 = vor.u32 %v4206, %v4207
        %v4211 = vshrl.u32 %v1557, 16
        %v4213 = vrot.slane %v4211, 7
        %v4214 = vshll.u32 %v1557, 16
        %v4216 = vor.u32 %v4213, %v4214
        %v4218 = vshrl.u32 %v1558, 16
        %v4220 = vrot.slane %v4218, 7
        %v4221 = vshll.u32 %v1558, 16
        %v4223 = vor.u32 %v4220, %v4221
        %v4225 = vshrl.u32 %v1559, 16
        %v4227 = vrot.slane %v4225, 7
        %v4228 = vshll.u32 %v1559, 16
        %v4230 = vor.u32 %v4227, %v4228
        %v4232 = vshrl.u32 %v1560, 16
        %v4234 = vrot.slane %v4232, 7
        %v4235 = vshll.u32 %v1560, 16
        %v4237 = vor.u32 %v4234, %v4235
        %v4239 = vshrl.u32 %v1561, 16
        %v4241 = vrot.slane %v4239, 7
        %v4242 = vshll.u32 %v1561, 16
        %v4244 = vor.u32 %v4241, %v4242
        %vm4277 = vcmask 1040384
        %vm4278 = vsmask.f32 256
        %vm4279 = vmand %vm4277, %vm4278
        %v4280 = vsel %vm4279, 0, %v4139
        %v4281 = vsel %vm4279, 0, %v4146
        %v4282 = vsel %vm4279, 0, %v4153
        %v4283 = vsel %vm4279, 0, %v4160
        %v4284 = vsel %vm4279, 0, %v4167
        %v4285 = vsel %vm4279, 0, %v4174
        %v4286 = vsel %vm4279, 0, %v4181
        %v4287 = vsel %vm4279, 0, %v4188
        %v4288 = vsel %vm4279, 0, %v4195
        %v4289 = vsel %vm4279, 0, %v4202
        %v4290 = vsel %vm4279, 0, %v4209
        %v4291 = vsel %vm4279, 0, %v4216
        %v4292 = vsel %vm4279, 0, %v4223
        %v4293 = vsel %vm4279, 0, %v4230
        %v4294 = vsel %vm4279, 0, %v4237
        %v4295 = vsel %vm4279, 0, %v4244
        %v4296 = vsel %vm4279, %v4136, 0
        %v4297 = vsel %vm4279, %v4143, 0
        %v4298 = vsel %vm4279, %v4150, 0
        %v4299 = vsel %vm4279, %v4157, 0
        %v4300 = vsel %vm4279, %v4164, 0
        %v4301 = vsel %vm4279, %v4171, 0
        %v4302 = vsel %vm4279, %v4178, 0
        %v4303 = vsel %vm4279, %v4185, 0
        %v4304 = vsel %vm4279, %v4192, 0
        %v4305 = vsel %vm4279, %v4199, 0
        %v4306 = vsel %vm4279, %v4206, 0
        %v4307 = vsel %vm4279, %v4213, 0
        %v4308 = vsel %vm4279, %v4220, 0
        %v4309 = vsel %vm4279, %v4227, 0
        %v4310 = vsel %vm4279, %v4234, 0
        %v4311 = vsel %vm4279, %v4241, 0
        %v4313 = vshrl.u32 %v4280, 16
        %v4315 = vshll.u32 %v4280, 16
        %v4317 = vrot.slane %v4315, 1
        %v4318 = vor.u32 %v4313, %v4317
        %v4320 = vshll.u32 %v4296, 16
        %v4322 = vrot.slane %v4320, 1
        %v4323 = vsel %vm1660, %v4318, %v4322
        %v4325 = vshrl.u32 %v4281, 16
        %v4327 = vshll.u32 %v4281, 16
        %v4329 = vrot.slane %v4327, 1
        %v4330 = vor.u32 %v4325, %v4329
        %v4332 = vshll.u32 %v4297, 16
        %v4334 = vrot.slane %v4332, 1
        %v4335 = vsel %vm1660, %v4330, %v4334
        %v4337 = vshrl.u32 %v4282, 16
        %v4339 = vshll.u32 %v4282, 16
        %v4341 = vrot.slane %v4339, 1
        %v4342 = vor.u32 %v4337, %v4341
        %v4344 = vshll.u32 %v4298, 16
        %v4346 = vrot.slane %v4344, 1
        %v4347 = vsel %vm1660, %v4342, %v4346
        %v4349 = vshrl.u32 %v4283, 16
        %v4351 = vshll.u32 %v4283, 16
        %v4353 = vrot.slane %v4351, 1
        %v4354 = vor.u32 %v4349, %v4353
        %v4356 = vshll.u32 %v4299, 16
        %v4358 = vrot.slane %v4356, 1
        %v4359 = vsel %vm1660, %v4354, %v4358
        %v4361 = vshrl.u32 %v4284, 16
        %v4363 = vshll.u32 %v4284, 16
        %v4365 = vrot.slane %v4363, 1
        %v4366 = vor.u32 %v4361, %v4365
        %v4368 = vshll.u32 %v4300, 16
        %v4370 = vrot.slane %v4368, 1
        %v4371 = vsel %vm1660, %v4366, %v4370
        %v4373 = vshrl.u32 %v4285, 16
        %v4375 = vshll.u32 %v4285, 16
        %v4377 = vrot.slane %v4375, 1
        %v4378 = vor.u32 %v4373, %v4377
        %v4380 = vshll.u32 %v4301, 16
        %v4382 = vrot.slane %v4380, 1
        %v4383 = vsel %vm1660, %v4378, %v4382
        %v4385 = vshrl.u32 %v4286, 16
        %v4387 = vshll.u32 %v4286, 16
        %v4389 = vrot.slane %v4387, 1
        %v4390 = vor.u32 %v4385, %v4389
        %v4392 = vshll.u32 %v4302, 16
        %v4394 = vrot.slane %v4392, 1
        %v4395 = vsel %vm1660, %v4390, %v4394
        %v4397 = vshrl.u32 %v4287, 16
        %v4399 = vshll.u32 %v4287, 16
        %v4401 = vrot.slane %v4399, 1
        %v4402 = vor.u32 %v4397, %v4401
        %v4404 = vshll.u32 %v4303, 16
        %v4406 = vrot.slane %v4404, 1
        %v4407 = vsel %vm1660, %v4402, %v4406
        %v4409 = vshrl.u32 %v4288, 16
        %v4411 = vshll.u32 %v4288, 16
        %v4413 = vrot.slane %v4411, 1
        %v4414 = vor.u32 %v4409, %v4413
        %v4416 = vshll.u32 %v4304, 16
        %v4418 = vrot.slane %v4416, 1
        %v4419 = vsel %vm1660, %v4414, %v4418
        %v4421 = vshrl.u32 %v4289, 16
        %v4423 = vshll.u32 %v4289, 16
        %v4425 = vrot.slane %v4423, 1
        %v4426 = vor.u32 %v4421, %v4425
        %v4428 = vshll.u32 %v4305, 16
        %v4430 = vrot.slane %v4428, 1
        %v4431 = vsel %vm1660, %v4426, %v4430
        %v4433 = vshrl.u32 %v4290, 16
        %v4435 = vshll.u32 %v4290, 16
        %v4437 = vrot.slane %v4435, 1
        %v4438 = vor.u32 %v4433, %v4437
        %v4440 = vshll.u32 %v4306, 16
        %v4442 = vrot.slane %v4440, 1
        %v4443 = vsel %vm1660, %v4438, %v4442
        %v4445 = vshrl.u32 %v4291, 16
        %v4447 = vshll.u32 %v4291, 16
        %v4449 = vrot.slane %v4447, 1
        %v4450 = vor.u32 %v4445, %v4449
        %v4452 = vshll.u32 %v4307, 16
        %v4454 = vrot.slane %v4452, 1
        %v4455 = vsel %vm1660, %v4450, %v4454
        %v4457 = vshrl.u32 %v4292, 16
        %v4459 = vshll.u32 %v4292, 16
        %v4461 = vrot.slane %v4459, 1
        %v4462 = vor.u32 %v4457, %v4461
        %v4464 = vshll.u32 %v4308, 16
        %v4466 = vrot.slane %v4464, 1
        %v4467 = vsel %vm1660, %v4462, %v4466
        %v4469 = vshrl.u32 %v4293, 16
        %v4471 = vshll.u32 %v4293, 16
        %v4473 = vrot.slane %v4471, 1
        %v4474 = vor.u32 %v4469, %v4473
        %v4476 = vshll.u32 %v4309, 16
        %v4478 = vrot.slane %v4476, 1
        %v4479 = vsel %vm1660, %v4474, %v4478
        %v4481 = vshrl.u32 %v4294, 16
        %v4483 = vshll.u32 %v4294, 16
        %v4485 = vrot.slane %v4483, 1
        %v4486 = vor.u32 %v4481, %v4485
        %v4488 = vshll.u32 %v4310, 16
        %v4490 = vrot.slane %v4488, 1
        %v4491 = vsel %vm1660, %v4486, %v4490
        %v4493 = vshrl.u32 %v4295, 16
        %v4495 = vshll.u32 %v4295, 16
        %v4497 = vrot.slane %v4495, 1
        %v4498 = vor.u32 %v4493, %v4497
        %v4500 = vshll.u32 %v4311, 16
        %v4502 = vrot.slane %v4500, 1
        %v4503 = vsel %vm1660, %v4498, %v4502
        %4504 = vrot.lane.b32.xlu0 %v1667, 64
        %v4505 = vpop.permute.xlu0 %4504
        %4506 = vrot.lane.b32.xlu0 %v4323, 64
        %v4507 = vpop.permute.xlu0 %4506
        %4508 = vrot.lane.b32.xlu0 %v4335, 64
        %v4509 = vpop.permute.xlu0 %4508
        %4510 = vrot.lane.b32.xlu0 %v4347, 64
        %v4511 = vpop.permute.xlu0 %4510
        %4512 = vrot.lane.b32.xlu0 %v4359, 64
        %v4513 = vpop.permute.xlu0 %4512
        %4514 = vrot.lane.b32.xlu0 %v4371, 64
        %v4515 = vpop.permute.xlu0 %4514
        %4516 = vrot.lane.b32.xlu0 %v4383, 64
        %v4517 = vpop.permute.xlu0 %4516
        %4518 = vrot.lane.b32.xlu0 %v4395, 64
        %v4519 = vpop.permute.xlu0 %4518
        %4520 = vrot.lane.b32.xlu0 %v4407, 64
        %v4521 = vpop.permute.xlu0 %4520
        %4522 = vrot.lane.b32.xlu0 %v4419, 64
        %v4523 = vpop.permute.xlu0 %4522
        %4524 = vrot.lane.b32.xlu0 %v4431, 64
        %v4525 = vpop.permute.xlu0 %4524
        %4526 = vrot.lane.b32.xlu0 %v4443, 64
        %v4527 = vpop.permute.xlu0 %4526
        %4528 = vrot.lane.b32.xlu0 %v4455, 64
        %v4529 = vpop.permute.xlu0 %4528
        %4530 = vrot.lane.b32.xlu0 %v4467, 64
        %v4531 = vpop.permute.xlu0 %4530
        %4532 = vrot.lane.b32.xlu0 %v4479, 64
        %v4533 = vpop.permute.xlu0 %4532
        %4534 = vrot.lane.b32.xlu0 %v4491, 64
        %v4535 = vpop.permute.xlu0 %4534
        %4536 = vrot.lane.b32.xlu0 %v4503, 64
        %v4537 = vpop.permute.xlu0 %4536
        %v4570 = vrot.slane %v4280, 1
        %v4571 = vrot.slane %v4296, 1
        %v4572 = vsel %vm1895, %v4570, %v4571
        %v4573 = vrot.slane %v4281, 1
        %v4574 = vrot.slane %v4297, 1
        %v4575 = vsel %vm1895, %v4573, %v4574
        %v4576 = vrot.slane %v4282, 1
        %v4577 = vrot.slane %v4298, 1
        %v4578 = vsel %vm1895, %v4576, %v4577
        %v4579 = vrot.slane %v4283, 1
        %v4580 = vrot.slane %v4299, 1
        %v4581 = vsel %vm1895, %v4579, %v4580
        %v4582 = vrot.slane %v4284, 1
        %v4583 = vrot.slane %v4300, 1
        %v4584 = vsel %vm1895, %v4582, %v4583
        %v4585 = vrot.slane %v4285, 1
        %v4586 = vrot.slane %v4301, 1
        %v4587 = vsel %vm1895, %v4585, %v4586
        %v4588 = vrot.slane %v4286, 1
        %v4589 = vrot.slane %v4302, 1
        %v4590 = vsel %vm1895, %v4588, %v4589
        %v4591 = vrot.slane %v4287, 1
        %v4592 = vrot.slane %v4303, 1
        %v4593 = vsel %vm1895, %v4591, %v4592
        %v4594 = vrot.slane %v4288, 1
        %v4595 = vrot.slane %v4304, 1
        %v4596 = vsel %vm1895, %v4594, %v4595
        %v4597 = vrot.slane %v4289, 1
        %v4598 = vrot.slane %v4305, 1
        %v4599 = vsel %vm1895, %v4597, %v4598
        %v4600 = vrot.slane %v4290, 1
        %v4601 = vrot.slane %v4306, 1
        %v4602 = vsel %vm1895, %v4600, %v4601
        %v4603 = vrot.slane %v4291, 1
        %v4604 = vrot.slane %v4307, 1
        %v4605 = vsel %vm1895, %v4603, %v4604
        %v4606 = vrot.slane %v4292, 1
        %v4607 = vrot.slane %v4308, 1
        %v4608 = vsel %vm1895, %v4606, %v4607
        %v4609 = vrot.slane %v4293, 1
        %v4610 = vrot.slane %v4309, 1
        %v4611 = vsel %vm1895, %v4609, %v4610
        %v4612 = vrot.slane %v4294, 1
        %v4613 = vrot.slane %v4310, 1
        %v4614 = vsel %vm1895, %v4612, %v4613
        %v4615 = vrot.slane %v4295, 1
        %v4616 = vrot.slane %v4311, 1
        %v4617 = vsel %vm1895, %v4615, %v4616
        %v4619 = vsel %vm841, 0, %v4505
        %v4622 = vsel %vm841, %v4280, %v4507
        %v4625 = vsel %vm841, %v4281, %v4509
        %v4628 = vsel %vm841, %v4282, %v4511
        %v4631 = vsel %vm841, %v4283, %v4513
        %v4634 = vsel %vm841, %v4284, %v4515
        %v4637 = vsel %vm841, %v4285, %v4517
        %v4640 = vsel %vm841, %v4286, %v4519
        %v4643 = vsel %vm841, %v4287, %v4521
        %v4646 = vsel %vm841, %v4288, %v4523
        %v4649 = vsel %vm841, %v4289, %v4525
        %v4652 = vsel %vm841, %v4290, %v4527
        %v4655 = vsel %vm841, %v4291, %v4529
        %v4658 = vsel %vm841, %v4292, %v4531
        %v4661 = vsel %vm841, %v4293, %v4533
        %v4664 = vsel %vm841, %v4294, %v4535
        %v4667 = vsel %vm841, %v4295, %v4537
        %v4669 = vld [vmem:[%s7] sm:$0xf]
        %v4670 = vld [vmem:[%s7 + $0x4] sm:$0xf]
        %v4671 = vld [vmem:[%s7 + $0x8] sm:$0xf]
        %v4672 = vld [vmem:[%s7 + $0xc] sm:$0xf]
        %v4673 = vld [vmem:[%s7 + $0x10] sm:$0xf]
        %v4674 = vld [vmem:[%s7 + $0x14] sm:$0xf]
        %v4675 = vld [vmem:[%s7 + $0x18] sm:$0xf]
        %v4676 = vld [vmem:[%s7 + $0x1c] sm:$0xf]
        %v4677 = vld [vmem:[%s7 + $0x20] sm:$0xf]
        %v4678 = vld [vmem:[%s7 + $0x24] sm:$0xf]
        %v4679 = vld [vmem:[%s7 + $0x28] sm:$0xf]
        %v4680 = vld [vmem:[%s7 + $0x2c] sm:$0xf]
        %v4681 = vld [vmem:[%s7 + $0x30] sm:$0xf]
        %v4682 = vld [vmem:[%s7 + $0x34] sm:$0xf]
        %v4683 = vld [vmem:[%s7 + $0x38] sm:$0xf]
        %v4684 = vld [vmem:[%s7 + $0x3c] sm:$0xf]
        %v4685 = vld [vmem:[%s7 + $0x40] sm:$0xf]
        %v4686 = vld [vmem:[%s7 + $0x44] sm:$0xf]
        %v4687 = vld [vmem:[%s7 + $0x48] sm:$0xf]
        %v4688 = vld [vmem:[%s7 + $0x4c] sm:$0xf]
        %v4689 = vld [vmem:[%s7 + $0x50] sm:$0xf]
        %v4690 = vld [vmem:[%s7 + $0x54] sm:$0xf]
        %v4691 = vld [vmem:[%s7 + $0x58] sm:$0xf]
        %v4692 = vld [vmem:[%s7 + $0x5c] sm:$0xf]
        %s4693 = scalar_lea.vmem %s7, 96
        %v4694 = vld [vmem:[%s4693] sm:$0xf]
        %v4695 = vld [vmem:[%s4693 + $0x4] sm:$0xf]
        %v4696 = vld [vmem:[%s4693 + $0x8] sm:$0xf]
        %v4697 = vld [vmem:[%s4693 + $0xc] sm:$0xf]
        %v4698 = vld [vmem:[%s4693 + $0x10] sm:$0xf]
        %v4699 = vld [vmem:[%s4693 + $0x14] sm:$0xf]
        %v4700 = vld [vmem:[%s4693 + $0x18] sm:$0xf]
        %v4701 = vld [vmem:[%s4693 + $0x1c] sm:$0xf]
        %v4702 = vld [vmem:[%s4693 + $0x20] sm:$0xf]
        %v4703 = vld [vmem:[%s4693 + $0x24] sm:$0xf]
        %v4704 = vld [vmem:[%s4693 + $0x28] sm:$0xf]
        %v4705 = vld [vmem:[%s4693 + $0x2c] sm:$0xf]
        %v4706 = vld [vmem:[%s4693 + $0x30] sm:$0xf]
        %v4707 = vld [vmem:[%s4693 + $0x34] sm:$0xf]
        %v4708 = vld [vmem:[%s4693 + $0x38] sm:$0xf]
        %v4709 = vld [vmem:[%s4693 + $0x3c] sm:$0xf]
        %v4710 = vld [vmem:[%s4693 + $0x40] sm:$0xf]
        %v4711 = vld [vmem:[%s4693 + $0x44] sm:$0xf]
        %v4712 = vld [vmem:[%s4693 + $0x48] sm:$0xf]
        %v4713 = vld [vmem:[%s4693 + $0x4c] sm:$0xf]
        %v4714 = vld [vmem:[%s4693 + $0x50] sm:$0xf]
        %v4715 = vld [vmem:[%s4693 + $0x54] sm:$0xf]
        %v4716 = vld [vmem:[%s4693 + $0x58] sm:$0xf]
        %v4717 = vld [vmem:[%s4693 + $0x5c] sm:$0xf]
        %v4742 = vunpack.c.l.b16 %v4694
        %v4743 = vunpack.c.l.b16 %v4695
        %v4744 = vunpack.c.l.b16 %v4696
        %v4745 = vunpack.c.l.b16 %v4697
        %v4746 = vunpack.c.l.b16 %v4698
        %v4747 = vunpack.c.l.b16 %v4699
        %v4748 = vunpack.c.l.b16 %v4700
        %v4749 = vunpack.c.l.b16 %v4701
        %v4750 = vunpack.c.l.b16 %v4702
        %v4751 = vunpack.c.l.b16 %v4703
        %v4752 = vunpack.c.l.b16 %v4704
        %v4753 = vunpack.c.l.b16 %v4705
        %v4754 = vunpack.c.l.b16 %v4706
        %v4755 = vunpack.c.l.b16 %v4707
        %v4756 = vunpack.c.l.b16 %v4708
        %v4757 = vunpack.c.l.b16 %v4709
        %v4758 = vunpack.c.l.b16 %v4710
        %v4759 = vunpack.c.l.b16 %v4711
        %v4760 = vunpack.c.l.b16 %v4712
        %v4761 = vunpack.c.l.b16 %v4713
        %v4762 = vunpack.c.l.b16 %v4714
        %v4763 = vunpack.c.l.b16 %v4715
        %v4764 = vunpack.c.l.b16 %v4716
        %v4765 = vunpack.c.l.b16 %v4717
        %v4766 = vpack.c.b16 %v4743, %v4742
        %v4767 = vpack.c.b16 %v4745, %v4744
        %v4768 = vpack.c.b16 %v4747, %v4746
        %v4769 = vpack.c.b16 %v4749, %v4748
        %v4770 = vpack.c.b16 %v4751, %v4750
        %v4771 = vpack.c.b16 %v4753, %v4752
        %v4772 = vpack.c.b16 %v4755, %v4754
        %v4773 = vpack.c.b16 %v4757, %v4756
        %v4774 = vpack.c.b16 %v4759, %v4758
        %v4775 = vpack.c.b16 %v4761, %v4760
        %v4776 = vpack.c.b16 %v4763, %v4762
        %v4777 = vpack.c.b16 %v4765, %v4764
        %v4791 = vsel %vm841, %v4572, 0
        %v4794 = vsel %vm841, %v4575, 0
        %v4797 = vsel %vm841, %v4578, 0
        %v4800 = vsel %vm841, %v4581, 0
        %v4803 = vsel %vm841, %v4584, 0
        %v4806 = vsel %vm841, %v4587, 0
        %v4809 = vsel %vm841, %v4590, 0
        %v4812 = vsel %vm841, %v4593, 0
        %v4815 = vsel %vm841, %v4596, 0
        %v4818 = vsel %vm841, %v4599, 0
        %v4821 = vsel %vm841, %v4602, 0
        %v4824 = vsel %vm841, %v4605, 0
        %v4827 = vsel %vm841, %v4608, 0
        %v4830 = vsel %vm841, %v4611, 0
        %v4833 = vsel %vm841, %v4614, 0
        %v4836 = vsel %vm841, %v4617, 0
        %4838 = vmatpush.bf16.msra.mxu0 %v4773
        %4839 = vmatpush.bf16.msra.mxu0 %v4772
        %4840 = vmatpush.bf16.msra.mxu0 %v4771
        %4841 = vmatpush.bf16.msra.mxu0 %v4770
        %4842 = vmatpush.bf16.msra.mxu0 %v4769
        %4843 = vmatpush.bf16.msra.mxu0 %v4768
        %4844 = vmatpush.bf16.msra.mxu0 %v4767
        %4845 = vmatpush.bf16.msra.mxu0 %v4766
        %4846 = vmatmul.bf16.gmra.mxu0 %v4622
        %v4847 = vpop.f32.mrf.mxu0
        %v4848 = vadd.f32 0.0, %v4847
        %v4849 = vpop.f32.mrf.mxu0
        %v4850 = vadd.f32 0.0, %v4849
        %4851 = vmatmul.bf16.gmra.mxu0 %v4625
        %v4852 = vpop.f32.mrf.mxu0
        %v4853 = vadd.f32 0.0, %v4852
        %v4854 = vpop.f32.mrf.mxu0
        %v4855 = vadd.f32 0.0, %v4854
        %4856 = vmatmul.bf16.gmra.mxu0 %v4628
        %v4857 = vpop.f32.mrf.mxu0
        %v4858 = vadd.f32 0.0, %v4857
        %v4859 = vpop.f32.mrf.mxu0
        %v4860 = vadd.f32 0.0, %v4859
        %4861 = vmatmul.bf16.gmra.mxu0 %v4631
        %v4862 = vpop.f32.mrf.mxu0
        %v4863 = vadd.f32 0.0, %v4862
        %v4864 = vpop.f32.mrf.mxu0
        %v4865 = vadd.f32 0.0, %v4864
        %4866 = vmatmul.bf16.gmra.mxu0 %v4634
        %v4867 = vpop.f32.mrf.mxu0
        %v4868 = vadd.f32 0.0, %v4867
        %v4869 = vpop.f32.mrf.mxu0
        %v4870 = vadd.f32 0.0, %v4869
        %4871 = vmatmul.bf16.gmra.mxu0 %v4637
        %v4872 = vpop.f32.mrf.mxu0
        %v4873 = vadd.f32 0.0, %v4872
        %v4874 = vpop.f32.mrf.mxu0
        %v4875 = vadd.f32 0.0, %v4874
        %4876 = vmatmul.bf16.gmra.mxu0 %v4640
        %v4877 = vpop.f32.mrf.mxu0
        %v4878 = vadd.f32 0.0, %v4877
        %v4879 = vpop.f32.mrf.mxu0
        %v4880 = vadd.f32 0.0, %v4879
        %4881 = vmatmul.bf16.gmra.mxu0 %v4643
        %v4882 = vpop.f32.mrf.mxu0
        %v4883 = vadd.f32 0.0, %v4882
        %v4884 = vpop.f32.mrf.mxu0
        %v4885 = vadd.f32 0.0, %v4884
        %4886 = vmatmul.bf16.gmra.mxu0 %v4646
        %v4887 = vpop.f32.mrf.mxu0
        %v4888 = vadd.f32 0.0, %v4887
        %v4889 = vpop.f32.mrf.mxu0
        %v4890 = vadd.f32 0.0, %v4889
        %4891 = vmatmul.bf16.gmra.mxu0 %v4649
        %v4892 = vpop.f32.mrf.mxu0
        %v4893 = vadd.f32 0.0, %v4892
        %v4894 = vpop.f32.mrf.mxu0
        %v4895 = vadd.f32 0.0, %v4894
        %4896 = vmatmul.bf16.gmra.mxu0 %v4652
        %v4897 = vpop.f32.mrf.mxu0
        %v4898 = vadd.f32 0.0, %v4897
        %v4899 = vpop.f32.mrf.mxu0
        %v4900 = vadd.f32 0.0, %v4899
        %4901 = vmatmul.bf16.gmra.mxu0 %v4655
        %v4902 = vpop.f32.mrf.mxu0
        %v4903 = vadd.f32 0.0, %v4902
        %v4904 = vpop.f32.mrf.mxu0
        %v4905 = vadd.f32 0.0, %v4904
        %4906 = vmatmul.bf16.gmra.mxu0 %v4658
        %v4907 = vpop.f32.mrf.mxu0
        %v4908 = vadd.f32 0.0, %v4907
        %v4909 = vpop.f32.mrf.mxu0
        %v4910 = vadd.f32 0.0, %v4909
        %4911 = vmatmul.bf16.gmra.mxu0 %v4661
        %v4912 = vpop.f32.mrf.mxu0
        %v4913 = vadd.f32 0.0, %v4912
        %v4914 = vpop.f32.mrf.mxu0
        %v4915 = vadd.f32 0.0, %v4914
        %4916 = vmatmul.bf16.gmra.mxu0 %v4664
        %v4917 = vpop.f32.mrf.mxu0
        %v4918 = vadd.f32 0.0, %v4917
        %v4919 = vpop.f32.mrf.mxu0
        %v4920 = vadd.f32 0.0, %v4919
        %4921 = vmatmul.bf16.gmra.mxu0 %v4667
        %v4922 = vpop.f32.mrf.mxu0
        %v4923 = vadd.f32 0.0, %v4922
        %v4924 = vpop.f32.mrf.mxu0
        %v4925 = vadd.f32 0.0, %v4924
        %4926 = vdwg.mxu0
        %4927 = vmatpush.bf16.msra.mxu0 0
        %4928 = vmatpush.bf16.msra.mxu0 0
        %4929 = vmatpush.bf16.msra.mxu0 0
        %4930 = vmatpush.bf16.msra.mxu0 0
        %4931 = vmatpush.bf16.msra.mxu0 %v4777
        %4932 = vmatpush.bf16.msra.mxu0 %v4776
        %4933 = vmatpush.bf16.msra.mxu0 %v4775
        %4934 = vmatpush.bf16.msra.mxu0 %v4774
        %4935 = vmatmul.bf16.gmra.mxu0 %v4791
        %v4936 = vpop.f32.mrf.mxu0
        %v4937 = vadd.f32 %v4848, %v4936
        %v4938 = vpop.f32.mrf.mxu0
        %v4939 = vadd.f32 %v4850, %v4938
        %4940 = vmatmul.bf16.gmra.mxu0 %v4794
        %v4941 = vpop.f32.mrf.mxu0
        %v4942 = vadd.f32 %v4853, %v4941
        %v4943 = vpop.f32.mrf.mxu0
        %v4944 = vadd.f32 %v4855, %v4943
        %4945 = vmatmul.bf16.gmra.mxu0 %v4797
        %v4946 = vpop.f32.mrf.mxu0
        %v4947 = vadd.f32 %v4858, %v4946
        %v4948 = vpop.f32.mrf.mxu0
        %v4949 = vadd.f32 %v4860, %v4948
        %4950 = vmatmul.bf16.gmra.mxu0 %v4800
        %v4951 = vpop.f32.mrf.mxu0
        %v4952 = vadd.f32 %v4863, %v4951
        %v4953 = vpop.f32.mrf.mxu0
        %v4954 = vadd.f32 %v4865, %v4953
        %4955 = vmatmul.bf16.gmra.mxu0 %v4803
        %v4956 = vpop.f32.mrf.mxu0
        %v4957 = vadd.f32 %v4868, %v4956
        %v4958 = vpop.f32.mrf.mxu0
        %v4959 = vadd.f32 %v4870, %v4958
        %4960 = vmatmul.bf16.gmra.mxu0 %v4806
        %v4961 = vpop.f32.mrf.mxu0
        %v4962 = vadd.f32 %v4873, %v4961
        %v4963 = vpop.f32.mrf.mxu0
        %v4964 = vadd.f32 %v4875, %v4963
        %4965 = vmatmul.bf16.gmra.mxu0 %v4809
        %v4966 = vpop.f32.mrf.mxu0
        %v4967 = vadd.f32 %v4878, %v4966
        %v4968 = vpop.f32.mrf.mxu0
        %v4969 = vadd.f32 %v4880, %v4968
        %4970 = vmatmul.bf16.gmra.mxu0 %v4812
        %v4971 = vpop.f32.mrf.mxu0
        %v4972 = vadd.f32 %v4883, %v4971
        %v4973 = vpop.f32.mrf.mxu0
        %v4974 = vadd.f32 %v4885, %v4973
        %4975 = vmatmul.bf16.gmra.mxu0 %v4815
        %v4976 = vpop.f32.mrf.mxu0
        %v4977 = vadd.f32 %v4888, %v4976
        %v4978 = vpop.f32.mrf.mxu0
        %v4979 = vadd.f32 %v4890, %v4978
        %4980 = vmatmul.bf16.gmra.mxu0 %v4818
        %v4981 = vpop.f32.mrf.mxu0
        %v4982 = vadd.f32 %v4893, %v4981
        %v4983 = vpop.f32.mrf.mxu0
        %v4984 = vadd.f32 %v4895, %v4983
        %4985 = vmatmul.bf16.gmra.mxu0 %v4821
        %v4986 = vpop.f32.mrf.mxu0
        %v4987 = vadd.f32 %v4898, %v4986
        %v4988 = vpop.f32.mrf.mxu0
        %v4989 = vadd.f32 %v4900, %v4988
        %4990 = vmatmul.bf16.gmra.mxu0 %v4824
        %v4991 = vpop.f32.mrf.mxu0
        %v4992 = vadd.f32 %v4903, %v4991
        %v4993 = vpop.f32.mrf.mxu0
        %v4994 = vadd.f32 %v4905, %v4993
        %4995 = vmatmul.bf16.gmra.mxu0 %v4827
        %v4996 = vpop.f32.mrf.mxu0
        %v4997 = vadd.f32 %v4908, %v4996
        %v4998 = vpop.f32.mrf.mxu0
        %v4999 = vadd.f32 %v4910, %v4998
        %5000 = vmatmul.bf16.gmra.mxu0 %v4830
        %v5001 = vpop.f32.mrf.mxu0
        %v5002 = vadd.f32 %v4913, %v5001
        %v5003 = vpop.f32.mrf.mxu0
        %v5004 = vadd.f32 %v4915, %v5003
        %5005 = vmatmul.bf16.gmra.mxu0 %v4833
        %v5006 = vpop.f32.mrf.mxu0
        %v5007 = vadd.f32 %v4918, %v5006
        %v5008 = vpop.f32.mrf.mxu0
        %v5009 = vadd.f32 %v4920, %v5008
        %5010 = vmatmul.bf16.gmra.mxu0 %v4836
        %v5011 = vpop.f32.mrf.mxu0
        %v5012 = vadd.f32 %v4923, %v5011
        %v5013 = vpop.f32.mrf.mxu0
        %v5014 = vadd.f32 %v4925, %v5013
        %5015 = vdwg.mxu0
        %v5040 = vunpack.c.l.b16 %v4669
        %v5041 = vunpack.c.l.b16 %v4670
        %v5042 = vunpack.c.l.b16 %v4671
        %v5043 = vunpack.c.l.b16 %v4672
        %v5044 = vunpack.c.l.b16 %v4673
        %v5045 = vunpack.c.l.b16 %v4674
        %v5046 = vunpack.c.l.b16 %v4675
        %v5047 = vunpack.c.l.b16 %v4676
        %v5048 = vunpack.c.l.b16 %v4677
        %v5049 = vunpack.c.l.b16 %v4678
        %v5050 = vunpack.c.l.b16 %v4679
        %v5051 = vunpack.c.l.b16 %v4680
        %v5052 = vunpack.c.l.b16 %v4681
        %v5053 = vunpack.c.l.b16 %v4682
        %v5054 = vunpack.c.l.b16 %v4683
        %v5055 = vunpack.c.l.b16 %v4684
        %v5056 = vunpack.c.l.b16 %v4685
        %v5057 = vunpack.c.l.b16 %v4686
        %v5058 = vunpack.c.l.b16 %v4687
        %v5059 = vunpack.c.l.b16 %v4688
        %v5060 = vunpack.c.l.b16 %v4689
        %v5061 = vunpack.c.l.b16 %v4690
        %v5062 = vunpack.c.l.b16 %v4691
        %v5063 = vunpack.c.l.b16 %v4692
        %v5064 = vpack.c.b16 %v5041, %v5040
        %v5065 = vpack.c.b16 %v5043, %v5042
        %v5066 = vpack.c.b16 %v5045, %v5044
        %v5067 = vpack.c.b16 %v5047, %v5046
        %v5068 = vpack.c.b16 %v5049, %v5048
        %v5069 = vpack.c.b16 %v5051, %v5050
        %v5070 = vpack.c.b16 %v5053, %v5052
        %v5071 = vpack.c.b16 %v5055, %v5054
        %v5072 = vpack.c.b16 %v5057, %v5056
        %v5073 = vpack.c.b16 %v5059, %v5058
        %v5074 = vpack.c.b16 %v5061, %v5060
        %v5075 = vpack.c.b16 %v5063, %v5062
        %v5089 = vsel %vm841, %v1897, 0
        %5091 = vmatpush.bf16.msra.mxu0 %v5071
        %5092 = vmatpush.bf16.msra.mxu0 %v5070
        %5093 = vmatpush.bf16.msra.mxu0 %v5069
        %5094 = vmatpush.bf16.msra.mxu0 %v5068
        %5095 = vmatpush.bf16.msra.mxu0 %v5067
        %5096 = vmatpush.bf16.msra.mxu0 %v5066
        %5097 = vmatpush.bf16.msra.mxu0 %v5065
        %5098 = vmatpush.bf16.msra.mxu0 %v5064
        %5099 = vmatmul.bf16.gmra.mxu0 %v4619
        %v5100 = vpop.f32.mrf.mxu0
        %v5101 = vadd.f32 %v4937, %v5100
        %v5102 = vpop.f32.mrf.mxu0
        %v5103 = vadd.f32 %v4939, %v5102
        %5104 = vmatmul.bf16.gmra.mxu0 %v4622
        %v5105 = vpop.f32.mrf.mxu0
        %v5106 = vadd.f32 %v4942, %v5105
        %v5107 = vpop.f32.mrf.mxu0
        %v5108 = vadd.f32 %v4944, %v5107
        %5109 = vmatmul.bf16.gmra.mxu0 %v4625
        %v5110 = vpop.f32.mrf.mxu0
        %v5111 = vadd.f32 %v4947, %v5110
        %v5112 = vpop.f32.mrf.mxu0
        %v5113 = vadd.f32 %v4949, %v5112
        %5114 = vmatmul.bf16.gmra.mxu0 %v4628
        %v5115 = vpop.f32.mrf.mxu0
        %v5116 = vadd.f32 %v4952, %v5115
        %v5117 = vpop.f32.mrf.mxu0
        %v5118 = vadd.f32 %v4954, %v5117
        %5119 = vmatmul.bf16.gmra.mxu0 %v4631
        %v5120 = vpop.f32.mrf.mxu0
        %v5121 = vadd.f32 %v4957, %v5120
        %v5122 = vpop.f32.mrf.mxu0
        %v5123 = vadd.f32 %v4959, %v5122
        %5124 = vmatmul.bf16.gmra.mxu0 %v4634
        %v5125 = vpop.f32.mrf.mxu0
        %v5126 = vadd.f32 %v4962, %v5125
        %v5127 = vpop.f32.mrf.mxu0
        %v5128 = vadd.f32 %v4964, %v5127
        %5129 = vmatmul.bf16.gmra.mxu0 %v4637
        %v5130 = vpop.f32.mrf.mxu0
        %v5131 = vadd.f32 %v4967, %v5130
        %v5132 = vpop.f32.mrf.mxu0
        %v5133 = vadd.f32 %v4969, %v5132
        %5134 = vmatmul.bf16.gmra.mxu0 %v4640
        %v5135 = vpop.f32.mrf.mxu0
        %v5136 = vadd.f32 %v4972, %v5135
        %v5137 = vpop.f32.mrf.mxu0
        %v5138 = vadd.f32 %v4974, %v5137
        %5139 = vmatmul.bf16.gmra.mxu0 %v4643
        %v5140 = vpop.f32.mrf.mxu0
        %v5141 = vadd.f32 %v4977, %v5140
        %v5142 = vpop.f32.mrf.mxu0
        %v5143 = vadd.f32 %v4979, %v5142
        %5144 = vmatmul.bf16.gmra.mxu0 %v4646
        %v5145 = vpop.f32.mrf.mxu0
        %v5146 = vadd.f32 %v4982, %v5145
        %v5147 = vpop.f32.mrf.mxu0
        %v5148 = vadd.f32 %v4984, %v5147
        %5149 = vmatmul.bf16.gmra.mxu0 %v4649
        %v5150 = vpop.f32.mrf.mxu0
        %v5151 = vadd.f32 %v4987, %v5150
        %v5152 = vpop.f32.mrf.mxu0
        %v5153 = vadd.f32 %v4989, %v5152
        %5154 = vmatmul.bf16.gmra.mxu0 %v4652
        %v5155 = vpop.f32.mrf.mxu0
        %v5156 = vadd.f32 %v4992, %v5155
        %v5157 = vpop.f32.mrf.mxu0
        %v5158 = vadd.f32 %v4994, %v5157
        %5159 = vmatmul.bf16.gmra.mxu0 %v4655
        %v5160 = vpop.f32.mrf.mxu0
        %v5161 = vadd.f32 %v4997, %v5160
        %v5162 = vpop.f32.mrf.mxu0
        %v5163 = vadd.f32 %v4999, %v5162
        %5164 = vmatmul.bf16.gmra.mxu0 %v4658
        %v5165 = vpop.f32.mrf.mxu0
        %v5166 = vadd.f32 %v5002, %v5165
        %v5167 = vpop.f32.mrf.mxu0
        %v5168 = vadd.f32 %v5004, %v5167
        %5169 = vmatmul.bf16.gmra.mxu0 %v4661
        %v5170 = vpop.f32.mrf.mxu0
        %v5171 = vadd.f32 %v5007, %v5170
        %v5172 = vpop.f32.mrf.mxu0
        %v5173 = vadd.f32 %v5009, %v5172
        %5174 = vmatmul.bf16.gmra.mxu0 %v4664
        %v5175 = vpop.f32.mrf.mxu0
        %v5176 = vadd.f32 %v5012, %v5175
        %v5177 = vpop.f32.mrf.mxu0
        %v5178 = vadd.f32 %v5014, %v5177
        %5179 = vdwg.mxu0
        %5180 = vmatpush.bf16.msra.mxu0 0
        %5181 = vmatpush.bf16.msra.mxu0 0
        %5182 = vmatpush.bf16.msra.mxu0 0
        %5183 = vmatpush.bf16.msra.mxu0 0
        %5184 = vmatpush.bf16.msra.mxu0 %v5075
        %5185 = vmatpush.bf16.msra.mxu0 %v5074
        %5186 = vmatpush.bf16.msra.mxu0 %v5073
        %5187 = vmatpush.bf16.msra.mxu0 %v5072
        %5188 = vmatmul.bf16.gmra.mxu0 %v5089
        %v5189 = vpop.f32.mrf.mxu0
        %v5190 = vadd.f32 %v5101, %v5189
        %v5191 = vpop.f32.mrf.mxu0
        %v5192 = vadd.f32 %v5103, %v5191
        %5193 = vmatmul.bf16.gmra.mxu0 %v4791
        %v5194 = vpop.f32.mrf.mxu0
        %v5195 = vadd.f32 %v5106, %v5194
        %v5196 = vpop.f32.mrf.mxu0
        %v5197 = vadd.f32 %v5108, %v5196
        %5198 = vmatmul.bf16.gmra.mxu0 %v4794
        %v5199 = vpop.f32.mrf.mxu0
        %v5200 = vadd.f32 %v5111, %v5199
        %v5201 = vpop.f32.mrf.mxu0
        %v5202 = vadd.f32 %v5113, %v5201
        %5203 = vmatmul.bf16.gmra.mxu0 %v4797
        %v5204 = vpop.f32.mrf.mxu0
        %v5205 = vadd.f32 %v5116, %v5204
        %v5206 = vpop.f32.mrf.mxu0
        %v5207 = vadd.f32 %v5118, %v5206
        %5208 = vmatmul.bf16.gmra.mxu0 %v4800
        %v5209 = vpop.f32.mrf.mxu0
        %v5210 = vadd.f32 %v5121, %v5209
        %v5211 = vpop.f32.mrf.mxu0
        %v5212 = vadd.f32 %v5123, %v5211
        %5213 = vmatmul.bf16.gmra.mxu0 %v4803
        %v5214 = vpop.f32.mrf.mxu0
        %v5215 = vadd.f32 %v5126, %v5214
        %v5216 = vpop.f32.mrf.mxu0
        %v5217 = vadd.f32 %v5128, %v5216
        %5218 = vmatmul.bf16.gmra.mxu0 %v4806
        %v5219 = vpop.f32.mrf.mxu0
        %v5220 = vadd.f32 %v5131, %v5219
        %v5221 = vpop.f32.mrf.mxu0
        %v5222 = vadd.f32 %v5133, %v5221
        %5223 = vmatmul.bf16.gmra.mxu0 %v4809
        %v5224 = vpop.f32.mrf.mxu0
        %v5225 = vadd.f32 %v5136, %v5224
        %v5226 = vpop.f32.mrf.mxu0
        %v5227 = vadd.f32 %v5138, %v5226
        %5228 = vmatmul.bf16.gmra.mxu0 %v4812
        %v5229 = vpop.f32.mrf.mxu0
        %v5230 = vadd.f32 %v5141, %v5229
        %v5231 = vpop.f32.mrf.mxu0
        %v5232 = vadd.f32 %v5143, %v5231
        %5233 = vmatmul.bf16.gmra.mxu0 %v4815
        %v5234 = vpop.f32.mrf.mxu0
        %v5235 = vadd.f32 %v5146, %v5234
        %v5236 = vpop.f32.mrf.mxu0
        %v5237 = vadd.f32 %v5148, %v5236
        %5238 = vmatmul.bf16.gmra.mxu0 %v4818
        %v5239 = vpop.f32.mrf.mxu0
        %v5240 = vadd.f32 %v5151, %v5239
        %v5241 = vpop.f32.mrf.mxu0
        %v5242 = vadd.f32 %v5153, %v5241
        %5243 = vmatmul.bf16.gmra.mxu0 %v4821
        %v5244 = vpop.f32.mrf.mxu0
        %v5245 = vadd.f32 %v5156, %v5244
        %v5246 = vpop.f32.mrf.mxu0
        %v5247 = vadd.f32 %v5158, %v5246
        %5248 = vmatmul.bf16.gmra.mxu0 %v4824
        %v5249 = vpop.f32.mrf.mxu0
        %v5250 = vadd.f32 %v5161, %v5249
        %v5251 = vpop.f32.mrf.mxu0
        %v5252 = vadd.f32 %v5163, %v5251
        %5253 = vmatmul.bf16.gmra.mxu0 %v4827
        %v5254 = vpop.f32.mrf.mxu0
        %v5255 = vadd.f32 %v5166, %v5254
        %v5256 = vpop.f32.mrf.mxu0
        %v5257 = vadd.f32 %v5168, %v5256
        %5258 = vmatmul.bf16.gmra.mxu0 %v4830
        %v5259 = vpop.f32.mrf.mxu0
        %v5260 = vadd.f32 %v5171, %v5259
        %v5261 = vpop.f32.mrf.mxu0
        %v5262 = vadd.f32 %v5173, %v5261
        %5263 = vmatmul.bf16.gmra.mxu0 %v4833
        %v5264 = vpop.f32.mrf.mxu0
        %v5265 = vadd.f32 %v5176, %v5264
        %v5266 = vpop.f32.mrf.mxu0
        %v5267 = vadd.f32 %v5178, %v5266
        %5268 = vdwg.mxu0
        %s5269 = scalar_lea.vmem %s7, 192
        %v5270 = vld [vmem:[%s5269] sm:$0xf]
        %v5271 = vld [vmem:[%s5269 + $0x4] sm:$0xf]
        %v5272 = vld [vmem:[%s5269 + $0x8] sm:$0xf]
        %v5273 = vld [vmem:[%s5269 + $0xc] sm:$0xf]
        %v5274 = vld [vmem:[%s5269 + $0x10] sm:$0xf]
        %v5275 = vld [vmem:[%s5269 + $0x14] sm:$0xf]
        %v5276 = vld [vmem:[%s5269 + $0x18] sm:$0xf]
        %v5277 = vld [vmem:[%s5269 + $0x1c] sm:$0xf]
        %v5278 = vld [vmem:[%s5269 + $0x20] sm:$0xf]
        %v5279 = vld [vmem:[%s5269 + $0x24] sm:$0xf]
        %v5280 = vld [vmem:[%s5269 + $0x28] sm:$0xf]
        %v5281 = vld [vmem:[%s5269 + $0x2c] sm:$0xf]
        %v5282 = vld [vmem:[%s5269 + $0x30] sm:$0xf]
        %v5283 = vld [vmem:[%s5269 + $0x34] sm:$0xf]
        %v5284 = vld [vmem:[%s5269 + $0x38] sm:$0xf]
        %v5285 = vld [vmem:[%s5269 + $0x3c] sm:$0xf]
        %v5286 = vld [vmem:[%s5269 + $0x40] sm:$0xf]
        %v5287 = vld [vmem:[%s5269 + $0x44] sm:$0xf]
        %v5288 = vld [vmem:[%s5269 + $0x48] sm:$0xf]
        %v5289 = vld [vmem:[%s5269 + $0x4c] sm:$0xf]
        %v5290 = vld [vmem:[%s5269 + $0x50] sm:$0xf]
        %v5291 = vld [vmem:[%s5269 + $0x54] sm:$0xf]
        %v5292 = vld [vmem:[%s5269 + $0x58] sm:$0xf]
        %v5293 = vld [vmem:[%s5269 + $0x5c] sm:$0xf]
        %v5318 = vunpack.c.l.b16 %v5270
        %v5319 = vunpack.c.l.b16 %v5271
        %v5320 = vunpack.c.l.b16 %v5272
        %v5321 = vunpack.c.l.b16 %v5273
        %v5322 = vunpack.c.l.b16 %v5274
        %v5323 = vunpack.c.l.b16 %v5275
        %v5324 = vunpack.c.l.b16 %v5276
        %v5325 = vunpack.c.l.b16 %v5277
        %v5326 = vunpack.c.l.b16 %v5278
        %v5327 = vunpack.c.l.b16 %v5279
        %v5328 = vunpack.c.l.b16 %v5280
        %v5329 = vunpack.c.l.b16 %v5281
        %v5330 = vunpack.c.l.b16 %v5282
        %v5331 = vunpack.c.l.b16 %v5283
        %v5332 = vunpack.c.l.b16 %v5284
        %v5333 = vunpack.c.l.b16 %v5285
        %v5334 = vunpack.c.l.b16 %v5286
        %v5335 = vunpack.c.l.b16 %v5287
        %v5336 = vunpack.c.l.b16 %v5288
        %v5337 = vunpack.c.l.b16 %v5289
        %v5338 = vunpack.c.l.b16 %v5290
        %v5339 = vunpack.c.l.b16 %v5291
        %v5340 = vunpack.c.l.b16 %v5292
        %v5341 = vunpack.c.l.b16 %v5293
        %v5342 = vpack.c.b16 %v5319, %v5318
        %v5343 = vpack.c.b16 %v5321, %v5320
        %v5344 = vpack.c.b16 %v5323, %v5322
        %v5345 = vpack.c.b16 %v5325, %v5324
        %v5346 = vpack.c.b16 %v5327, %v5326
        %v5347 = vpack.c.b16 %v5329, %v5328
        %v5348 = vpack.c.b16 %v5331, %v5330
        %v5349 = vpack.c.b16 %v5333, %v5332
        %v5350 = vpack.c.b16 %v5335, %v5334
        %v5351 = vpack.c.b16 %v5337, %v5336
        %v5352 = vpack.c.b16 %v5339, %v5338
        %v5353 = vpack.c.b16 %v5341, %v5340
        %5366 = vmatpush.bf16.msra.mxu0 %v5349
        %5367 = vmatpush.bf16.msra.mxu0 %v5348
        %5368 = vmatpush.bf16.msra.mxu0 %v5347
        %5369 = vmatpush.bf16.msra.mxu0 %v5346
        %5370 = vmatpush.bf16.msra.mxu0 %v5345
        %5371 = vmatpush.bf16.msra.mxu0 %v5344
        %5372 = vmatpush.bf16.msra.mxu0 %v5343
        %5373 = vmatpush.bf16.msra.mxu0 %v5342
        %5374 = vmatmul.bf16.gmra.mxu0 %v4625
        %v5375 = vpop.f32.mrf.mxu0
        %v5376 = vadd.f32 0.0, %v5375
        %v5377 = vpop.f32.mrf.mxu0
        %v5378 = vadd.f32 0.0, %v5377
        %5379 = vmatmul.bf16.gmra.mxu0 %v4628
        %v5380 = vpop.f32.mrf.mxu0
        %v5381 = vadd.f32 0.0, %v5380
        %v5382 = vpop.f32.mrf.mxu0
        %v5383 = vadd.f32 0.0, %v5382
        %5384 = vmatmul.bf16.gmra.mxu0 %v4631
        %v5385 = vpop.f32.mrf.mxu0
        %v5386 = vadd.f32 0.0, %v5385
        %v5387 = vpop.f32.mrf.mxu0
        %v5388 = vadd.f32 0.0, %v5387
        %5389 = vmatmul.bf16.gmra.mxu0 %v4634
        %v5390 = vpop.f32.mrf.mxu0
        %v5391 = vadd.f32 0.0, %v5390
        %v5392 = vpop.f32.mrf.mxu0
        %v5393 = vadd.f32 0.0, %v5392
        %5394 = vmatmul.bf16.gmra.mxu0 %v4637
        %v5395 = vpop.f32.mrf.mxu0
        %v5396 = vadd.f32 0.0, %v5395
        %v5397 = vpop.f32.mrf.mxu0
        %v5398 = vadd.f32 0.0, %v5397
        %5399 = vmatmul.bf16.gmra.mxu0 %v4640
        %v5400 = vpop.f32.mrf.mxu0
        %v5401 = vadd.f32 0.0, %v5400
        %v5402 = vpop.f32.mrf.mxu0
        %v5403 = vadd.f32 0.0, %v5402
        %5404 = vmatmul.bf16.gmra.mxu0 %v4643
        %v5405 = vpop.f32.mrf.mxu0
        %v5406 = vadd.f32 0.0, %v5405
        %v5407 = vpop.f32.mrf.mxu0
        %v5408 = vadd.f32 0.0, %v5407
        %5409 = vmatmul.bf16.gmra.mxu0 %v4646
        %v5410 = vpop.f32.mrf.mxu0
        %v5411 = vadd.f32 0.0, %v5410
        %v5412 = vpop.f32.mrf.mxu0
        %v5413 = vadd.f32 0.0, %v5412
        %5414 = vmatmul.bf16.gmra.mxu0 %v4649
        %v5415 = vpop.f32.mrf.mxu0
        %v5416 = vadd.f32 0.0, %v5415
        %v5417 = vpop.f32.mrf.mxu0
        %v5418 = vadd.f32 0.0, %v5417
        %5419 = vmatmul.bf16.gmra.mxu0 %v4652
        %v5420 = vpop.f32.mrf.mxu0
        %v5421 = vadd.f32 0.0, %v5420
        %v5422 = vpop.f32.mrf.mxu0
        %v5423 = vadd.f32 0.0, %v5422
        %5424 = vmatmul.bf16.gmra.mxu0 %v4655
        %v5425 = vpop.f32.mrf.mxu0
        %v5426 = vadd.f32 0.0, %v5425
        %v5427 = vpop.f32.mrf.mxu0
        %v5428 = vadd.f32 0.0, %v5427
        %5429 = vmatmul.bf16.gmra.mxu0 %v4658
        %v5430 = vpop.f32.mrf.mxu0
        %v5431 = vadd.f32 0.0, %v5430
        %v5432 = vpop.f32.mrf.mxu0
        %v5433 = vadd.f32 0.0, %v5432
        %5434 = vmatmul.bf16.gmra.mxu0 %v4661
        %v5435 = vpop.f32.mrf.mxu0
        %v5436 = vadd.f32 0.0, %v5435
        %v5437 = vpop.f32.mrf.mxu0
        %v5438 = vadd.f32 0.0, %v5437
        %5439 = vmatmul.bf16.gmra.mxu0 %v4664
        %v5440 = vpop.f32.mrf.mxu0
        %v5441 = vadd.f32 0.0, %v5440
        %v5442 = vpop.f32.mrf.mxu0
        %v5443 = vadd.f32 0.0, %v5442
        %5444 = vmatmul.bf16.gmra.mxu0 %v4667
        %v5445 = vpop.f32.mrf.mxu0
        %v5446 = vadd.f32 0.0, %v5445
        %v5447 = vpop.f32.mrf.mxu0
        %v5448 = vadd.f32 0.0, %v5447
        %5449 = vmatmul.bf16.gmra.mxu0 %v4619
        %v5450 = vpop.f32.mrf.mxu0
        %v5451 = vadd.f32 0.0, %v5450
        %v5452 = vpop.f32.mrf.mxu0
        %v5453 = vadd.f32 0.0, %v5452
        %5454 = vdwg.mxu0
        %5455 = vmatpush.bf16.msra.mxu0 0
        %5456 = vmatpush.bf16.msra.mxu0 0
        %5457 = vmatpush.bf16.msra.mxu0 0
        %5458 = vmatpush.bf16.msra.mxu0 0
        %5459 = vmatpush.bf16.msra.mxu0 %v5353
        %5460 = vmatpush.bf16.msra.mxu0 %v5352
        %5461 = vmatpush.bf16.msra.mxu0 %v5351
        %5462 = vmatpush.bf16.msra.mxu0 %v5350
        %5463 = vmatmul.bf16.gmra.mxu0 %v4794
        %v5464 = vpop.f32.mrf.mxu0
        %v5465 = vadd.f32 %v5376, %v5464
        %v5466 = vpop.f32.mrf.mxu0
        %v5467 = vadd.f32 %v5378, %v5466
        %5468 = vmatmul.bf16.gmra.mxu0 %v4797
        %v5469 = vpop.f32.mrf.mxu0
        %v5470 = vadd.f32 %v5381, %v5469
        %v5471 = vpop.f32.mrf.mxu0
        %v5472 = vadd.f32 %v5383, %v5471
        %5473 = vmatmul.bf16.gmra.mxu0 %v4800
        %v5474 = vpop.f32.mrf.mxu0
        %v5475 = vadd.f32 %v5386, %v5474
        %v5476 = vpop.f32.mrf.mxu0
        %v5477 = vadd.f32 %v5388, %v5476
        %5478 = vmatmul.bf16.gmra.mxu0 %v4803
        %v5479 = vpop.f32.mrf.mxu0
        %v5480 = vadd.f32 %v5391, %v5479
        %v5481 = vpop.f32.mrf.mxu0
        %v5482 = vadd.f32 %v5393, %v5481
        %5483 = vmatmul.bf16.gmra.mxu0 %v4806
        %v5484 = vpop.f32.mrf.mxu0
        %v5485 = vadd.f32 %v5396, %v5484
        %v5486 = vpop.f32.mrf.mxu0
        %v5487 = vadd.f32 %v5398, %v5486
        %5488 = vmatmul.bf16.gmra.mxu0 %v4809
        %v5489 = vpop.f32.mrf.mxu0
        %v5490 = vadd.f32 %v5401, %v5489
        %v5491 = vpop.f32.mrf.mxu0
        %v5492 = vadd.f32 %v5403, %v5491
        %5493 = vmatmul.bf16.gmra.mxu0 %v4812
        %v5494 = vpop.f32.mrf.mxu0
        %v5495 = vadd.f32 %v5406, %v5494
        %v5496 = vpop.f32.mrf.mxu0
        %v5497 = vadd.f32 %v5408, %v5496
        %5498 = vmatmul.bf16.gmra.mxu0 %v4815
        %v5499 = vpop.f32.mrf.mxu0
        %v5500 = vadd.f32 %v5411, %v5499
        %v5501 = vpop.f32.mrf.mxu0
        %v5502 = vadd.f32 %v5413, %v5501
        %5503 = vmatmul.bf16.gmra.mxu0 %v4818
        %v5504 = vpop.f32.mrf.mxu0
        %v5505 = vadd.f32 %v5416, %v5504
        %v5506 = vpop.f32.mrf.mxu0
        %v5507 = vadd.f32 %v5418, %v5506
        %5508 = vmatmul.bf16.gmra.mxu0 %v4821
        %v5509 = vpop.f32.mrf.mxu0
        %v5510 = vadd.f32 %v5421, %v5509
        %v5511 = vpop.f32.mrf.mxu0
        %v5512 = vadd.f32 %v5423, %v5511
        %5513 = vmatmul.bf16.gmra.mxu0 %v4824
        %v5514 = vpop.f32.mrf.mxu0
        %v5515 = vadd.f32 %v5426, %v5514
        %v5516 = vpop.f32.mrf.mxu0
        %v5517 = vadd.f32 %v5428, %v5516
        %5518 = vmatmul.bf16.gmra.mxu0 %v4827
        %v5519 = vpop.f32.mrf.mxu0
        %v5520 = vadd.f32 %v5431, %v5519
        %v5521 = vpop.f32.mrf.mxu0
        %v5522 = vadd.f32 %v5433, %v5521
        %5523 = vmatmul.bf16.gmra.mxu0 %v4830
        %v5524 = vpop.f32.mrf.mxu0
        %v5525 = vadd.f32 %v5436, %v5524
        %v5526 = vpop.f32.mrf.mxu0
        %v5527 = vadd.f32 %v5438, %v5526
        %5528 = vmatmul.bf16.gmra.mxu0 %v4833
        %v5529 = vpop.f32.mrf.mxu0
        %v5530 = vadd.f32 %v5441, %v5529
        %v5531 = vpop.f32.mrf.mxu0
        %v5532 = vadd.f32 %v5443, %v5531
        %5533 = vmatmul.bf16.gmra.mxu0 %v4836
        %v5534 = vpop.f32.mrf.mxu0
        %v5535 = vadd.f32 %v5446, %v5534
        %v5536 = vpop.f32.mrf.mxu0
        %v5537 = vadd.f32 %v5448, %v5536
        %5538 = vmatmul.bf16.gmra.mxu0 %v5089
        %v5539 = vpop.f32.mrf.mxu0
        %v5540 = vadd.f32 %v5451, %v5539
        %v5541 = vpop.f32.mrf.mxu0
        %v5542 = vadd.f32 %v5453, %v5541
        %5543 = vdwg.mxu0
        %v5544 = vadd.f32 %v5190, %v5465
        %v5545 = vadd.f32 %v5192, %v5467
        %v5546 = vadd.f32 %v5195, %v5470
        %v5547 = vadd.f32 %v5197, %v5472
        %v5548 = vadd.f32 %v5200, %v5475
        %v5549 = vadd.f32 %v5202, %v5477
        %v5550 = vadd.f32 %v5205, %v5480
        %v5551 = vadd.f32 %v5207, %v5482
        %v5552 = vadd.f32 %v5210, %v5485
        %v5553 = vadd.f32 %v5212, %v5487
        %v5554 = vadd.f32 %v5215, %v5490
        %v5555 = vadd.f32 %v5217, %v5492
        %v5556 = vadd.f32 %v5220, %v5495
        %v5557 = vadd.f32 %v5222, %v5497
        %v5558 = vadd.f32 %v5225, %v5500
        %v5559 = vadd.f32 %v5227, %v5502
        %v5560 = vadd.f32 %v5230, %v5505
        %v5561 = vadd.f32 %v5232, %v5507
        %v5562 = vadd.f32 %v5235, %v5510
        %v5563 = vadd.f32 %v5237, %v5512
        %v5564 = vadd.f32 %v5240, %v5515
        %v5565 = vadd.f32 %v5242, %v5517
        %v5566 = vadd.f32 %v5245, %v5520
        %v5567 = vadd.f32 %v5247, %v5522
        %v5568 = vadd.f32 %v5250, %v5525
        %v5569 = vadd.f32 %v5252, %v5527
        %v5570 = vadd.f32 %v5255, %v5530
        %v5571 = vadd.f32 %v5257, %v5532
        %v5572 = vadd.f32 %v5260, %v5535
        %v5573 = vadd.f32 %v5262, %v5537
        %v5574 = vadd.f32 %v5265, %v5540
        %v5575 = vadd.f32 %v5267, %v5542
        %v5576 = vld [vmem:[%s8] sm:$0x1]
        %v5578 = vperm.slane %v5576, 0
        %v5580 = vmul.f32 %v5544, %v5578
        %v5581 = vmul.f32 %v5545, %v5578
        %v5582 = vmul.f32 %v5546, %v5578
        %v5583 = vmul.f32 %v5547, %v5578
        %v5584 = vmul.f32 %v5548, %v5578
        %v5585 = vmul.f32 %v5549, %v5578
        %v5586 = vmul.f32 %v5550, %v5578
        %v5587 = vmul.f32 %v5551, %v5578
        %v5588 = vmul.f32 %v5552, %v5578
        %v5589 = vmul.f32 %v5553, %v5578
        %v5590 = vmul.f32 %v5554, %v5578
        %v5591 = vmul.f32 %v5555, %v5578
        %v5592 = vmul.f32 %v5556, %v5578
        %v5593 = vmul.f32 %v5557, %v5578
        %v5594 = vmul.f32 %v5558, %v5578
        %v5595 = vmul.f32 %v5559, %v5578
        %v5596 = vmul.f32 %v5560, %v5578
        %v5597 = vmul.f32 %v5561, %v5578
        %v5598 = vmul.f32 %v5562, %v5578
        %v5599 = vmul.f32 %v5563, %v5578
        %v5600 = vmul.f32 %v5564, %v5578
        %v5601 = vmul.f32 %v5565, %v5578
        %v5602 = vmul.f32 %v5566, %v5578
        %v5603 = vmul.f32 %v5567, %v5578
        %v5604 = vmul.f32 %v5568, %v5578
        %v5605 = vmul.f32 %v5569, %v5578
        %v5606 = vmul.f32 %v5570, %v5578
        %v5607 = vmul.f32 %v5571, %v5578
        %v5608 = vmul.f32 %v5572, %v5578
        %v5609 = vmul.f32 %v5573, %v5578
        %v5610 = vmul.f32 %v5574, %v5578
        %v5611 = vmul.f32 %v5575, %v5578
        %v5612 = vld [vmem:[%s9] sm:$0x1]
        %v5614 = vperm.slane %v5612, 0
        %v5616 = vadd.f32 %v5580, %v5614
        %v5617 = vadd.f32 %v5581, %v5614
        %v5618 = vadd.f32 %v5582, %v5614
        %v5619 = vadd.f32 %v5583, %v5614
        %v5620 = vadd.f32 %v5584, %v5614
        %v5621 = vadd.f32 %v5585, %v5614
        %v5622 = vadd.f32 %v5586, %v5614
        %v5623 = vadd.f32 %v5587, %v5614
        %v5624 = vadd.f32 %v5588, %v5614
        %v5625 = vadd.f32 %v5589, %v5614
        %v5626 = vadd.f32 %v5590, %v5614
        %v5627 = vadd.f32 %v5591, %v5614
        %v5628 = vadd.f32 %v5592, %v5614
        %v5629 = vadd.f32 %v5593, %v5614
        %v5630 = vadd.f32 %v5594, %v5614
        %v5631 = vadd.f32 %v5595, %v5614
        %v5632 = vadd.f32 %v5596, %v5614
        %v5633 = vadd.f32 %v5597, %v5614
        %v5634 = vadd.f32 %v5598, %v5614
        %v5635 = vadd.f32 %v5599, %v5614
        %v5636 = vadd.f32 %v5600, %v5614
        %v5637 = vadd.f32 %v5601, %v5614
        %v5638 = vadd.f32 %v5602, %v5614
        %v5639 = vadd.f32 %v5603, %v5614
        %v5640 = vadd.f32 %v5604, %v5614
        %v5641 = vadd.f32 %v5605, %v5614
        %v5642 = vadd.f32 %v5606, %v5614
        %v5643 = vadd.f32 %v5607, %v5614
        %v5644 = vadd.f32 %v5608, %v5614
        %v5645 = vadd.f32 %v5609, %v5614
        %v5646 = vadd.f32 %v5610, %v5614
        %v5647 = vadd.f32 %v5611, %v5614
        %v5648 = vmax.f32 %v5616, 0.0
        %v5649 = vmax.f32 %v5617, 0.0
        %v5650 = vmax.f32 %v5618, 0.0
        %v5651 = vmax.f32 %v5619, 0.0
        %v5652 = vmax.f32 %v5620, 0.0
        %v5653 = vmax.f32 %v5621, 0.0
        %v5654 = vmax.f32 %v5622, 0.0
        %v5655 = vmax.f32 %v5623, 0.0
        %v5656 = vmax.f32 %v5624, 0.0
        %v5657 = vmax.f32 %v5625, 0.0
        %v5658 = vmax.f32 %v5626, 0.0
        %v5659 = vmax.f32 %v5627, 0.0
        %v5660 = vmax.f32 %v5628, 0.0
        %v5661 = vmax.f32 %v5629, 0.0
        %v5662 = vmax.f32 %v5630, 0.0
        %v5663 = vmax.f32 %v5631, 0.0
        %v5664 = vmax.f32 %v5632, 0.0
        %v5665 = vmax.f32 %v5633, 0.0
        %v5666 = vmax.f32 %v5634, 0.0
        %v5667 = vmax.f32 %v5635, 0.0
        %v5668 = vmax.f32 %v5636, 0.0
        %v5669 = vmax.f32 %v5637, 0.0
        %v5670 = vmax.f32 %v5638, 0.0
        %v5671 = vmax.f32 %v5639, 0.0
        %v5672 = vmax.f32 %v5640, 0.0
        %v5673 = vmax.f32 %v5641, 0.0
        %v5674 = vmax.f32 %v5642, 0.0
        %v5675 = vmax.f32 %v5643, 0.0
        %v5676 = vmax.f32 %v5644, 0.0
        %v5677 = vmax.f32 %v5645, 0.0
        %v5678 = vmax.f32 %v5646, 0.0
        %v5679 = vmax.f32 %v5647, 0.0
        %v5680 = vpack.c.bf16 %v5648, %v5648
        %v5681 = vpack.c.bf16 %v5649, %v5649
        %v5682 = vpack.c.bf16 %v5650, %v5650
        %v5683 = vpack.c.bf16 %v5651, %v5651
        %v5684 = vpack.c.bf16 %v5652, %v5652
        %v5685 = vpack.c.bf16 %v5653, %v5653
        %v5686 = vpack.c.bf16 %v5654, %v5654
        %v5687 = vpack.c.bf16 %v5655, %v5655
        %v5688 = vpack.c.bf16 %v5656, %v5656
        %v5689 = vpack.c.bf16 %v5657, %v5657
        %v5690 = vpack.c.bf16 %v5658, %v5658
        %v5691 = vpack.c.bf16 %v5659, %v5659
        %v5692 = vpack.c.bf16 %v5660, %v5660
        %v5693 = vpack.c.bf16 %v5661, %v5661
        %v5694 = vpack.c.bf16 %v5662, %v5662
        %v5695 = vpack.c.bf16 %v5663, %v5663
        %v5696 = vpack.c.bf16 %v5664, %v5664
        %v5697 = vpack.c.bf16 %v5665, %v5665
        %v5698 = vpack.c.bf16 %v5666, %v5666
        %v5699 = vpack.c.bf16 %v5667, %v5667
        %v5700 = vpack.c.bf16 %v5668, %v5668
        %v5701 = vpack.c.bf16 %v5669, %v5669
        %v5702 = vpack.c.bf16 %v5670, %v5670
        %v5703 = vpack.c.bf16 %v5671, %v5671
        %v5704 = vpack.c.bf16 %v5672, %v5672
        %v5705 = vpack.c.bf16 %v5673, %v5673
        %v5706 = vpack.c.bf16 %v5674, %v5674
        %v5707 = vpack.c.bf16 %v5675, %v5675
        %v5708 = vpack.c.bf16 %v5676, %v5676
        %v5709 = vpack.c.bf16 %v5677, %v5677
        %v5710 = vpack.c.bf16 %v5678, %v5678
        %v5711 = vpack.c.bf16 %v5679, %v5679
        %v5744 = vunpack.c.l.b16 %v5680
        %v5745 = vunpack.c.l.b16 %v5681
        %v5746 = vunpack.c.l.b16 %v5682
        %v5747 = vunpack.c.l.b16 %v5683
        %v5748 = vunpack.c.l.b16 %v5684
        %v5749 = vunpack.c.l.b16 %v5685
        %v5750 = vunpack.c.l.b16 %v5686
        %v5751 = vunpack.c.l.b16 %v5687
        %v5752 = vunpack.c.l.b16 %v5688
        %v5753 = vunpack.c.l.b16 %v5689
        %v5754 = vunpack.c.l.b16 %v5690
        %v5755 = vunpack.c.l.b16 %v5691
        %v5756 = vunpack.c.l.b16 %v5692
        %v5757 = vunpack.c.l.b16 %v5693
        %v5758 = vunpack.c.l.b16 %v5694
        %v5759 = vunpack.c.l.b16 %v5695
        %v5760 = vunpack.c.l.b16 %v5696
        %v5761 = vunpack.c.l.b16 %v5697
        %v5762 = vunpack.c.l.b16 %v5698
        %v5763 = vunpack.c.l.b16 %v5699
        %v5764 = vunpack.c.l.b16 %v5700
        %v5765 = vunpack.c.l.b16 %v5701
        %v5766 = vunpack.c.l.b16 %v5702
        %v5767 = vunpack.c.l.b16 %v5703
        %v5768 = vunpack.c.l.b16 %v5704
        %v5769 = vunpack.c.l.b16 %v5705
        %v5770 = vunpack.c.l.b16 %v5706
        %v5771 = vunpack.c.l.b16 %v5707
        %v5772 = vunpack.c.l.b16 %v5708
        %v5773 = vunpack.c.l.b16 %v5709
        %v5774 = vunpack.c.l.b16 %v5710
        %v5775 = vunpack.c.l.b16 %v5711
        %v5776 = vpack.c.b16 %v5745, %v5744
        %v5777 = vpack.c.b16 %v5747, %v5746
        %v5778 = vpack.c.b16 %v5749, %v5748
        %v5779 = vpack.c.b16 %v5751, %v5750
        %v5780 = vpack.c.b16 %v5753, %v5752
        %v5781 = vpack.c.b16 %v5755, %v5754
        %v5782 = vpack.c.b16 %v5757, %v5756
        %v5783 = vpack.c.b16 %v5759, %v5758
        %v5784 = vpack.c.b16 %v5761, %v5760
        %v5785 = vpack.c.b16 %v5763, %v5762
        %v5786 = vpack.c.b16 %v5765, %v5764
        %v5787 = vpack.c.b16 %v5767, %v5766
        %v5788 = vpack.c.b16 %v5769, %v5768
        %v5789 = vpack.c.b16 %v5771, %v5770
        %v5790 = vpack.c.b16 %v5773, %v5772
        %v5791 = vpack.c.b16 %v5775, %v5774
        %v5793 = vshrl.u32 %v5776, 16
        %v5795 = vrot.slane %v5793, 7
        %v5796 = vshll.u32 %v5776, 16
        %v5798 = vor.u32 %v5795, %v5796
        %v5800 = vshrl.u32 %v5777, 16
        %v5802 = vrot.slane %v5800, 7
        %v5803 = vshll.u32 %v5777, 16
        %v5805 = vor.u32 %v5802, %v5803
        %v5807 = vshrl.u32 %v5778, 16
        %v5809 = vrot.slane %v5807, 7
        %v5810 = vshll.u32 %v5778, 16
        %v5812 = vor.u32 %v5809, %v5810
        %v5814 = vshrl.u32 %v5779, 16
        %v5816 = vrot.slane %v5814, 7
        %v5817 = vshll.u32 %v5779, 16
        %v5819 = vor.u32 %v5816, %v5817
        %v5821 = vshrl.u32 %v5780, 16
        %v5823 = vrot.slane %v5821, 7
        %v5824 = vshll.u32 %v5780, 16
        %v5826 = vor.u32 %v5823, %v5824
        %v5828 = vshrl.u32 %v5781, 16
        %v5830 = vrot.slane %v5828, 7
        %v5831 = vshll.u32 %v5781, 16
        %v5833 = vor.u32 %v5830, %v5831
        %v5835 = vshrl.u32 %v5782, 16
        %v5837 = vrot.slane %v5835, 7
        %v5838 = vshll.u32 %v5782, 16
        %v5840 = vor.u32 %v5837, %v5838
        %v5842 = vshrl.u32 %v5783, 16
        %v5844 = vrot.slane %v5842, 7
        %v5845 = vshll.u32 %v5783, 16
        %v5847 = vor.u32 %v5844, %v5845
        %v5849 = vshrl.u32 %v5784, 16
        %v5851 = vrot.slane %v5849, 7
        %v5852 = vshll.u32 %v5784, 16
        %v5854 = vor.u32 %v5851, %v5852
        %v5856 = vshrl.u32 %v5785, 16
        %v5858 = vrot.slane %v5856, 7
        %v5859 = vshll.u32 %v5785, 16
        %v5861 = vor.u32 %v5858, %v5859
        %v5863 = vshrl.u32 %v5786, 16
        %v5865 = vrot.slane %v5863, 7
        %v5866 = vshll.u32 %v5786, 16
        %v5868 = vor.u32 %v5865, %v5866
        %v5870 = vshrl.u32 %v5787, 16
        %v5872 = vrot.slane %v5870, 7
        %v5873 = vshll.u32 %v5787, 16
        %v5875 = vor.u32 %v5872, %v5873
        %v5877 = vshrl.u32 %v5788, 16
        %v5879 = vrot.slane %v5877, 7
        %v5880 = vshll.u32 %v5788, 16
        %v5882 = vor.u32 %v5879, %v5880
        %v5884 = vshrl.u32 %v5789, 16
        %v5886 = vrot.slane %v5884, 7
        %v5887 = vshll.u32 %v5789, 16
        %v5889 = vor.u32 %v5886, %v5887
        %v5891 = vshrl.u32 %v5790, 16
        %v5893 = vrot.slane %v5891, 7
        %v5894 = vshll.u32 %v5790, 16
        %v5896 = vor.u32 %v5893, %v5894
        %v5898 = vshrl.u32 %v5791, 16
        %v5900 = vrot.slane %v5898, 7
        %v5901 = vshll.u32 %v5791, 16
        %v5903 = vor.u32 %v5900, %v5901
        %v5936 = vsel %vm4279, 0, %v5798
        %v5937 = vsel %vm4279, 0, %v5805
        %v5938 = vsel %vm4279, 0, %v5812
        %v5939 = vsel %vm4279, 0, %v5819
        %v5940 = vsel %vm4279, 0, %v5826
        %v5941 = vsel %vm4279, 0, %v5833
        %v5942 = vsel %vm4279, 0, %v5840
        %v5943 = vsel %vm4279, 0, %v5847
        %v5944 = vsel %vm4279, 0, %v5854
        %v5945 = vsel %vm4279, 0, %v5861
        %v5946 = vsel %vm4279, 0, %v5868
        %v5947 = vsel %vm4279, 0, %v5875
        %v5948 = vsel %vm4279, 0, %v5882
        %v5949 = vsel %vm4279, 0, %v5889
        %v5950 = vsel %vm4279, 0, %v5896
        %v5951 = vsel %vm4279, 0, %v5903
        %v5952 = vsel %vm4279, %v5795, 0
        %v5953 = vsel %vm4279, %v5802, 0
        %v5954 = vsel %vm4279, %v5809, 0
        %v5955 = vsel %vm4279, %v5816, 0
        %v5956 = vsel %vm4279, %v5823, 0
        %v5957 = vsel %vm4279, %v5830, 0
        %v5958 = vsel %vm4279, %v5837, 0
        %v5959 = vsel %vm4279, %v5844, 0
        %v5960 = vsel %vm4279, %v5851, 0
        %v5961 = vsel %vm4279, %v5858, 0
        %v5962 = vsel %vm4279, %v5865, 0
        %v5963 = vsel %vm4279, %v5872, 0
        %v5964 = vsel %vm4279, %v5879, 0
        %v5965 = vsel %vm4279, %v5886, 0
        %v5966 = vsel %vm4279, %v5893, 0
        %v5967 = vsel %vm4279, %v5900, 0
        %v5969 = vshrl.u32 %v5936, 16
        %v5971 = vshll.u32 %v5936, 16
        %v5973 = vrot.slane %v5971, 1
        %v5974 = vor.u32 %v5969, %v5973
        %v5976 = vshll.u32 %v5952, 16
        %v5978 = vrot.slane %v5976, 1
        %v5979 = vsel %vm1660, %v5974, %v5978
        %v5981 = vshrl.u32 %v5937, 16
        %v5983 = vshll.u32 %v5937, 16
        %v5985 = vrot.slane %v5983, 1
        %v5986 = vor.u32 %v5981, %v5985
        %v5988 = vshll.u32 %v5953, 16
        %v5990 = vrot.slane %v5988, 1
        %v5991 = vsel %vm1660, %v5986, %v5990
        %v5993 = vshrl.u32 %v5938, 16
        %v5995 = vshll.u32 %v5938, 16
        %v5997 = vrot.slane %v5995, 1
        %v5998 = vor.u32 %v5993, %v5997
        %v6000 = vshll.u32 %v5954, 16
        %v6002 = vrot.slane %v6000, 1
        %v6003 = vsel %vm1660, %v5998, %v6002
        %v6005 = vshrl.u32 %v5939, 16
        %v6007 = vshll.u32 %v5939, 16
        %v6009 = vrot.slane %v6007, 1
        %v6010 = vor.u32 %v6005, %v6009
        %v6012 = vshll.u32 %v5955, 16
        %v6014 = vrot.slane %v6012, 1
        %v6015 = vsel %vm1660, %v6010, %v6014
        %v6017 = vshrl.u32 %v5940, 16
        %v6019 = vshll.u32 %v5940, 16
        %v6021 = vrot.slane %v6019, 1
        %v6022 = vor.u32 %v6017, %v6021
        %v6024 = vshll.u32 %v5956, 16
        %v6026 = vrot.slane %v6024, 1
        %v6027 = vsel %vm1660, %v6022, %v6026
        %v6029 = vshrl.u32 %v5941, 16
        %v6031 = vshll.u32 %v5941, 16
        %v6033 = vrot.slane %v6031, 1
        %v6034 = vor.u32 %v6029, %v6033
        %v6036 = vshll.u32 %v5957, 16
        %v6038 = vrot.slane %v6036, 1
        %v6039 = vsel %vm1660, %v6034, %v6038
        %v6041 = vshrl.u32 %v5942, 16
        %v6043 = vshll.u32 %v5942, 16
        %v6045 = vrot.slane %v6043, 1
        %v6046 = vor.u32 %v6041, %v6045
        %v6048 = vshll.u32 %v5958, 16
        %v6050 = vrot.slane %v6048, 1
        %v6051 = vsel %vm1660, %v6046, %v6050
        %v6053 = vshrl.u32 %v5943, 16
        %v6055 = vshll.u32 %v5943, 16
        %v6057 = vrot.slane %v6055, 1
        %v6058 = vor.u32 %v6053, %v6057
        %v6060 = vshll.u32 %v5959, 16
        %v6062 = vrot.slane %v6060, 1
        %v6063 = vsel %vm1660, %v6058, %v6062
        %v6065 = vshrl.u32 %v5944, 16
        %v6067 = vshll.u32 %v5944, 16
        %v6069 = vrot.slane %v6067, 1
        %v6070 = vor.u32 %v6065, %v6069
        %v6072 = vshll.u32 %v5960, 16
        %v6074 = vrot.slane %v6072, 1
        %v6075 = vsel %vm1660, %v6070, %v6074
        %v6077 = vshrl.u32 %v5945, 16
        %v6079 = vshll.u32 %v5945, 16
        %v6081 = vrot.slane %v6079, 1
        %v6082 = vor.u32 %v6077, %v6081
        %v6084 = vshll.u32 %v5961, 16
        %v6086 = vrot.slane %v6084, 1
        %v6087 = vsel %vm1660, %v6082, %v6086
        %v6089 = vshrl.u32 %v5946, 16
        %v6091 = vshll.u32 %v5946, 16
        %v6093 = vrot.slane %v6091, 1
        %v6094 = vor.u32 %v6089, %v6093
        %v6096 = vshll.u32 %v5962, 16
        %v6098 = vrot.slane %v6096, 1
        %v6099 = vsel %vm1660, %v6094, %v6098
        %v6101 = vshrl.u32 %v5947, 16
        %v6103 = vshll.u32 %v5947, 16
        %v6105 = vrot.slane %v6103, 1
        %v6106 = vor.u32 %v6101, %v6105
        %v6108 = vshll.u32 %v5963, 16
        %v6110 = vrot.slane %v6108, 1
        %v6111 = vsel %vm1660, %v6106, %v6110
        %v6113 = vshrl.u32 %v5948, 16
        %v6115 = vshll.u32 %v5948, 16
        %v6117 = vrot.slane %v6115, 1
        %v6118 = vor.u32 %v6113, %v6117
        %v6120 = vshll.u32 %v5964, 16
        %v6122 = vrot.slane %v6120, 1
        %v6123 = vsel %vm1660, %v6118, %v6122
        %v6125 = vshrl.u32 %v5949, 16
        %v6127 = vshll.u32 %v5949, 16
        %v6129 = vrot.slane %v6127, 1
        %v6130 = vor.u32 %v6125, %v6129
        %v6132 = vshll.u32 %v5965, 16
        %v6134 = vrot.slane %v6132, 1
        %v6135 = vsel %vm1660, %v6130, %v6134
        %v6137 = vshrl.u32 %v5950, 16
        %v6139 = vshll.u32 %v5950, 16
        %v6141 = vrot.slane %v6139, 1
        %v6142 = vor.u32 %v6137, %v6141
        %v6144 = vshll.u32 %v5966, 16
        %v6146 = vrot.slane %v6144, 1
        %v6147 = vsel %vm1660, %v6142, %v6146
        %v6149 = vshrl.u32 %v5951, 16
        %v6151 = vshll.u32 %v5951, 16
        %v6153 = vrot.slane %v6151, 1
        %v6154 = vor.u32 %v6149, %v6153
        %v6156 = vshll.u32 %v5967, 16
        %v6158 = vrot.slane %v6156, 1
        %v6159 = vsel %vm1660, %v6154, %v6158
        %6160 = vrot.lane.b32.xlu0 %v1667, 96
        %v6161 = vpop.permute.xlu0 %6160
        %6162 = vrot.lane.b32.xlu0 %v5979, 96
        %v6163 = vpop.permute.xlu0 %6162
        %6164 = vrot.lane.b32.xlu0 %v5991, 96
        %v6165 = vpop.permute.xlu0 %6164
        %6166 = vrot.lane.b32.xlu0 %v6003, 96
        %v6167 = vpop.permute.xlu0 %6166
        %6168 = vrot.lane.b32.xlu0 %v6015, 96
        %v6169 = vpop.permute.xlu0 %6168
        %6170 = vrot.lane.b32.xlu0 %v6027, 96
        %v6171 = vpop.permute.xlu0 %6170
        %6172 = vrot.lane.b32.xlu0 %v6039, 96
        %v6173 = vpop.permute.xlu0 %6172
        %6174 = vrot.lane.b32.xlu0 %v6051, 96
        %v6175 = vpop.permute.xlu0 %6174
        %6176 = vrot.lane.b32.xlu0 %v6063, 96
        %v6177 = vpop.permute.xlu0 %6176
        %6178 = vrot.lane.b32.xlu0 %v6075, 96
        %v6179 = vpop.permute.xlu0 %6178
        %6180 = vrot.lane.b32.xlu0 %v6087, 96
        %v6181 = vpop.permute.xlu0 %6180
        %6182 = vrot.lane.b32.xlu0 %v6099, 96
        %v6183 = vpop.permute.xlu0 %6182
        %6184 = vrot.lane.b32.xlu0 %v6111, 96
        %v6185 = vpop.permute.xlu0 %6184
        %6186 = vrot.lane.b32.xlu0 %v6123, 96
        %v6187 = vpop.permute.xlu0 %6186
        %6188 = vrot.lane.b32.xlu0 %v6135, 96
        %v6189 = vpop.permute.xlu0 %6188
        %6190 = vrot.lane.b32.xlu0 %v6147, 96
        %v6191 = vpop.permute.xlu0 %6190
        %6192 = vrot.lane.b32.xlu0 %v6159, 96
        %v6193 = vpop.permute.xlu0 %6192
        %v6226 = vrot.slane %v5936, 1
        %v6227 = vrot.slane %v5952, 1
        %v6228 = vsel %vm1895, %v6226, %v6227
        %v6229 = vrot.slane %v5937, 1
        %v6230 = vrot.slane %v5953, 1
        %v6231 = vsel %vm1895, %v6229, %v6230
        %v6232 = vrot.slane %v5938, 1
        %v6233 = vrot.slane %v5954, 1
        %v6234 = vsel %vm1895, %v6232, %v6233
        %v6235 = vrot.slane %v5939, 1
        %v6236 = vrot.slane %v5955, 1
        %v6237 = vsel %vm1895, %v6235, %v6236
        %v6238 = vrot.slane %v5940, 1
        %v6239 = vrot.slane %v5956, 1
        %v6240 = vsel %vm1895, %v6238, %v6239
        %v6241 = vrot.slane %v5941, 1
        %v6242 = vrot.slane %v5957, 1
        %v6243 = vsel %vm1895, %v6241, %v6242
        %v6244 = vrot.slane %v5942, 1
        %v6245 = vrot.slane %v5958, 1
        %v6246 = vsel %vm1895, %v6244, %v6245
        %v6247 = vrot.slane %v5943, 1
        %v6248 = vrot.slane %v5959, 1
        %v6249 = vsel %vm1895, %v6247, %v6248
        %v6250 = vrot.slane %v5944, 1
        %v6251 = vrot.slane %v5960, 1
        %v6252 = vsel %vm1895, %v6250, %v6251
        %v6253 = vrot.slane %v5945, 1
        %v6254 = vrot.slane %v5961, 1
        %v6255 = vsel %vm1895, %v6253, %v6254
        %v6256 = vrot.slane %v5946, 1
        %v6257 = vrot.slane %v5962, 1
        %v6258 = vsel %vm1895, %v6256, %v6257
        %v6259 = vrot.slane %v5947, 1
        %v6260 = vrot.slane %v5963, 1
        %v6261 = vsel %vm1895, %v6259, %v6260
        %v6262 = vrot.slane %v5948, 1
        %v6263 = vrot.slane %v5964, 1
        %v6264 = vsel %vm1895, %v6262, %v6263
        %v6265 = vrot.slane %v5949, 1
        %v6266 = vrot.slane %v5965, 1
        %v6267 = vsel %vm1895, %v6265, %v6266
        %v6268 = vrot.slane %v5950, 1
        %v6269 = vrot.slane %v5966, 1
        %v6270 = vsel %vm1895, %v6268, %v6269
        %v6271 = vrot.slane %v5951, 1
        %v6272 = vrot.slane %v5967, 1
        %v6273 = vsel %vm1895, %v6271, %v6272
        %6274 = vrot.lane.b32.xlu0 %v1897, 64
        %v6275 = vpop.permute.xlu0 %6274
        %6276 = vrot.lane.b32.xlu0 %v6228, 64
        %v6277 = vpop.permute.xlu0 %6276
        %6278 = vrot.lane.b32.xlu0 %v6231, 64
        %v6279 = vpop.permute.xlu0 %6278
        %6280 = vrot.lane.b32.xlu0 %v6234, 64
        %v6281 = vpop.permute.xlu0 %6280
        %6282 = vrot.lane.b32.xlu0 %v6237, 64
        %v6283 = vpop.permute.xlu0 %6282
        %6284 = vrot.lane.b32.xlu0 %v6240, 64
        %v6285 = vpop.permute.xlu0 %6284
        %6286 = vrot.lane.b32.xlu0 %v6243, 64
        %v6287 = vpop.permute.xlu0 %6286
        %6288 = vrot.lane.b32.xlu0 %v6246, 64
        %v6289 = vpop.permute.xlu0 %6288
        %6290 = vrot.lane.b32.xlu0 %v6249, 64
        %v6291 = vpop.permute.xlu0 %6290
        %6292 = vrot.lane.b32.xlu0 %v6252, 64
        %v6293 = vpop.permute.xlu0 %6292
        %6294 = vrot.lane.b32.xlu0 %v6255, 64
        %v6295 = vpop.permute.xlu0 %6294
        %6296 = vrot.lane.b32.xlu0 %v6258, 64
        %v6297 = vpop.permute.xlu0 %6296
        %6298 = vrot.lane.b32.xlu0 %v6261, 64
        %v6299 = vpop.permute.xlu0 %6298
        %6300 = vrot.lane.b32.xlu0 %v6264, 64
        %v6301 = vpop.permute.xlu0 %6300
        %6302 = vrot.lane.b32.xlu0 %v6267, 64
        %v6303 = vpop.permute.xlu0 %6302
        %6304 = vrot.lane.b32.xlu0 %v6270, 64
        %v6305 = vpop.permute.xlu0 %6304
        %6306 = vrot.lane.b32.xlu0 %v6273, 64
        %v6307 = vpop.permute.xlu0 %6306
        %v6309 = vsel %vm2283, 0, %v6161
        %v6312 = vsel %vm2283, %v5936, %v6163
        %v6315 = vsel %vm2283, %v5937, %v6165
        %v6318 = vsel %vm2283, %v5938, %v6167
        %v6321 = vsel %vm2283, %v5939, %v6169
        %v6324 = vsel %vm2283, %v5940, %v6171
        %v6327 = vsel %vm2283, %v5941, %v6173
        %v6330 = vsel %vm2283, %v5942, %v6175
        %v6333 = vsel %vm2283, %v5943, %v6177
        %v6336 = vsel %vm2283, %v5944, %v6179
        %v6339 = vsel %vm2283, %v5945, %v6181
        %v6342 = vsel %vm2283, %v5946, %v6183
        %v6345 = vsel %vm2283, %v5947, %v6185
        %v6348 = vsel %vm2283, %v5948, %v6187
        %v6351 = vsel %vm2283, %v5949, %v6189
        %v6354 = vsel %vm2283, %v5950, %v6191
        %v6357 = vsel %vm2283, %v5951, %v6193
        %v6360 = vsel %vm841, %v6161, %v6275
        %v6363 = vsel %vm841, %v6163, %v6277
        %v6366 = vsel %vm841, %v6165, %v6279
        %v6369 = vsel %vm841, %v6167, %v6281
        %v6372 = vsel %vm841, %v6169, %v6283
        %v6375 = vsel %vm841, %v6171, %v6285
        %v6378 = vsel %vm841, %v6173, %v6287
        %v6381 = vsel %vm841, %v6175, %v6289
        %v6384 = vsel %vm841, %v6177, %v6291
        %v6387 = vsel %vm841, %v6179, %v6293
        %v6390 = vsel %vm841, %v6181, %v6295
        %v6393 = vsel %vm841, %v6183, %v6297
        %v6396 = vsel %vm841, %v6185, %v6299
        %v6399 = vsel %vm841, %v6187, %v6301
        %v6402 = vsel %vm841, %v6189, %v6303
        %v6405 = vsel %vm841, %v6191, %v6305
        %v6408 = vsel %vm841, %v6193, %v6307
        %v6410 = vld [vmem:[%s10] sm:$0xf]
        %v6411 = vld [vmem:[%s10 + $0x4] sm:$0xf]
        %v6412 = vld [vmem:[%s10 + $0x8] sm:$0xf]
        %v6413 = vld [vmem:[%s10 + $0xc] sm:$0xf]
        %v6414 = vld [vmem:[%s10 + $0x10] sm:$0xf]
        %v6415 = vld [vmem:[%s10 + $0x14] sm:$0xf]
        %v6416 = vld [vmem:[%s10 + $0x18] sm:$0xf]
        %v6417 = vld [vmem:[%s10 + $0x1c] sm:$0xf]
        %v6418 = vld [vmem:[%s10 + $0x20] sm:$0xf]
        %v6419 = vld [vmem:[%s10 + $0x24] sm:$0xf]
        %v6420 = vld [vmem:[%s10 + $0x28] sm:$0xf]
        %v6421 = vld [vmem:[%s10 + $0x2c] sm:$0xf]
        %v6422 = vld [vmem:[%s10 + $0x30] sm:$0xf]
        %v6423 = vld [vmem:[%s10 + $0x34] sm:$0xf]
        %v6424 = vld [vmem:[%s10 + $0x38] sm:$0xf]
        %v6425 = vld [vmem:[%s10 + $0x3c] sm:$0xf]
        %v6426 = vld [vmem:[%s10 + $0x40] sm:$0xf]
        %v6427 = vld [vmem:[%s10 + $0x44] sm:$0xf]
        %v6428 = vld [vmem:[%s10 + $0x48] sm:$0xf]
        %v6429 = vld [vmem:[%s10 + $0x4c] sm:$0xf]
        %v6430 = vld [vmem:[%s10 + $0x50] sm:$0xf]
        %v6431 = vld [vmem:[%s10 + $0x54] sm:$0xf]
        %v6432 = vld [vmem:[%s10 + $0x58] sm:$0xf]
        %v6433 = vld [vmem:[%s10 + $0x5c] sm:$0xf]
        %v6434 = vld [vmem:[%s10 + $0x60] sm:$0xf]
        %v6435 = vld [vmem:[%s10 + $0x64] sm:$0xf]
        %v6436 = vld [vmem:[%s10 + $0x68] sm:$0xf]
        %v6437 = vld [vmem:[%s10 + $0x6c] sm:$0xf]
        %v6438 = vld [vmem:[%s10 + $0x70] sm:$0xf]
        %v6439 = vld [vmem:[%s10 + $0x74] sm:$0xf]
        %v6440 = vld [vmem:[%s10 + $0x78] sm:$0xf]
        %v6441 = vld [vmem:[%s10 + $0x7c] sm:$0xf]
        %v6442 = vld [vmem:[%s10 + $0x80] sm:$0xf]
        %v6443 = vld [vmem:[%s10 + $0x84] sm:$0xf]
        %v6444 = vld [vmem:[%s10 + $0x88] sm:$0xf]
        %v6445 = vld [vmem:[%s10 + $0x8c] sm:$0xf]
        %s6446 = scalar_lea.vmem %s10, 144
        %v6447 = vld [vmem:[%s6446] sm:$0xf]
        %v6448 = vld [vmem:[%s6446 + $0x4] sm:$0xf]
        %v6449 = vld [vmem:[%s6446 + $0x8] sm:$0xf]
        %v6450 = vld [vmem:[%s6446 + $0xc] sm:$0xf]
        %v6451 = vld [vmem:[%s6446 + $0x10] sm:$0xf]
        %v6452 = vld [vmem:[%s6446 + $0x14] sm:$0xf]
        %v6453 = vld [vmem:[%s6446 + $0x18] sm:$0xf]
        %v6454 = vld [vmem:[%s6446 + $0x1c] sm:$0xf]
        %v6455 = vld [vmem:[%s6446 + $0x20] sm:$0xf]
        %v6456 = vld [vmem:[%s6446 + $0x24] sm:$0xf]
        %v6457 = vld [vmem:[%s6446 + $0x28] sm:$0xf]
        %v6458 = vld [vmem:[%s6446 + $0x2c] sm:$0xf]
        %v6459 = vld [vmem:[%s6446 + $0x30] sm:$0xf]
        %v6460 = vld [vmem:[%s6446 + $0x34] sm:$0xf]
        %v6461 = vld [vmem:[%s6446 + $0x38] sm:$0xf]
        %v6462 = vld [vmem:[%s6446 + $0x3c] sm:$0xf]
        %v6463 = vld [vmem:[%s6446 + $0x40] sm:$0xf]
        %v6464 = vld [vmem:[%s6446 + $0x44] sm:$0xf]
        %v6465 = vld [vmem:[%s6446 + $0x48] sm:$0xf]
        %v6466 = vld [vmem:[%s6446 + $0x4c] sm:$0xf]
        %v6467 = vld [vmem:[%s6446 + $0x50] sm:$0xf]
        %v6468 = vld [vmem:[%s6446 + $0x54] sm:$0xf]
        %v6469 = vld [vmem:[%s6446 + $0x58] sm:$0xf]
        %v6470 = vld [vmem:[%s6446 + $0x5c] sm:$0xf]
        %v6471 = vld [vmem:[%s6446 + $0x60] sm:$0xf]
        %v6472 = vld [vmem:[%s6446 + $0x64] sm:$0xf]
        %v6473 = vld [vmem:[%s6446 + $0x68] sm:$0xf]
        %v6474 = vld [vmem:[%s6446 + $0x6c] sm:$0xf]
        %v6475 = vld [vmem:[%s6446 + $0x70] sm:$0xf]
        %v6476 = vld [vmem:[%s6446 + $0x74] sm:$0xf]
        %v6477 = vld [vmem:[%s6446 + $0x78] sm:$0xf]
        %v6478 = vld [vmem:[%s6446 + $0x7c] sm:$0xf]
        %v6479 = vld [vmem:[%s6446 + $0x80] sm:$0xf]
        %v6480 = vld [vmem:[%s6446 + $0x84] sm:$0xf]
        %v6481 = vld [vmem:[%s6446 + $0x88] sm:$0xf]
        %v6482 = vld [vmem:[%s6446 + $0x8c] sm:$0xf]
        %v6519 = vunpack.c.l.b16 %v6447
        %v6520 = vunpack.c.l.b16 %v6448
        %v6521 = vunpack.c.l.b16 %v6449
        %v6522 = vunpack.c.l.b16 %v6450
        %v6523 = vunpack.c.l.b16 %v6451
        %v6524 = vunpack.c.l.b16 %v6452
        %v6525 = vunpack.c.l.b16 %v6453
        %v6526 = vunpack.c.l.b16 %v6454
        %v6527 = vunpack.c.l.b16 %v6455
        %v6528 = vunpack.c.l.b16 %v6456
        %v6529 = vunpack.c.l.b16 %v6457
        %v6530 = vunpack.c.l.b16 %v6458
        %v6531 = vunpack.c.l.b16 %v6459
        %v6532 = vunpack.c.l.b16 %v6460
        %v6533 = vunpack.c.l.b16 %v6461
        %v6534 = vunpack.c.l.b16 %v6462
        %v6535 = vunpack.c.l.b16 %v6463
        %v6536 = vunpack.c.l.b16 %v6464
        %v6537 = vunpack.c.l.b16 %v6465
        %v6538 = vunpack.c.l.b16 %v6466
        %v6539 = vunpack.c.l.b16 %v6467
        %v6540 = vunpack.c.l.b16 %v6468
        %v6541 = vunpack.c.l.b16 %v6469
        %v6542 = vunpack.c.l.b16 %v6470
        %v6543 = vunpack.c.l.b16 %v6471
        %v6544 = vunpack.c.l.b16 %v6472
        %v6545 = vunpack.c.l.b16 %v6473
        %v6546 = vunpack.c.l.b16 %v6474
        %v6547 = vunpack.c.l.b16 %v6475
        %v6548 = vunpack.c.l.b16 %v6476
        %v6549 = vunpack.c.l.b16 %v6477
        %v6550 = vunpack.c.l.b16 %v6478
        %v6551 = vunpack.c.l.b16 %v6479
        %v6552 = vunpack.c.l.b16 %v6480
        %v6553 = vunpack.c.l.b16 %v6481
        %v6554 = vunpack.c.l.b16 %v6482
        %v6555 = vpack.c.b16 %v6520, %v6519
        %v6556 = vpack.c.b16 %v6522, %v6521
        %v6557 = vpack.c.b16 %v6524, %v6523
        %v6558 = vpack.c.b16 %v6526, %v6525
        %v6559 = vpack.c.b16 %v6528, %v6527
        %v6560 = vpack.c.b16 %v6530, %v6529
        %v6561 = vpack.c.b16 %v6532, %v6531
        %v6562 = vpack.c.b16 %v6534, %v6533
        %v6563 = vpack.c.b16 %v6536, %v6535
        %v6564 = vpack.c.b16 %v6538, %v6537
        %v6565 = vpack.c.b16 %v6540, %v6539
        %v6566 = vpack.c.b16 %v6542, %v6541
        %v6567 = vpack.c.b16 %v6544, %v6543
        %v6568 = vpack.c.b16 %v6546, %v6545
        %v6569 = vpack.c.b16 %v6548, %v6547
        %v6570 = vpack.c.b16 %v6550, %v6549
        %v6571 = vpack.c.b16 %v6552, %v6551
        %v6572 = vpack.c.b16 %v6554, %v6553
        %vm6591 = vcmask 261120
        %v6592 = vsel %vm6591, %v6277, 0
        %v6594 = vsel %vm6591, %v6279, 0
        %v6596 = vsel %vm6591, %v6281, 0
        %v6598 = vsel %vm6591, %v6283, 0
        %v6600 = vsel %vm6591, %v6285, 0
        %v6602 = vsel %vm6591, %v6287, 0
        %v6604 = vsel %vm6591, %v6289, 0
        %v6606 = vsel %vm6591, %v6291, 0
        %v6608 = vsel %vm6591, %v6293, 0
        %v6610 = vsel %vm6591, %v6295, 0
        %v6612 = vsel %vm6591, %v6297, 0
        %v6614 = vsel %vm6591, %v6299, 0
        %v6616 = vsel %vm6591, %v6301, 0
        %v6618 = vsel %vm6591, %v6303, 0
        %v6620 = vsel %vm6591, %v6305, 0
        %v6622 = vsel %vm6591, %v6307, 0
        %6624 = vmatpush.bf16.msra.mxu0 %v6562
        %6625 = vmatpush.bf16.msra.mxu0 %v6561
        %6626 = vmatpush.bf16.msra.mxu0 %v6560
        %6627 = vmatpush.bf16.msra.mxu0 %v6559
        %6628 = vmatpush.bf16.msra.mxu0 %v6558
        %6629 = vmatpush.bf16.msra.mxu0 %v6557
        %6630 = vmatpush.bf16.msra.mxu0 %v6556
        %6631 = vmatpush.bf16.msra.mxu0 %v6555
        %6632 = vmatmul.bf16.gmra.mxu0 %v6312
        %v6633 = vpop.f32.mrf.mxu0
        %v6634 = vadd.f32 0.0, %v6633
        %v6635 = vpop.f32.mrf.mxu0
        %v6636 = vadd.f32 0.0, %v6635
        %6637 = vmatmul.bf16.gmra.mxu0 %v6315
        %v6638 = vpop.f32.mrf.mxu0
        %v6639 = vadd.f32 0.0, %v6638
        %v6640 = vpop.f32.mrf.mxu0
        %v6641 = vadd.f32 0.0, %v6640
        %6642 = vmatmul.bf16.gmra.mxu0 %v6318
        %v6643 = vpop.f32.mrf.mxu0
        %v6644 = vadd.f32 0.0, %v6643
        %v6645 = vpop.f32.mrf.mxu0
        %v6646 = vadd.f32 0.0, %v6645
        %6647 = vmatmul.bf16.gmra.mxu0 %v6321
        %v6648 = vpop.f32.mrf.mxu0
        %v6649 = vadd.f32 0.0, %v6648
        %v6650 = vpop.f32.mrf.mxu0
        %v6651 = vadd.f32 0.0, %v6650
        %6652 = vmatmul.bf16.gmra.mxu0 %v6324
        %v6653 = vpop.f32.mrf.mxu0
        %v6654 = vadd.f32 0.0, %v6653
        %v6655 = vpop.f32.mrf.mxu0
        %v6656 = vadd.f32 0.0, %v6655
        %6657 = vmatmul.bf16.gmra.mxu0 %v6327
        %v6658 = vpop.f32.mrf.mxu0
        %v6659 = vadd.f32 0.0, %v6658
        %v6660 = vpop.f32.mrf.mxu0
        %v6661 = vadd.f32 0.0, %v6660
        %6662 = vmatmul.bf16.gmra.mxu0 %v6330
        %v6663 = vpop.f32.mrf.mxu0
        %v6664 = vadd.f32 0.0, %v6663
        %v6665 = vpop.f32.mrf.mxu0
        %v6666 = vadd.f32 0.0, %v6665
        %6667 = vmatmul.bf16.gmra.mxu0 %v6333
        %v6668 = vpop.f32.mrf.mxu0
        %v6669 = vadd.f32 0.0, %v6668
        %v6670 = vpop.f32.mrf.mxu0
        %v6671 = vadd.f32 0.0, %v6670
        %6672 = vmatmul.bf16.gmra.mxu0 %v6336
        %v6673 = vpop.f32.mrf.mxu0
        %v6674 = vadd.f32 0.0, %v6673
        %v6675 = vpop.f32.mrf.mxu0
        %v6676 = vadd.f32 0.0, %v6675
        %6677 = vmatmul.bf16.gmra.mxu0 %v6339
        %v6678 = vpop.f32.mrf.mxu0
        %v6679 = vadd.f32 0.0, %v6678
        %v6680 = vpop.f32.mrf.mxu0
        %v6681 = vadd.f32 0.0, %v6680
        %6682 = vmatmul.bf16.gmra.mxu0 %v6342
        %v6683 = vpop.f32.mrf.mxu0
        %v6684 = vadd.f32 0.0, %v6683
        %v6685 = vpop.f32.mrf.mxu0
        %v6686 = vadd.f32 0.0, %v6685
        %6687 = vmatmul.bf16.gmra.mxu0 %v6345
        %v6688 = vpop.f32.mrf.mxu0
        %v6689 = vadd.f32 0.0, %v6688
        %v6690 = vpop.f32.mrf.mxu0
        %v6691 = vadd.f32 0.0, %v6690
        %6692 = vmatmul.bf16.gmra.mxu0 %v6348
        %v6693 = vpop.f32.mrf.mxu0
        %v6694 = vadd.f32 0.0, %v6693
        %v6695 = vpop.f32.mrf.mxu0
        %v6696 = vadd.f32 0.0, %v6695
        %6697 = vmatmul.bf16.gmra.mxu0 %v6351
        %v6698 = vpop.f32.mrf.mxu0
        %v6699 = vadd.f32 0.0, %v6698
        %v6700 = vpop.f32.mrf.mxu0
        %v6701 = vadd.f32 0.0, %v6700
        %6702 = vmatmul.bf16.gmra.mxu0 %v6354
        %v6703 = vpop.f32.mrf.mxu0
        %v6704 = vadd.f32 0.0, %v6703
        %v6705 = vpop.f32.mrf.mxu0
        %v6706 = vadd.f32 0.0, %v6705
        %6707 = vmatmul.bf16.gmra.mxu0 %v6357
        %v6708 = vpop.f32.mrf.mxu0
        %v6709 = vadd.f32 0.0, %v6708
        %v6710 = vpop.f32.mrf.mxu0
        %v6711 = vadd.f32 0.0, %v6710
        %6712 = vdwg.mxu0
        %6713 = vmatpush.bf16.msra.mxu0 %v6570
        %6714 = vmatpush.bf16.msra.mxu0 %v6569
        %6715 = vmatpush.bf16.msra.mxu0 %v6568
        %6716 = vmatpush.bf16.msra.mxu0 %v6567
        %6717 = vmatpush.bf16.msra.mxu0 %v6566
        %6718 = vmatpush.bf16.msra.mxu0 %v6565
        %6719 = vmatpush.bf16.msra.mxu0 %v6564
        %6720 = vmatpush.bf16.msra.mxu0 %v6563
        %6721 = vmatmul.bf16.gmra.mxu0 %v6363
        %v6722 = vpop.f32.mrf.mxu0
        %v6723 = vadd.f32 %v6634, %v6722
        %v6724 = vpop.f32.mrf.mxu0
        %v6725 = vadd.f32 %v6636, %v6724
        %6726 = vmatmul.bf16.gmra.mxu0 %v6366
        %v6727 = vpop.f32.mrf.mxu0
        %v6728 = vadd.f32 %v6639, %v6727
        %v6729 = vpop.f32.mrf.mxu0
        %v6730 = vadd.f32 %v6641, %v6729
        %6731 = vmatmul.bf16.gmra.mxu0 %v6369
        %v6732 = vpop.f32.mrf.mxu0
        %v6733 = vadd.f32 %v6644, %v6732
        %v6734 = vpop.f32.mrf.mxu0
        %v6735 = vadd.f32 %v6646, %v6734
        %6736 = vmatmul.bf16.gmra.mxu0 %v6372
        %v6737 = vpop.f32.mrf.mxu0
        %v6738 = vadd.f32 %v6649, %v6737
        %v6739 = vpop.f32.mrf.mxu0
        %v6740 = vadd.f32 %v6651, %v6739
        %6741 = vmatmul.bf16.gmra.mxu0 %v6375
        %v6742 = vpop.f32.mrf.mxu0
        %v6743 = vadd.f32 %v6654, %v6742
        %v6744 = vpop.f32.mrf.mxu0
        %v6745 = vadd.f32 %v6656, %v6744
        %6746 = vmatmul.bf16.gmra.mxu0 %v6378
        %v6747 = vpop.f32.mrf.mxu0
        %v6748 = vadd.f32 %v6659, %v6747
        %v6749 = vpop.f32.mrf.mxu0
        %v6750 = vadd.f32 %v6661, %v6749
        %6751 = vmatmul.bf16.gmra.mxu0 %v6381
        %v6752 = vpop.f32.mrf.mxu0
        %v6753 = vadd.f32 %v6664, %v6752
        %v6754 = vpop.f32.mrf.mxu0
        %v6755 = vadd.f32 %v6666, %v6754
        %6756 = vmatmul.bf16.gmra.mxu0 %v6384
        %v6757 = vpop.f32.mrf.mxu0
        %v6758 = vadd.f32 %v6669, %v6757
        %v6759 = vpop.f32.mrf.mxu0
        %v6760 = vadd.f32 %v6671, %v6759
        %6761 = vmatmul.bf16.gmra.mxu0 %v6387
        %v6762 = vpop.f32.mrf.mxu0
        %v6763 = vadd.f32 %v6674, %v6762
        %v6764 = vpop.f32.mrf.mxu0
        %v6765 = vadd.f32 %v6676, %v6764
        %6766 = vmatmul.bf16.gmra.mxu0 %v6390
        %v6767 = vpop.f32.mrf.mxu0
        %v6768 = vadd.f32 %v6679, %v6767
        %v6769 = vpop.f32.mrf.mxu0
        %v6770 = vadd.f32 %v6681, %v6769
        %6771 = vmatmul.bf16.gmra.mxu0 %v6393
        %v6772 = vpop.f32.mrf.mxu0
        %v6773 = vadd.f32 %v6684, %v6772
        %v6774 = vpop.f32.mrf.mxu0
        %v6775 = vadd.f32 %v6686, %v6774
        %6776 = vmatmul.bf16.gmra.mxu0 %v6396
        %v6777 = vpop.f32.mrf.mxu0
        %v6778 = vadd.f32 %v6689, %v6777
        %v6779 = vpop.f32.mrf.mxu0
        %v6780 = vadd.f32 %v6691, %v6779
        %6781 = vmatmul.bf16.gmra.mxu0 %v6399
        %v6782 = vpop.f32.mrf.mxu0
        %v6783 = vadd.f32 %v6694, %v6782
        %v6784 = vpop.f32.mrf.mxu0
        %v6785 = vadd.f32 %v6696, %v6784
        %6786 = vmatmul.bf16.gmra.mxu0 %v6402
        %v6787 = vpop.f32.mrf.mxu0
        %v6788 = vadd.f32 %v6699, %v6787
        %v6789 = vpop.f32.mrf.mxu0
        %v6790 = vadd.f32 %v6701, %v6789
        %6791 = vmatmul.bf16.gmra.mxu0 %v6405
        %v6792 = vpop.f32.mrf.mxu0
        %v6793 = vadd.f32 %v6704, %v6792
        %v6794 = vpop.f32.mrf.mxu0
        %v6795 = vadd.f32 %v6706, %v6794
        %6796 = vmatmul.bf16.gmra.mxu0 %v6408
        %v6797 = vpop.f32.mrf.mxu0
        %v6798 = vadd.f32 %v6709, %v6797
        %v6799 = vpop.f32.mrf.mxu0
        %v6800 = vadd.f32 %v6711, %v6799
        %6801 = vdwg.mxu0
        %6802 = vmatpush.bf16.msra.mxu0 0
        %6803 = vmatpush.bf16.msra.mxu0 0
        %6804 = vmatpush.bf16.msra.mxu0 0
        %6805 = vmatpush.bf16.msra.mxu0 0
        %6806 = vmatpush.bf16.msra.mxu0 0
        %6807 = vmatpush.bf16.msra.mxu0 0
        %6808 = vmatpush.bf16.msra.mxu0 %v6572
        %6809 = vmatpush.bf16.msra.mxu0 %v6571
        %6810 = vmatmul.bf16.gmra.mxu0 %v6592
        %v6811 = vpop.f32.mrf.mxu0
        %v6812 = vadd.f32 %v6723, %v6811
        %v6813 = vpop.f32.mrf.mxu0
        %v6814 = vadd.f32 %v6725, %v6813
        %6815 = vmatmul.bf16.gmra.mxu0 %v6594
        %v6816 = vpop.f32.mrf.mxu0
        %v6817 = vadd.f32 %v6728, %v6816
        %v6818 = vpop.f32.mrf.mxu0
        %v6819 = vadd.f32 %v6730, %v6818
        %6820 = vmatmul.bf16.gmra.mxu0 %v6596
        %v6821 = vpop.f32.mrf.mxu0
        %v6822 = vadd.f32 %v6733, %v6821
        %v6823 = vpop.f32.mrf.mxu0
        %v6824 = vadd.f32 %v6735, %v6823
        %6825 = vmatmul.bf16.gmra.mxu0 %v6598
        %v6826 = vpop.f32.mrf.mxu0
        %v6827 = vadd.f32 %v6738, %v6826
        %v6828 = vpop.f32.mrf.mxu0
        %v6829 = vadd.f32 %v6740, %v6828
        %6830 = vmatmul.bf16.gmra.mxu0 %v6600
        %v6831 = vpop.f32.mrf.mxu0
        %v6832 = vadd.f32 %v6743, %v6831
        %v6833 = vpop.f32.mrf.mxu0
        %v6834 = vadd.f32 %v6745, %v6833
        %6835 = vmatmul.bf16.gmra.mxu0 %v6602
        %v6836 = vpop.f32.mrf.mxu0
        %v6837 = vadd.f32 %v6748, %v6836
        %v6838 = vpop.f32.mrf.mxu0
        %v6839 = vadd.f32 %v6750, %v6838
        %6840 = vmatmul.bf16.gmra.mxu0 %v6604
        %v6841 = vpop.f32.mrf.mxu0
        %v6842 = vadd.f32 %v6753, %v6841
        %v6843 = vpop.f32.mrf.mxu0
        %v6844 = vadd.f32 %v6755, %v6843
        %6845 = vmatmul.bf16.gmra.mxu0 %v6606
        %v6846 = vpop.f32.mrf.mxu0
        %v6847 = vadd.f32 %v6758, %v6846
        %v6848 = vpop.f32.mrf.mxu0
        %v6849 = vadd.f32 %v6760, %v6848
        %6850 = vmatmul.bf16.gmra.mxu0 %v6608
        %v6851 = vpop.f32.mrf.mxu0
        %v6852 = vadd.f32 %v6763, %v6851
        %v6853 = vpop.f32.mrf.mxu0
        %v6854 = vadd.f32 %v6765, %v6853
        %6855 = vmatmul.bf16.gmra.mxu0 %v6610
        %v6856 = vpop.f32.mrf.mxu0
        %v6857 = vadd.f32 %v6768, %v6856
        %v6858 = vpop.f32.mrf.mxu0
        %v6859 = vadd.f32 %v6770, %v6858
        %6860 = vmatmul.bf16.gmra.mxu0 %v6612
        %v6861 = vpop.f32.mrf.mxu0
        %v6862 = vadd.f32 %v6773, %v6861
        %v6863 = vpop.f32.mrf.mxu0
        %v6864 = vadd.f32 %v6775, %v6863
        %6865 = vmatmul.bf16.gmra.mxu0 %v6614
        %v6866 = vpop.f32.mrf.mxu0
        %v6867 = vadd.f32 %v6778, %v6866
        %v6868 = vpop.f32.mrf.mxu0
        %v6869 = vadd.f32 %v6780, %v6868
        %6870 = vmatmul.bf16.gmra.mxu0 %v6616
        %v6871 = vpop.f32.mrf.mxu0
        %v6872 = vadd.f32 %v6783, %v6871
        %v6873 = vpop.f32.mrf.mxu0
        %v6874 = vadd.f32 %v6785, %v6873
        %6875 = vmatmul.bf16.gmra.mxu0 %v6618
        %v6876 = vpop.f32.mrf.mxu0
        %v6877 = vadd.f32 %v6788, %v6876
        %v6878 = vpop.f32.mrf.mxu0
        %v6879 = vadd.f32 %v6790, %v6878
        %6880 = vmatmul.bf16.gmra.mxu0 %v6620
        %v6881 = vpop.f32.mrf.mxu0
        %v6882 = vadd.f32 %v6793, %v6881
        %v6883 = vpop.f32.mrf.mxu0
        %v6884 = vadd.f32 %v6795, %v6883
        %6885 = vmatmul.bf16.gmra.mxu0 %v6622
        %v6886 = vpop.f32.mrf.mxu0
        %v6887 = vadd.f32 %v6798, %v6886
        %v6888 = vpop.f32.mrf.mxu0
        %v6889 = vadd.f32 %v6800, %v6888
        %6890 = vdwg.mxu0
        %v6927 = vunpack.c.l.b16 %v6410
        %v6928 = vunpack.c.l.b16 %v6411
        %v6929 = vunpack.c.l.b16 %v6412
        %v6930 = vunpack.c.l.b16 %v6413
        %v6931 = vunpack.c.l.b16 %v6414
        %v6932 = vunpack.c.l.b16 %v6415
        %v6933 = vunpack.c.l.b16 %v6416
        %v6934 = vunpack.c.l.b16 %v6417
        %v6935 = vunpack.c.l.b16 %v6418
        %v6936 = vunpack.c.l.b16 %v6419
        %v6937 = vunpack.c.l.b16 %v6420
        %v6938 = vunpack.c.l.b16 %v6421
        %v6939 = vunpack.c.l.b16 %v6422
        %v6940 = vunpack.c.l.b16 %v6423
        %v6941 = vunpack.c.l.b16 %v6424
        %v6942 = vunpack.c.l.b16 %v6425
        %v6943 = vunpack.c.l.b16 %v6426
        %v6944 = vunpack.c.l.b16 %v6427
        %v6945 = vunpack.c.l.b16 %v6428
        %v6946 = vunpack.c.l.b16 %v6429
        %v6947 = vunpack.c.l.b16 %v6430
        %v6948 = vunpack.c.l.b16 %v6431
        %v6949 = vunpack.c.l.b16 %v6432
        %v6950 = vunpack.c.l.b16 %v6433
        %v6951 = vunpack.c.l.b16 %v6434
        %v6952 = vunpack.c.l.b16 %v6435
        %v6953 = vunpack.c.l.b16 %v6436
        %v6954 = vunpack.c.l.b16 %v6437
        %v6955 = vunpack.c.l.b16 %v6438
        %v6956 = vunpack.c.l.b16 %v6439
        %v6957 = vunpack.c.l.b16 %v6440
        %v6958 = vunpack.c.l.b16 %v6441
        %v6959 = vunpack.c.l.b16 %v6442
        %v6960 = vunpack.c.l.b16 %v6443
        %v6961 = vunpack.c.l.b16 %v6444
        %v6962 = vunpack.c.l.b16 %v6445
        %v6963 = vpack.c.b16 %v6928, %v6927
        %v6964 = vpack.c.b16 %v6930, %v6929
        %v6965 = vpack.c.b16 %v6932, %v6931
        %v6966 = vpack.c.b16 %v6934, %v6933
        %v6967 = vpack.c.b16 %v6936, %v6935
        %v6968 = vpack.c.b16 %v6938, %v6937
        %v6969 = vpack.c.b16 %v6940, %v6939
        %v6970 = vpack.c.b16 %v6942, %v6941
        %v6971 = vpack.c.b16 %v6944, %v6943
        %v6972 = vpack.c.b16 %v6946, %v6945
        %v6973 = vpack.c.b16 %v6948, %v6947
        %v6974 = vpack.c.b16 %v6950, %v6949
        %v6975 = vpack.c.b16 %v6952, %v6951
        %v6976 = vpack.c.b16 %v6954, %v6953
        %v6977 = vpack.c.b16 %v6956, %v6955
        %v6978 = vpack.c.b16 %v6958, %v6957
        %v6979 = vpack.c.b16 %v6960, %v6959
        %v6980 = vpack.c.b16 %v6962, %v6961
        %v6999 = vsel %vm6591, %v6275, 0
        %7001 = vmatpush.bf16.msra.mxu0 %v6970
        %7002 = vmatpush.bf16.msra.mxu0 %v6969
        %7003 = vmatpush.bf16.msra.mxu0 %v6968
        %7004 = vmatpush.bf16.msra.mxu0 %v6967
        %7005 = vmatpush.bf16.msra.mxu0 %v6966
        %7006 = vmatpush.bf16.msra.mxu0 %v6965
        %7007 = vmatpush.bf16.msra.mxu0 %v6964
        %7008 = vmatpush.bf16.msra.mxu0 %v6963
        %7009 = vmatmul.bf16.gmra.mxu0 %v6309
        %v7010 = vpop.f32.mrf.mxu0
        %v7011 = vadd.f32 %v6812, %v7010
        %v7012 = vpop.f32.mrf.mxu0
        %v7013 = vadd.f32 %v6814, %v7012
        %7014 = vmatmul.bf16.gmra.mxu0 %v6312
        %v7015 = vpop.f32.mrf.mxu0
        %v7016 = vadd.f32 %v6817, %v7015
        %v7017 = vpop.f32.mrf.mxu0
        %v7018 = vadd.f32 %v6819, %v7017
        %7019 = vmatmul.bf16.gmra.mxu0 %v6315
        %v7020 = vpop.f32.mrf.mxu0
        %v7021 = vadd.f32 %v6822, %v7020
        %v7022 = vpop.f32.mrf.mxu0
        %v7023 = vadd.f32 %v6824, %v7022
        %7024 = vmatmul.bf16.gmra.mxu0 %v6318
        %v7025 = vpop.f32.mrf.mxu0
        %v7026 = vadd.f32 %v6827, %v7025
        %v7027 = vpop.f32.mrf.mxu0
        %v7028 = vadd.f32 %v6829, %v7027
        %7029 = vmatmul.bf16.gmra.mxu0 %v6321
        %v7030 = vpop.f32.mrf.mxu0
        %v7031 = vadd.f32 %v6832, %v7030
        %v7032 = vpop.f32.mrf.mxu0
        %v7033 = vadd.f32 %v6834, %v7032
        %7034 = vmatmul.bf16.gmra.mxu0 %v6324
        %v7035 = vpop.f32.mrf.mxu0
        %v7036 = vadd.f32 %v6837, %v7035
        %v7037 = vpop.f32.mrf.mxu0
        %v7038 = vadd.f32 %v6839, %v7037
        %7039 = vmatmul.bf16.gmra.mxu0 %v6327
        %v7040 = vpop.f32.mrf.mxu0
        %v7041 = vadd.f32 %v6842, %v7040
        %v7042 = vpop.f32.mrf.mxu0
        %v7043 = vadd.f32 %v6844, %v7042
        %7044 = vmatmul.bf16.gmra.mxu0 %v6330
        %v7045 = vpop.f32.mrf.mxu0
        %v7046 = vadd.f32 %v6847, %v7045
        %v7047 = vpop.f32.mrf.mxu0
        %v7048 = vadd.f32 %v6849, %v7047
        %7049 = vmatmul.bf16.gmra.mxu0 %v6333
        %v7050 = vpop.f32.mrf.mxu0
        %v7051 = vadd.f32 %v6852, %v7050
        %v7052 = vpop.f32.mrf.mxu0
        %v7053 = vadd.f32 %v6854, %v7052
        %7054 = vmatmul.bf16.gmra.mxu0 %v6336
        %v7055 = vpop.f32.mrf.mxu0
        %v7056 = vadd.f32 %v6857, %v7055
        %v7057 = vpop.f32.mrf.mxu0
        %v7058 = vadd.f32 %v6859, %v7057
        %7059 = vmatmul.bf16.gmra.mxu0 %v6339
        %v7060 = vpop.f32.mrf.mxu0
        %v7061 = vadd.f32 %v6862, %v7060
        %v7062 = vpop.f32.mrf.mxu0
        %v7063 = vadd.f32 %v6864, %v7062
        %7064 = vmatmul.bf16.gmra.mxu0 %v6342
        %v7065 = vpop.f32.mrf.mxu0
        %v7066 = vadd.f32 %v6867, %v7065
        %v7067 = vpop.f32.mrf.mxu0
        %v7068 = vadd.f32 %v6869, %v7067
        %7069 = vmatmul.bf16.gmra.mxu0 %v6345
        %v7070 = vpop.f32.mrf.mxu0
        %v7071 = vadd.f32 %v6872, %v7070
        %v7072 = vpop.f32.mrf.mxu0
        %v7073 = vadd.f32 %v6874, %v7072
        %7074 = vmatmul.bf16.gmra.mxu0 %v6348
        %v7075 = vpop.f32.mrf.mxu0
        %v7076 = vadd.f32 %v6877, %v7075
        %v7077 = vpop.f32.mrf.mxu0
        %v7078 = vadd.f32 %v6879, %v7077
        %7079 = vmatmul.bf16.gmra.mxu0 %v6351
        %v7080 = vpop.f32.mrf.mxu0
        %v7081 = vadd.f32 %v6882, %v7080
        %v7082 = vpop.f32.mrf.mxu0
        %v7083 = vadd.f32 %v6884, %v7082
        %7084 = vmatmul.bf16.gmra.mxu0 %v6354
        %v7085 = vpop.f32.mrf.mxu0
        %v7086 = vadd.f32 %v6887, %v7085
        %v7087 = vpop.f32.mrf.mxu0
        %v7088 = vadd.f32 %v6889, %v7087
        %7089 = vdwg.mxu0
        %7090 = vmatpush.bf16.msra.mxu0 %v6978
        %7091 = vmatpush.bf16.msra.mxu0 %v6977
        %7092 = vmatpush.bf16.msra.mxu0 %v6976
        %7093 = vmatpush.bf16.msra.mxu0 %v6975
        %7094 = vmatpush.bf16.msra.mxu0 %v6974
        %7095 = vmatpush.bf16.msra.mxu0 %v6973
        %7096 = vmatpush.bf16.msra.mxu0 %v6972
        %7097 = vmatpush.bf16.msra.mxu0 %v6971
        %7098 = vmatmul.bf16.gmra.mxu0 %v6360
        %v7099 = vpop.f32.mrf.mxu0
        %v7100 = vadd.f32 %v7011, %v7099
        %v7101 = vpop.f32.mrf.mxu0
        %v7102 = vadd.f32 %v7013, %v7101
        %7103 = vmatmul.bf16.gmra.mxu0 %v6363
        %v7104 = vpop.f32.mrf.mxu0
        %v7105 = vadd.f32 %v7016, %v7104
        %v7106 = vpop.f32.mrf.mxu0
        %v7107 = vadd.f32 %v7018, %v7106
        %7108 = vmatmul.bf16.gmra.mxu0 %v6366
        %v7109 = vpop.f32.mrf.mxu0
        %v7110 = vadd.f32 %v7021, %v7109
        %v7111 = vpop.f32.mrf.mxu0
        %v7112 = vadd.f32 %v7023, %v7111
        %7113 = vmatmul.bf16.gmra.mxu0 %v6369
        %v7114 = vpop.f32.mrf.mxu0
        %v7115 = vadd.f32 %v7026, %v7114
        %v7116 = vpop.f32.mrf.mxu0
        %v7117 = vadd.f32 %v7028, %v7116
        %7118 = vmatmul.bf16.gmra.mxu0 %v6372
        %v7119 = vpop.f32.mrf.mxu0
        %v7120 = vadd.f32 %v7031, %v7119
        %v7121 = vpop.f32.mrf.mxu0
        %v7122 = vadd.f32 %v7033, %v7121
        %7123 = vmatmul.bf16.gmra.mxu0 %v6375
        %v7124 = vpop.f32.mrf.mxu0
        %v7125 = vadd.f32 %v7036, %v7124
        %v7126 = vpop.f32.mrf.mxu0
        %v7127 = vadd.f32 %v7038, %v7126
        %7128 = vmatmul.bf16.gmra.mxu0 %v6378
        %v7129 = vpop.f32.mrf.mxu0
        %v7130 = vadd.f32 %v7041, %v7129
        %v7131 = vpop.f32.mrf.mxu0
        %v7132 = vadd.f32 %v7043, %v7131
        %7133 = vmatmul.bf16.gmra.mxu0 %v6381
        %v7134 = vpop.f32.mrf.mxu0
        %v7135 = vadd.f32 %v7046, %v7134
        %v7136 = vpop.f32.mrf.mxu0
        %v7137 = vadd.f32 %v7048, %v7136
        %7138 = vmatmul.bf16.gmra.mxu0 %v6384
        %v7139 = vpop.f32.mrf.mxu0
        %v7140 = vadd.f32 %v7051, %v7139
        %v7141 = vpop.f32.mrf.mxu0
        %v7142 = vadd.f32 %v7053, %v7141
        %7143 = vmatmul.bf16.gmra.mxu0 %v6387
        %v7144 = vpop.f32.mrf.mxu0
        %v7145 = vadd.f32 %v7056, %v7144
        %v7146 = vpop.f32.mrf.mxu0
        %v7147 = vadd.f32 %v7058, %v7146
        %7148 = vmatmul.bf16.gmra.mxu0 %v6390
        %v7149 = vpop.f32.mrf.mxu0
        %v7150 = vadd.f32 %v7061, %v7149
        %v7151 = vpop.f32.mrf.mxu0
        %v7152 = vadd.f32 %v7063, %v7151
        %7153 = vmatmul.bf16.gmra.mxu0 %v6393
        %v7154 = vpop.f32.mrf.mxu0
        %v7155 = vadd.f32 %v7066, %v7154
        %v7156 = vpop.f32.mrf.mxu0
        %v7157 = vadd.f32 %v7068, %v7156
        %7158 = vmatmul.bf16.gmra.mxu0 %v6396
        %v7159 = vpop.f32.mrf.mxu0
        %v7160 = vadd.f32 %v7071, %v7159
        %v7161 = vpop.f32.mrf.mxu0
        %v7162 = vadd.f32 %v7073, %v7161
        %7163 = vmatmul.bf16.gmra.mxu0 %v6399
        %v7164 = vpop.f32.mrf.mxu0
        %v7165 = vadd.f32 %v7076, %v7164
        %v7166 = vpop.f32.mrf.mxu0
        %v7167 = vadd.f32 %v7078, %v7166
        %7168 = vmatmul.bf16.gmra.mxu0 %v6402
        %v7169 = vpop.f32.mrf.mxu0
        %v7170 = vadd.f32 %v7081, %v7169
        %v7171 = vpop.f32.mrf.mxu0
        %v7172 = vadd.f32 %v7083, %v7171
        %7173 = vmatmul.bf16.gmra.mxu0 %v6405
        %v7174 = vpop.f32.mrf.mxu0
        %v7175 = vadd.f32 %v7086, %v7174
        %v7176 = vpop.f32.mrf.mxu0
        %v7177 = vadd.f32 %v7088, %v7176
        %7178 = vdwg.mxu0
        %7179 = vmatpush.bf16.msra.mxu0 0
        %7180 = vmatpush.bf16.msra.mxu0 0
        %7181 = vmatpush.bf16.msra.mxu0 0
        %7182 = vmatpush.bf16.msra.mxu0 0
        %7183 = vmatpush.bf16.msra.mxu0 0
        %7184 = vmatpush.bf16.msra.mxu0 0
        %7185 = vmatpush.bf16.msra.mxu0 %v6980
        %7186 = vmatpush.bf16.msra.mxu0 %v6979
        %7187 = vmatmul.bf16.gmra.mxu0 %v6999
        %v7188 = vpop.f32.mrf.mxu0
        %v7189 = vadd.f32 %v7100, %v7188
        %v7190 = vpop.f32.mrf.mxu0
        %v7191 = vadd.f32 %v7102, %v7190
        %7192 = vmatmul.bf16.gmra.mxu0 %v6592
        %v7193 = vpop.f32.mrf.mxu0
        %v7194 = vadd.f32 %v7105, %v7193
        %v7195 = vpop.f32.mrf.mxu0
        %v7196 = vadd.f32 %v7107, %v7195
        %7197 = vmatmul.bf16.gmra.mxu0 %v6594
        %v7198 = vpop.f32.mrf.mxu0
        %v7199 = vadd.f32 %v7110, %v7198
        %v7200 = vpop.f32.mrf.mxu0
        %v7201 = vadd.f32 %v7112, %v7200
        %7202 = vmatmul.bf16.gmra.mxu0 %v6596
        %v7203 = vpop.f32.mrf.mxu0
        %v7204 = vadd.f32 %v7115, %v7203
        %v7205 = vpop.f32.mrf.mxu0
        %v7206 = vadd.f32 %v7117, %v7205
        %7207 = vmatmul.bf16.gmra.mxu0 %v6598
        %v7208 = vpop.f32.mrf.mxu0
        %v7209 = vadd.f32 %v7120, %v7208
        %v7210 = vpop.f32.mrf.mxu0
        %v7211 = vadd.f32 %v7122, %v7210
        %7212 = vmatmul.bf16.gmra.mxu0 %v6600
        %v7213 = vpop.f32.mrf.mxu0
        %v7214 = vadd.f32 %v7125, %v7213
        %v7215 = vpop.f32.mrf.mxu0
        %v7216 = vadd.f32 %v7127, %v7215
        %7217 = vmatmul.bf16.gmra.mxu0 %v6602
        %v7218 = vpop.f32.mrf.mxu0
        %v7219 = vadd.f32 %v7130, %v7218
        %v7220 = vpop.f32.mrf.mxu0
        %v7221 = vadd.f32 %v7132, %v7220
        %7222 = vmatmul.bf16.gmra.mxu0 %v6604
        %v7223 = vpop.f32.mrf.mxu0
        %v7224 = vadd.f32 %v7135, %v7223
        %v7225 = vpop.f32.mrf.mxu0
        %v7226 = vadd.f32 %v7137, %v7225
        %7227 = vmatmul.bf16.gmra.mxu0 %v6606
        %v7228 = vpop.f32.mrf.mxu0
        %v7229 = vadd.f32 %v7140, %v7228
        %v7230 = vpop.f32.mrf.mxu0
        %v7231 = vadd.f32 %v7142, %v7230
        %7232 = vmatmul.bf16.gmra.mxu0 %v6608
        %v7233 = vpop.f32.mrf.mxu0
        %v7234 = vadd.f32 %v7145, %v7233
        %v7235 = vpop.f32.mrf.mxu0
        %v7236 = vadd.f32 %v7147, %v7235
        %7237 = vmatmul.bf16.gmra.mxu0 %v6610
        %v7238 = vpop.f32.mrf.mxu0
        %v7239 = vadd.f32 %v7150, %v7238
        %v7240 = vpop.f32.mrf.mxu0
        %v7241 = vadd.f32 %v7152, %v7240
        %7242 = vmatmul.bf16.gmra.mxu0 %v6612
        %v7243 = vpop.f32.mrf.mxu0
        %v7244 = vadd.f32 %v7155, %v7243
        %v7245 = vpop.f32.mrf.mxu0
        %v7246 = vadd.f32 %v7157, %v7245
        %7247 = vmatmul.bf16.gmra.mxu0 %v6614
        %v7248 = vpop.f32.mrf.mxu0
        %v7249 = vadd.f32 %v7160, %v7248
        %v7250 = vpop.f32.mrf.mxu0
        %v7251 = vadd.f32 %v7162, %v7250
        %7252 = vmatmul.bf16.gmra.mxu0 %v6616
        %v7253 = vpop.f32.mrf.mxu0
        %v7254 = vadd.f32 %v7165, %v7253
        %v7255 = vpop.f32.mrf.mxu0
        %v7256 = vadd.f32 %v7167, %v7255
        %7257 = vmatmul.bf16.gmra.mxu0 %v6618
        %v7258 = vpop.f32.mrf.mxu0
        %v7259 = vadd.f32 %v7170, %v7258
        %v7260 = vpop.f32.mrf.mxu0
        %v7261 = vadd.f32 %v7172, %v7260
        %7262 = vmatmul.bf16.gmra.mxu0 %v6620
        %v7263 = vpop.f32.mrf.mxu0
        %v7264 = vadd.f32 %v7175, %v7263
        %v7265 = vpop.f32.mrf.mxu0
        %v7266 = vadd.f32 %v7177, %v7265
        %7267 = vdwg.mxu0
        %s7268 = scalar_lea.vmem %s10, 288
        %v7269 = vld [vmem:[%s7268] sm:$0xf]
        %v7270 = vld [vmem:[%s7268 + $0x4] sm:$0xf]
        %v7271 = vld [vmem:[%s7268 + $0x8] sm:$0xf]
        %v7272 = vld [vmem:[%s7268 + $0xc] sm:$0xf]
        %v7273 = vld [vmem:[%s7268 + $0x10] sm:$0xf]
        %v7274 = vld [vmem:[%s7268 + $0x14] sm:$0xf]
        %v7275 = vld [vmem:[%s7268 + $0x18] sm:$0xf]
        %v7276 = vld [vmem:[%s7268 + $0x1c] sm:$0xf]
        %v7277 = vld [vmem:[%s7268 + $0x20] sm:$0xf]
        %v7278 = vld [vmem:[%s7268 + $0x24] sm:$0xf]
        %v7279 = vld [vmem:[%s7268 + $0x28] sm:$0xf]
        %v7280 = vld [vmem:[%s7268 + $0x2c] sm:$0xf]
        %v7281 = vld [vmem:[%s7268 + $0x30] sm:$0xf]
        %v7282 = vld [vmem:[%s7268 + $0x34] sm:$0xf]
        %v7283 = vld [vmem:[%s7268 + $0x38] sm:$0xf]
        %v7284 = vld [vmem:[%s7268 + $0x3c] sm:$0xf]
        %v7285 = vld [vmem:[%s7268 + $0x40] sm:$0xf]
        %v7286 = vld [vmem:[%s7268 + $0x44] sm:$0xf]
        %v7287 = vld [vmem:[%s7268 + $0x48] sm:$0xf]
        %v7288 = vld [vmem:[%s7268 + $0x4c] sm:$0xf]
        %v7289 = vld [vmem:[%s7268 + $0x50] sm:$0xf]
        %v7290 = vld [vmem:[%s7268 + $0x54] sm:$0xf]
        %v7291 = vld [vmem:[%s7268 + $0x58] sm:$0xf]
        %v7292 = vld [vmem:[%s7268 + $0x5c] sm:$0xf]
        %v7293 = vld [vmem:[%s7268 + $0x60] sm:$0xf]
        %v7294 = vld [vmem:[%s7268 + $0x64] sm:$0xf]
        %v7295 = vld [vmem:[%s7268 + $0x68] sm:$0xf]
        %v7296 = vld [vmem:[%s7268 + $0x6c] sm:$0xf]
        %v7297 = vld [vmem:[%s7268 + $0x70] sm:$0xf]
        %v7298 = vld [vmem:[%s7268 + $0x74] sm:$0xf]
        %v7299 = vld [vmem:[%s7268 + $0x78] sm:$0xf]
        %v7300 = vld [vmem:[%s7268 + $0x7c] sm:$0xf]
        %v7301 = vld [vmem:[%s7268 + $0x80] sm:$0xf]
        %v7302 = vld [vmem:[%s7268 + $0x84] sm:$0xf]
        %v7303 = vld [vmem:[%s7268 + $0x88] sm:$0xf]
        %v7304 = vld [vmem:[%s7268 + $0x8c] sm:$0xf]
        %v7341 = vunpack.c.l.b16 %v7269
        %v7342 = vunpack.c.l.b16 %v7270
        %v7343 = vunpack.c.l.b16 %v7271
        %v7344 = vunpack.c.l.b16 %v7272
        %v7345 = vunpack.c.l.b16 %v7273
        %v7346 = vunpack.c.l.b16 %v7274
        %v7347 = vunpack.c.l.b16 %v7275
        %v7348 = vunpack.c.l.b16 %v7276
        %v7349 = vunpack.c.l.b16 %v7277
        %v7350 = vunpack.c.l.b16 %v7278
        %v7351 = vunpack.c.l.b16 %v7279
        %v7352 = vunpack.c.l.b16 %v7280
        %v7353 = vunpack.c.l.b16 %v7281
        %v7354 = vunpack.c.l.b16 %v7282
        %v7355 = vunpack.c.l.b16 %v7283
        %v7356 = vunpack.c.l.b16 %v7284
        %v7357 = vunpack.c.l.b16 %v7285
        %v7358 = vunpack.c.l.b16 %v7286
        %v7359 = vunpack.c.l.b16 %v7287
        %v7360 = vunpack.c.l.b16 %v7288
        %v7361 = vunpack.c.l.b16 %v7289
        %v7362 = vunpack.c.l.b16 %v7290
        %v7363 = vunpack.c.l.b16 %v7291
        %v7364 = vunpack.c.l.b16 %v7292
        %v7365 = vunpack.c.l.b16 %v7293
        %v7366 = vunpack.c.l.b16 %v7294
        %v7367 = vunpack.c.l.b16 %v7295
        %v7368 = vunpack.c.l.b16 %v7296
        %v7369 = vunpack.c.l.b16 %v7297
        %v7370 = vunpack.c.l.b16 %v7298
        %v7371 = vunpack.c.l.b16 %v7299
        %v7372 = vunpack.c.l.b16 %v7300
        %v7373 = vunpack.c.l.b16 %v7301
        %v7374 = vunpack.c.l.b16 %v7302
        %v7375 = vunpack.c.l.b16 %v7303
        %v7376 = vunpack.c.l.b16 %v7304
        %v7377 = vpack.c.b16 %v7342, %v7341
        %v7378 = vpack.c.b16 %v7344, %v7343
        %v7379 = vpack.c.b16 %v7346, %v7345
        %v7380 = vpack.c.b16 %v7348, %v7347
        %v7381 = vpack.c.b16 %v7350, %v7349
        %v7382 = vpack.c.b16 %v7352, %v7351
        %v7383 = vpack.c.b16 %v7354, %v7353
        %v7384 = vpack.c.b16 %v7356, %v7355
        %v7385 = vpack.c.b16 %v7358, %v7357
        %v7386 = vpack.c.b16 %v7360, %v7359
        %v7387 = vpack.c.b16 %v7362, %v7361
        %v7388 = vpack.c.b16 %v7364, %v7363
        %v7389 = vpack.c.b16 %v7366, %v7365
        %v7390 = vpack.c.b16 %v7368, %v7367
        %v7391 = vpack.c.b16 %v7370, %v7369
        %v7392 = vpack.c.b16 %v7372, %v7371
        %v7393 = vpack.c.b16 %v7374, %v7373
        %v7394 = vpack.c.b16 %v7376, %v7375
        %7413 = vmatpush.bf16.msra.mxu0 %v7384
        %7414 = vmatpush.bf16.msra.mxu0 %v7383
        %7415 = vmatpush.bf16.msra.mxu0 %v7382
        %7416 = vmatpush.bf16.msra.mxu0 %v7381
        %7417 = vmatpush.bf16.msra.mxu0 %v7380
        %7418 = vmatpush.bf16.msra.mxu0 %v7379
        %7419 = vmatpush.bf16.msra.mxu0 %v7378
        %7420 = vmatpush.bf16.msra.mxu0 %v7377
        %7421 = vmatmul.bf16.gmra.mxu0 %v6315
        %v7422 = vpop.f32.mrf.mxu0
        %v7423 = vadd.f32 0.0, %v7422
        %v7424 = vpop.f32.mrf.mxu0
        %v7425 = vadd.f32 0.0, %v7424
        %7426 = vmatmul.bf16.gmra.mxu0 %v6318
        %v7427 = vpop.f32.mrf.mxu0
        %v7428 = vadd.f32 0.0, %v7427
        %v7429 = vpop.f32.mrf.mxu0
        %v7430 = vadd.f32 0.0, %v7429
        %7431 = vmatmul.bf16.gmra.mxu0 %v6321
        %v7432 = vpop.f32.mrf.mxu0
        %v7433 = vadd.f32 0.0, %v7432
        %v7434 = vpop.f32.mrf.mxu0
        %v7435 = vadd.f32 0.0, %v7434
        %7436 = vmatmul.bf16.gmra.mxu0 %v6324
        %v7437 = vpop.f32.mrf.mxu0
        %v7438 = vadd.f32 0.0, %v7437
        %v7439 = vpop.f32.mrf.mxu0
        %v7440 = vadd.f32 0.0, %v7439
        %7441 = vmatmul.bf16.gmra.mxu0 %v6327
        %v7442 = vpop.f32.mrf.mxu0
        %v7443 = vadd.f32 0.0, %v7442
        %v7444 = vpop.f32.mrf.mxu0
        %v7445 = vadd.f32 0.0, %v7444
        %7446 = vmatmul.bf16.gmra.mxu0 %v6330
        %v7447 = vpop.f32.mrf.mxu0
        %v7448 = vadd.f32 0.0, %v7447
        %v7449 = vpop.f32.mrf.mxu0
        %v7450 = vadd.f32 0.0, %v7449
        %7451 = vmatmul.bf16.gmra.mxu0 %v6333
        %v7452 = vpop.f32.mrf.mxu0
        %v7453 = vadd.f32 0.0, %v7452
        %v7454 = vpop.f32.mrf.mxu0
        %v7455 = vadd.f32 0.0, %v7454
        %7456 = vmatmul.bf16.gmra.mxu0 %v6336
        %v7457 = vpop.f32.mrf.mxu0
        %v7458 = vadd.f32 0.0, %v7457
        %v7459 = vpop.f32.mrf.mxu0
        %v7460 = vadd.f32 0.0, %v7459
        %7461 = vmatmul.bf16.gmra.mxu0 %v6339
        %v7462 = vpop.f32.mrf.mxu0
        %v7463 = vadd.f32 0.0, %v7462
        %v7464 = vpop.f32.mrf.mxu0
        %v7465 = vadd.f32 0.0, %v7464
        %7466 = vmatmul.bf16.gmra.mxu0 %v6342
        %v7467 = vpop.f32.mrf.mxu0
        %v7468 = vadd.f32 0.0, %v7467
        %v7469 = vpop.f32.mrf.mxu0
        %v7470 = vadd.f32 0.0, %v7469
        %7471 = vmatmul.bf16.gmra.mxu0 %v6345
        %v7472 = vpop.f32.mrf.mxu0
        %v7473 = vadd.f32 0.0, %v7472
        %v7474 = vpop.f32.mrf.mxu0
        %v7475 = vadd.f32 0.0, %v7474
        %7476 = vmatmul.bf16.gmra.mxu0 %v6348
        %v7477 = vpop.f32.mrf.mxu0
        %v7478 = vadd.f32 0.0, %v7477
        %v7479 = vpop.f32.mrf.mxu0
        %v7480 = vadd.f32 0.0, %v7479
        %7481 = vmatmul.bf16.gmra.mxu0 %v6351
        %v7482 = vpop.f32.mrf.mxu0
        %v7483 = vadd.f32 0.0, %v7482
        %v7484 = vpop.f32.mrf.mxu0
        %v7485 = vadd.f32 0.0, %v7484
        %7486 = vmatmul.bf16.gmra.mxu0 %v6354
        %v7487 = vpop.f32.mrf.mxu0
        %v7488 = vadd.f32 0.0, %v7487
        %v7489 = vpop.f32.mrf.mxu0
        %v7490 = vadd.f32 0.0, %v7489
        %7491 = vmatmul.bf16.gmra.mxu0 %v6357
        %v7492 = vpop.f32.mrf.mxu0
        %v7493 = vadd.f32 0.0, %v7492
        %v7494 = vpop.f32.mrf.mxu0
        %v7495 = vadd.f32 0.0, %v7494
        %7496 = vmatmul.bf16.gmra.mxu0 %v6309
        %v7497 = vpop.f32.mrf.mxu0
        %v7498 = vadd.f32 0.0, %v7497
        %v7499 = vpop.f32.mrf.mxu0
        %v7500 = vadd.f32 0.0, %v7499
        %7501 = vdwg.mxu0
        %7502 = vmatpush.bf16.msra.mxu0 %v7392
        %7503 = vmatpush.bf16.msra.mxu0 %v7391
        %7504 = vmatpush.bf16.msra.mxu0 %v7390
        %7505 = vmatpush.bf16.msra.mxu0 %v7389
        %7506 = vmatpush.bf16.msra.mxu0 %v7388
        %7507 = vmatpush.bf16.msra.mxu0 %v7387
        %7508 = vmatpush.bf16.msra.mxu0 %v7386
        %7509 = vmatpush.bf16.msra.mxu0 %v7385
        %7510 = vmatmul.bf16.gmra.mxu0 %v6366
        %v7511 = vpop.f32.mrf.mxu0
        %v7512 = vadd.f32 %v7423, %v7511
        %v7513 = vpop.f32.mrf.mxu0
        %v7514 = vadd.f32 %v7425, %v7513
        %7515 = vmatmul.bf16.gmra.mxu0 %v6369
        %v7516 = vpop.f32.mrf.mxu0
        %v7517 = vadd.f32 %v7428, %v7516
        %v7518 = vpop.f32.mrf.mxu0
        %v7519 = vadd.f32 %v7430, %v7518
        %7520 = vmatmul.bf16.gmra.mxu0 %v6372
        %v7521 = vpop.f32.mrf.mxu0
        %v7522 = vadd.f32 %v7433, %v7521
        %v7523 = vpop.f32.mrf.mxu0
        %v7524 = vadd.f32 %v7435, %v7523
        %7525 = vmatmul.bf16.gmra.mxu0 %v6375
        %v7526 = vpop.f32.mrf.mxu0
        %v7527 = vadd.f32 %v7438, %v7526
        %v7528 = vpop.f32.mrf.mxu0
        %v7529 = vadd.f32 %v7440, %v7528
        %7530 = vmatmul.bf16.gmra.mxu0 %v6378
        %v7531 = vpop.f32.mrf.mxu0
        %v7532 = vadd.f32 %v7443, %v7531
        %v7533 = vpop.f32.mrf.mxu0
        %v7534 = vadd.f32 %v7445, %v7533
        %7535 = vmatmul.bf16.gmra.mxu0 %v6381
        %v7536 = vpop.f32.mrf.mxu0
        %v7537 = vadd.f32 %v7448, %v7536
        %v7538 = vpop.f32.mrf.mxu0
        %v7539 = vadd.f32 %v7450, %v7538
        %7540 = vmatmul.bf16.gmra.mxu0 %v6384
        %v7541 = vpop.f32.mrf.mxu0
        %v7542 = vadd.f32 %v7453, %v7541
        %v7543 = vpop.f32.mrf.mxu0
        %v7544 = vadd.f32 %v7455, %v7543
        %7545 = vmatmul.bf16.gmra.mxu0 %v6387
        %v7546 = vpop.f32.mrf.mxu0
        %v7547 = vadd.f32 %v7458, %v7546
        %v7548 = vpop.f32.mrf.mxu0
        %v7549 = vadd.f32 %v7460, %v7548
        %7550 = vmatmul.bf16.gmra.mxu0 %v6390
        %v7551 = vpop.f32.mrf.mxu0
        %v7552 = vadd.f32 %v7463, %v7551
        %v7553 = vpop.f32.mrf.mxu0
        %v7554 = vadd.f32 %v7465, %v7553
        %7555 = vmatmul.bf16.gmra.mxu0 %v6393
        %v7556 = vpop.f32.mrf.mxu0
        %v7557 = vadd.f32 %v7468, %v7556
        %v7558 = vpop.f32.mrf.mxu0
        %v7559 = vadd.f32 %v7470, %v7558
        %7560 = vmatmul.bf16.gmra.mxu0 %v6396
        %v7561 = vpop.f32.mrf.mxu0
        %v7562 = vadd.f32 %v7473, %v7561
        %v7563 = vpop.f32.mrf.mxu0
        %v7564 = vadd.f32 %v7475, %v7563
        %7565 = vmatmul.bf16.gmra.mxu0 %v6399
        %v7566 = vpop.f32.mrf.mxu0
        %v7567 = vadd.f32 %v7478, %v7566
        %v7568 = vpop.f32.mrf.mxu0
        %v7569 = vadd.f32 %v7480, %v7568
        %7570 = vmatmul.bf16.gmra.mxu0 %v6402
        %v7571 = vpop.f32.mrf.mxu0
        %v7572 = vadd.f32 %v7483, %v7571
        %v7573 = vpop.f32.mrf.mxu0
        %v7574 = vadd.f32 %v7485, %v7573
        %7575 = vmatmul.bf16.gmra.mxu0 %v6405
        %v7576 = vpop.f32.mrf.mxu0
        %v7577 = vadd.f32 %v7488, %v7576
        %v7578 = vpop.f32.mrf.mxu0
        %v7579 = vadd.f32 %v7490, %v7578
        %7580 = vmatmul.bf16.gmra.mxu0 %v6408
        %v7581 = vpop.f32.mrf.mxu0
        %v7582 = vadd.f32 %v7493, %v7581
        %v7583 = vpop.f32.mrf.mxu0
        %v7584 = vadd.f32 %v7495, %v7583
        %7585 = vmatmul.bf16.gmra.mxu0 %v6360
        %v7586 = vpop.f32.mrf.mxu0
        %v7587 = vadd.f32 %v7498, %v7586
        %v7588 = vpop.f32.mrf.mxu0
        %v7589 = vadd.f32 %v7500, %v7588
        %7590 = vdwg.mxu0
        %7591 = vmatpush.bf16.msra.mxu0 0
        %7592 = vmatpush.bf16.msra.mxu0 0
        %7593 = vmatpush.bf16.msra.mxu0 0
        %7594 = vmatpush.bf16.msra.mxu0 0
        %7595 = vmatpush.bf16.msra.mxu0 0
        %7596 = vmatpush.bf16.msra.mxu0 0
        %7597 = vmatpush.bf16.msra.mxu0 %v7394
        %7598 = vmatpush.bf16.msra.mxu0 %v7393
        %7599 = vmatmul.bf16.gmra.mxu0 %v6594
        %v7600 = vpop.f32.mrf.mxu0
        %v7601 = vadd.f32 %v7512, %v7600
        %v7602 = vpop.f32.mrf.mxu0
        %v7603 = vadd.f32 %v7514, %v7602
        %7604 = vmatmul.bf16.gmra.mxu0 %v6596
        %v7605 = vpop.f32.mrf.mxu0
        %v7606 = vadd.f32 %v7517, %v7605
        %v7607 = vpop.f32.mrf.mxu0
        %v7608 = vadd.f32 %v7519, %v7607
        %7609 = vmatmul.bf16.gmra.mxu0 %v6598
        %v7610 = vpop.f32.mrf.mxu0
        %v7611 = vadd.f32 %v7522, %v7610
        %v7612 = vpop.f32.mrf.mxu0
        %v7613 = vadd.f32 %v7524, %v7612
        %7614 = vmatmul.bf16.gmra.mxu0 %v6600
        %v7615 = vpop.f32.mrf.mxu0
        %v7616 = vadd.f32 %v7527, %v7615
        %v7617 = vpop.f32.mrf.mxu0
        %v7618 = vadd.f32 %v7529, %v7617
        %7619 = vmatmul.bf16.gmra.mxu0 %v6602
        %v7620 = vpop.f32.mrf.mxu0
        %v7621 = vadd.f32 %v7532, %v7620
        %v7622 = vpop.f32.mrf.mxu0
        %v7623 = vadd.f32 %v7534, %v7622
        %7624 = vmatmul.bf16.gmra.mxu0 %v6604
        %v7625 = vpop.f32.mrf.mxu0
        %v7626 = vadd.f32 %v7537, %v7625
        %v7627 = vpop.f32.mrf.mxu0
        %v7628 = vadd.f32 %v7539, %v7627
        %7629 = vmatmul.bf16.gmra.mxu0 %v6606
        %v7630 = vpop.f32.mrf.mxu0
        %v7631 = vadd.f32 %v7542, %v7630
        %v7632 = vpop.f32.mrf.mxu0
        %v7633 = vadd.f32 %v7544, %v7632
        %7634 = vmatmul.bf16.gmra.mxu0 %v6608
        %v7635 = vpop.f32.mrf.mxu0
        %v7636 = vadd.f32 %v7547, %v7635
        %v7637 = vpop.f32.mrf.mxu0
        %v7638 = vadd.f32 %v7549, %v7637
        %7639 = vmatmul.bf16.gmra.mxu0 %v6610
        %v7640 = vpop.f32.mrf.mxu0
        %v7641 = vadd.f32 %v7552, %v7640
        %v7642 = vpop.f32.mrf.mxu0
        %v7643 = vadd.f32 %v7554, %v7642
        %7644 = vmatmul.bf16.gmra.mxu0 %v6612
        %v7645 = vpop.f32.mrf.mxu0
        %v7646 = vadd.f32 %v7557, %v7645
        %v7647 = vpop.f32.mrf.mxu0
        %v7648 = vadd.f32 %v7559, %v7647
        %7649 = vmatmul.bf16.gmra.mxu0 %v6614
        %v7650 = vpop.f32.mrf.mxu0
        %v7651 = vadd.f32 %v7562, %v7650
        %v7652 = vpop.f32.mrf.mxu0
        %v7653 = vadd.f32 %v7564, %v7652
        %7654 = vmatmul.bf16.gmra.mxu0 %v6616
        %v7655 = vpop.f32.mrf.mxu0
        %v7656 = vadd.f32 %v7567, %v7655
        %v7657 = vpop.f32.mrf.mxu0
        %v7658 = vadd.f32 %v7569, %v7657
        %7659 = vmatmul.bf16.gmra.mxu0 %v6618
        %v7660 = vpop.f32.mrf.mxu0
        %v7661 = vadd.f32 %v7572, %v7660
        %v7662 = vpop.f32.mrf.mxu0
        %v7663 = vadd.f32 %v7574, %v7662
        %7664 = vmatmul.bf16.gmra.mxu0 %v6620
        %v7665 = vpop.f32.mrf.mxu0
        %v7666 = vadd.f32 %v7577, %v7665
        %v7667 = vpop.f32.mrf.mxu0
        %v7668 = vadd.f32 %v7579, %v7667
        %7669 = vmatmul.bf16.gmra.mxu0 %v6622
        %v7670 = vpop.f32.mrf.mxu0
        %v7671 = vadd.f32 %v7582, %v7670
        %v7672 = vpop.f32.mrf.mxu0
        %v7673 = vadd.f32 %v7584, %v7672
        %7674 = vmatmul.bf16.gmra.mxu0 %v6999
        %v7675 = vpop.f32.mrf.mxu0
        %v7676 = vadd.f32 %v7587, %v7675
        %v7677 = vpop.f32.mrf.mxu0
        %v7678 = vadd.f32 %v7589, %v7677
        %7679 = vdwg.mxu0
        %v7680 = vadd.f32 %v7189, %v7601
        %v7681 = vadd.f32 %v7191, %v7603
        %v7682 = vadd.f32 %v7194, %v7606
        %v7683 = vadd.f32 %v7196, %v7608
        %v7684 = vadd.f32 %v7199, %v7611
        %v7685 = vadd.f32 %v7201, %v7613
        %v7686 = vadd.f32 %v7204, %v7616
        %v7687 = vadd.f32 %v7206, %v7618
        %v7688 = vadd.f32 %v7209, %v7621
        %v7689 = vadd.f32 %v7211, %v7623
        %v7690 = vadd.f32 %v7214, %v7626
        %v7691 = vadd.f32 %v7216, %v7628
        %v7692 = vadd.f32 %v7219, %v7631
        %v7693 = vadd.f32 %v7221, %v7633
        %v7694 = vadd.f32 %v7224, %v7636
        %v7695 = vadd.f32 %v7226, %v7638
        %v7696 = vadd.f32 %v7229, %v7641
        %v7697 = vadd.f32 %v7231, %v7643
        %v7698 = vadd.f32 %v7234, %v7646
        %v7699 = vadd.f32 %v7236, %v7648
        %v7700 = vadd.f32 %v7239, %v7651
        %v7701 = vadd.f32 %v7241, %v7653
        %v7702 = vadd.f32 %v7244, %v7656
        %v7703 = vadd.f32 %v7246, %v7658
        %v7704 = vadd.f32 %v7249, %v7661
        %v7705 = vadd.f32 %v7251, %v7663
        %v7706 = vadd.f32 %v7254, %v7666
        %v7707 = vadd.f32 %v7256, %v7668
        %v7708 = vadd.f32 %v7259, %v7671
        %v7709 = vadd.f32 %v7261, %v7673
        %v7710 = vadd.f32 %v7264, %v7676
        %v7711 = vadd.f32 %v7266, %v7678
        %v7712 = vld [vmem:[%s11] sm:$0x1]
        %v7714 = vperm.slane %v7712, 0
        %v7716 = vmul.f32 %v7680, %v7714
        %v7717 = vmul.f32 %v7681, %v7714
        %v7718 = vmul.f32 %v7682, %v7714
        %v7719 = vmul.f32 %v7683, %v7714
        %v7720 = vmul.f32 %v7684, %v7714
        %v7721 = vmul.f32 %v7685, %v7714
        %v7722 = vmul.f32 %v7686, %v7714
        %v7723 = vmul.f32 %v7687, %v7714
        %v7724 = vmul.f32 %v7688, %v7714
        %v7725 = vmul.f32 %v7689, %v7714
        %v7726 = vmul.f32 %v7690, %v7714
        %v7727 = vmul.f32 %v7691, %v7714
        %v7728 = vmul.f32 %v7692, %v7714
        %v7729 = vmul.f32 %v7693, %v7714
        %v7730 = vmul.f32 %v7694, %v7714
        %v7731 = vmul.f32 %v7695, %v7714
        %v7732 = vmul.f32 %v7696, %v7714
        %v7733 = vmul.f32 %v7697, %v7714
        %v7734 = vmul.f32 %v7698, %v7714
        %v7735 = vmul.f32 %v7699, %v7714
        %v7736 = vmul.f32 %v7700, %v7714
        %v7737 = vmul.f32 %v7701, %v7714
        %v7738 = vmul.f32 %v7702, %v7714
        %v7739 = vmul.f32 %v7703, %v7714
        %v7740 = vmul.f32 %v7704, %v7714
        %v7741 = vmul.f32 %v7705, %v7714
        %v7742 = vmul.f32 %v7706, %v7714
        %v7743 = vmul.f32 %v7707, %v7714
        %v7744 = vmul.f32 %v7708, %v7714
        %v7745 = vmul.f32 %v7709, %v7714
        %v7746 = vmul.f32 %v7710, %v7714
        %v7747 = vmul.f32 %v7711, %v7714
        %v7748 = vld [vmem:[%s12] sm:$0x1]
        %v7750 = vperm.slane %v7748, 0
        %v7752 = vadd.f32 %v7716, %v7750
        %v7753 = vadd.f32 %v7717, %v7750
        %v7754 = vadd.f32 %v7718, %v7750
        %v7755 = vadd.f32 %v7719, %v7750
        %v7756 = vadd.f32 %v7720, %v7750
        %v7757 = vadd.f32 %v7721, %v7750
        %v7758 = vadd.f32 %v7722, %v7750
        %v7759 = vadd.f32 %v7723, %v7750
        %v7760 = vadd.f32 %v7724, %v7750
        %v7761 = vadd.f32 %v7725, %v7750
        %v7762 = vadd.f32 %v7726, %v7750
        %v7763 = vadd.f32 %v7727, %v7750
        %v7764 = vadd.f32 %v7728, %v7750
        %v7765 = vadd.f32 %v7729, %v7750
        %v7766 = vadd.f32 %v7730, %v7750
        %v7767 = vadd.f32 %v7731, %v7750
        %v7768 = vadd.f32 %v7732, %v7750
        %v7769 = vadd.f32 %v7733, %v7750
        %v7770 = vadd.f32 %v7734, %v7750
        %v7771 = vadd.f32 %v7735, %v7750
        %v7772 = vadd.f32 %v7736, %v7750
        %v7773 = vadd.f32 %v7737, %v7750
        %v7774 = vadd.f32 %v7738, %v7750
        %v7775 = vadd.f32 %v7739, %v7750
        %v7776 = vadd.f32 %v7740, %v7750
        %v7777 = vadd.f32 %v7741, %v7750
        %v7778 = vadd.f32 %v7742, %v7750
        %v7779 = vadd.f32 %v7743, %v7750
        %v7780 = vadd.f32 %v7744, %v7750
        %v7781 = vadd.f32 %v7745, %v7750
        %v7782 = vadd.f32 %v7746, %v7750
        %v7783 = vadd.f32 %v7747, %v7750
        %v7784 = vmax.f32 %v7752, 0.0
        %v7785 = vmax.f32 %v7753, 0.0
        %v7786 = vmax.f32 %v7754, 0.0
        %v7787 = vmax.f32 %v7755, 0.0
        %v7788 = vmax.f32 %v7756, 0.0
        %v7789 = vmax.f32 %v7757, 0.0
        %v7790 = vmax.f32 %v7758, 0.0
        %v7791 = vmax.f32 %v7759, 0.0
        %v7792 = vmax.f32 %v7760, 0.0
        %v7793 = vmax.f32 %v7761, 0.0
        %v7794 = vmax.f32 %v7762, 0.0
        %v7795 = vmax.f32 %v7763, 0.0
        %v7796 = vmax.f32 %v7764, 0.0
        %v7797 = vmax.f32 %v7765, 0.0
        %v7798 = vmax.f32 %v7766, 0.0
        %v7799 = vmax.f32 %v7767, 0.0
        %v7800 = vmax.f32 %v7768, 0.0
        %v7801 = vmax.f32 %v7769, 0.0
        %v7802 = vmax.f32 %v7770, 0.0
        %v7803 = vmax.f32 %v7771, 0.0
        %v7804 = vmax.f32 %v7772, 0.0
        %v7805 = vmax.f32 %v7773, 0.0
        %v7806 = vmax.f32 %v7774, 0.0
        %v7807 = vmax.f32 %v7775, 0.0
        %v7808 = vmax.f32 %v7776, 0.0
        %v7809 = vmax.f32 %v7777, 0.0
        %v7810 = vmax.f32 %v7778, 0.0
        %v7811 = vmax.f32 %v7779, 0.0
        %v7812 = vmax.f32 %v7780, 0.0
        %v7813 = vmax.f32 %v7781, 0.0
        %v7814 = vmax.f32 %v7782, 0.0
        %v7815 = vmax.f32 %v7783, 0.0
        %v7816 = vunpack.c.l.bf16 %v521
        %v7817 = vunpack.c.h.bf16 %v521
        %v7818 = vunpack.c.l.bf16 %v522
        %v7819 = vunpack.c.h.bf16 %v522
        %v7820 = vunpack.c.l.bf16 %v523
        %v7821 = vunpack.c.h.bf16 %v523
        %v7822 = vunpack.c.l.bf16 %v524
        %v7823 = vunpack.c.h.bf16 %v524
        %v7824 = vunpack.c.l.bf16 %v525
        %v7825 = vunpack.c.h.bf16 %v525
        %v7826 = vunpack.c.l.bf16 %v526
        %v7827 = vunpack.c.h.bf16 %v526
        %v7828 = vunpack.c.l.bf16 %v527
        %v7829 = vunpack.c.h.bf16 %v527
        %v7830 = vunpack.c.l.bf16 %v528
        %v7831 = vunpack.c.h.bf16 %v528
        %v7832 = vunpack.c.l.bf16 %v529
        %v7833 = vunpack.c.h.bf16 %v529
        %v7834 = vunpack.c.l.bf16 %v530
        %v7835 = vunpack.c.h.bf16 %v530
        %v7836 = vunpack.c.l.bf16 %v531
        %v7837 = vunpack.c.h.bf16 %v531
        %v7838 = vunpack.c.l.bf16 %v532
        %v7839 = vunpack.c.h.bf16 %v532
        %v7840 = vunpack.c.l.bf16 %v533
        %v7841 = vunpack.c.h.bf16 %v533
        %v7842 = vunpack.c.l.bf16 %v534
        %v7843 = vunpack.c.h.bf16 %v534
        %v7844 = vunpack.c.l.bf16 %v535
        %v7845 = vunpack.c.h.bf16 %v535
        %v7846 = vunpack.c.l.bf16 %v536
        %v7847 = vunpack.c.h.bf16 %v536
        %v7848 = vunpack.c.l.bf16 %v537
        %v7849 = vunpack.c.h.bf16 %v537
        %v7850 = vunpack.c.l.bf16 %v538
        %v7851 = vunpack.c.h.bf16 %v538
        %v7852 = vunpack.c.l.bf16 %v539
        %v7853 = vunpack.c.h.bf16 %v539
        %v7854 = vunpack.c.l.bf16 %v540
        %v7855 = vunpack.c.h.bf16 %v540
        %v7856 = vunpack.c.l.bf16 %v541
        %v7857 = vunpack.c.h.bf16 %v541
        %v7858 = vunpack.c.l.bf16 %v542
        %v7859 = vunpack.c.h.bf16 %v542
        %v7860 = vunpack.c.l.bf16 %v543
        %v7861 = vunpack.c.h.bf16 %v543
        %v7862 = vunpack.c.l.bf16 %v544
        %v7863 = vunpack.c.h.bf16 %v544
        %v7864 = vunpack.c.l.bf16 %v545
        %v7865 = vunpack.c.h.bf16 %v545
        %v7866 = vunpack.c.l.bf16 %v546
        %v7867 = vunpack.c.h.bf16 %v546
        %v7868 = vunpack.c.l.bf16 %v547
        %v7869 = vunpack.c.h.bf16 %v547
        %v7870 = vunpack.c.l.bf16 %v548
        %v7871 = vunpack.c.h.bf16 %v548
        %v7872 = vunpack.c.l.bf16 %v549
        %v7873 = vunpack.c.h.bf16 %v549
        %v7874 = vunpack.c.l.bf16 %v550
        %v7875 = vunpack.c.h.bf16 %v550
        %v7876 = vunpack.c.l.bf16 %v551
        %v7877 = vunpack.c.h.bf16 %v551
        %v7878 = vunpack.c.l.bf16 %v552
        %v7879 = vunpack.c.h.bf16 %v552
        %v7944 = vrot.slane %v7816, 7
        %v7945 = vrot.slane %v7817, 7
        %v7946 = vrot.slane %v7818, 7
        %v7947 = vsel %vm1610, %v7944, %v7946
        %v7948 = vrot.slane %v7819, 7
        %v7949 = vsel %vm1610, %v7945, %v7948
        %v7950 = vrot.slane %v7820, 7
        %v7951 = vrot.slane %v7821, 7
        %v7952 = vrot.slane %v7822, 7
        %v7953 = vsel %vm1610, %v7950, %v7952
        %v7954 = vrot.slane %v7823, 7
        %v7955 = vsel %vm1610, %v7951, %v7954
        %v7956 = vrot.slane %v7824, 7
        %v7957 = vrot.slane %v7825, 7
        %v7958 = vrot.slane %v7826, 7
        %v7959 = vsel %vm1610, %v7956, %v7958
        %v7960 = vrot.slane %v7827, 7
        %v7961 = vsel %vm1610, %v7957, %v7960
        %v7962 = vrot.slane %v7828, 7
        %v7963 = vrot.slane %v7829, 7
        %v7964 = vrot.slane %v7830, 7
        %v7965 = vsel %vm1610, %v7962, %v7964
        %v7966 = vrot.slane %v7831, 7
        %v7967 = vsel %vm1610, %v7963, %v7966
        %v7968 = vrot.slane %v7832, 7
        %v7969 = vrot.slane %v7833, 7
        %v7970 = vrot.slane %v7834, 7
        %v7971 = vsel %vm1610, %v7968, %v7970
        %v7972 = vrot.slane %v7835, 7
        %v7973 = vsel %vm1610, %v7969, %v7972
        %v7974 = vrot.slane %v7836, 7
        %v7975 = vrot.slane %v7837, 7
        %v7976 = vrot.slane %v7838, 7
        %v7977 = vsel %vm1610, %v7974, %v7976
        %v7978 = vrot.slane %v7839, 7
        %v7979 = vsel %vm1610, %v7975, %v7978
        %v7980 = vrot.slane %v7840, 7
        %v7981 = vrot.slane %v7841, 7
        %v7982 = vrot.slane %v7842, 7
        %v7983 = vsel %vm1610, %v7980, %v7982
        %v7984 = vrot.slane %v7843, 7
        %v7985 = vsel %vm1610, %v7981, %v7984
        %v7986 = vrot.slane %v7844, 7
        %v7987 = vrot.slane %v7845, 7
        %v7988 = vrot.slane %v7846, 7
        %v7989 = vsel %vm1610, %v7986, %v7988
        %v7990 = vrot.slane %v7847, 7
        %v7991 = vsel %vm1610, %v7987, %v7990
        %v7992 = vrot.slane %v7848, 7
        %v7993 = vrot.slane %v7849, 7
        %v7994 = vrot.slane %v7850, 7
        %v7995 = vsel %vm1610, %v7992, %v7994
        %v7996 = vrot.slane %v7851, 7
        %v7997 = vsel %vm1610, %v7993, %v7996
        %v7998 = vrot.slane %v7852, 7
        %v7999 = vrot.slane %v7853, 7
        %v8000 = vrot.slane %v7854, 7
        %v8001 = vsel %vm1610, %v7998, %v8000
        %v8002 = vrot.slane %v7855, 7
        %v8003 = vsel %vm1610, %v7999, %v8002
        %v8004 = vrot.slane %v7856, 7
        %v8005 = vrot.slane %v7857, 7
        %v8006 = vrot.slane %v7858, 7
        %v8007 = vsel %vm1610, %v8004, %v8006
        %v8008 = vrot.slane %v7859, 7
        %v8009 = vsel %vm1610, %v8005, %v8008
        %v8010 = vrot.slane %v7860, 7
        %v8011 = vrot.slane %v7861, 7
        %v8012 = vrot.slane %v7862, 7
        %v8013 = vsel %vm1610, %v8010, %v8012
        %v8014 = vrot.slane %v7863, 7
        %v8015 = vsel %vm1610, %v8011, %v8014
        %v8016 = vrot.slane %v7864, 7
        %v8017 = vrot.slane %v7865, 7
        %v8018 = vrot.slane %v7866, 7
        %v8019 = vsel %vm1610, %v8016, %v8018
        %v8020 = vrot.slane %v7867, 7
        %v8021 = vsel %vm1610, %v8017, %v8020
        %v8022 = vrot.slane %v7868, 7
        %v8023 = vrot.slane %v7869, 7
        %v8024 = vrot.slane %v7870, 7
        %v8025 = vsel %vm1610, %v8022, %v8024
        %v8026 = vrot.slane %v7871, 7
        %v8027 = vsel %vm1610, %v8023, %v8026
        %v8028 = vrot.slane %v7872, 7
        %v8029 = vrot.slane %v7873, 7
        %v8030 = vrot.slane %v7874, 7
        %v8031 = vsel %vm1610, %v8028, %v8030
        %v8032 = vrot.slane %v7875, 7
        %v8033 = vsel %vm1610, %v8029, %v8032
        %v8034 = vrot.slane %v7876, 7
        %v8035 = vrot.slane %v7877, 7
        %v8036 = vrot.slane %v7878, 7
        %v8037 = vsel %vm1610, %v8034, %v8036
        %v8038 = vrot.slane %v7879, 7
        %v8039 = vsel %vm1610, %v8035, %v8038
        %v8136 = vsel %vm1610, 0.0, %v7944
        %v8137 = vsel %vm1610, 0.0, %v7945
        %v8138 = vsel %vm1610, 0.0, %v7950
        %v8139 = vsel %vm1610, 0.0, %v7951
        %v8140 = vsel %vm1610, 0.0, %v7956
        %v8141 = vsel %vm1610, 0.0, %v7957
        %v8142 = vsel %vm1610, 0.0, %v7962
        %v8143 = vsel %vm1610, 0.0, %v7963
        %v8144 = vsel %vm1610, 0.0, %v7968
        %v8145 = vsel %vm1610, 0.0, %v7969
        %v8146 = vsel %vm1610, 0.0, %v7974
        %v8147 = vsel %vm1610, 0.0, %v7975
        %v8148 = vsel %vm1610, 0.0, %v7980
        %v8149 = vsel %vm1610, 0.0, %v7981
        %v8150 = vsel %vm1610, 0.0, %v7986
        %v8151 = vsel %vm1610, 0.0, %v7987
        %v8152 = vsel %vm1610, 0.0, %v7992
        %v8153 = vsel %vm1610, 0.0, %v7993
        %v8154 = vsel %vm1610, 0.0, %v7998
        %v8155 = vsel %vm1610, 0.0, %v7999
        %v8156 = vsel %vm1610, 0.0, %v8004
        %v8157 = vsel %vm1610, 0.0, %v8005
        %v8158 = vsel %vm1610, 0.0, %v8010
        %v8159 = vsel %vm1610, 0.0, %v8011
        %v8160 = vsel %vm1610, 0.0, %v8016
        %v8161 = vsel %vm1610, 0.0, %v8017
        %v8162 = vsel %vm1610, 0.0, %v8022
        %v8163 = vsel %vm1610, 0.0, %v8023
        %v8164 = vsel %vm1610, 0.0, %v8028
        %v8165 = vsel %vm1610, 0.0, %v8029
        %v8166 = vsel %vm1610, 0.0, %v8034
        %v8167 = vsel %vm1610, 0.0, %v8035
        %v8168 = vsel %vm1610, %v7946, 0.0
        %v8169 = vsel %vm1610, %v7948, 0.0
        %v8170 = vsel %vm1610, %v7952, 0.0
        %v8171 = vsel %vm1610, %v7954, 0.0
        %v8172 = vsel %vm1610, %v7958, 0.0
        %v8173 = vsel %vm1610, %v7960, 0.0
        %v8174 = vsel %vm1610, %v7964, 0.0
        %v8175 = vsel %vm1610, %v7966, 0.0
        %v8176 = vsel %vm1610, %v7970, 0.0
        %v8177 = vsel %vm1610, %v7972, 0.0
        %v8178 = vsel %vm1610, %v7976, 0.0
        %v8179 = vsel %vm1610, %v7978, 0.0
        %v8180 = vsel %vm1610, %v7982, 0.0
        %v8181 = vsel %vm1610, %v7984, 0.0
        %v8182 = vsel %vm1610, %v7988, 0.0
        %v8183 = vsel %vm1610, %v7990, 0.0
        %v8184 = vsel %vm1610, %v7994, 0.0
        %v8185 = vsel %vm1610, %v7996, 0.0
        %v8186 = vsel %vm1610, %v8000, 0.0
        %v8187 = vsel %vm1610, %v8002, 0.0
        %v8188 = vsel %vm1610, %v8006, 0.0
        %v8189 = vsel %vm1610, %v8008, 0.0
        %v8190 = vsel %vm1610, %v8012, 0.0
        %v8191 = vsel %vm1610, %v8014, 0.0
        %v8192 = vsel %vm1610, %v8018, 0.0
        %v8193 = vsel %vm1610, %v8020, 0.0
        %v8194 = vsel %vm1610, %v8024, 0.0
        %v8195 = vsel %vm1610, %v8026, 0.0
        %v8196 = vsel %vm1610, %v8030, 0.0
        %v8197 = vsel %vm1610, %v8032, 0.0
        %v8198 = vsel %vm1610, %v8036, 0.0
        %v8199 = vsel %vm1610, %v8038, 0.0
        %vm8264 = vcmask 1046528
        %v8265 = vrot.slane %v8136, 1
        %v8266 = vrot.slane %v7947, 1
        %v8267 = vsel %vm8264, %v8265, %v8266
        %v8268 = vrot.slane %v8137, 1
        %v8269 = vrot.slane %v7949, 1
        %v8270 = vsel %vm8264, %v8268, %v8269
        %v8271 = vrot.slane %v8168, 1
        %v8272 = vsel %vm8264, %v8266, %v8271
        %v8273 = vrot.slane %v8169, 1
        %v8274 = vsel %vm8264, %v8269, %v8273
        %v8275 = vrot.slane %v8138, 1
        %v8276 = vrot.slane %v7953, 1
        %v8277 = vsel %vm8264, %v8275, %v8276
        %v8278 = vrot.slane %v8139, 1
        %v8279 = vrot.slane %v7955, 1
        %v8280 = vsel %vm8264, %v8278, %v8279
        %v8281 = vrot.slane %v8170, 1
        %v8282 = vsel %vm8264, %v8276, %v8281
        %v8283 = vrot.slane %v8171, 1
        %v8284 = vsel %vm8264, %v8279, %v8283
        %v8285 = vrot.slane %v8140, 1
        %v8286 = vrot.slane %v7959, 1
        %v8287 = vsel %vm8264, %v8285, %v8286
        %v8288 = vrot.slane %v8141, 1
        %v8289 = vrot.slane %v7961, 1
        %v8290 = vsel %vm8264, %v8288, %v8289
        %v8291 = vrot.slane %v8172, 1
        %v8292 = vsel %vm8264, %v8286, %v8291
        %v8293 = vrot.slane %v8173, 1
        %v8294 = vsel %vm8264, %v8289, %v8293
        %v8295 = vrot.slane %v8142, 1
        %v8296 = vrot.slane %v7965, 1
        %v8297 = vsel %vm8264, %v8295, %v8296
        %v8298 = vrot.slane %v8143, 1
        %v8299 = vrot.slane %v7967, 1
        %v8300 = vsel %vm8264, %v8298, %v8299
        %v8301 = vrot.slane %v8174, 1
        %v8302 = vsel %vm8264, %v8296, %v8301
        %v8303 = vrot.slane %v8175, 1
        %v8304 = vsel %vm8264, %v8299, %v8303
        %v8305 = vrot.slane %v8144, 1
        %v8306 = vrot.slane %v7971, 1
        %v8307 = vsel %vm8264, %v8305, %v8306
        %v8308 = vrot.slane %v8145, 1
        %v8309 = vrot.slane %v7973, 1
        %v8310 = vsel %vm8264, %v8308, %v8309
        %v8311 = vrot.slane %v8176, 1
        %v8312 = vsel %vm8264, %v8306, %v8311
        %v8313 = vrot.slane %v8177, 1
        %v8314 = vsel %vm8264, %v8309, %v8313
        %v8315 = vrot.slane %v8146, 1
        %v8316 = vrot.slane %v7977, 1
        %v8317 = vsel %vm8264, %v8315, %v8316
        %v8318 = vrot.slane %v8147, 1
        %v8319 = vrot.slane %v7979, 1
        %v8320 = vsel %vm8264, %v8318, %v8319
        %v8321 = vrot.slane %v8178, 1
        %v8322 = vsel %vm8264, %v8316, %v8321
        %v8323 = vrot.slane %v8179, 1
        %v8324 = vsel %vm8264, %v8319, %v8323
        %v8325 = vrot.slane %v8148, 1
        %v8326 = vrot.slane %v7983, 1
        %v8327 = vsel %vm8264, %v8325, %v8326
        %v8328 = vrot.slane %v8149, 1
        %v8329 = vrot.slane %v7985, 1
        %v8330 = vsel %vm8264, %v8328, %v8329
        %v8331 = vrot.slane %v8180, 1
        %v8332 = vsel %vm8264, %v8326, %v8331
        %v8333 = vrot.slane %v8181, 1
        %v8334 = vsel %vm8264, %v8329, %v8333
        %v8335 = vrot.slane %v8150, 1
        %v8336 = vrot.slane %v7989, 1
        %v8337 = vsel %vm8264, %v8335, %v8336
        %v8338 = vrot.slane %v8151, 1
        %v8339 = vrot.slane %v7991, 1
        %v8340 = vsel %vm8264, %v8338, %v8339
        %v8341 = vrot.slane %v8182, 1
        %v8342 = vsel %vm8264, %v8336, %v8341
        %v8343 = vrot.slane %v8183, 1
        %v8344 = vsel %vm8264, %v8339, %v8343
        %v8345 = vrot.slane %v8152, 1
        %v8346 = vrot.slane %v7995, 1
        %v8347 = vsel %vm8264, %v8345, %v8346
        %v8348 = vrot.slane %v8153, 1
        %v8349 = vrot.slane %v7997, 1
        %v8350 = vsel %vm8264, %v8348, %v8349
        %v8351 = vrot.slane %v8184, 1
        %v8352 = vsel %vm8264, %v8346, %v8351
        %v8353 = vrot.slane %v8185, 1
        %v8354 = vsel %vm8264, %v8349, %v8353
        %v8355 = vrot.slane %v8154, 1
        %v8356 = vrot.slane %v8001, 1
        %v8357 = vsel %vm8264, %v8355, %v8356
        %v8358 = vrot.slane %v8155, 1
        %v8359 = vrot.slane %v8003, 1
        %v8360 = vsel %vm8264, %v8358, %v8359
        %v8361 = vrot.slane %v8186, 1
        %v8362 = vsel %vm8264, %v8356, %v8361
        %v8363 = vrot.slane %v8187, 1
        %v8364 = vsel %vm8264, %v8359, %v8363
        %v8365 = vrot.slane %v8156, 1
        %v8366 = vrot.slane %v8007, 1
        %v8367 = vsel %vm8264, %v8365, %v8366
        %v8368 = vrot.slane %v8157, 1
        %v8369 = vrot.slane %v8009, 1
        %v8370 = vsel %vm8264, %v8368, %v8369
        %v8371 = vrot.slane %v8188, 1
        %v8372 = vsel %vm8264, %v8366, %v8371
        %v8373 = vrot.slane %v8189, 1
        %v8374 = vsel %vm8264, %v8369, %v8373
        %v8375 = vrot.slane %v8158, 1
        %v8376 = vrot.slane %v8013, 1
        %v8377 = vsel %vm8264, %v8375, %v8376
        %v8378 = vrot.slane %v8159, 1
        %v8379 = vrot.slane %v8015, 1
        %v8380 = vsel %vm8264, %v8378, %v8379
        %v8381 = vrot.slane %v8190, 1
        %v8382 = vsel %vm8264, %v8376, %v8381
        %v8383 = vrot.slane %v8191, 1
        %v8384 = vsel %vm8264, %v8379, %v8383
        %v8385 = vrot.slane %v8160, 1
        %v8386 = vrot.slane %v8019, 1
        %v8387 = vsel %vm8264, %v8385, %v8386
        %v8388 = vrot.slane %v8161, 1
        %v8389 = vrot.slane %v8021, 1
        %v8390 = vsel %vm8264, %v8388, %v8389
        %v8391 = vrot.slane %v8192, 1
        %v8392 = vsel %vm8264, %v8386, %v8391
        %v8393 = vrot.slane %v8193, 1
        %v8394 = vsel %vm8264, %v8389, %v8393
        %v8395 = vrot.slane %v8162, 1
        %v8396 = vrot.slane %v8025, 1
        %v8397 = vsel %vm8264, %v8395, %v8396
        %v8398 = vrot.slane %v8163, 1
        %v8399 = vrot.slane %v8027, 1
        %v8400 = vsel %vm8264, %v8398, %v8399
        %v8401 = vrot.slane %v8194, 1
        %v8402 = vsel %vm8264, %v8396, %v8401
        %v8403 = vrot.slane %v8195, 1
        %v8404 = vsel %vm8264, %v8399, %v8403
        %v8405 = vrot.slane %v8164, 1
        %v8406 = vrot.slane %v8031, 1
        %v8407 = vsel %vm8264, %v8405, %v8406
        %v8408 = vrot.slane %v8165, 1
        %v8409 = vrot.slane %v8033, 1
        %v8410 = vsel %vm8264, %v8408, %v8409
        %v8411 = vrot.slane %v8196, 1
        %v8412 = vsel %vm8264, %v8406, %v8411
        %v8413 = vrot.slane %v8197, 1
        %v8414 = vsel %vm8264, %v8409, %v8413
        %v8415 = vrot.slane %v8166, 1
        %v8416 = vrot.slane %v8037, 1
        %v8417 = vsel %vm8264, %v8415, %v8416
        %v8418 = vrot.slane %v8167, 1
        %v8419 = vrot.slane %v8039, 1
        %v8420 = vsel %vm8264, %v8418, %v8419
        %v8421 = vrot.slane %v8198, 1
        %v8422 = vsel %vm8264, %v8416, %v8421
        %v8423 = vrot.slane %v8199, 1
        %v8424 = vsel %vm8264, %v8419, %v8423
        %v8489 = vadd.f32 %v8136, %v8267
        %v8490 = vadd.f32 %v8137, %v8270
        %v8491 = vadd.f32 %v7947, %v8272
        %v8492 = vadd.f32 %v7949, %v8274
        %v8493 = vadd.f32 %v8138, %v8277
        %v8494 = vadd.f32 %v8139, %v8280
        %v8495 = vadd.f32 %v7953, %v8282
        %v8496 = vadd.f32 %v7955, %v8284
        %v8497 = vadd.f32 %v8140, %v8287
        %v8498 = vadd.f32 %v8141, %v8290
        %v8499 = vadd.f32 %v7959, %v8292
        %v8500 = vadd.f32 %v7961, %v8294
        %v8501 = vadd.f32 %v8142, %v8297
        %v8502 = vadd.f32 %v8143, %v8300
        %v8503 = vadd.f32 %v7965, %v8302
        %v8504 = vadd.f32 %v7967, %v8304
        %v8505 = vadd.f32 %v8144, %v8307
        %v8506 = vadd.f32 %v8145, %v8310
        %v8507 = vadd.f32 %v7971, %v8312
        %v8508 = vadd.f32 %v7973, %v8314
        %v8509 = vadd.f32 %v8146, %v8317
        %v8510 = vadd.f32 %v8147, %v8320
        %v8511 = vadd.f32 %v7977, %v8322
        %v8512 = vadd.f32 %v7979, %v8324
        %v8513 = vadd.f32 %v8148, %v8327
        %v8514 = vadd.f32 %v8149, %v8330
        %v8515 = vadd.f32 %v7983, %v8332
        %v8516 = vadd.f32 %v7985, %v8334
        %v8517 = vadd.f32 %v8150, %v8337
        %v8518 = vadd.f32 %v8151, %v8340
        %v8519 = vadd.f32 %v7989, %v8342
        %v8520 = vadd.f32 %v7991, %v8344
        %v8521 = vadd.f32 %v8152, %v8347
        %v8522 = vadd.f32 %v8153, %v8350
        %v8523 = vadd.f32 %v7995, %v8352
        %v8524 = vadd.f32 %v7997, %v8354
        %v8525 = vadd.f32 %v8154, %v8357
        %v8526 = vadd.f32 %v8155, %v8360
        %v8527 = vadd.f32 %v8001, %v8362
        %v8528 = vadd.f32 %v8003, %v8364
        %v8529 = vadd.f32 %v8156, %v8367
        %v8530 = vadd.f32 %v8157, %v8370
        %v8531 = vadd.f32 %v8007, %v8372
        %v8532 = vadd.f32 %v8009, %v8374
        %v8533 = vadd.f32 %v8158, %v8377
        %v8534 = vadd.f32 %v8159, %v8380
        %v8535 = vadd.f32 %v8013, %v8382
        %v8536 = vadd.f32 %v8015, %v8384
        %v8537 = vadd.f32 %v8160, %v8387
        %v8538 = vadd.f32 %v8161, %v8390
        %v8539 = vadd.f32 %v8019, %v8392
        %v8540 = vadd.f32 %v8021, %v8394
        %v8541 = vadd.f32 %v8162, %v8397
        %v8542 = vadd.f32 %v8163, %v8400
        %v8543 = vadd.f32 %v8025, %v8402
        %v8544 = vadd.f32 %v8027, %v8404
        %v8545 = vadd.f32 %v8164, %v8407
        %v8546 = vadd.f32 %v8165, %v8410
        %v8547 = vadd.f32 %v8031, %v8412
        %v8548 = vadd.f32 %v8033, %v8414
        %v8549 = vadd.f32 %v8166, %v8417
        %v8550 = vadd.f32 %v8167, %v8420
        %v8551 = vadd.f32 %v8037, %v8422
        %v8552 = vadd.f32 %v8039, %v8424
        %vm8553 = vcmask 1045504
        %v8554 = vrot.slane %v8136, 2
        %v8555 = vrot.slane %v7947, 2
        %v8556 = vsel %vm8553, %v8554, %v8555
        %v8557 = vrot.slane %v8137, 2
        %v8558 = vrot.slane %v7949, 2
        %v8559 = vsel %vm8553, %v8557, %v8558
        %v8560 = vrot.slane %v8168, 2
        %v8561 = vsel %vm8553, %v8555, %v8560
        %v8562 = vrot.slane %v8169, 2
        %v8563 = vsel %vm8553, %v8558, %v8562
        %v8564 = vrot.slane %v8138, 2
        %v8565 = vrot.slane %v7953, 2
        %v8566 = vsel %vm8553, %v8564, %v8565
        %v8567 = vrot.slane %v8139, 2
        %v8568 = vrot.slane %v7955, 2
        %v8569 = vsel %vm8553, %v8567, %v8568
        %v8570 = vrot.slane %v8170, 2
        %v8571 = vsel %vm8553, %v8565, %v8570
        %v8572 = vrot.slane %v8171, 2
        %v8573 = vsel %vm8553, %v8568, %v8572
        %v8574 = vrot.slane %v8140, 2
        %v8575 = vrot.slane %v7959, 2
        %v8576 = vsel %vm8553, %v8574, %v8575
        %v8577 = vrot.slane %v8141, 2
        %v8578 = vrot.slane %v7961, 2
        %v8579 = vsel %vm8553, %v8577, %v8578
        %v8580 = vrot.slane %v8172, 2
        %v8581 = vsel %vm8553, %v8575, %v8580
        %v8582 = vrot.slane %v8173, 2
        %v8583 = vsel %vm8553, %v8578, %v8582
        %v8584 = vrot.slane %v8142, 2
        %v8585 = vrot.slane %v7965, 2
        %v8586 = vsel %vm8553, %v8584, %v8585
        %v8587 = vrot.slane %v8143, 2
        %v8588 = vrot.slane %v7967, 2
        %v8589 = vsel %vm8553, %v8587, %v8588
        %v8590 = vrot.slane %v8174, 2
        %v8591 = vsel %vm8553, %v8585, %v8590
        %v8592 = vrot.slane %v8175, 2
        %v8593 = vsel %vm8553, %v8588, %v8592
        %v8594 = vrot.slane %v8144, 2
        %v8595 = vrot.slane %v7971, 2
        %v8596 = vsel %vm8553, %v8594, %v8595
        %v8597 = vrot.slane %v8145, 2
        %v8598 = vrot.slane %v7973, 2
        %v8599 = vsel %vm8553, %v8597, %v8598
        %v8600 = vrot.slane %v8176, 2
        %v8601 = vsel %vm8553, %v8595, %v8600
        %v8602 = vrot.slane %v8177, 2
        %v8603 = vsel %vm8553, %v8598, %v8602
        %v8604 = vrot.slane %v8146, 2
        %v8605 = vrot.slane %v7977, 2
        %v8606 = vsel %vm8553, %v8604, %v8605
        %v8607 = vrot.slane %v8147, 2
        %v8608 = vrot.slane %v7979, 2
        %v8609 = vsel %vm8553, %v8607, %v8608
        %v8610 = vrot.slane %v8178, 2
        %v8611 = vsel %vm8553, %v8605, %v8610
        %v8612 = vrot.slane %v8179, 2
        %v8613 = vsel %vm8553, %v8608, %v8612
        %v8614 = vrot.slane %v8148, 2
        %v8615 = vrot.slane %v7983, 2
        %v8616 = vsel %vm8553, %v8614, %v8615
        %v8617 = vrot.slane %v8149, 2
        %v8618 = vrot.slane %v7985, 2
        %v8619 = vsel %vm8553, %v8617, %v8618
        %v8620 = vrot.slane %v8180, 2
        %v8621 = vsel %vm8553, %v8615, %v8620
        %v8622 = vrot.slane %v8181, 2
        %v8623 = vsel %vm8553, %v8618, %v8622
        %v8624 = vrot.slane %v8150, 2
        %v8625 = vrot.slane %v7989, 2
        %v8626 = vsel %vm8553, %v8624, %v8625
        %v8627 = vrot.slane %v8151, 2
        %v8628 = vrot.slane %v7991, 2
        %v8629 = vsel %vm8553, %v8627, %v8628
        %v8630 = vrot.slane %v8182, 2
        %v8631 = vsel %vm8553, %v8625, %v8630
        %v8632 = vrot.slane %v8183, 2
        %v8633 = vsel %vm8553, %v8628, %v8632
        %v8634 = vrot.slane %v8152, 2
        %v8635 = vrot.slane %v7995, 2
        %v8636 = vsel %vm8553, %v8634, %v8635
        %v8637 = vrot.slane %v8153, 2
        %v8638 = vrot.slane %v7997, 2
        %v8639 = vsel %vm8553, %v8637, %v8638
        %v8640 = vrot.slane %v8184, 2
        %v8641 = vsel %vm8553, %v8635, %v8640
        %v8642 = vrot.slane %v8185, 2
        %v8643 = vsel %vm8553, %v8638, %v8642
        %v8644 = vrot.slane %v8154, 2
        %v8645 = vrot.slane %v8001, 2
        %v8646 = vsel %vm8553, %v8644, %v8645
        %v8647 = vrot.slane %v8155, 2
        %v8648 = vrot.slane %v8003, 2
        %v8649 = vsel %vm8553, %v8647, %v8648
        %v8650 = vrot.slane %v8186, 2
        %v8651 = vsel %vm8553, %v8645, %v8650
        %v8652 = vrot.slane %v8187, 2
        %v8653 = vsel %vm8553, %v8648, %v8652
        %v8654 = vrot.slane %v8156, 2
        %v8655 = vrot.slane %v8007, 2
        %v8656 = vsel %vm8553, %v8654, %v8655
        %v8657 = vrot.slane %v8157, 2
        %v8658 = vrot.slane %v8009, 2
        %v8659 = vsel %vm8553, %v8657, %v8658
        %v8660 = vrot.slane %v8188, 2
        %v8661 = vsel %vm8553, %v8655, %v8660
        %v8662 = vrot.slane %v8189, 2
        %v8663 = vsel %vm8553, %v8658, %v8662
        %v8664 = vrot.slane %v8158, 2
        %v8665 = vrot.slane %v8013, 2
        %v8666 = vsel %vm8553, %v8664, %v8665
        %v8667 = vrot.slane %v8159, 2
        %v8668 = vrot.slane %v8015, 2
        %v8669 = vsel %vm8553, %v8667, %v8668
        %v8670 = vrot.slane %v8190, 2
        %v8671 = vsel %vm8553, %v8665, %v8670
        %v8672 = vrot.slane %v8191, 2
        %v8673 = vsel %vm8553, %v8668, %v8672
        %v8674 = vrot.slane %v8160, 2
        %v8675 = vrot.slane %v8019, 2
        %v8676 = vsel %vm8553, %v8674, %v8675
        %v8677 = vrot.slane %v8161, 2
        %v8678 = vrot.slane %v8021, 2
        %v8679 = vsel %vm8553, %v8677, %v8678
        %v8680 = vrot.slane %v8192, 2
        %v8681 = vsel %vm8553, %v8675, %v8680
        %v8682 = vrot.slane %v8193, 2
        %v8683 = vsel %vm8553, %v8678, %v8682
        %v8684 = vrot.slane %v8162, 2
        %v8685 = vrot.slane %v8025, 2
        %v8686 = vsel %vm8553, %v8684, %v8685
        %v8687 = vrot.slane %v8163, 2
        %v8688 = vrot.slane %v8027, 2
        %v8689 = vsel %vm8553, %v8687, %v8688
        %v8690 = vrot.slane %v8194, 2
        %v8691 = vsel %vm8553, %v8685, %v8690
        %v8692 = vrot.slane %v8195, 2
        %v8693 = vsel %vm8553, %v8688, %v8692
        %v8694 = vrot.slane %v8164, 2
        %v8695 = vrot.slane %v8031, 2
        %v8696 = vsel %vm8553, %v8694, %v8695
        %v8697 = vrot.slane %v8165, 2
        %v8698 = vrot.slane %v8033, 2
        %v8699 = vsel %vm8553, %v8697, %v8698
        %v8700 = vrot.slane %v8196, 2
        %v8701 = vsel %vm8553, %v8695, %v8700
        %v8702 = vrot.slane %v8197, 2
        %v8703 = vsel %vm8553, %v8698, %v8702
        %v8704 = vrot.slane %v8166, 2
        %v8705 = vrot.slane %v8037, 2
        %v8706 = vsel %vm8553, %v8704, %v8705
        %v8707 = vrot.slane %v8167, 2
        %v8708 = vrot.slane %v8039, 2
        %v8709 = vsel %vm8553, %v8707, %v8708
        %v8710 = vrot.slane %v8198, 2
        %v8711 = vsel %vm8553, %v8705, %v8710
        %v8712 = vrot.slane %v8199, 2
        %v8713 = vsel %vm8553, %v8708, %v8712
        %v8778 = vadd.f32 %v8489, %v8556
        %v8779 = vadd.f32 %v8490, %v8559
        %v8780 = vadd.f32 %v8491, %v8561
        %v8781 = vadd.f32 %v8492, %v8563
        %v8782 = vadd.f32 %v8493, %v8566
        %v8783 = vadd.f32 %v8494, %v8569
        %v8784 = vadd.f32 %v8495, %v8571
        %v8785 = vadd.f32 %v8496, %v8573
        %v8786 = vadd.f32 %v8497, %v8576
        %v8787 = vadd.f32 %v8498, %v8579
        %v8788 = vadd.f32 %v8499, %v8581
        %v8789 = vadd.f32 %v8500, %v8583
        %v8790 = vadd.f32 %v8501, %v8586
        %v8791 = vadd.f32 %v8502, %v8589
        %v8792 = vadd.f32 %v8503, %v8591
        %v8793 = vadd.f32 %v8504, %v8593
        %v8794 = vadd.f32 %v8505, %v8596
        %v8795 = vadd.f32 %v8506, %v8599
        %v8796 = vadd.f32 %v8507, %v8601
        %v8797 = vadd.f32 %v8508, %v8603
        %v8798 = vadd.f32 %v8509, %v8606
        %v8799 = vadd.f32 %v8510, %v8609
        %v8800 = vadd.f32 %v8511, %v8611
        %v8801 = vadd.f32 %v8512, %v8613
        %v8802 = vadd.f32 %v8513, %v8616
        %v8803 = vadd.f32 %v8514, %v8619
        %v8804 = vadd.f32 %v8515, %v8621
        %v8805 = vadd.f32 %v8516, %v8623
        %v8806 = vadd.f32 %v8517, %v8626
        %v8807 = vadd.f32 %v8518, %v8629
        %v8808 = vadd.f32 %v8519, %v8631
        %v8809 = vadd.f32 %v8520, %v8633
        %v8810 = vadd.f32 %v8521, %v8636
        %v8811 = vadd.f32 %v8522, %v8639
        %v8812 = vadd.f32 %v8523, %v8641
        %v8813 = vadd.f32 %v8524, %v8643
        %v8814 = vadd.f32 %v8525, %v8646
        %v8815 = vadd.f32 %v8526, %v8649
        %v8816 = vadd.f32 %v8527, %v8651
        %v8817 = vadd.f32 %v8528, %v8653
        %v8818 = vadd.f32 %v8529, %v8656
        %v8819 = vadd.f32 %v8530, %v8659
        %v8820 = vadd.f32 %v8531, %v8661
        %v8821 = vadd.f32 %v8532, %v8663
        %v8822 = vadd.f32 %v8533, %v8666
        %v8823 = vadd.f32 %v8534, %v8669
        %v8824 = vadd.f32 %v8535, %v8671
        %v8825 = vadd.f32 %v8536, %v8673
        %v8826 = vadd.f32 %v8537, %v8676
        %v8827 = vadd.f32 %v8538, %v8679
        %v8828 = vadd.f32 %v8539, %v8681
        %v8829 = vadd.f32 %v8540, %v8683
        %v8830 = vadd.f32 %v8541, %v8686
        %v8831 = vadd.f32 %v8542, %v8689
        %v8832 = vadd.f32 %v8543, %v8691
        %v8833 = vadd.f32 %v8544, %v8693
        %v8834 = vadd.f32 %v8545, %v8696
        %v8835 = vadd.f32 %v8546, %v8699
        %v8836 = vadd.f32 %v8547, %v8701
        %v8837 = vadd.f32 %v8548, %v8703
        %v8838 = vadd.f32 %v8549, %v8706
        %v8839 = vadd.f32 %v8550, %v8709
        %v8840 = vadd.f32 %v8551, %v8711
        %v8841 = vadd.f32 %v8552, %v8713
        %v8842 = vadd.f32 %v8778, 0.0
        %v8843 = vadd.f32 %v8779, 0.0
        %v8844 = vadd.f32 %v8780, 0.0
        %v8845 = vadd.f32 %v8781, 0.0
        %v8846 = vadd.f32 %v8778, %v8782
        %v8847 = vadd.f32 %v8779, %v8783
        %v8848 = vadd.f32 %v8780, %v8784
        %v8849 = vadd.f32 %v8781, %v8785
        %v8850 = vadd.f32 %v8782, %v8786
        %v8851 = vadd.f32 %v8783, %v8787
        %v8852 = vadd.f32 %v8784, %v8788
        %v8853 = vadd.f32 %v8785, %v8789
        %v8854 = vadd.f32 %v8786, %v8790
        %v8855 = vadd.f32 %v8787, %v8791
        %v8856 = vadd.f32 %v8788, %v8792
        %v8857 = vadd.f32 %v8789, %v8793
        %v8858 = vadd.f32 %v8790, %v8794
        %v8859 = vadd.f32 %v8791, %v8795
        %v8860 = vadd.f32 %v8792, %v8796
        %v8861 = vadd.f32 %v8793, %v8797
        %v8862 = vadd.f32 %v8794, %v8798
        %v8863 = vadd.f32 %v8795, %v8799
        %v8864 = vadd.f32 %v8796, %v8800
        %v8865 = vadd.f32 %v8797, %v8801
        %v8866 = vadd.f32 %v8798, %v8802
        %v8867 = vadd.f32 %v8799, %v8803
        %v8868 = vadd.f32 %v8800, %v8804
        %v8869 = vadd.f32 %v8801, %v8805
        %v8870 = vadd.f32 %v8802, %v8806
        %v8871 = vadd.f32 %v8803, %v8807
        %v8872 = vadd.f32 %v8804, %v8808
        %v8873 = vadd.f32 %v8805, %v8809
        %v8874 = vadd.f32 %v8806, %v8810
        %v8875 = vadd.f32 %v8807, %v8811
        %v8876 = vadd.f32 %v8808, %v8812
        %v8877 = vadd.f32 %v8809, %v8813
        %v8878 = vadd.f32 %v8810, %v8814
        %v8879 = vadd.f32 %v8811, %v8815
        %v8880 = vadd.f32 %v8812, %v8816
        %v8881 = vadd.f32 %v8813, %v8817
        %v8882 = vadd.f32 %v8814, %v8818
        %v8883 = vadd.f32 %v8815, %v8819
        %v8884 = vadd.f32 %v8816, %v8820
        %v8885 = vadd.f32 %v8817, %v8821
        %v8886 = vadd.f32 %v8818, %v8822
        %v8887 = vadd.f32 %v8819, %v8823
        %v8888 = vadd.f32 %v8820, %v8824
        %v8889 = vadd.f32 %v8821, %v8825
        %v8890 = vadd.f32 %v8822, %v8826
        %v8891 = vadd.f32 %v8823, %v8827
        %v8892 = vadd.f32 %v8824, %v8828
        %v8893 = vadd.f32 %v8825, %v8829
        %v8894 = vadd.f32 %v8826, %v8830
        %v8895 = vadd.f32 %v8827, %v8831
        %v8896 = vadd.f32 %v8828, %v8832
        %v8897 = vadd.f32 %v8829, %v8833
        %v8898 = vadd.f32 %v8830, %v8834
        %v8899 = vadd.f32 %v8831, %v8835
        %v8900 = vadd.f32 %v8832, %v8836
        %v8901 = vadd.f32 %v8833, %v8837
        %v8902 = vadd.f32 %v8834, %v8838
        %v8903 = vadd.f32 %v8835, %v8839
        %v8904 = vadd.f32 %v8836, %v8840
        %v8905 = vadd.f32 %v8837, %v8841
        %v8906 = vadd.f32 %v8842, %v8782
        %v8907 = vadd.f32 %v8843, %v8783
        %v8908 = vadd.f32 %v8844, %v8784
        %v8909 = vadd.f32 %v8845, %v8785
        %v8910 = vadd.f32 %v8846, %v8786
        %v8911 = vadd.f32 %v8847, %v8787
        %v8912 = vadd.f32 %v8848, %v8788
        %v8913 = vadd.f32 %v8849, %v8789
        %v8914 = vadd.f32 %v8850, %v8790
        %v8915 = vadd.f32 %v8851, %v8791
        %v8916 = vadd.f32 %v8852, %v8792
        %v8917 = vadd.f32 %v8853, %v8793
        %v8918 = vadd.f32 %v8854, %v8794
        %v8919 = vadd.f32 %v8855, %v8795
        %v8920 = vadd.f32 %v8856, %v8796
        %v8921 = vadd.f32 %v8857, %v8797
        %v8922 = vadd.f32 %v8858, %v8798
        %v8923 = vadd.f32 %v8859, %v8799
        %v8924 = vadd.f32 %v8860, %v8800
        %v8925 = vadd.f32 %v8861, %v8801
        %v8926 = vadd.f32 %v8862, %v8802
        %v8927 = vadd.f32 %v8863, %v8803
        %v8928 = vadd.f32 %v8864, %v8804
        %v8929 = vadd.f32 %v8865, %v8805
        %v8930 = vadd.f32 %v8866, %v8806
        %v8931 = vadd.f32 %v8867, %v8807
        %v8932 = vadd.f32 %v8868, %v8808
        %v8933 = vadd.f32 %v8869, %v8809
        %v8934 = vadd.f32 %v8870, %v8810
        %v8935 = vadd.f32 %v8871, %v8811
        %v8936 = vadd.f32 %v8872, %v8812
        %v8937 = vadd.f32 %v8873, %v8813
        %v8938 = vadd.f32 %v8874, %v8814
        %v8939 = vadd.f32 %v8875, %v8815
        %v8940 = vadd.f32 %v8876, %v8816
        %v8941 = vadd.f32 %v8877, %v8817
        %v8942 = vadd.f32 %v8878, %v8818
        %v8943 = vadd.f32 %v8879, %v8819
        %v8944 = vadd.f32 %v8880, %v8820
        %v8945 = vadd.f32 %v8881, %v8821
        %v8946 = vadd.f32 %v8882, %v8822
        %v8947 = vadd.f32 %v8883, %v8823
        %v8948 = vadd.f32 %v8884, %v8824
        %v8949 = vadd.f32 %v8885, %v8825
        %v8950 = vadd.f32 %v8886, %v8826
        %v8951 = vadd.f32 %v8887, %v8827
        %v8952 = vadd.f32 %v8888, %v8828
        %v8953 = vadd.f32 %v8889, %v8829
        %v8954 = vadd.f32 %v8890, %v8830
        %v8955 = vadd.f32 %v8891, %v8831
        %v8956 = vadd.f32 %v8892, %v8832
        %v8957 = vadd.f32 %v8893, %v8833
        %v8958 = vadd.f32 %v8894, %v8834
        %v8959 = vadd.f32 %v8895, %v8835
        %v8960 = vadd.f32 %v8896, %v8836
        %v8961 = vadd.f32 %v8897, %v8837
        %v8962 = vadd.f32 %v8898, %v8838
        %v8963 = vadd.f32 %v8899, %v8839
        %v8964 = vadd.f32 %v8900, %v8840
        %v8965 = vadd.f32 %v8901, %v8841
        %v8966 = vadd.f32 %v8902, 0.0
        %v8967 = vadd.f32 %v8903, 0.0
        %v8968 = vadd.f32 %v8904, 0.0
        %v8969 = vadd.f32 %v8905, 0.0
        %v8970 = vsel %vm1610, 0.0, 1.0
        %v8971 = vsel %vm1610, 1.0, 0.0
        %v8975 = vrot.slane %v8970, 1
        %v8976 = vrot.slane 1.0, 1
        %v8977 = vsel %vm8264, %v8975, %v8976
        %v8978 = vrot.slane %v8971, 1
        %v8979 = vsel %vm8264, %v8976, %v8978
        %v8982 = vadd.f32 %v8970, %v8977
        %v8983 = vadd.f32 %v8979, 1.0
        %v8984 = vrot.slane %v8970, 2
        %v8985 = vrot.slane 1.0, 2
        %v8986 = vsel %vm8553, %v8984, %v8985
        %v8987 = vrot.slane %v8971, 2
        %v8988 = vsel %vm8553, %v8985, %v8987
        %v8991 = vadd.f32 %v8982, %v8986
        %v8992 = vadd.f32 %v8983, %v8988
        %v8993 = vadd.f32 %v8991, 0.0
        %v8994 = vadd.f32 %v8992, 0.0
        %v8995 = vadd.f32 %v8991, %v8991
        %v8996 = vadd.f32 %v8992, %v8992
        %v8997 = vadd.f32 %v8993, %v8991
        %v8998 = vadd.f32 %v8994, %v8992
        %v8999 = vadd.f32 %v8995, %v8991
        %v9000 = vadd.f32 %v8996, %v8992
        %v9001 = vadd.f32 %v8995, 0.0
        %v9002 = vadd.f32 %v8996, 0.0
        %9004 = vset.pattern.permute.xlu0 0
        %9005 = vperm.xlu0 %9004, %v8997
        %v9006 = vpop.permute.xlu0 %9005
        %9009 = vset.pattern.permute.xlu0 0
        %9010 = vperm.xlu0 %9009, %v8998
        %v9011 = vpop.permute.xlu0 %9010
        %9014 = vset.pattern.permute.xlu0 0
        %9015 = vperm.xlu0 %9014, %v8999
        %v9016 = vpop.permute.xlu0 %9015
        %9019 = vset.pattern.permute.xlu0 0
        %9020 = vperm.xlu0 %9019, %v9000
        %v9021 = vpop.permute.xlu0 %9020
        %9024 = vset.pattern.permute.xlu0 0
        %9025 = vperm.xlu0 %9024, %v9001
        %v9026 = vpop.permute.xlu0 %9025
        %9029 = vset.pattern.permute.xlu0 0
        %9030 = vperm.xlu0 %9029, %v9002
        %v9031 = vpop.permute.xlu0 %9030
        %v9033 = vrcp.pop %v9006
        %v9034 = vmul.f32 %v9006, %v9033
        %v9035 = vsub.f32 1.0, %v9034
        %v9036 = vmul.f32 %v9033, %v9035
        %v9037 = vadd.f32 %v9033, %v9036
        %vm9038 = vweird.f32 %v9006
        %vm9039 = vweird.f32 %v9033
        %vm9040 = vmor %vm9038, %vm9039
        %v9041 = vsel %vm9040, %v9033, %v9037
        %v9042 = vand.u32 2147483647, %v9006
        %vm9043 = vcmp.eq.f32.partialorder %v9042, 8.507059e+37
        %v9044 = vand.u32 %v9006, 2147483648
        %v9045 = vor.u32 1.1754944e-38, %v9044
        %v9046 = vsel %vm9043, %v9045, %v9041
        %v9047 = vmul.f32 %v8906, %v9046
        %v9048 = vmul.f32 %v8907, %v9046
        %v9049 = vrcp.pop %v9011
        %v9050 = vmul.f32 %v9011, %v9049
        %v9051 = vsub.f32 1.0, %v9050
        %v9052 = vmul.f32 %v9049, %v9051
        %v9053 = vadd.f32 %v9049, %v9052
        %vm9054 = vweird.f32 %v9011
        %vm9055 = vweird.f32 %v9049
        %vm9056 = vmor %vm9054, %vm9055
        %v9057 = vsel %vm9056, %v9049, %v9053
        %v9058 = vand.u32 2147483647, %v9011
        %vm9059 = vcmp.eq.f32.partialorder %v9058, 8.507059e+37
        %v9060 = vand.u32 %v9011, 2147483648
        %v9061 = vor.u32 1.1754944e-38, %v9060
        %v9062 = vsel %vm9059, %v9061, %v9057
        %v9063 = vmul.f32 %v8908, %v9062
        %v9064 = vmul.f32 %v8909, %v9062
        %v9065 = vrcp.pop %v9016
        %v9066 = vmul.f32 %v9016, %v9065
        %v9067 = vsub.f32 1.0, %v9066
        %v9068 = vmul.f32 %v9065, %v9067
        %v9069 = vadd.f32 %v9065, %v9068
        %vm9070 = vweird.f32 %v9016
        %vm9071 = vweird.f32 %v9065
        %vm9072 = vmor %vm9070, %vm9071
        %v9073 = vsel %vm9072, %v9065, %v9069
        %v9074 = vand.u32 2147483647, %v9016
        %vm9075 = vcmp.eq.f32.partialorder %v9074, 8.507059e+37
        %v9076 = vand.u32 %v9016, 2147483648
        %v9077 = vor.u32 1.1754944e-38, %v9076
        %v9078 = vsel %vm9075, %v9077, %v9073
        %v9079 = vmul.f32 %v8910, %v9078
        %v9080 = vmul.f32 %v8911, %v9078
        %v9081 = vrcp.pop %v9021
        %v9082 = vmul.f32 %v9021, %v9081
        %v9083 = vsub.f32 1.0, %v9082
        %v9084 = vmul.f32 %v9081, %v9083
        %v9085 = vadd.f32 %v9081, %v9084
        %vm9086 = vweird.f32 %v9021
        %vm9087 = vweird.f32 %v9081
        %vm9088 = vmor %vm9086, %vm9087
        %v9089 = vsel %vm9088, %v9081, %v9085
        %v9090 = vand.u32 2147483647, %v9021
        %vm9091 = vcmp.eq.f32.partialorder %v9090, 8.507059e+37
        %v9092 = vand.u32 %v9021, 2147483648
        %v9093 = vor.u32 1.1754944e-38, %v9092
        %v9094 = vsel %vm9091, %v9093, %v9089
        %v9095 = vmul.f32 %v8912, %v9094
        %v9096 = vmul.f32 %v8913, %v9094
        %v9097 = vmul.f32 %v8914, %v9078
        %v9098 = vmul.f32 %v8915, %v9078
        %v9099 = vmul.f32 %v8916, %v9094
        %v9100 = vmul.f32 %v8917, %v9094
        %v9101 = vmul.f32 %v8918, %v9078
        %v9102 = vmul.f32 %v8919, %v9078
        %v9103 = vmul.f32 %v8920, %v9094
        %v9104 = vmul.f32 %v8921, %v9094
        %v9105 = vmul.f32 %v8922, %v9078
        %v9106 = vmul.f32 %v8923, %v9078
        %v9107 = vmul.f32 %v8924, %v9094
        %v9108 = vmul.f32 %v8925, %v9094
        %v9109 = vmul.f32 %v8926, %v9078
        %v9110 = vmul.f32 %v8927, %v9078
        %v9111 = vmul.f32 %v8928, %v9094
        %v9112 = vmul.f32 %v8929, %v9094
        %v9113 = vmul.f32 %v8930, %v9078
        %v9114 = vmul.f32 %v8931, %v9078
        %v9115 = vmul.f32 %v8932, %v9094
        %v9116 = vmul.f32 %v8933, %v9094
        %v9117 = vmul.f32 %v8934, %v9078
        %v9118 = vmul.f32 %v8935, %v9078
        %v9119 = vmul.f32 %v8936, %v9094
        %v9120 = vmul.f32 %v8937, %v9094
        %v9121 = vmul.f32 %v8938, %v9078
        %v9122 = vmul.f32 %v8939, %v9078
        %v9123 = vmul.f32 %v8940, %v9094
        %v9124 = vmul.f32 %v8941, %v9094
        %v9125 = vmul.f32 %v8942, %v9078
        %v9126 = vmul.f32 %v8943, %v9078
        %v9127 = vmul.f32 %v8944, %v9094
        %v9128 = vmul.f32 %v8945, %v9094
        %v9129 = vmul.f32 %v8946, %v9078
        %v9130 = vmul.f32 %v8947, %v9078
        %v9131 = vmul.f32 %v8948, %v9094
        %v9132 = vmul.f32 %v8949, %v9094
        %v9133 = vmul.f32 %v8950, %v9078
        %v9134 = vmul.f32 %v8951, %v9078
        %v9135 = vmul.f32 %v8952, %v9094
        %v9136 = vmul.f32 %v8953, %v9094
        %v9137 = vmul.f32 %v8954, %v9078
        %v9138 = vmul.f32 %v8955, %v9078
        %v9139 = vmul.f32 %v8956, %v9094
        %v9140 = vmul.f32 %v8957, %v9094
        %v9141 = vmul.f32 %v8958, %v9078
        %v9142 = vmul.f32 %v8959, %v9078
        %v9143 = vmul.f32 %v8960, %v9094
        %v9144 = vmul.f32 %v8961, %v9094
        %v9145 = vmul.f32 %v8962, %v9078
        %v9146 = vmul.f32 %v8963, %v9078
        %v9147 = vmul.f32 %v8964, %v9094
        %v9148 = vmul.f32 %v8965, %v9094
        %v9149 = vrcp.pop %v9026
        %v9150 = vmul.f32 %v9026, %v9149
        %v9151 = vsub.f32 1.0, %v9150
        %v9152 = vmul.f32 %v9149, %v9151
        %v9153 = vadd.f32 %v9149, %v9152
        %vm9154 = vweird.f32 %v9026
        %vm9155 = vweird.f32 %v9149
        %vm9156 = vmor %vm9154, %vm9155
        %v9157 = vsel %vm9156, %v9149, %v9153
        %v9158 = vand.u32 2147483647, %v9026
        %vm9159 = vcmp.eq.f32.partialorder %v9158, 8.507059e+37
        %v9160 = vand.u32 %v9026, 2147483648
        %v9161 = vor.u32 1.1754944e-38, %v9160
        %v9162 = vsel %vm9159, %v9161, %v9157
        %v9163 = vmul.f32 %v8966, %v9162
        %v9164 = vmul.f32 %v8967, %v9162
        %v9165 = vrcp.pop %v9031
        %v9166 = vmul.f32 %v9031, %v9165
        %v9167 = vsub.f32 1.0, %v9166
        %v9168 = vmul.f32 %v9165, %v9167
        %v9169 = vadd.f32 %v9165, %v9168
        %vm9170 = vweird.f32 %v9031
        %vm9171 = vweird.f32 %v9165
        %vm9172 = vmor %vm9170, %vm9171
        %v9173 = vsel %vm9172, %v9165, %v9169
        %v9174 = vand.u32 2147483647, %v9031
        %vm9175 = vcmp.eq.f32.partialorder %v9174, 8.507059e+37
        %v9176 = vand.u32 %v9031, 2147483648
        %v9177 = vor.u32 1.1754944e-38, %v9176
        %v9178 = vsel %vm9175, %v9177, %v9173
        %v9179 = vmul.f32 %v8968, %v9178
        %v9180 = vmul.f32 %v8969, %v9178
        %v9181 = vpack.c.bf16 %v9063, %v9047
        %v9182 = vpack.c.bf16 %v9064, %v9048
        %v9183 = vpack.c.bf16 %v9095, %v9079
        %v9184 = vpack.c.bf16 %v9096, %v9080
        %v9185 = vpack.c.bf16 %v9099, %v9097
        %v9186 = vpack.c.bf16 %v9100, %v9098
        %v9187 = vpack.c.bf16 %v9103, %v9101
        %v9188 = vpack.c.bf16 %v9104, %v9102
        %v9189 = vpack.c.bf16 %v9107, %v9105
        %v9190 = vpack.c.bf16 %v9108, %v9106
        %v9191 = vpack.c.bf16 %v9111, %v9109
        %v9192 = vpack.c.bf16 %v9112, %v9110
        %v9193 = vpack.c.bf16 %v9115, %v9113
        %v9194 = vpack.c.bf16 %v9116, %v9114
        %v9195 = vpack.c.bf16 %v9119, %v9117
        %v9196 = vpack.c.bf16 %v9120, %v9118
        %v9197 = vpack.c.bf16 %v9123, %v9121
        %v9198 = vpack.c.bf16 %v9124, %v9122
        %v9199 = vpack.c.bf16 %v9127, %v9125
        %v9200 = vpack.c.bf16 %v9128, %v9126
        %v9201 = vpack.c.bf16 %v9131, %v9129
        %v9202 = vpack.c.bf16 %v9132, %v9130
        %v9203 = vpack.c.bf16 %v9135, %v9133
        %v9204 = vpack.c.bf16 %v9136, %v9134
        %v9205 = vpack.c.bf16 %v9139, %v9137
        %v9206 = vpack.c.bf16 %v9140, %v9138
        %v9207 = vpack.c.bf16 %v9143, %v9141
        %v9208 = vpack.c.bf16 %v9144, %v9142
        %v9209 = vpack.c.bf16 %v9147, %v9145
        %v9210 = vpack.c.bf16 %v9148, %v9146
        %v9211 = vpack.c.bf16 %v9179, %v9163
        %v9212 = vpack.c.bf16 %v9180, %v9164
        %v9213 = vld [vmem:[%s13] sm:$0xf]
        %v9214 = vld [vmem:[%s13 + $0x4] sm:$0xf]
        %v9215 = vld [vmem:[%s13 + $0x8] sm:$0xf]
        %v9216 = vld [vmem:[%s13 + $0xc] sm:$0xf]
        %v9217 = vld [vmem:[%s13 + $0x10] sm:$0xf]
        %v9218 = vld [vmem:[%s13 + $0x14] sm:$0xf]
        %v9219 = vld [vmem:[%s13 + $0x18] sm:$0xf]
        %v9220 = vld [vmem:[%s13 + $0x1c] sm:$0xf]
        %v9221 = vld [vmem:[%s13 + $0x20] sm:$0xf]
        %v9222 = vld [vmem:[%s13 + $0x24] sm:$0xf]
        %v9223 = vld [vmem:[%s13 + $0x28] sm:$0xf]
        %v9224 = vld [vmem:[%s13 + $0x2c] sm:$0xf]
        %v9225 = vld [vmem:[%s13 + $0x30] sm:$0xf]
        %v9226 = vld [vmem:[%s13 + $0x34] sm:$0xf]
        %v9227 = vld [vmem:[%s13 + $0x38] sm:$0xf]
        %v9228 = vld [vmem:[%s13 + $0x3c] sm:$0xf]
        %v9229 = vld [vmem:[%s13 + $0x40] sm:$0xf]
        %v9230 = vld [vmem:[%s13 + $0x44] sm:$0xf]
        %v9231 = vld [vmem:[%s13 + $0x48] sm:$0xf]
        %v9232 = vld [vmem:[%s13 + $0x4c] sm:$0xf]
        %v9233 = vld [vmem:[%s13 + $0x50] sm:$0xf]
        %v9234 = vld [vmem:[%s13 + $0x54] sm:$0xf]
        %v9235 = vld [vmem:[%s13 + $0x58] sm:$0xf]
        %v9236 = vld [vmem:[%s13 + $0x5c] sm:$0xf]
        %v9261 = vunpack.c.l.b16 %v9213
        %v9262 = vunpack.c.l.b16 %v9214
        %v9263 = vunpack.c.l.b16 %v9215
        %v9264 = vunpack.c.l.b16 %v9216
        %v9265 = vunpack.c.l.b16 %v9217
        %v9266 = vunpack.c.l.b16 %v9218
        %v9267 = vunpack.c.l.b16 %v9219
        %v9268 = vunpack.c.l.b16 %v9220
        %v9269 = vunpack.c.l.b16 %v9221
        %v9270 = vunpack.c.l.b16 %v9222
        %v9271 = vunpack.c.l.b16 %v9223
        %v9272 = vunpack.c.l.b16 %v9224
        %v9273 = vunpack.c.l.b16 %v9225
        %v9274 = vunpack.c.l.b16 %v9226
        %v9275 = vunpack.c.l.b16 %v9227
        %v9276 = vunpack.c.l.b16 %v9228
        %v9277 = vunpack.c.l.b16 %v9229
        %v9278 = vunpack.c.l.b16 %v9230
        %v9279 = vunpack.c.l.b16 %v9231
        %v9280 = vunpack.c.l.b16 %v9232
        %v9281 = vunpack.c.l.b16 %v9233
        %v9282 = vunpack.c.l.b16 %v9234
        %v9283 = vunpack.c.l.b16 %v9235
        %v9284 = vunpack.c.l.b16 %v9236
        %v9285 = vpack.c.b16 %v9262, %v9261
        %v9286 = vpack.c.b16 %v9264, %v9263
        %v9287 = vpack.c.b16 %v9266, %v9265
        %v9288 = vpack.c.b16 %v9268, %v9267
        %v9289 = vpack.c.b16 %v9270, %v9269
        %v9290 = vpack.c.b16 %v9272, %v9271
        %v9291 = vpack.c.b16 %v9274, %v9273
        %v9292 = vpack.c.b16 %v9276, %v9275
        %v9293 = vpack.c.b16 %v9278, %v9277
        %v9294 = vpack.c.b16 %v9280, %v9279
        %v9295 = vpack.c.b16 %v9282, %v9281
        %v9296 = vpack.c.b16 %v9284, %v9283
        %v9310 = vsel %vm841, %v9182, 0
        %v9313 = vsel %vm841, %v9184, 0
        %v9316 = vsel %vm841, %v9186, 0
        %v9319 = vsel %vm841, %v9188, 0
        %v9322 = vsel %vm841, %v9190, 0
        %v9325 = vsel %vm841, %v9192, 0
        %v9328 = vsel %vm841, %v9194, 0
        %v9331 = vsel %vm841, %v9196, 0
        %v9334 = vsel %vm841, %v9198, 0
        %v9337 = vsel %vm841, %v9200, 0
        %v9340 = vsel %vm841, %v9202, 0
        %v9343 = vsel %vm841, %v9204, 0
        %v9346 = vsel %vm841, %v9206, 0
        %v9349 = vsel %vm841, %v9208, 0
        %v9352 = vsel %vm841, %v9210, 0
        %v9355 = vsel %vm841, %v9212, 0
        %9357 = vmatpush.bf16.msra.mxu0 %v9292
        %9358 = vmatpush.bf16.msra.mxu0 %v9291
        %9359 = vmatpush.bf16.msra.mxu0 %v9290
        %9360 = vmatpush.bf16.msra.mxu0 %v9289
        %9361 = vmatpush.bf16.msra.mxu0 %v9288
        %9362 = vmatpush.bf16.msra.mxu0 %v9287
        %9363 = vmatpush.bf16.msra.mxu0 %v9286
        %9364 = vmatpush.bf16.msra.mxu0 %v9285
        %9365 = vmatmul.bf16.gmra.mxu0 %v9181
        %v9366 = vpop.f32.mrf.mxu0
        %v9367 = vadd.f32 0.0, %v9366
        %v9368 = vpop.f32.mrf.mxu0
        %v9369 = vadd.f32 0.0, %v9368
        %9370 = vmatmul.bf16.gmra.mxu0 %v9183
        %v9371 = vpop.f32.mrf.mxu0
        %v9372 = vadd.f32 0.0, %v9371
        %v9373 = vpop.f32.mrf.mxu0
        %v9374 = vadd.f32 0.0, %v9373
        %9375 = vmatmul.bf16.gmra.mxu0 %v9185
        %v9376 = vpop.f32.mrf.mxu0
        %v9377 = vadd.f32 0.0, %v9376
        %v9378 = vpop.f32.mrf.mxu0
        %v9379 = vadd.f32 0.0, %v9378
        %9380 = vmatmul.bf16.gmra.mxu0 %v9187
        %v9381 = vpop.f32.mrf.mxu0
        %v9382 = vadd.f32 0.0, %v9381
        %v9383 = vpop.f32.mrf.mxu0
        %v9384 = vadd.f32 0.0, %v9383
        %9385 = vmatmul.bf16.gmra.mxu0 %v9189
        %v9386 = vpop.f32.mrf.mxu0
        %v9387 = vadd.f32 0.0, %v9386
        %v9388 = vpop.f32.mrf.mxu0
        %v9389 = vadd.f32 0.0, %v9388
        %9390 = vmatmul.bf16.gmra.mxu0 %v9191
        %v9391 = vpop.f32.mrf.mxu0
        %v9392 = vadd.f32 0.0, %v9391
        %v9393 = vpop.f32.mrf.mxu0
        %v9394 = vadd.f32 0.0, %v9393
        %9395 = vmatmul.bf16.gmra.mxu0 %v9193
        %v9396 = vpop.f32.mrf.mxu0
        %v9397 = vadd.f32 0.0, %v9396
        %v9398 = vpop.f32.mrf.mxu0
        %v9399 = vadd.f32 0.0, %v9398
        %9400 = vmatmul.bf16.gmra.mxu0 %v9195
        %v9401 = vpop.f32.mrf.mxu0
        %v9402 = vadd.f32 0.0, %v9401
        %v9403 = vpop.f32.mrf.mxu0
        %v9404 = vadd.f32 0.0, %v9403
        %9405 = vmatmul.bf16.gmra.mxu0 %v9197
        %v9406 = vpop.f32.mrf.mxu0
        %v9407 = vadd.f32 0.0, %v9406
        %v9408 = vpop.f32.mrf.mxu0
        %v9409 = vadd.f32 0.0, %v9408
        %9410 = vmatmul.bf16.gmra.mxu0 %v9199
        %v9411 = vpop.f32.mrf.mxu0
        %v9412 = vadd.f32 0.0, %v9411
        %v9413 = vpop.f32.mrf.mxu0
        %v9414 = vadd.f32 0.0, %v9413
        %9415 = vmatmul.bf16.gmra.mxu0 %v9201
        %v9416 = vpop.f32.mrf.mxu0
        %v9417 = vadd.f32 0.0, %v9416
        %v9418 = vpop.f32.mrf.mxu0
        %v9419 = vadd.f32 0.0, %v9418
        %9420 = vmatmul.bf16.gmra.mxu0 %v9203
        %v9421 = vpop.f32.mrf.mxu0
        %v9422 = vadd.f32 0.0, %v9421
        %v9423 = vpop.f32.mrf.mxu0
        %v9424 = vadd.f32 0.0, %v9423
        %9425 = vmatmul.bf16.gmra.mxu0 %v9205
        %v9426 = vpop.f32.mrf.mxu0
        %v9427 = vadd.f32 0.0, %v9426
        %v9428 = vpop.f32.mrf.mxu0
        %v9429 = vadd.f32 0.0, %v9428
        %9430 = vmatmul.bf16.gmra.mxu0 %v9207
        %v9431 = vpop.f32.mrf.mxu0
        %v9432 = vadd.f32 0.0, %v9431
        %v9433 = vpop.f32.mrf.mxu0
        %v9434 = vadd.f32 0.0, %v9433
        %9435 = vmatmul.bf16.gmra.mxu0 %v9209
        %v9436 = vpop.f32.mrf.mxu0
        %v9437 = vadd.f32 0.0, %v9436
        %v9438 = vpop.f32.mrf.mxu0
        %v9439 = vadd.f32 0.0, %v9438
        %9440 = vmatmul.bf16.gmra.mxu0 %v9211
        %v9441 = vpop.f32.mrf.mxu0
        %v9442 = vadd.f32 0.0, %v9441
        %v9443 = vpop.f32.mrf.mxu0
        %v9444 = vadd.f32 0.0, %v9443
        %9445 = vdwg.mxu0
        %9446 = vmatpush.bf16.msra.mxu0 0
        %9447 = vmatpush.bf16.msra.mxu0 0
        %9448 = vmatpush.bf16.msra.mxu0 0
        %9449 = vmatpush.bf16.msra.mxu0 0
        %9450 = vmatpush.bf16.msra.mxu0 %v9296
        %9451 = vmatpush.bf16.msra.mxu0 %v9295
        %9452 = vmatpush.bf16.msra.mxu0 %v9294
        %9453 = vmatpush.bf16.msra.mxu0 %v9293
        %9454 = vmatmul.bf16.gmra.mxu0 %v9310
        %v9455 = vpop.f32.mrf.mxu0
        %v9456 = vadd.f32 %v9367, %v9455
        %v9457 = vpop.f32.mrf.mxu0
        %v9458 = vadd.f32 %v9369, %v9457
        %9459 = vmatmul.bf16.gmra.mxu0 %v9313
        %v9460 = vpop.f32.mrf.mxu0
        %v9461 = vadd.f32 %v9372, %v9460
        %v9462 = vpop.f32.mrf.mxu0
        %v9463 = vadd.f32 %v9374, %v9462
        %9464 = vmatmul.bf16.gmra.mxu0 %v9316
        %v9465 = vpop.f32.mrf.mxu0
        %v9466 = vadd.f32 %v9377, %v9465
        %v9467 = vpop.f32.mrf.mxu0
        %v9468 = vadd.f32 %v9379, %v9467
        %9469 = vmatmul.bf16.gmra.mxu0 %v9319
        %v9470 = vpop.f32.mrf.mxu0
        %v9471 = vadd.f32 %v9382, %v9470
        %v9472 = vpop.f32.mrf.mxu0
        %v9473 = vadd.f32 %v9384, %v9472
        %9474 = vmatmul.bf16.gmra.mxu0 %v9322
        %v9475 = vpop.f32.mrf.mxu0
        %v9476 = vadd.f32 %v9387, %v9475
        %v9477 = vpop.f32.mrf.mxu0
        %v9478 = vadd.f32 %v9389, %v9477
        %9479 = vmatmul.bf16.gmra.mxu0 %v9325
        %v9480 = vpop.f32.mrf.mxu0
        %v9481 = vadd.f32 %v9392, %v9480
        %v9482 = vpop.f32.mrf.mxu0
        %v9483 = vadd.f32 %v9394, %v9482
        %9484 = vmatmul.bf16.gmra.mxu0 %v9328
        %v9485 = vpop.f32.mrf.mxu0
        %v9486 = vadd.f32 %v9397, %v9485
        %v9487 = vpop.f32.mrf.mxu0
        %v9488 = vadd.f32 %v9399, %v9487
        %9489 = vmatmul.bf16.gmra.mxu0 %v9331
        %v9490 = vpop.f32.mrf.mxu0
        %v9491 = vadd.f32 %v9402, %v9490
        %v9492 = vpop.f32.mrf.mxu0
        %v9493 = vadd.f32 %v9404, %v9492
        %9494 = vmatmul.bf16.gmra.mxu0 %v9334
        %v9495 = vpop.f32.mrf.mxu0
        %v9496 = vadd.f32 %v9407, %v9495
        %v9497 = vpop.f32.mrf.mxu0
        %v9498 = vadd.f32 %v9409, %v9497
        %9499 = vmatmul.bf16.gmra.mxu0 %v9337
        %v9500 = vpop.f32.mrf.mxu0
        %v9501 = vadd.f32 %v9412, %v9500
        %v9502 = vpop.f32.mrf.mxu0
        %v9503 = vadd.f32 %v9414, %v9502
        %9504 = vmatmul.bf16.gmra.mxu0 %v9340
        %v9505 = vpop.f32.mrf.mxu0
        %v9506 = vadd.f32 %v9417, %v9505
        %v9507 = vpop.f32.mrf.mxu0
        %v9508 = vadd.f32 %v9419, %v9507
        %9509 = vmatmul.bf16.gmra.mxu0 %v9343
        %v9510 = vpop.f32.mrf.mxu0
        %v9511 = vadd.f32 %v9422, %v9510
        %v9512 = vpop.f32.mrf.mxu0
        %v9513 = vadd.f32 %v9424, %v9512
        %9514 = vmatmul.bf16.gmra.mxu0 %v9346
        %v9515 = vpop.f32.mrf.mxu0
        %v9516 = vadd.f32 %v9427, %v9515
        %v9517 = vpop.f32.mrf.mxu0
        %v9518 = vadd.f32 %v9429, %v9517
        %9519 = vmatmul.bf16.gmra.mxu0 %v9349
        %v9520 = vpop.f32.mrf.mxu0
        %v9521 = vadd.f32 %v9432, %v9520
        %v9522 = vpop.f32.mrf.mxu0
        %v9523 = vadd.f32 %v9434, %v9522
        %9524 = vmatmul.bf16.gmra.mxu0 %v9352
        %v9525 = vpop.f32.mrf.mxu0
        %v9526 = vadd.f32 %v9437, %v9525
        %v9527 = vpop.f32.mrf.mxu0
        %v9528 = vadd.f32 %v9439, %v9527
        %9529 = vmatmul.bf16.gmra.mxu0 %v9355
        %v9530 = vpop.f32.mrf.mxu0
        %v9531 = vadd.f32 %v9442, %v9530
        %v9532 = vpop.f32.mrf.mxu0
        %v9533 = vadd.f32 %v9444, %v9532
        %9534 = vdwg.mxu0
        %v9535 = vld [vmem:[%s14] sm:$0x1]
        %v9537 = vperm.slane %v9535, 0
        %v9539 = vmul.f32 %v9456, %v9537
        %v9540 = vmul.f32 %v9458, %v9537
        %v9541 = vmul.f32 %v9461, %v9537
        %v9542 = vmul.f32 %v9463, %v9537
        %v9543 = vmul.f32 %v9466, %v9537
        %v9544 = vmul.f32 %v9468, %v9537
        %v9545 = vmul.f32 %v9471, %v9537
        %v9546 = vmul.f32 %v9473, %v9537
        %v9547 = vmul.f32 %v9476, %v9537
        %v9548 = vmul.f32 %v9478, %v9537
        %v9549 = vmul.f32 %v9481, %v9537
        %v9550 = vmul.f32 %v9483, %v9537
        %v9551 = vmul.f32 %v9486, %v9537
        %v9552 = vmul.f32 %v9488, %v9537
        %v9553 = vmul.f32 %v9491, %v9537
        %v9554 = vmul.f32 %v9493, %v9537
        %v9555 = vmul.f32 %v9496, %v9537
        %v9556 = vmul.f32 %v9498, %v9537
        %v9557 = vmul.f32 %v9501, %v9537
        %v9558 = vmul.f32 %v9503, %v9537
        %v9559 = vmul.f32 %v9506, %v9537
        %v9560 = vmul.f32 %v9508, %v9537
        %v9561 = vmul.f32 %v9511, %v9537
        %v9562 = vmul.f32 %v9513, %v9537
        %v9563 = vmul.f32 %v9516, %v9537
        %v9564 = vmul.f32 %v9518, %v9537
        %v9565 = vmul.f32 %v9521, %v9537
        %v9566 = vmul.f32 %v9523, %v9537
        %v9567 = vmul.f32 %v9526, %v9537
        %v9568 = vmul.f32 %v9528, %v9537
        %v9569 = vmul.f32 %v9531, %v9537
        %v9570 = vmul.f32 %v9533, %v9537
        %v9571 = vld [vmem:[%s15] sm:$0x1]
        %v9573 = vperm.slane %v9571, 0
        %v9575 = vadd.f32 %v9539, %v9573
        %v9576 = vadd.f32 %v9540, %v9573
        %v9577 = vadd.f32 %v9541, %v9573
        %v9578 = vadd.f32 %v9542, %v9573
        %v9579 = vadd.f32 %v9543, %v9573
        %v9580 = vadd.f32 %v9544, %v9573
        %v9581 = vadd.f32 %v9545, %v9573
        %v9582 = vadd.f32 %v9546, %v9573
        %v9583 = vadd.f32 %v9547, %v9573
        %v9584 = vadd.f32 %v9548, %v9573
        %v9585 = vadd.f32 %v9549, %v9573
        %v9586 = vadd.f32 %v9550, %v9573
        %v9587 = vadd.f32 %v9551, %v9573
        %v9588 = vadd.f32 %v9552, %v9573
        %v9589 = vadd.f32 %v9553, %v9573
        %v9590 = vadd.f32 %v9554, %v9573
        %v9591 = vadd.f32 %v9555, %v9573
        %v9592 = vadd.f32 %v9556, %v9573
        %v9593 = vadd.f32 %v9557, %v9573
        %v9594 = vadd.f32 %v9558, %v9573
        %v9595 = vadd.f32 %v9559, %v9573
        %v9596 = vadd.f32 %v9560, %v9573
        %v9597 = vadd.f32 %v9561, %v9573
        %v9598 = vadd.f32 %v9562, %v9573
        %v9599 = vadd.f32 %v9563, %v9573
        %v9600 = vadd.f32 %v9564, %v9573
        %v9601 = vadd.f32 %v9565, %v9573
        %v9602 = vadd.f32 %v9566, %v9573
        %v9603 = vadd.f32 %v9567, %v9573
        %v9604 = vadd.f32 %v9568, %v9573
        %v9605 = vadd.f32 %v9569, %v9573
        %v9606 = vadd.f32 %v9570, %v9573
        %v9607 = vmax.f32 %v9575, 0.0
        %v9608 = vmax.f32 %v9576, 0.0
        %v9609 = vmax.f32 %v9577, 0.0
        %v9610 = vmax.f32 %v9578, 0.0
        %v9611 = vmax.f32 %v9579, 0.0
        %v9612 = vmax.f32 %v9580, 0.0
        %v9613 = vmax.f32 %v9581, 0.0
        %v9614 = vmax.f32 %v9582, 0.0
        %v9615 = vmax.f32 %v9583, 0.0
        %v9616 = vmax.f32 %v9584, 0.0
        %v9617 = vmax.f32 %v9585, 0.0
        %v9618 = vmax.f32 %v9586, 0.0
        %v9619 = vmax.f32 %v9587, 0.0
        %v9620 = vmax.f32 %v9588, 0.0
        %v9621 = vmax.f32 %v9589, 0.0
        %v9622 = vmax.f32 %v9590, 0.0
        %v9623 = vmax.f32 %v9591, 0.0
        %v9624 = vmax.f32 %v9592, 0.0
        %v9625 = vmax.f32 %v9593, 0.0
        %v9626 = vmax.f32 %v9594, 0.0
        %v9627 = vmax.f32 %v9595, 0.0
        %v9628 = vmax.f32 %v9596, 0.0
        %v9629 = vmax.f32 %v9597, 0.0
        %v9630 = vmax.f32 %v9598, 0.0
        %v9631 = vmax.f32 %v9599, 0.0
        %v9632 = vmax.f32 %v9600, 0.0
        %v9633 = vmax.f32 %v9601, 0.0
        %v9634 = vmax.f32 %v9602, 0.0
        %v9635 = vmax.f32 %v9603, 0.0
        %v9636 = vmax.f32 %v9604, 0.0
        %v9637 = vmax.f32 %v9605, 0.0
        %v9638 = vmax.f32 %v9606, 0.0
        %9703 = vrot.lane.b32.xlu0 %v1386, 16
        %v9704 = vpop.permute.xlu0 %9703
        %9705 = vrot.lane.b32.xlu0 %v1387, 16
        %v9706 = vpop.permute.xlu0 %9705
        %9707 = vrot.lane.b32.xlu0 %v1388, 16
        %v9708 = vpop.permute.xlu0 %9707
        %9709 = vrot.lane.b32.xlu0 %v1389, 16
        %v9710 = vpop.permute.xlu0 %9709
        %9711 = vrot.lane.b32.xlu0 %v1390, 16
        %v9712 = vpop.permute.xlu0 %9711
        %9713 = vrot.lane.b32.xlu0 %v1391, 16
        %v9714 = vpop.permute.xlu0 %9713
        %9715 = vrot.lane.b32.xlu0 %v1392, 16
        %v9716 = vpop.permute.xlu0 %9715
        %9717 = vrot.lane.b32.xlu0 %v1393, 16
        %v9718 = vpop.permute.xlu0 %9717
        %9719 = vrot.lane.b32.xlu0 %v1394, 16
        %v9720 = vpop.permute.xlu0 %9719
        %9721 = vrot.lane.b32.xlu0 %v1395, 16
        %v9722 = vpop.permute.xlu0 %9721
        %9723 = vrot.lane.b32.xlu0 %v1396, 16
        %v9724 = vpop.permute.xlu0 %9723
        %9725 = vrot.lane.b32.xlu0 %v1397, 16
        %v9726 = vpop.permute.xlu0 %9725
        %9727 = vrot.lane.b32.xlu0 %v1398, 16
        %v9728 = vpop.permute.xlu0 %9727
        %9729 = vrot.lane.b32.xlu0 %v1399, 16
        %v9730 = vpop.permute.xlu0 %9729
        %9731 = vrot.lane.b32.xlu0 %v1400, 16
        %v9732 = vpop.permute.xlu0 %9731
        %9733 = vrot.lane.b32.xlu0 %v1401, 16
        %v9734 = vpop.permute.xlu0 %9733
        %9735 = vrot.lane.b32.xlu0 %v1402, 16
        %v9736 = vpop.permute.xlu0 %9735
        %9737 = vrot.lane.b32.xlu0 %v1403, 16
        %v9738 = vpop.permute.xlu0 %9737
        %9739 = vrot.lane.b32.xlu0 %v1404, 16
        %v9740 = vpop.permute.xlu0 %9739
        %9741 = vrot.lane.b32.xlu0 %v1405, 16
        %v9742 = vpop.permute.xlu0 %9741
        %9743 = vrot.lane.b32.xlu0 %v1406, 16
        %v9744 = vpop.permute.xlu0 %9743
        %9745 = vrot.lane.b32.xlu0 %v1407, 16
        %v9746 = vpop.permute.xlu0 %9745
        %9747 = vrot.lane.b32.xlu0 %v1408, 16
        %v9748 = vpop.permute.xlu0 %9747
        %9749 = vrot.lane.b32.xlu0 %v1409, 16
        %v9750 = vpop.permute.xlu0 %9749
        %9751 = vrot.lane.b32.xlu0 %v1410, 16
        %v9752 = vpop.permute.xlu0 %9751
        %9753 = vrot.lane.b32.xlu0 %v1411, 16
        %v9754 = vpop.permute.xlu0 %9753
        %9755 = vrot.lane.b32.xlu0 %v1412, 16
        %v9756 = vpop.permute.xlu0 %9755
        %9757 = vrot.lane.b32.xlu0 %v1413, 16
        %v9758 = vpop.permute.xlu0 %9757
        %9759 = vrot.lane.b32.xlu0 %v1414, 16
        %v9760 = vpop.permute.xlu0 %9759
        %9761 = vrot.lane.b32.xlu0 %v1415, 16
        %v9762 = vpop.permute.xlu0 %9761
        %9763 = vrot.lane.b32.xlu0 %v1416, 16
        %v9764 = vpop.permute.xlu0 %9763
        %9765 = vrot.lane.b32.xlu0 %v1417, 16
        %v9766 = vpop.permute.xlu0 %9765
        %9767 = vrot.lane.b32.xlu0 %v1418, 16
        %v9768 = vpop.permute.xlu0 %9767
        %9769 = vrot.lane.b32.xlu0 %v1419, 16
        %v9770 = vpop.permute.xlu0 %9769
        %9771 = vrot.lane.b32.xlu0 %v1420, 16
        %v9772 = vpop.permute.xlu0 %9771
        %9773 = vrot.lane.b32.xlu0 %v1421, 16
        %v9774 = vpop.permute.xlu0 %9773
        %9775 = vrot.lane.b32.xlu0 %v1422, 16
        %v9776 = vpop.permute.xlu0 %9775
        %9777 = vrot.lane.b32.xlu0 %v1423, 16
        %v9778 = vpop.permute.xlu0 %9777
        %9779 = vrot.lane.b32.xlu0 %v1424, 16
        %v9780 = vpop.permute.xlu0 %9779
        %9781 = vrot.lane.b32.xlu0 %v1425, 16
        %v9782 = vpop.permute.xlu0 %9781
        %9783 = vrot.lane.b32.xlu0 %v1426, 16
        %v9784 = vpop.permute.xlu0 %9783
        %9785 = vrot.lane.b32.xlu0 %v1427, 16
        %v9786 = vpop.permute.xlu0 %9785
        %9787 = vrot.lane.b32.xlu0 %v1428, 16
        %v9788 = vpop.permute.xlu0 %9787
        %9789 = vrot.lane.b32.xlu0 %v1429, 16
        %v9790 = vpop.permute.xlu0 %9789
        %9791 = vrot.lane.b32.xlu0 %v1430, 16
        %v9792 = vpop.permute.xlu0 %9791
        %9793 = vrot.lane.b32.xlu0 %v1431, 16
        %v9794 = vpop.permute.xlu0 %9793
        %9795 = vrot.lane.b32.xlu0 %v1432, 16
        %v9796 = vpop.permute.xlu0 %9795
        %9797 = vrot.lane.b32.xlu0 %v1433, 16
        %v9798 = vpop.permute.xlu0 %9797
        %9799 = vrot.lane.b32.xlu0 %v1434, 16
        %v9800 = vpop.permute.xlu0 %9799
        %9801 = vrot.lane.b32.xlu0 %v1435, 16
        %v9802 = vpop.permute.xlu0 %9801
        %9803 = vrot.lane.b32.xlu0 %v1436, 16
        %v9804 = vpop.permute.xlu0 %9803
        %9805 = vrot.lane.b32.xlu0 %v1437, 16
        %v9806 = vpop.permute.xlu0 %9805
        %9807 = vrot.lane.b32.xlu0 %v1438, 16
        %v9808 = vpop.permute.xlu0 %9807
        %9809 = vrot.lane.b32.xlu0 %v1439, 16
        %v9810 = vpop.permute.xlu0 %9809
        %9811 = vrot.lane.b32.xlu0 %v1440, 16
        %v9812 = vpop.permute.xlu0 %9811
        %9813 = vrot.lane.b32.xlu0 %v1441, 16
        %v9814 = vpop.permute.xlu0 %9813
        %9815 = vrot.lane.b32.xlu0 %v1442, 16
        %v9816 = vpop.permute.xlu0 %9815
        %9817 = vrot.lane.b32.xlu0 %v1443, 16
        %v9818 = vpop.permute.xlu0 %9817
        %9819 = vrot.lane.b32.xlu0 %v1444, 16
        %v9820 = vpop.permute.xlu0 %9819
        %9821 = vrot.lane.b32.xlu0 %v1445, 16
        %v9822 = vpop.permute.xlu0 %9821
        %9823 = vrot.lane.b32.xlu0 %v1446, 16
        %v9824 = vpop.permute.xlu0 %9823
        %9825 = vrot.lane.b32.xlu0 %v1447, 16
        %v9826 = vpop.permute.xlu0 %9825
        %9827 = vrot.lane.b32.xlu0 %v1448, 16
        %v9828 = vpop.permute.xlu0 %9827
        %9829 = vrot.lane.b32.xlu0 %v1449, 16
        %v9830 = vpop.permute.xlu0 %9829
        %v9831 = vsel %vm2335, %v9704, %v9706
        %v9832 = vsel %vm2335, %v9708, %v9710
        %v9833 = vsel %vm2335, %v9712, %v9714
        %v9834 = vsel %vm2335, %v9716, %v9718
        %v9835 = vsel %vm2335, %v9720, %v9722
        %v9836 = vsel %vm2335, %v9724, %v9726
        %v9837 = vsel %vm2335, %v9728, %v9730
        %v9838 = vsel %vm2335, %v9732, %v9734
        %v9839 = vsel %vm2335, %v9736, %v9738
        %v9840 = vsel %vm2335, %v9740, %v9742
        %v9841 = vsel %vm2335, %v9744, %v9746
        %v9842 = vsel %vm2335, %v9748, %v9750
        %v9843 = vsel %vm2335, %v9752, %v9754
        %v9844 = vsel %vm2335, %v9756, %v9758
        %v9845 = vsel %vm2335, %v9760, %v9762
        %v9846 = vsel %vm2335, %v9764, %v9766
        %v9847 = vsel %vm2335, %v9768, %v9770
        %v9848 = vsel %vm2335, %v9772, %v9774
        %v9849 = vsel %vm2335, %v9776, %v9778
        %v9850 = vsel %vm2335, %v9780, %v9782
        %v9851 = vsel %vm2335, %v9784, %v9786
        %v9852 = vsel %vm2335, %v9788, %v9790
        %v9853 = vsel %vm2335, %v9792, %v9794
        %v9854 = vsel %vm2335, %v9796, %v9798
        %v9855 = vsel %vm2335, %v9800, %v9802
        %v9856 = vsel %vm2335, %v9804, %v9806
        %v9857 = vsel %vm2335, %v9808, %v9810
        %v9858 = vsel %vm2335, %v9812, %v9814
        %v9859 = vsel %vm2335, %v9816, %v9818
        %v9860 = vsel %vm2335, %v9820, %v9822
        %v9861 = vsel %vm2335, %v9824, %v9826
        %v9862 = vsel %vm2335, %v9828, %v9830
        %9927 = vrot.lane.b32.xlu0 %v4101, 96
        %v9928 = vpop.permute.xlu0 %9927
        %9929 = vrot.lane.b32.xlu0 %v4102, 96
        %v9930 = vpop.permute.xlu0 %9929
        %9931 = vrot.lane.b32.xlu0 %v4103, 96
        %v9932 = vpop.permute.xlu0 %9931
        %9933 = vrot.lane.b32.xlu0 %v4104, 96
        %v9934 = vpop.permute.xlu0 %9933
        %9935 = vrot.lane.b32.xlu0 %v4105, 96
        %v9936 = vpop.permute.xlu0 %9935
        %9937 = vrot.lane.b32.xlu0 %v4106, 96
        %v9938 = vpop.permute.xlu0 %9937
        %9939 = vrot.lane.b32.xlu0 %v4107, 96
        %v9940 = vpop.permute.xlu0 %9939
        %9941 = vrot.lane.b32.xlu0 %v4108, 96
        %v9942 = vpop.permute.xlu0 %9941
        %9943 = vrot.lane.b32.xlu0 %v4109, 96
        %v9944 = vpop.permute.xlu0 %9943
        %9945 = vrot.lane.b32.xlu0 %v4110, 96
        %v9946 = vpop.permute.xlu0 %9945
        %9947 = vrot.lane.b32.xlu0 %v4111, 96
        %v9948 = vpop.permute.xlu0 %9947
        %9949 = vrot.lane.b32.xlu0 %v4112, 96
        %v9950 = vpop.permute.xlu0 %9949
        %9951 = vrot.lane.b32.xlu0 %v4113, 96
        %v9952 = vpop.permute.xlu0 %9951
        %9953 = vrot.lane.b32.xlu0 %v4114, 96
        %v9954 = vpop.permute.xlu0 %9953
        %9955 = vrot.lane.b32.xlu0 %v4115, 96
        %v9956 = vpop.permute.xlu0 %9955
        %9957 = vrot.lane.b32.xlu0 %v4116, 96
        %v9958 = vpop.permute.xlu0 %9957
        %9959 = vrot.lane.b32.xlu0 %v4117, 96
        %v9960 = vpop.permute.xlu0 %9959
        %9961 = vrot.lane.b32.xlu0 %v4118, 96
        %v9962 = vpop.permute.xlu0 %9961
        %9963 = vrot.lane.b32.xlu0 %v4119, 96
        %v9964 = vpop.permute.xlu0 %9963
        %9965 = vrot.lane.b32.xlu0 %v4120, 96
        %v9966 = vpop.permute.xlu0 %9965
        %9967 = vrot.lane.b32.xlu0 %v4121, 96
        %v9968 = vpop.permute.xlu0 %9967
        %9969 = vrot.lane.b32.xlu0 %v4122, 96
        %v9970 = vpop.permute.xlu0 %9969
        %9971 = vrot.lane.b32.xlu0 %v4123, 96
        %v9972 = vpop.permute.xlu0 %9971
        %9973 = vrot.lane.b32.xlu0 %v4124, 96
        %v9974 = vpop.permute.xlu0 %9973
        %9975 = vrot.lane.b32.xlu0 %v4125, 96
        %v9976 = vpop.permute.xlu0 %9975
        %9977 = vrot.lane.b32.xlu0 %v4126, 96
        %v9978 = vpop.permute.xlu0 %9977
        %9979 = vrot.lane.b32.xlu0 %v4127, 96
        %v9980 = vpop.permute.xlu0 %9979
        %9981 = vrot.lane.b32.xlu0 %v4128, 96
        %v9982 = vpop.permute.xlu0 %9981
        %9983 = vrot.lane.b32.xlu0 %v4129, 96
        %v9984 = vpop.permute.xlu0 %9983
        %9985 = vrot.lane.b32.xlu0 %v4130, 96
        %v9986 = vpop.permute.xlu0 %9985
        %9987 = vrot.lane.b32.xlu0 %v4131, 96
        %v9988 = vpop.permute.xlu0 %9987
        %9989 = vrot.lane.b32.xlu0 %v4132, 96
        %v9990 = vpop.permute.xlu0 %9989
        %10055 = vrot.lane.b32.xlu0 %v7784, 32
        %v10056 = vpop.permute.xlu0 %10055
        %10057 = vrot.lane.b32.xlu0 %v7785, 32
        %v10058 = vpop.permute.xlu0 %10057
        %10059 = vrot.lane.b32.xlu0 %v7786, 32
        %v10060 = vpop.permute.xlu0 %10059
        %10061 = vrot.lane.b32.xlu0 %v7787, 32
        %v10062 = vpop.permute.xlu0 %10061
        %10063 = vrot.lane.b32.xlu0 %v7788, 32
        %v10064 = vpop.permute.xlu0 %10063
        %10065 = vrot.lane.b32.xlu0 %v7789, 32
        %v10066 = vpop.permute.xlu0 %10065
        %10067 = vrot.lane.b32.xlu0 %v7790, 32
        %v10068 = vpop.permute.xlu0 %10067
        %10069 = vrot.lane.b32.xlu0 %v7791, 32
        %v10070 = vpop.permute.xlu0 %10069
        %10071 = vrot.lane.b32.xlu0 %v7792, 32
        %v10072 = vpop.permute.xlu0 %10071
        %10073 = vrot.lane.b32.xlu0 %v7793, 32
        %v10074 = vpop.permute.xlu0 %10073
        %10075 = vrot.lane.b32.xlu0 %v7794, 32
        %v10076 = vpop.permute.xlu0 %10075
        %10077 = vrot.lane.b32.xlu0 %v7795, 32
        %v10078 = vpop.permute.xlu0 %10077
        %10079 = vrot.lane.b32.xlu0 %v7796, 32
        %v10080 = vpop.permute.xlu0 %10079
        %10081 = vrot.lane.b32.xlu0 %v7797, 32
        %v10082 = vpop.permute.xlu0 %10081
        %10083 = vrot.lane.b32.xlu0 %v7798, 32
        %v10084 = vpop.permute.xlu0 %10083
        %10085 = vrot.lane.b32.xlu0 %v7799, 32
        %v10086 = vpop.permute.xlu0 %10085
        %10087 = vrot.lane.b32.xlu0 %v7800, 32
        %v10088 = vpop.permute.xlu0 %10087
        %10089 = vrot.lane.b32.xlu0 %v7801, 32
        %v10090 = vpop.permute.xlu0 %10089
        %10091 = vrot.lane.b32.xlu0 %v7802, 32
        %v10092 = vpop.permute.xlu0 %10091
        %10093 = vrot.lane.b32.xlu0 %v7803, 32
        %v10094 = vpop.permute.xlu0 %10093
        %10095 = vrot.lane.b32.xlu0 %v7804, 32
        %v10096 = vpop.permute.xlu0 %10095
        %10097 = vrot.lane.b32.xlu0 %v7805, 32
        %v10098 = vpop.permute.xlu0 %10097
        %10099 = vrot.lane.b32.xlu0 %v7806, 32
        %v10100 = vpop.permute.xlu0 %10099
        %10101 = vrot.lane.b32.xlu0 %v7807, 32
        %v10102 = vpop.permute.xlu0 %10101
        %10103 = vrot.lane.b32.xlu0 %v7808, 32
        %v10104 = vpop.permute.xlu0 %10103
        %10105 = vrot.lane.b32.xlu0 %v7809, 32
        %v10106 = vpop.permute.xlu0 %10105
        %10107 = vrot.lane.b32.xlu0 %v7810, 32
        %v10108 = vpop.permute.xlu0 %10107
        %10109 = vrot.lane.b32.xlu0 %v7811, 32
        %v10110 = vpop.permute.xlu0 %10109
        %10111 = vrot.lane.b32.xlu0 %v7812, 32
        %v10112 = vpop.permute.xlu0 %10111
        %10113 = vrot.lane.b32.xlu0 %v7813, 32
        %v10114 = vpop.permute.xlu0 %10113
        %10115 = vrot.lane.b32.xlu0 %v7814, 32
        %v10116 = vpop.permute.xlu0 %10115
        %10117 = vrot.lane.b32.xlu0 %v7815, 32
        %v10118 = vpop.permute.xlu0 %10117
        %v10151 = vsel %vm2283, %v9831, %v9928
        %v10152 = vsel %vm2283, %v9832, %v9930
        %v10153 = vsel %vm2283, %v9833, %v9932
        %v10154 = vsel %vm2283, %v9834, %v9934
        %v10155 = vsel %vm2283, %v9835, %v9936
        %v10156 = vsel %vm2283, %v9836, %v9938
        %v10157 = vsel %vm2283, %v9837, %v9940
        %v10158 = vsel %vm2283, %v9838, %v9942
        %v10159 = vsel %vm2283, %v9839, %v9944
        %v10160 = vsel %vm2283, %v9840, %v9946
        %v10161 = vsel %vm2283, %v9841, %v9948
        %v10162 = vsel %vm2283, %v9842, %v9950
        %v10163 = vsel %vm2283, %v9843, %v9952
        %v10164 = vsel %vm2283, %v9844, %v9954
        %v10165 = vsel %vm2283, %v9845, %v9956
        %v10166 = vsel %vm2283, %v9846, %v9958
        %v10167 = vsel %vm2283, %v9847, %v9960
        %v10168 = vsel %vm2283, %v9848, %v9962
        %v10169 = vsel %vm2283, %v9849, %v9964
        %v10170 = vsel %vm2283, %v9850, %v9966
        %v10171 = vsel %vm2283, %v9851, %v9968
        %v10172 = vsel %vm2283, %v9852, %v9970
        %v10173 = vsel %vm2283, %v9853, %v9972
        %v10174 = vsel %vm2283, %v9854, %v9974
        %v10175 = vsel %vm2283, %v9855, %v9976
        %v10176 = vsel %vm2283, %v9856, %v9978
        %v10177 = vsel %vm2283, %v9857, %v9980
        %v10178 = vsel %vm2283, %v9858, %v9982
        %v10179 = vsel %vm2283, %v9859, %v9984
        %v10180 = vsel %vm2283, %v9860, %v9986
        %v10181 = vsel %vm2283, %v9861, %v9988
        %v10182 = vsel %vm2283, %v9862, %v9990
        %v10183 = vsel %vm6591, %v9928, %v10056
        %v10184 = vsel %vm6591, %v9930, %v10058
        %v10185 = vsel %vm6591, %v9932, %v10060
        %v10186 = vsel %vm6591, %v9934, %v10062
        %v10187 = vsel %vm6591, %v9936, %v10064
        %v10188 = vsel %vm6591, %v9938, %v10066
        %v10189 = vsel %vm6591, %v9940, %v10068
        %v10190 = vsel %vm6591, %v9942, %v10070
        %v10191 = vsel %vm6591, %v9944, %v10072
        %v10192 = vsel %vm6591, %v9946, %v10074
        %v10193 = vsel %vm6591, %v9948, %v10076
        %v10194 = vsel %vm6591, %v9950, %v10078
        %v10195 = vsel %vm6591, %v9952, %v10080
        %v10196 = vsel %vm6591, %v9954, %v10082
        %v10197 = vsel %vm6591, %v9956, %v10084
        %v10198 = vsel %vm6591, %v9958, %v10086
        %v10199 = vsel %vm6591, %v9960, %v10088
        %v10200 = vsel %vm6591, %v9962, %v10090
        %v10201 = vsel %vm6591, %v9964, %v10092
        %v10202 = vsel %vm6591, %v9966, %v10094
        %v10203 = vsel %vm6591, %v9968, %v10096
        %v10204 = vsel %vm6591, %v9970, %v10098
        %v10205 = vsel %vm6591, %v9972, %v10100
        %v10206 = vsel %vm6591, %v9974, %v10102
        %v10207 = vsel %vm6591, %v9976, %v10104
        %v10208 = vsel %vm6591, %v9978, %v10106
        %v10209 = vsel %vm6591, %v9980, %v10108
        %v10210 = vsel %vm6591, %v9982, %v10110
        %v10211 = vsel %vm6591, %v9984, %v10112
        %v10212 = vsel %vm6591, %v9986, %v10114
        %v10213 = vsel %vm6591, %v9988, %v10116
        %v10214 = vsel %vm6591, %v9990, %v10118
        %10215 = vst [vmem:[%s514] sm:$0xff] %v10151
        %10216 = vst [vmem:[%s514 + $0x8] sm:$0xff] %v10183
        %10217 = vst.msk [vmem:[%s514 + $0x10] sm:$0xff] %vm841, %v9607
        %10218 = vst [vmem:[%s514 + $0x18] sm:$0xff] %v10152
        %10219 = vst [vmem:[%s514 + $0x20] sm:$0xff] %v10184
        %10220 = vst.msk [vmem:[%s514 + $0x28] sm:$0xff] %vm841, %v9608
        %10221 = vst [vmem:[%s514 + $0x30] sm:$0xff] %v10153
        %10222 = vst [vmem:[%s514 + $0x38] sm:$0xff] %v10185
        %10223 = vst.msk [vmem:[%s514 + $0x40] sm:$0xff] %vm841, %v9609
        %10224 = vst [vmem:[%s514 + $0x48] sm:$0xff] %v10154
        %10225 = vst [vmem:[%s514 + $0x50] sm:$0xff] %v10186
        %10226 = vst.msk [vmem:[%s514 + $0x58] sm:$0xff] %vm841, %v9610
        %10227 = vst [vmem:[%s514 + $0x60] sm:$0xff] %v10155
        %10228 = vst [vmem:[%s514 + $0x68] sm:$0xff] %v10187
        %10229 = vst.msk [vmem:[%s514 + $0x70] sm:$0xff] %vm841, %v9611
        %10230 = vst [vmem:[%s514 + $0x78] sm:$0xff] %v10156
        %10231 = vst [vmem:[%s514 + $0x80] sm:$0xff] %v10188
        %10232 = vst.msk [vmem:[%s514 + $0x88] sm:$0xff] %vm841, %v9612
        %10233 = vst [vmem:[%s514 + $0x90] sm:$0xff] %v10157
        %10234 = vst [vmem:[%s514 + $0x98] sm:$0xff] %v10189
        %10235 = vst.msk [vmem:[%s514 + $0xa0] sm:$0xff] %vm841, %v9613
        %10236 = vst [vmem:[%s514 + $0xa8] sm:$0xff] %v10158
        %10237 = vst [vmem:[%s514 + $0xb0] sm:$0xff] %v10190
        %10238 = vst.msk [vmem:[%s514 + $0xb8] sm:$0xff] %vm841, %v9614
        %10239 = vst [vmem:[%s514 + $0xc0] sm:$0xff] %v10159
        %10240 = vst [vmem:[%s514 + $0xc8] sm:$0xff] %v10191
        %10241 = vst.msk [vmem:[%s514 + $0xd0] sm:$0xff] %vm841, %v9615
        %10242 = vst [vmem:[%s514 + $0xd8] sm:$0xff] %v10160
        %10243 = vst [vmem:[%s514 + $0xe0] sm:$0xff] %v10192
        %10244 = vst.msk [vmem:[%s514 + $0xe8] sm:$0xff] %vm841, %v9616
        %10245 = vst [vmem:[%s514 + $0xf0] sm:$0xff] %v10161
        %10246 = vst [vmem:[%s514 + $0xf8] sm:$0xff] %v10193
        %10247 = vst.msk [vmem:[%s514 + $0x100] sm:$0xff] %vm841, %v9617
        %10248 = vst [vmem:[%s514 + $0x108] sm:$0xff] %v10162
        %10249 = vst [vmem:[%s514 + $0x110] sm:$0xff] %v10194
        %10250 = vst.msk [vmem:[%s514 + $0x118] sm:$0xff] %vm841, %v9618
        %10251 = vst [vmem:[%s514 + $0x120] sm:$0xff] %v10163
        %10252 = vst [vmem:[%s514 + $0x128] sm:$0xff] %v10195
        %10253 = vst.msk [vmem:[%s514 + $0x130] sm:$0xff] %vm841, %v9619
        %10254 = vst [vmem:[%s514 + $0x138] sm:$0xff] %v10164
        %10255 = vst [vmem:[%s514 + $0x140] sm:$0xff] %v10196
        %10256 = vst.msk [vmem:[%s514 + $0x148] sm:$0xff] %vm841, %v9620
        %10257 = vst [vmem:[%s514 + $0x150] sm:$0xff] %v10165
        %10258 = vst [vmem:[%s514 + $0x158] sm:$0xff] %v10197
        %10259 = vst.msk [vmem:[%s514 + $0x160] sm:$0xff] %vm841, %v9621
        %10260 = vst [vmem:[%s514 + $0x168] sm:$0xff] %v10166
        %10261 = vst [vmem:[%s514 + $0x170] sm:$0xff] %v10198
        %10262 = vst.msk [vmem:[%s514 + $0x178] sm:$0xff] %vm841, %v9622
        %10263 = vst [vmem:[%s514 + $0x180] sm:$0xff] %v10167
        %10264 = vst [vmem:[%s514 + $0x188] sm:$0xff] %v10199
        %10265 = vst.msk [vmem:[%s514 + $0x190] sm:$0xff] %vm841, %v9623
        %10266 = vst [vmem:[%s514 + $0x198] sm:$0xff] %v10168
        %10267 = vst [vmem:[%s514 + $0x1a0] sm:$0xff] %v10200
        %10268 = vst.msk [vmem:[%s514 + $0x1a8] sm:$0xff] %vm841, %v9624
        %10269 = vst [vmem:[%s514 + $0x1b0] sm:$0xff] %v10169
        %10270 = vst [vmem:[%s514 + $0x1b8] sm:$0xff] %v10201
        %10271 = vst.msk [vmem:[%s514 + $0x1c0] sm:$0xff] %vm841, %v9625
        %10272 = vst [vmem:[%s514 + $0x1c8] sm:$0xff] %v10170
        %10273 = vst [vmem:[%s514 + $0x1d0] sm:$0xff] %v10202
        %10274 = vst.msk [vmem:[%s514 + $0x1d8] sm:$0xff] %vm841, %v9626
        %10275 = vst [vmem:[%s514 + $0x1e0] sm:$0xff] %v10171
        %10276 = vst [vmem:[%s514 + $0x1e8] sm:$0xff] %v10203
        %10277 = vst.msk [vmem:[%s514 + $0x1f0] sm:$0xff] %vm841, %v9627
        %10278 = vst [vmem:[%s514 + $0x1f8] sm:$0xff] %v10172
        %10279 = vst [vmem:[%s514 + $0x200] sm:$0xff] %v10204
        %10280 = vst.msk [vmem:[%s514 + $0x208] sm:$0xff] %vm841, %v9628
        %10281 = vst [vmem:[%s514 + $0x210] sm:$0xff] %v10173
        %10282 = vst [vmem:[%s514 + $0x218] sm:$0xff] %v10205
        %10283 = vst.msk [vmem:[%s514 + $0x220] sm:$0xff] %vm841, %v9629
        %10284 = vst [vmem:[%s514 + $0x228] sm:$0xff] %v10174
        %10285 = vst [vmem:[%s514 + $0x230] sm:$0xff] %v10206
        %10286 = vst.msk [vmem:[%s514 + $0x238] sm:$0xff] %vm841, %v9630
        %10287 = vst [vmem:[%s514 + $0x240] sm:$0xff] %v10175
        %10288 = vst [vmem:[%s514 + $0x248] sm:$0xff] %v10207
        %10289 = vst.msk [vmem:[%s514 + $0x250] sm:$0xff] %vm841, %v9631
        %10290 = vst [vmem:[%s514 + $0x258] sm:$0xff] %v10176
        %10291 = vst [vmem:[%s514 + $0x260] sm:$0xff] %v10208
        %10292 = vst.msk [vmem:[%s514 + $0x268] sm:$0xff] %vm841, %v9632
        %10293 = vst [vmem:[%s514 + $0x270] sm:$0xff] %v10177
        %10294 = vst [vmem:[%s514 + $0x278] sm:$0xff] %v10209
        %10295 = vst.msk [vmem:[%s514 + $0x280] sm:$0xff] %vm841, %v9633
        %10296 = vst [vmem:[%s514 + $0x288] sm:$0xff] %v10178
        %10297 = vst [vmem:[%s514 + $0x290] sm:$0xff] %v10210
        %10298 = vst.msk [vmem:[%s514 + $0x298] sm:$0xff] %vm841, %v9634
        %10299 = vst [vmem:[%s514 + $0x2a0] sm:$0xff] %v10179
        %10300 = vst [vmem:[%s514 + $0x2a8] sm:$0xff] %v10211
        %10301 = vst.msk [vmem:[%s514 + $0x2b0] sm:$0xff] %vm841, %v9635
        %10302 = vst [vmem:[%s514 + $0x2b8] sm:$0xff] %v10180
        %10303 = vst [vmem:[%s514 + $0x2c0] sm:$0xff] %v10212
        %10304 = vst.msk [vmem:[%s514 + $0x2c8] sm:$0xff] %vm841, %v9636
        %10305 = vst [vmem:[%s514 + $0x2d0] sm:$0xff] %v10181
        %10306 = vst [vmem:[%s514 + $0x2d8] sm:$0xff] %v10213
        %10307 = vst.msk [vmem:[%s514 + $0x2e0] sm:$0xff] %vm841, %v9637
        %10308 = vst [vmem:[%s514 + $0x2e8] sm:$0xff] %v10182
        %10309 = vst [vmem:[%s514 + $0x2f0] sm:$0xff] %v10214
        %10310 = vst.msk [vmem:[%s514 + $0x2f8] sm:$0xff] %vm841, %v9638
        %s10311 = sand.u32 %s379, 1
        %s10312 = scalar_lea.sflag [#allocation3], %s10311
        %s10313 = sand.u32 %s379, 1
        %s10314 = smul.addr %s10313, 768
        %s10315 = scalar_lea.vmem [#allocation2], %s10314
        // Predicated region
        $region85: #{mixed_5b_forward.1} parent=83 // pred_check
          %p10316 = pneg %p389
        $region86: #{mixed_5b_forward.1} parent=83 // pred_check_branch
          %10318 = sbr.rel (%p10316) target = $region88
        $region87: #{mixed_5b_forward.1} parent=83 // pred_region
          %10320 = vsyncadd %s10312, 0
          %s10321 = smul.addr %s30, 96
          %s10322 = smul.addr %s10321, 8
          %s10323 = scalar_lea.hbm %s16, %s10322
          %s10324 = sshll.u32 %s10315, 4
          %s10325 = int_to_ptr.vmem [resolvable:$true] %s10324
          %s10326 = sshll.u32 %s10323, 4
          %s10327 = int_to_ptr.hbm [resolvable:$true] %s10326
          %10332 = dma.vmem_to_hbm [thread:$0]  %s10325, 12288, %s10327, %s10312, 384, 384, 24
        $region88: #{mixed_5b_forward.1} parent=83 // pred_fallthru
          _
      $region84: #{mixed_5b_forward.1} parent=5 // pred_fallthru
        _
      %p10333 = scmp.le.s32.totalorder 2, %s25
      // Predicated region
      $region89: #{mixed_5b_forward.1} parent=5 // pred_check
        %p10334 = pneg %p10333
      $region90: #{mixed_5b_forward.1} parent=5 // pred_check_branch
        %10336 = sbr.rel (%p10334) target = $region92
      $region91: #{mixed_5b_forward.1} parent=5 // pred_region
        %s10337 = ssub.s32 %s25, 2
        // Predicated region
        $region93: #{mixed_5b_forward.1} parent=91 // pred_check
          %p10338 = pneg %p395
        $region94: #{mixed_5b_forward.1} parent=91 // pred_check_branch
          %10340 = sbr.rel (%p10338) target = $region96
        $region95: #{mixed_5b_forward.1} parent=91 // pred_region
          %s10341 = sand.u32 %s380, 1
          %s10342 = scalar_lea.sflag [#allocation3], %s10341
          %s10343 = sand.u32 %s380, 1
          %s10344 = smul.addr %s10343, 768
          %s10345 = scalar_lea.vmem [#allocation2], %s10344
          %10347 = dma.done %s10342, 12288
        $region96: #{mixed_5b_forward.1} parent=91 // pred_fallthru
          _
      $region92: #{mixed_5b_forward.1} parent=5 // pred_fallthru
        _
    $region6: #{mixed_5b_forward.1} parent=1 // loop_footer
      %s29 = sadd.s32 1, %s25
    $region7: #{mixed_5b_forward.1} parent=1 // loop_footer_branch
      %24 = sbr.rel target = $region3
    $region8: #{mixed_5b_forward.1} parent=1 // loop_exit
      _
    %10348 = vsyncpa [#allocation3], 1
    %s10349 = scalar_lea.sflag [#allocation3], 1
    %10350 = vsyncpa %s10349, 1

</llo_original>
